<compile_context>
chip_gen: v7x
topology: tpu7x:2x2x1
jax: 0.10.0
libtpu: 0.0.40
codegen_flags: <defaults>
</compile_context>

<pallas_src>
import functools
import math

import jax
import jax.numpy as jnp
import numpy as np
from jax.experimental import pallas as pl
from jax.experimental.pallas import tpu as pltpu

LEAK = 0.01          # nn.LeakyReLU() default negative_slope
BN_EPS = 1e-5        # nn.BatchNorm2d default eps
_HI = jax.lax.Precision.HIGHEST   # reference only


def _leaky(v):
    return jnp.where(v > 0, v, LEAK * v)


def fold_bn(bn):
    """Eval-mode BatchNorm2d -> per-channel (scale, shift), numpy."""
    gamma, beta, rmean, rvar = (np.asarray(a, np.float32) for a in bn)
    scale = gamma / np.sqrt(rvar + BN_EPS)
    return scale, beta - rmean * scale


# ----------------------------------------------------------------------------
# Fused kernel: one batch tile (b_tile examples) per grid step.
# ----------------------------------------------------------------------------
def _tsception_kernel(x_ref, toepT_ref, bdwT_ref, bsc_ref, pcatT_ref, pool2T_ref,
                      wfbdT_ref, bf_ref, w1bdT_ref, b1_ref, w2bdT_ref, b2_ref,
                      o_ref, *, num_t, tu_pad, t4_used):
    x = x_ref[0]                                   # (T+1, R) bf16, last row = ones (bias)

    # (1) All three Tception temporal convs as ONE Toeplitz MXU matmul + LeakyReLU.
    #     Rows = (filter, branch, time); lanes = (example-in-tile, electrode).
    y = jnp.dot(toepT_ref[...], x, preferred_element_type=jnp.float32)
    y = _leaky(y).astype(jnp.bfloat16)             # (num_t * tu_pad, R)

    # (2) Sception1+2 with BN_t and the even/odd channel-difference folded into a
    #     block-diagonal (over examples) weight; AvgPool(1,8) pulled out as pcatT.
    #     Row slices are 128-aligned (tu_pad % 128 == 0) - no narrow slicing/concat.
    acc = jnp.dot(y[0:tu_pad, :], bdwT_ref[0], preferred_element_type=jnp.float32)
    for f in range(1, num_t):
        acc = acc + jnp.dot(y[f * tu_pad:(f + 1) * tu_pad, :], bdwT_ref[f],
                            preferred_element_type=jnp.float32)          # (tu_pad, bt*2S)
    s = jnp.dot(pcatT_ref[...], acc, preferred_element_type=jnp.float32) + bsc_ref[...]
    s = _leaky(s)                                                          # (Tcat, bt*2S)
    s2 = jnp.dot(pool2T_ref[...], s, preferred_element_type=jnp.float32)  # (T2, bt*2S)

    # (3) Fusion conv (2,1) with BN_s folded, LeakyReLU.
    fz = jnp.dot(s2, wfbdT_ref[...], preferred_element_type=jnp.float32) + bf_ref[...]
    fz = _leaky(fz)                                                        # (T2, bt*S)

    # (4) AvgPool(1,4) + BN_fusion (folded into fc1) + temporal mean == one mean,
    #     no transpose (time is already the sublane/reduction axis).
    feat = jnp.mean(fz[0:t4_used, :], axis=0, keepdims=True)              # (1, bt*S)

    # (5) MLP head, block-diagonal over the tile -> one lane-dense output row per step.
    h = jnp.maximum(
        jnp.dot(feat, w1bdT_ref[...], preferred_element_type=jnp.float32) + b1_ref[...],
        0.0)                                                               # (1, bt*H)
    o_ref[0] = jnp.dot(h, w2bdT_ref[...],
                       preferred_element_type=jnp.float32) + b2_ref[...]  # (1, bt*NCp)


def _zero_map(nd):
    return lambda i: (0,) * nd


# ----------------------------------------------------------------------------
# One-time parameter folding (Toeplitz, pooling matrices, BN folds, block-diag tiles).
# ----------------------------------------------------------------------------
def tsception_prepare(p, cfg, C, T, b_tile):
    F, S = cfg["num_T"], cfg["num_S"]
    kernels = cfg["kernels"]
    H = int(np.asarray(p["w_fc1"]).shape[0])
    NC = int(np.asarray(p["w_fc2"]).shape[0])
    pool_t = 8

    sc_t, sh_t = fold_bn(p["bn_t"])
    sc_s, sh_s = fold_bn(p["bn_s"])
    sc_f, sh_f = fold_bn(p["bn_f"])

    tps, tus, offs = [], [], []
    off = 0
    for k in kernels:
        tp = (T - k + 1) // pool_t
        tps.append(tp)
        tus.append(tp * pool_t)
        offs.append(off)
        off += tp * pool_t
    Tu = off
    tu_pad = ((Tu + 127) // 128) * 128
    Tcat = sum(tps)
    T2 = Tcat // 2
    t4_used = (T2 // 4) * 4

    wt = [np.asarray(p["wt1"], np.float32), np.asarray(p["wt2"], np.float32),
          np.asarray(p["wt3"], np.float32)]
    bt = [np.asarray(p["bt1"], np.float32), np.asarray(p["bt2"], np.float32),
          np.asarray(p["bt3"], np.float32)]

    # Transposed Toeplitz weight: rows = (filter, branch, time), cols = input time; one
    # extra trailing column carries the conv bias (x gets an appended ones-row).
    toepT = np.zeros((F * tu_pad, T + 1), np.float32)
    for b, k in enumerate(kernels):
        tu, o0 = tus[b], offs[b]
        t_idx = np.arange(tu)
        j_idx = np.arange(k)
        f_idx = np.arange(F)
        rows = (f_idx[:, None, None] * tu_pad + o0 + t_idx[None, :, None]
                + np.zeros((1, 1, k), np.int64))
        cols = np.broadcast_to((t_idx[:, None] + j_idx[None, :])[None], rows.shape)
        vals = np.broadcast_to(wt[b][:, None, :], rows.shape)
        toepT[rows.reshape(-1), cols.reshape(-1)] = vals.reshape(-1)
        brow = (f_idx[:, None] * tu_pad + o0 + t_idx[None, :]).reshape(-1)
        toepT[brow, T] = np.repeat(bt[b], tu)

    # Combined Sception1/2 weight with BN_t folded (scale->weight, shift->bias) and the
    # Sception2 even-odd difference folded via +/- signs.
    ws1 = np.asarray(p["ws1"], np.float32)[..., 0]          # (S, F, C)
    ws2 = np.asarray(p["ws2"], np.float32)[..., 0]          # (S, F, C//2)
    w2e = np.zeros((S, F, C), np.float32)
    w2e[:, :, 0::2] = ws2
    w2e[:, :, 1::2] = -ws2
    w_raw = np.concatenate([ws1, w2e], axis=0)              # (2S, F, C)
    w_eff = w_raw * sc_t[None, :, None]
    b_eff = (np.concatenate([np.asarray(p["bs1"], np.float32),
                             np.asarray(p["bs2"], np.float32)])
             + np.sum(w_raw * sh_t[None, :, None], axis=(1, 2)))         # (2S,)

    bdwT = np.zeros((F, b_tile * C, b_tile * 2 * S), np.float32)
    blk = np.transpose(w_eff, (1, 2, 0))                    # (F, C, 2S)
    for e in range(b_tile):
        bdwT[:, e * C:(e + 1) * C, e * 2 * S:(e + 1) * 2 * S] = blk
    bsc = np.tile(b_eff, b_tile)[None, :]                   # (1, bt*2S)

    # AvgPool(1,8) (pulled through the Sception conv) and AvgPool(1,2), transposed.
    pcatT = np.zeros((Tcat, tu_pad), np.float32)
    cat0 = 0
    for b in range(3):
        for q in range(tps[b]):
            pcatT[cat0 + q, offs[b] + 8 * q: offs[b] + 8 * q + 8] = 1.0 / 8.0
        cat0 += tps[b]
    pool2T = np.zeros((T2, Tcat), np.float32)
    for q in range(T2):
        pool2T[q, 2 * q: 2 * q + 2] = 0.5

    # Fusion conv (2,1) == (S, 2S) matmul with BN_s folded, block-diag over the tile.
    wf_raw = np.transpose(np.asarray(p["wf"], np.float32)[..., 0],
                          (0, 2, 1)).reshape(S, 2 * S)
    sc2 = np.concatenate([sc_s, sc_s])
    sh2 = np.concatenate([sh_s, sh_s])
    wf_eff = wf_raw * sc2[None, :]
    bf_eff = np.asarray(p["bf"], np.float32) + wf_raw @ sh2
    wfbdT = np.zeros((b_tile * 2 * S, b_tile * S), np.float32)
    for e in range(b_tile):
        wfbdT[e * 2 * S:(e + 1) * 2 * S, e * S:(e + 1) * S] = wf_eff.T
    bf_row = np.tile(bf_eff, b_tile)[None, :]

    # Head with BN_fusion folded into fc1; classes padded so the output store is
    # lane-dense (b_tile * ncp >= 128 lanes when possible).
    ncp = ((NC + 7) // 8) * 8
    ncp = max(ncp, ((math.ceil(128 / b_tile) + 7) // 8) * 8)
    w_fc1 = np.asarray(p["w_fc1"], np.float32)
    b_fc1 = np.asarray(p["b_fc1"], np.float32)
    w_fc2 = np.asarray(p["w_fc2"], np.float32)
    b_fc2 = np.asarray(p["b_fc2"], np.float32)
    w1_eff = (w_fc1 * sc_f[None, :]).T                      # (S, H)
    b1_eff = b_fc1 + w_fc1 @ sh_f                           # (H,)
    w2_eff = np.zeros((H, ncp), np.float32)
    w2_eff[:, :NC] = w_fc2.T
    b2_eff = np.zeros((ncp,), np.float32)
    b2_eff[:NC] = b_fc2
    w1bdT = np.zeros((b_tile * S, b_tile * H), np.float32)
    w2bdT = np.zeros((b_tile * H, b_tile * ncp), np.float32)
    for e in range(b_tile):
        w1bdT[e * S:(e + 1) * S, e * H:(e + 1) * H] = w1_eff
        w2bdT[e * H:(e + 1) * H, e * ncp:(e + 1) * ncp] = w2_eff
    b1_row = np.tile(b1_eff, b_tile)[None, :]
    b2_row = np.tile(b2_eff, b_tile)[None, :]

    return dict(
        toepT=jnp.asarray(toepT, jnp.bfloat16),
        bdwT=jnp.asarray(bdwT, jnp.bfloat16),
        bsc=jnp.asarray(bsc), pcatT=jnp.asarray(pcatT), pool2T=jnp.asarray(pool2T),
        wfbdT=jnp.asarray(wfbdT), bf=jnp.asarray(bf_row),
        w1bdT=jnp.asarray(w1bdT), b1=jnp.asarray(b1_row),
        w2bdT=jnp.asarray(w2bdT), b2=jnp.asarray(b2_row),
        num_t=F, num_s=S, num_classes=NC, ncp=int(ncp), b_tile=int(b_tile),
        tu_pad=int(tu_pad), t4_used=int(t4_used),
    )


def tsception_forward(x, fp):
    """Single fused pallas_call over batch tiles (grid=(ceil(B / b_tile),))."""
    B, C, T = x.shape
    bt = fp["b_tile"]
    ncp = fp["ncp"]
    NC = fp["num_classes"]
    nb = -(-B // bt)
    b_pad = nb * bt
    if b_pad != B:
        x = jnp.concatenate([x, jnp.zeros((b_pad - B, C, T), x.dtype)], axis=0)
    # lanes = (example-in-tile, electrode), sublanes = time; append ones-row (conv bias).
    xk = jnp.transpose(x.reshape(nb, bt, C, T), (0, 3, 1, 2)).reshape(nb, T, bt * C)
    xk = jnp.concatenate([xk, jnp.ones((nb, 1, bt * C), xk.dtype)], axis=1)
    xk = xk.astype(jnp.bfloat16)

    names = ("toepT", "bdwT", "bsc", "pcatT", "pool2T", "wfbdT", "bf",
             "w1bdT", "b1", "w2bdT", "b2")
    weights = [fp[k] for k in names]
    kern = functools.partial(_tsception_kernel, num_t=fp["num_t"],
                             tu_pad=fp["tu_pad"], t4_used=fp["t4_used"])
    in_specs = [pl.BlockSpec((1, T + 1, bt * C), lambda i: (i, 0, 0))]
    in_specs += [pl.BlockSpec(tuple(w.shape), _zero_map(w.ndim)) for w in weights]
    out = pl.pallas_call(
        kern,
        out_shape=jax.ShapeDtypeStruct((nb, 1, bt * ncp), jnp.float32),
        grid=(nb,),
        in_specs=in_specs,
        out_specs=pl.BlockSpec((1, 1, bt * ncp), lambda i: (i, 0, 0)),
        compiler_params=pltpu.CompilerParams(dimension_semantics=("parallel",)),
    )(xk, *weights)
    return out.reshape(b_pad, ncp)[:B, :NC]


# ----------------------------------------------------------------------------
# Pure-JAX reference mirroring the PyTorch forward (HIGHEST precision).
# ----------------------------------------------------------------------------
def _ref_conv_block(x, w, b, stride, pool):
    y = jax.lax.conv_general_dilated(
        x, w, window_strides=stride, padding="VALID",
        dimension_numbers=("NCHW", "OIHW", "NCHW"), precision=_HI)
    y = y + b[None, :, None, None]
    y = jnp.where(y > 0, y, LEAK * y)
    B, Cc, Hh, W = y.shape
    wp = W // pool
    return y[..., :wp * pool].reshape(B, Cc, Hh, wp, pool).mean(-1)


def _ref_bn(x, bn):
    g, bta, rm, rv = bn
    inv = g / jnp.sqrt(rv + BN_EPS)
    return (x - rm[None, :, None, None]) * inv[None, :, None, None] \
        + bta[None, :, None, None]


def reference_forward(x, p, cfg):
    C = x.shape[1]
    x4 = x[:, None]                                         # (B, 1, C, T)
    y1 = _ref_conv_block(x4, p["wt1"][:, None, None, :], p["bt1"], (1, 1), 8)
    y2 = _ref_conv_block(x4, p["wt2"][:, None, None, :], p["bt2"], (1, 1), 8)
    y3 = _ref_conv_block(x4, p["wt3"][:, None, None, :], p["bt3"], (1, 1), 8)
    out = jnp.concatenate([y1, y2, y3], axis=-1)
    out = _ref_bn(out, p["bn_t"])
    z1 = _ref_conv_block(out, p["ws1"], p["bs1"], (1, 1), 2)
    diff = out[:, :, 0:C:2, :] - out[:, :, 1:C:2, :]
    z2 = _ref_conv_block(diff, p["ws2"], p["bs2"], (C // 2, 1), 2)
    out_ = jnp.concatenate([z1, z2], axis=2)
    out_ = _ref_bn(out_, p["bn_s"])
    fz = _ref_conv_block(out_, p["wf"], p["bf"], (1, 1), 4)
    fz = _ref_bn(fz, p["bn_f"])
    feat = jnp.mean(fz, axis=-1)[:, :, 0]                   # (B, S)
    h = jnp.maximum(feat @ p["w_fc1"].T + p["b_fc1"], 0.0)
    return h @ p["w_fc2"].T + p["b_fc2"]


if __name__ == "__main__":
    # Small, module-consistent config: input_size=(1, C, T), sampling_rate=64.
    B, C, T = 2, 4, 128
    sampling_rate = 64
    num_T, num_S, hidden, num_classes = 8, 8, 32, 2
    kernels = tuple(int(w * sampling_rate) for w in (0.5, 0.25, 0.125))  # (32, 16, 8)
    cfg = dict(num_T=num_T, num_S=num_S, kernels=kernels)

    key = jax.random.PRNGKey(0)
    ks = jax.random.split(key, 32)

    def n(k, shp, s=0.1):
        return (s * jax.random.normal(k, shp)).astype(jnp.float32)

    def bn_params(k, c):
        ka, kb, kc, kd = jax.random.split(k, 4)
        return (1.0 + n(ka, (c,)), n(kb, (c,)), n(kc, (c,)),
                1.0 + jnp.abs(n(kd, (c,))))

    p = {
        "wt1": n(ks[0], (num_T, kernels[0])), "bt1": n(ks[1], (num_T,)),
        "wt2": n(ks[2], (num_T, kernels[1])), "bt2": n(ks[3], (num_T,)),
        "wt3": n(ks[4], (num_T, kernels[2])), "bt3": n(ks[5], (num_T,)),
        "ws1": n(ks[6], (num_S, num_T, C, 1)), "bs1": n(ks[7], (num_S,)),
        "ws2": n(ks[8], (num_S, num_T, C // 2, 1)), "bs2": n(ks[9], (num_S,)),
        "wf": n(ks[10], (num_S, num_S, 2, 1)), "bf": n(ks[11], (num_S,)),
        "bn_t": bn_params(ks[12], num_T),
        "bn_s": bn_params(ks[13], num_S),
        "bn_f": bn_params(ks[14], num_S),
        "w_fc1": n(ks[15], (hidden, num_S)), "b_fc1": n(ks[16], (hidden,)),
        "w_fc2": n(ks[17], (num_classes, hidden)), "b_fc2": n(ks[18], (num_classes,)),
    }

    x = jax.random.normal(ks[19], (B, C, T), jnp.float32)

    # Batch tile: fill the MXU row/lane dimension (target ~256) with example*electrode.
    b_tile = max(1, min(B, 256 // max(C, 1)))
    fp = tsception_prepare(p, cfg, C, T, b_tile)

    out = jax.block_until_ready(tsception_forward(x, fp))
    ref = jax.block_until_ready(reference_forward(x, p, cfg))
    assert out.shape == (B, num_classes), out.shape
    # bf16 operands on the dominant MXU matmuls (matches default f32 MXU precision).
    assert np.allclose(np.asarray(out), np.asarray(ref), rtol=2e-2, atol=2e-2), (out, ref)
    print("KERNEL_OK")
</pallas_src>

<mosaic_0001>
module attributes {stable_mosaic.version = 11 : i64} {
  func.func @_tsception_kernel(%arg0: i32, %arg1: memref<1x129x8xbf16, #tpu.memory_space<vmem>>, %arg2: memref<3072x129xbf16, #tpu.memory_space<vmem>>, %arg3: memref<8x8x32xbf16, #tpu.memory_space<vmem>>, %arg4: memref<1x32xf32, #tpu.memory_space<vmem>>, %arg5: memref<41x384xf32, #tpu.memory_space<vmem>>, %arg6: memref<20x41xf32, #tpu.memory_space<vmem>>, %arg7: memref<32x16xf32, #tpu.memory_space<vmem>>, %arg8: memref<1x16xf32, #tpu.memory_space<vmem>>, %arg9: memref<16x64xf32, #tpu.memory_space<vmem>>, %arg10: memref<1x64xf32, #tpu.memory_space<vmem>>, %arg11: memref<64x128xf32, #tpu.memory_space<vmem>>, %arg12: memref<1x128xf32, #tpu.memory_space<vmem>>, %arg13: memref<1x1x128xf32, #tpu.memory_space<vmem>>) attributes {dimension_semantics = [#tpu.dimension_semantics<parallel>], iteration_bounds = array<i64: 1>, scalar_prefetch = 0 : i64, scratch_operands = 0 : i64, tpu.core_type = #tpu.core_type<tc>, window_params = [{transform_indices = @transform_0, window_bounds = array<i64: 1, 129, 8>}, {pipeline_mode = #tpu.pipeline_mode<synchronous>, transform_indices = @transform_1, window_bounds = array<i64: 3072, 129>}, {pipeline_mode = #tpu.pipeline_mode<synchronous>, transform_indices = @transform_2, window_bounds = array<i64: 8, 8, 32>}, {pipeline_mode = #tpu.pipeline_mode<synchronous>, transform_indices = @transform_3, window_bounds = array<i64: 1, 32>}, {pipeline_mode = #tpu.pipeline_mode<synchronous>, transform_indices = @transform_4, window_bounds = array<i64: 41, 384>}, {pipeline_mode = #tpu.pipeline_mode<synchronous>, transform_indices = @transform_5, window_bounds = array<i64: 20, 41>}, {pipeline_mode = #tpu.pipeline_mode<synchronous>, transform_indices = @transform_6, window_bounds = array<i64: 32, 16>}, {pipeline_mode = #tpu.pipeline_mode<synchronous>, transform_indices = @transform_7, window_bounds = array<i64: 1, 16>}, {pipeline_mode = #tpu.pipeline_mode<synchronous>, transform_indices = @transform_8, window_bounds = array<i64: 16, 64>}, {pipeline_mode = #tpu.pipeline_mode<synchronous>, transform_indices = @transform_9, window_bounds = array<i64: 1, 64>}, {pipeline_mode = #tpu.pipeline_mode<synchronous>, transform_indices = @transform_10, window_bounds = array<i64: 64, 128>}, {pipeline_mode = #tpu.pipeline_mode<synchronous>, transform_indices = @transform_11, window_bounds = array<i64: 1, 128>}, {transform_indices = @transform_12, window_bounds = array<i64: 1, 1, 128>}]} {
    %c0 = arith.constant 0 : index
    %c0_0 = arith.constant 0 : index
    %c0_1 = arith.constant 0 : index
    %0 = vector.load %arg1[%c0, %c0_0, %c0_1] : memref<1x129x8xbf16, #tpu.memory_space<vmem>>, vector<1x129x8xbf16>
    %1 = vector.shape_cast %0 : vector<1x129x8xbf16> to vector<129x8xbf16>
    %c0_2 = arith.constant 0 : index
    %c0_3 = arith.constant 0 : index
    %2 = vector.load %arg2[%c0_2, %c0_3] : memref<3072x129xbf16, #tpu.memory_space<vmem>>, vector<3072x129xbf16>
    %cst = arith.constant dense<0.000000e+00> : vector<3072x8xf32>
    %3 = tpu.matmul %2, %1, %cst {dimension_numbers = #tpu.dot_dimension_numbers<[1], [0], [0], [1], [0, 0, 1, 1], [], []>} : vector<3072x129xbf16>, vector<129x8xbf16>, vector<3072x8xf32> -> vector<3072x8xf32>
    %cst_4 = arith.constant 0.000000e+00 : f32
    %4 = vector.broadcast %cst_4 : f32 to vector<3072x8xf32>
    %5 = arith.cmpf ogt, %3, %4 : vector<3072x8xf32>
    %cst_5 = arith.constant 0.00999999977 : f32
    %6 = vector.broadcast %cst_5 : f32 to vector<3072x8xf32>
    %7 = arith.mulf %6, %3 : vector<3072x8xf32>
    %8 = arith.select %5, %3, %7 : vector<3072x8xi1>, vector<3072x8xf32>
    %9 = arith.truncf %8 : vector<3072x8xf32> to vector<3072x8xbf16>
    %10 = vector.extract_strided_slice %9 {offsets = [0, 0], sizes = [384, 8], strides = [1, 1]} : vector<3072x8xbf16> to vector<384x8xbf16>
    %c0_6 = arith.constant 0 : index
    %c0_7 = arith.constant 0 : index
    %c0_8 = arith.constant 0 : index
    %11 = vector.load %arg3[%c0_6, %c0_7, %c0_8] : memref<8x8x32xbf16, #tpu.memory_space<vmem>>, vector<1x8x32xbf16>
    %12 = vector.shape_cast %11 : vector<1x8x32xbf16> to vector<8x32xbf16>
    %cst_9 = arith.constant dense<0.000000e+00> : vector<384x32xf32>
    %13 = tpu.matmul %10, %12, %cst_9 {dimension_numbers = #tpu.dot_dimension_numbers<[1], [0], [0], [1], [0, 0, 1, 1], [], []>} : vector<384x8xbf16>, vector<8x32xbf16>, vector<384x32xf32> -> vector<384x32xf32>
    %14 = vector.extract_strided_slice %9 {offsets = [384, 0], sizes = [384, 8], strides = [1, 1]} : vector<3072x8xbf16> to vector<384x8xbf16>
    %c1 = arith.constant 1 : index
    %c0_10 = arith.constant 0 : index
    %c0_11 = arith.constant 0 : index
    %15 = vector.load %arg3[%c1, %c0_10, %c0_11] : memref<8x8x32xbf16, #tpu.memory_space<vmem>>, vector<1x8x32xbf16>
    %16 = vector.shape_cast %15 : vector<1x8x32xbf16> to vector<8x32xbf16>
    %cst_12 = arith.constant dense<0.000000e+00> : vector<384x32xf32>
    %17 = tpu.matmul %14, %16, %cst_12 {dimension_numbers = #tpu.dot_dimension_numbers<[1], [0], [0], [1], [0, 0, 1, 1], [], []>} : vector<384x8xbf16>, vector<8x32xbf16>, vector<384x32xf32> -> vector<384x32xf32>
    %18 = arith.addf %13, %17 : vector<384x32xf32>
    %19 = vector.extract_strided_slice %9 {offsets = [768, 0], sizes = [384, 8], strides = [1, 1]} : vector<3072x8xbf16> to vector<384x8xbf16>
    %c2 = arith.constant 2 : index
    %c0_13 = arith.constant 0 : index
    %c0_14 = arith.constant 0 : index
    %20 = vector.load %arg3[%c2, %c0_13, %c0_14] : memref<8x8x32xbf16, #tpu.memory_space<vmem>>, vector<1x8x32xbf16>
    %21 = vector.shape_cast %20 : vector<1x8x32xbf16> to vector<8x32xbf16>
    %cst_15 = arith.constant dense<0.000000e+00> : vector<384x32xf32>
    %22 = tpu.matmul %19, %21, %cst_15 {dimension_numbers = #tpu.dot_dimension_numbers<[1], [0], [0], [1], [0, 0, 1, 1], [], []>} : vector<384x8xbf16>, vector<8x32xbf16>, vector<384x32xf32> -> vector<384x32xf32>
    %23 = arith.addf %18, %22 : vector<384x32xf32>
    %24 = vector.extract_strided_slice %9 {offsets = [1152, 0], sizes = [384, 8], strides = [1, 1]} : vector<3072x8xbf16> to vector<384x8xbf16>
    %c3 = arith.constant 3 : index
    %c0_16 = arith.constant 0 : index
    %c0_17 = arith.constant 0 : index
    %25 = vector.load %arg3[%c3, %c0_16, %c0_17] : memref<8x8x32xbf16, #tpu.memory_space<vmem>>, vector<1x8x32xbf16>
    %26 = vector.shape_cast %25 : vector<1x8x32xbf16> to vector<8x32xbf16>
    %cst_18 = arith.constant dense<0.000000e+00> : vector<384x32xf32>
    %27 = tpu.matmul %24, %26, %cst_18 {dimension_numbers = #tpu.dot_dimension_numbers<[1], [0], [0], [1], [0, 0, 1, 1], [], []>} : vector<384x8xbf16>, vector<8x32xbf16>, vector<384x32xf32> -> vector<384x32xf32>
    %28 = arith.addf %23, %27 : vector<384x32xf32>
    %29 = vector.extract_strided_slice %9 {offsets = [1536, 0], sizes = [384, 8], strides = [1, 1]} : vector<3072x8xbf16> to vector<384x8xbf16>
    %c4 = arith.constant 4 : index
    %c0_19 = arith.constant 0 : index
    %c0_20 = arith.constant 0 : index
    %30 = vector.load %arg3[%c4, %c0_19, %c0_20] : memref<8x8x32xbf16, #tpu.memory_space<vmem>>, vector<1x8x32xbf16>
    %31 = vector.shape_cast %30 : vector<1x8x32xbf16> to vector<8x32xbf16>
    %cst_21 = arith.constant dense<0.000000e+00> : vector<384x32xf32>
    %32 = tpu.matmul %29, %31, %cst_21 {dimension_numbers = #tpu.dot_dimension_numbers<[1], [0], [0], [1], [0, 0, 1, 1], [], []>} : vector<384x8xbf16>, vector<8x32xbf16>, vector<384x32xf32> -> vector<384x32xf32>
    %33 = arith.addf %28, %32 : vector<384x32xf32>
    %34 = vector.extract_strided_slice %9 {offsets = [1920, 0], sizes = [384, 8], strides = [1, 1]} : vector<3072x8xbf16> to vector<384x8xbf16>
    %c5 = arith.constant 5 : index
    %c0_22 = arith.constant 0 : index
    %c0_23 = arith.constant 0 : index
    %35 = vector.load %arg3[%c5, %c0_22, %c0_23] : memref<8x8x32xbf16, #tpu.memory_space<vmem>>, vector<1x8x32xbf16>
    %36 = vector.shape_cast %35 : vector<1x8x32xbf16> to vector<8x32xbf16>
    %cst_24 = arith.constant dense<0.000000e+00> : vector<384x32xf32>
    %37 = tpu.matmul %34, %36, %cst_24 {dimension_numbers = #tpu.dot_dimension_numbers<[1], [0], [0], [1], [0, 0, 1, 1], [], []>} : vector<384x8xbf16>, vector<8x32xbf16>, vector<384x32xf32> -> vector<384x32xf32>
    %38 = arith.addf %33, %37 : vector<384x32xf32>
    %39 = vector.extract_strided_slice %9 {offsets = [2304, 0], sizes = [384, 8], strides = [1, 1]} : vector<3072x8xbf16> to vector<384x8xbf16>
    %c6 = arith.constant 6 : index
    %c0_25 = arith.constant 0 : index
    %c0_26 = arith.constant 0 : index
    %40 = vector.load %arg3[%c6, %c0_25, %c0_26] : memref<8x8x32xbf16, #tpu.memory_space<vmem>>, vector<1x8x32xbf16>
    %41 = vector.shape_cast %40 : vector<1x8x32xbf16> to vector<8x32xbf16>
    %cst_27 = arith.constant dense<0.000000e+00> : vector<384x32xf32>
    %42 = tpu.matmul %39, %41, %cst_27 {dimension_numbers = #tpu.dot_dimension_numbers<[1], [0], [0], [1], [0, 0, 1, 1], [], []>} : vector<384x8xbf16>, vector<8x32xbf16>, vector<384x32xf32> -> vector<384x32xf32>
    %43 = arith.addf %38, %42 : vector<384x32xf32>
    %44 = vector.extract_strided_slice %9 {offsets = [2688, 0], sizes = [384, 8], strides = [1, 1]} : vector<3072x8xbf16> to vector<384x8xbf16>
    %c7 = arith.constant 7 : index
    %c0_28 = arith.constant 0 : index
    %c0_29 = arith.constant 0 : index
    %45 = vector.load %arg3[%c7, %c0_28, %c0_29] : memref<8x8x32xbf16, #tpu.memory_space<vmem>>, vector<1x8x32xbf16>
    %46 = vector.shape_cast %45 : vector<1x8x32xbf16> to vector<8x32xbf16>
    %cst_30 = arith.constant dense<0.000000e+00> : vector<384x32xf32>
    %47 = tpu.matmul %44, %46, %cst_30 {dimension_numbers = #tpu.dot_dimension_numbers<[1], [0], [0], [1], [0, 0, 1, 1], [], []>} : vector<384x8xbf16>, vector<8x32xbf16>, vector<384x32xf32> -> vector<384x32xf32>
    %48 = arith.addf %43, %47 : vector<384x32xf32>
    %c0_31 = arith.constant 0 : index
    %c0_32 = arith.constant 0 : index
    %49 = vector.load %arg5[%c0_31, %c0_32] : memref<41x384xf32, #tpu.memory_space<vmem>>, vector<41x384xf32>
    %cst_33 = arith.constant dense<0.000000e+00> : vector<41x32xf32>
    %50 = tpu.matmul %49, %48, %cst_33 {dimension_numbers = #tpu.dot_dimension_numbers<[1], [0], [0], [1], [0, 0, 1, 1], [], []>} : vector<41x384xf32>, vector<384x32xf32>, vector<41x32xf32> -> vector<41x32xf32>
    %c0_34 = arith.constant 0 : index
    %c0_35 = arith.constant 0 : index
    %51 = vector.load %arg4[%c0_34, %c0_35] : memref<1x32xf32, #tpu.memory_space<vmem>>, vector<1x32xf32>
    %52 = vector.broadcast %51 : vector<1x32xf32> to vector<41x32xf32>
    %53 = arith.addf %50, %52 : vector<41x32xf32>
    %cst_36 = arith.constant 0.000000e+00 : f32
    %54 = vector.broadcast %cst_36 : f32 to vector<41x32xf32>
    %55 = arith.cmpf ogt, %53, %54 : vector<41x32xf32>
    %cst_37 = arith.constant 0.00999999977 : f32
    %56 = vector.broadcast %cst_37 : f32 to vector<41x32xf32>
    %57 = arith.mulf %56, %53 : vector<41x32xf32>
    %58 = arith.select %55, %53, %57 : vector<41x32xi1>, vector<41x32xf32>
    %c0_38 = arith.constant 0 : index
    %c0_39 = arith.constant 0 : index
    %59 = vector.load %arg6[%c0_38, %c0_39] : memref<20x41xf32, #tpu.memory_space<vmem>>, vector<20x41xf32>
    %cst_40 = arith.constant dense<0.000000e+00> : vector<20x32xf32>
    %60 = tpu.matmul %59, %58, %cst_40 {dimension_numbers = #tpu.dot_dimension_numbers<[1], [0], [0], [1], [0, 0, 1, 1], [], []>} : vector<20x41xf32>, vector<41x32xf32>, vector<20x32xf32> -> vector<20x32xf32>
    %c0_41 = arith.constant 0 : index
    %c0_42 = arith.constant 0 : index
    %61 = vector.load %arg7[%c0_41, %c0_42] : memref<32x16xf32, #tpu.memory_space<vmem>>, vector<32x16xf32>
    %cst_43 = arith.constant dense<0.000000e+00> : vector<20x16xf32>
    %62 = tpu.matmul %60, %61, %cst_43 {dimension_numbers = #tpu.dot_dimension_numbers<[1], [0], [0], [1], [0, 0, 1, 1], [], []>} : vector<20x32xf32>, vector<32x16xf32>, vector<20x16xf32> -> vector<20x16xf32>
    %c0_44 = arith.constant 0 : index
    %c0_45 = arith.constant 0 : index
    %63 = vector.load %arg8[%c0_44, %c0_45] : memref<1x16xf32, #tpu.memory_space<vmem>>, vector<1x16xf32>
    %64 = vector.broadcast %63 : vector<1x16xf32> to vector<20x16xf32>
    %65 = arith.addf %62, %64 : vector<20x16xf32>
    %cst_46 = arith.constant 0.000000e+00 : f32
    %66 = vector.broadcast %cst_46 : f32 to vector<20x16xf32>
    %67 = arith.cmpf ogt, %65, %66 : vector<20x16xf32>
    %cst_47 = arith.constant 0.00999999977 : f32
    %68 = vector.broadcast %cst_47 : f32 to vector<20x16xf32>
    %69 = arith.mulf %68, %65 : vector<20x16xf32>
    %70 = arith.select %67, %65, %69 : vector<20x16xi1>, vector<20x16xf32>
    %cst_48 = arith.constant dense<0.000000e+00> : vector<16xf32>
    %71 = vector.multi_reduction <add>, %70, %cst_48 [0] : vector<20x16xf32> to vector<16xf32>
    %72 = vector.shape_cast %71 : vector<16xf32> to vector<1x16xf32>
    %cst_49 = arith.constant 2.000000e+01 : f32
    %73 = vector.broadcast %cst_49 : f32 to vector<1x16xf32>
    %74 = arith.divf %72, %73 : vector<1x16xf32>
    %c0_50 = arith.constant 0 : index
    %c0_51 = arith.constant 0 : index
    %75 = vector.load %arg9[%c0_50, %c0_51] : memref<16x64xf32, #tpu.memory_space<vmem>>, vector<16x64xf32>
    %cst_52 = arith.constant dense<0.000000e+00> : vector<1x64xf32>
    %76 = tpu.matmul %74, %75, %cst_52 {dimension_numbers = #tpu.dot_dimension_numbers<[1], [0], [0], [1], [0, 0, 1, 1], [], []>} : vector<1x16xf32>, vector<16x64xf32>, vector<1x64xf32> -> vector<1x64xf32>
    %c0_53 = arith.constant 0 : index
    %c0_54 = arith.constant 0 : index
    %77 = vector.load %arg10[%c0_53, %c0_54] : memref<1x64xf32, #tpu.memory_space<vmem>>, vector<1x64xf32>
    %78 = arith.addf %76, %77 : vector<1x64xf32>
    %cst_55 = arith.constant 0.000000e+00 : f32
    %79 = vector.broadcast %cst_55 : f32 to vector<1x64xf32>
    %80 = arith.maximumf %78, %79 : vector<1x64xf32>
    %c0_56 = arith.constant 0 : index
    %c0_57 = arith.constant 0 : index
    %81 = vector.load %arg11[%c0_56, %c0_57] : memref<64x128xf32, #tpu.memory_space<vmem>>, vector<64x128xf32>
    %cst_58 = arith.constant dense<0.000000e+00> : vector<1x128xf32>
    %82 = tpu.matmul %80, %81, %cst_58 {dimension_numbers = #tpu.dot_dimension_numbers<[1], [0], [0], [1], [0, 0, 1, 1], [], []>} : vector<1x64xf32>, vector<64x128xf32>, vector<1x128xf32> -> vector<1x128xf32>
    %c0_59 = arith.constant 0 : index
    %c0_60 = arith.constant 0 : index
    %83 = vector.load %arg12[%c0_59, %c0_60] : memref<1x128xf32, #tpu.memory_space<vmem>>, vector<1x128xf32>
    %84 = arith.addf %82, %83 : vector<1x128xf32>
    %c0_61 = arith.constant 0 : index
    %c0_62 = arith.constant 0 : index
    %c0_63 = arith.constant 0 : index
    %85 = vector.load %arg13[%c0_61, %c0_62, %c0_63] : memref<1x1x128xf32, #tpu.memory_space<vmem>>, vector<1x1x128xf32>
    %86 = vector.shape_cast %85 : vector<1x1x128xf32> to vector<1x128xf32>
    %87 = vector.shape_cast %84 : vector<1x128xf32> to vector<1x1x128xf32>
    tpu.vector_store %arg13[%c0_61, %c0_62, %c0_63], %87 {strides = array<i32>} : memref<1x1x128xf32, #tpu.memory_space<vmem>>, vector<1x1x128xf32>,
    return
  }
  func.func @transform_0(%arg0: i32) -> (i32, i32, i32) {
    %c0_i32 = arith.constant 0 : i32
    %c0_i32_0 = arith.constant 0 : i32
    %c0_i32_1 = arith.constant 0 : i32
    return %arg0, %c0_i32, %c0_i32_0 : i32, i32, i32
  }
  func.func @transform_1(%arg0: i32) -> (i32, i32) {
    %c0_i32 = arith.constant 0 : i32
    %c0_i32_0 = arith.constant 0 : i32
    %c0_i32_1 = arith.constant 0 : i32
    return %c0_i32, %c0_i32_0 : i32, i32
  }
  func.func @transform_2(%arg0: i32) -> (i32, i32, i32) {
    %c0_i32 = arith.constant 0 : i32
    %c0_i32_0 = arith.constant 0 : i32
    %c0_i32_1 = arith.constant 0 : i32
    %c0_i32_2 = arith.constant 0 : i32
    return %c0_i32, %c0_i32_0, %c0_i32_1 : i32, i32, i32
  }
  func.func @transform_3(%arg0: i32) -> (i32, i32) {
    %c0_i32 = arith.constant 0 : i32
    %c0_i32_0 = arith.constant 0 : i32
    %c0_i32_1 = arith.constant 0 : i32
    return %c0_i32, %c0_i32_0 : i32, i32
  }
  func.func @transform_4(%arg0: i32) -> (i32, i32) {
    %c0_i32 = arith.constant 0 : i32
    %c0_i32_0 = arith.constant 0 : i32
    %c0_i32_1 = arith.constant 0 : i32
    return %c0_i32, %c0_i32_0 : i32, i32
  }
  func.func @transform_5(%arg0: i32) -> (i32, i32) {
    %c0_i32 = arith.constant 0 : i32
    %c0_i32_0 = arith.constant 0 : i32
    %c0_i32_1 = arith.constant 0 : i32
    return %c0_i32, %c0_i32_0 : i32, i32
  }
  func.func @transform_6(%arg0: i32) -> (i32, i32) {
    %c0_i32 = arith.constant 0 : i32
    %c0_i32_0 = arith.constant 0 : i32
    %c0_i32_1 = arith.constant 0 : i32
    return %c0_i32, %c0_i32_0 : i32, i32
  }
  func.func @transform_7(%arg0: i32) -> (i32, i32) {
    %c0_i32 = arith.constant 0 : i32
    %c0_i32_0 = arith.constant 0 : i32
    %c0_i32_1 = arith.constant 0 : i32
    return %c0_i32, %c0_i32_0 : i32, i32
  }
  func.func @transform_8(%arg0: i32) -> (i32, i32) {
    %c0_i32 = arith.constant 0 : i32
    %c0_i32_0 = arith.constant 0 : i32
    %c0_i32_1 = arith.constant 0 : i32
    return %c0_i32, %c0_i32_0 : i32, i32
  }
  func.func @transform_9(%arg0: i32) -> (i32, i32) {
    %c0_i32 = arith.constant 0 : i32
    %c0_i32_0 = arith.constant 0 : i32
    %c0_i32_1 = arith.constant 0 : i32
    return %c0_i32, %c0_i32_0 : i32, i32
  }
  func.func @transform_10(%arg0: i32) -> (i32, i32) {
    %c0_i32 = arith.constant 0 : i32
    %c0_i32_0 = arith.constant 0 : i32
    %c0_i32_1 = arith.constant 0 : i32
    return %c0_i32, %c0_i32_0 : i32, i32
  }
  func.func @transform_11(%arg0: i32) -> (i32, i32) {
    %c0_i32 = arith.constant 0 : i32
    %c0_i32_0 = arith.constant 0 : i32
    %c0_i32_1 = arith.constant 0 : i32
    return %c0_i32, %c0_i32_0 : i32, i32
  }
  func.func @transform_12(%arg0: i32) -> (i32, i32, i32) {
    %c0_i32 = arith.constant 0 : i32
    %c0_i32_0 = arith.constant 0 : i32
    %c0_i32_1 = arith.constant 0 : i32
    return %arg0, %c0_i32, %c0_i32_0 : i32, i32, i32
  }
}

</mosaic_0001>

<llo_original>
// kernel: tpu_custom_call.1
$region0: #{tpu_custom_call.1}
  #allocation0 [shape = 'u32[]', space=smem, size = 0x4, offset = 0x4, fixed_abs, tag = 'smem constant byte address 0x4 - core index']
  #allocation1 [shape = 'u32[144,128]{1,0:T(1,128)}', space=vmem, size = 0x12000, scoped, tag = 'internal scratch']
  %s0 = inlined_call_operand.vmem [shape: bf16[1,129,8], index: 0, kind: input, shape index: {}]
  %s1 = inlined_call_operand.vmem [shape: bf16[3072,129], index: 1, kind: input, shape index: {}]
  %s2 = inlined_call_operand.vmem [shape: bf16[8,8,32], index: 2, kind: input, shape index: {}]
  %s3 = inlined_call_operand.vmem [shape: f32[1,32], index: 3, kind: input, shape index: {}]
  %s4 = inlined_call_operand.vmem [shape: f32[41,384], index: 4, kind: input, shape index: {}]
  %s5 = inlined_call_operand.vmem [shape: f32[20,41], index: 5, kind: input, shape index: {}]
  %s6 = inlined_call_operand.vmem [shape: f32[32,16], index: 6, kind: input, shape index: {}]
  %s7 = inlined_call_operand.vmem [shape: f32[1,16], index: 7, kind: input, shape index: {}]
  %s8 = inlined_call_operand.vmem [shape: f32[16,64], index: 8, kind: input, shape index: {}]
  %s9 = inlined_call_operand.vmem [shape: f32[1,64], index: 9, kind: input, shape index: {}]
  %s10 = inlined_call_operand.vmem [shape: f32[64,128], index: 10, kind: input, shape index: {}]
  %s11 = inlined_call_operand.vmem [shape: f32[1,128], index: 11, kind: input, shape index: {}]
  %s12 = inlined_call_operand.hbm [shape: f32[1,1,128], index: 12, kind: output, shape index: {}]
  %s13 = sld [smem:[#allocation0]]
  $region58: #{tpu_custom_call.1} parent=0
    _
  %s15 = ssub.s32 1, %s13
  %s16 = scalar_select 0, %s15, %s13
  $region1: #{tpu_custom_call.1} parent=0
    #allocation2 [shape = 'u8[512]{0}', space=vmem, size = 0x400, scoped, tag = 'output window, operand 0, single buffered']
    #allocation3 [shape = 's32[1]{0}', space=sflag, size = 0x4, scoped, tag = 'scoped memory for tpu_custom_call.1']
    %17 = vsyncpa [#allocation3], 0
    // Predicated region
    $region2: #{tpu_custom_call.1} parent=1 // pred_check
      _
    $region3: #{tpu_custom_call.1} parent=1 // pred_check_branch
      %19 = sbr.rel (0) target = $region5
    $region4: #{tpu_custom_call.1} parent=1 // pred_region
      _
    $region5: #{tpu_custom_call.1} parent=1 // pred_fallthru
      _
    // Predicated region
    $region6: #{tpu_custom_call.1} parent=1 // pred_check
      _
    $region7: #{tpu_custom_call.1} parent=1 // pred_check_branch
      %21 = sbr.rel (0) target = $region9
    $region8: #{tpu_custom_call.1} parent=1 // pred_region
      _
    $region9: #{tpu_custom_call.1} parent=1 // pred_fallthru
      _
    // Predicated region
    $region10: #{tpu_custom_call.1} parent=1 // pred_check
      _
    $region11: #{tpu_custom_call.1} parent=1 // pred_check_branch
      %23 = sbr.rel (0) target = $region13
    $region12: #{tpu_custom_call.1} parent=1 // pred_region
      _
    $region13: #{tpu_custom_call.1} parent=1 // pred_fallthru
      _
    // Predicated region
    $region14: #{tpu_custom_call.1} parent=1 // pred_check
      _
    $region15: #{tpu_custom_call.1} parent=1 // pred_check_branch
      %25 = sbr.rel (0) target = $region17
    $region16: #{tpu_custom_call.1} parent=1 // pred_region
      _
    $region17: #{tpu_custom_call.1} parent=1 // pred_fallthru
      _
    // Predicated region
    $region18: #{tpu_custom_call.1} parent=1 // pred_check
      _
    $region19: #{tpu_custom_call.1} parent=1 // pred_check_branch
      %27 = sbr.rel (0) target = $region21
    $region20: #{tpu_custom_call.1} parent=1 // pred_region
      _
    $region21: #{tpu_custom_call.1} parent=1 // pred_fallthru
      _
    // Predicated region
    $region22: #{tpu_custom_call.1} parent=1 // pred_check
      _
    $region23: #{tpu_custom_call.1} parent=1 // pred_check_branch
      %29 = sbr.rel (0) target = $region25
    $region24: #{tpu_custom_call.1} parent=1 // pred_region
      _
    $region25: #{tpu_custom_call.1} parent=1 // pred_fallthru
      _
    // Predicated region
    $region26: #{tpu_custom_call.1} parent=1 // pred_check
      _
    $region27: #{tpu_custom_call.1} parent=1 // pred_check_branch
      %31 = sbr.rel (0) target = $region29
    $region28: #{tpu_custom_call.1} parent=1 // pred_region
      _
    $region29: #{tpu_custom_call.1} parent=1 // pred_fallthru
      _
    // Predicated region
    $region30: #{tpu_custom_call.1} parent=1 // pred_check
      _
    $region31: #{tpu_custom_call.1} parent=1 // pred_check_branch
      %33 = sbr.rel (0) target = $region33
    $region32: #{tpu_custom_call.1} parent=1 // pred_region
      _
    $region33: #{tpu_custom_call.1} parent=1 // pred_fallthru
      _
    // Predicated region
    $region34: #{tpu_custom_call.1} parent=1 // pred_check
      _
    $region35: #{tpu_custom_call.1} parent=1 // pred_check_branch
      %35 = sbr.rel (0) target = $region37
    $region36: #{tpu_custom_call.1} parent=1 // pred_region
      _
    $region37: #{tpu_custom_call.1} parent=1 // pred_fallthru
      _
    // Predicated region
    $region38: #{tpu_custom_call.1} parent=1 // pred_check
      _
    $region39: #{tpu_custom_call.1} parent=1 // pred_check_branch
      %37 = sbr.rel (0) target = $region41
    $region40: #{tpu_custom_call.1} parent=1 // pred_region
      _
    $region41: #{tpu_custom_call.1} parent=1 // pred_fallthru
      _
    // Predicated region
    $region42: #{tpu_custom_call.1} parent=1 // pred_check
      _
    $region43: #{tpu_custom_call.1} parent=1 // pred_check_branch
      %39 = sbr.rel (0) target = $region45
    $region44: #{tpu_custom_call.1} parent=1 // pred_region
      _
    $region45: #{tpu_custom_call.1} parent=1 // pred_fallthru
      _
    // Predicated region
    $region46: #{tpu_custom_call.1} parent=1 // pred_check
      _
    $region47: #{tpu_custom_call.1} parent=1 // pred_check_branch
      %41 = sbr.rel (0) target = $region49
    $region48: #{tpu_custom_call.1} parent=1 // pred_region
      _
    $region49: #{tpu_custom_call.1} parent=1 // pred_fallthru
      _
    %v43 = vld [vmem:[%s0] sm:$0xf]
    %v44 = vld [vmem:[%s0 + $0x4] sm:$0xf]
    %v45 = vld [vmem:[%s0 + $0x8] sm:$0xf]
    %v46 = vld [vmem:[%s0 + $0xc] sm:$0xf]
    %v47 = vld [vmem:[%s0 + $0x10] sm:$0xf]
    %v48 = vld [vmem:[%s0 + $0x14] sm:$0xf]
    %v49 = vld [vmem:[%s0 + $0x18] sm:$0xf]
    %v50 = vld [vmem:[%s0 + $0x1c] sm:$0xf]
    %v51 = vld [vmem:[%s0 + $0x20] sm:$0xf]
    %v52 = vld [vmem:[%s0 + $0x24] sm:$0xf]
    %v53 = vld [vmem:[%s0 + $0x28] sm:$0xf]
    %v54 = vld [vmem:[%s0 + $0x2c] sm:$0xf]
    %v55 = vld [vmem:[%s0 + $0x30] sm:$0xf]
    %v56 = vld [vmem:[%s0 + $0x34] sm:$0xf]
    %v57 = vld [vmem:[%s0 + $0x38] sm:$0xf]
    %v58 = vld [vmem:[%s0 + $0x3c] sm:$0xf]
    %v59 = vld [vmem:[%s0 + $0x40] sm:$0x1]
    %v60 = vld [vmem:[%s1] sm:$0xff]
    %v61 = vld [vmem:[%s1 + $0x8] sm:$0xff]
    %v62 = vld [vmem:[%s1 + $0x10] sm:$0xff]
    %v63 = vld [vmem:[%s1 + $0x18] sm:$0xff]
    %v64 = vld [vmem:[%s1 + $0x20] sm:$0xff]
    %v65 = vld [vmem:[%s1 + $0x28] sm:$0xff]
    %v66 = vld [vmem:[%s1 + $0x30] sm:$0xff]
    %v67 = vld [vmem:[%s1 + $0x38] sm:$0xff]
    %v68 = vld [vmem:[%s1 + $0x40] sm:$0xff]
    %v69 = vld [vmem:[%s1 + $0x48] sm:$0xff]
    %v70 = vld [vmem:[%s1 + $0x50] sm:$0xff]
    %v71 = vld [vmem:[%s1 + $0x58] sm:$0xff]
    %v72 = vld [vmem:[%s1 + $0x60] sm:$0xff]
    %v73 = vld [vmem:[%s1 + $0x68] sm:$0xff]
    %v74 = vld [vmem:[%s1 + $0x70] sm:$0xff]
    %v75 = vld [vmem:[%s1 + $0x78] sm:$0xff]
    %v76 = vld [vmem:[%s1 + $0x80] sm:$0xff]
    %v77 = vld [vmem:[%s1 + $0x88] sm:$0xff]
    %v78 = vld [vmem:[%s1 + $0x90] sm:$0xff]
    %v79 = vld [vmem:[%s1 + $0x98] sm:$0xff]
    %v80 = vld [vmem:[%s1 + $0xa0] sm:$0xff]
    %v81 = vld [vmem:[%s1 + $0xa8] sm:$0xff]
    %v82 = vld [vmem:[%s1 + $0xb0] sm:$0xff]
    %v83 = vld [vmem:[%s1 + $0xb8] sm:$0xff]
    %v84 = vld [vmem:[%s1 + $0xc0] sm:$0xff]
    %v85 = vld [vmem:[%s1 + $0xc8] sm:$0xff]
    %v86 = vld [vmem:[%s1 + $0xd0] sm:$0xff]
    %v87 = vld [vmem:[%s1 + $0xd8] sm:$0xff]
    %v88 = vld [vmem:[%s1 + $0xe0] sm:$0xff]
    %v89 = vld [vmem:[%s1 + $0xe8] sm:$0xff]
    %v90 = vld [vmem:[%s1 + $0xf0] sm:$0xff]
    %v91 = vld [vmem:[%s1 + $0xf8] sm:$0xff]
    %v92 = vld [vmem:[%s1 + $0x100] sm:$0xff]
    %v93 = vld [vmem:[%s1 + $0x108] sm:$0xff]
    %v94 = vld [vmem:[%s1 + $0x110] sm:$0xff]
    %v95 = vld [vmem:[%s1 + $0x118] sm:$0xff]
    %v96 = vld [vmem:[%s1 + $0x120] sm:$0xff]
    %v97 = vld [vmem:[%s1 + $0x128] sm:$0xff]
    %v98 = vld [vmem:[%s1 + $0x130] sm:$0xff]
    %v99 = vld [vmem:[%s1 + $0x138] sm:$0xff]
    %v100 = vld [vmem:[%s1 + $0x140] sm:$0xff]
    %v101 = vld [vmem:[%s1 + $0x148] sm:$0xff]
    %v102 = vld [vmem:[%s1 + $0x150] sm:$0xff]
    %v103 = vld [vmem:[%s1 + $0x158] sm:$0xff]
    %v104 = vld [vmem:[%s1 + $0x160] sm:$0xff]
    %v105 = vld [vmem:[%s1 + $0x168] sm:$0xff]
    %v106 = vld [vmem:[%s1 + $0x170] sm:$0xff]
    %v107 = vld [vmem:[%s1 + $0x178] sm:$0xff]
    %v108 = vld [vmem:[%s1 + $0x180] sm:$0xff]
    %v109 = vld [vmem:[%s1 + $0x188] sm:$0xff]
    %v110 = vld [vmem:[%s1 + $0x190] sm:$0xff]
    %v111 = vld [vmem:[%s1 + $0x198] sm:$0xff]
    %v112 = vld [vmem:[%s1 + $0x1a0] sm:$0xff]
    %v113 = vld [vmem:[%s1 + $0x1a8] sm:$0xff]
    %v114 = vld [vmem:[%s1 + $0x1b0] sm:$0xff]
    %v115 = vld [vmem:[%s1 + $0x1b8] sm:$0xff]
    %v116 = vld [vmem:[%s1 + $0x1c0] sm:$0xff]
    %v117 = vld [vmem:[%s1 + $0x1c8] sm:$0xff]
    %v118 = vld [vmem:[%s1 + $0x1d0] sm:$0xff]
    %v119 = vld [vmem:[%s1 + $0x1d8] sm:$0xff]
    %v120 = vld [vmem:[%s1 + $0x1e0] sm:$0xff]
    %v121 = vld [vmem:[%s1 + $0x1e8] sm:$0xff]
    %v122 = vld [vmem:[%s1 + $0x1f0] sm:$0xff]
    %v123 = vld [vmem:[%s1 + $0x1f8] sm:$0xff]
    %v124 = vld [vmem:[%s1 + $0x200] sm:$0xff]
    %v125 = vld [vmem:[%s1 + $0x208] sm:$0xff]
    %v126 = vld [vmem:[%s1 + $0x210] sm:$0xff]
    %v127 = vld [vmem:[%s1 + $0x218] sm:$0xff]
    %v128 = vld [vmem:[%s1 + $0x220] sm:$0xff]
    %v129 = vld [vmem:[%s1 + $0x228] sm:$0xff]
    %v130 = vld [vmem:[%s1 + $0x230] sm:$0xff]
    %v131 = vld [vmem:[%s1 + $0x238] sm:$0xff]
    %v132 = vld [vmem:[%s1 + $0x240] sm:$0xff]
    %v133 = vld [vmem:[%s1 + $0x248] sm:$0xff]
    %v134 = vld [vmem:[%s1 + $0x250] sm:$0xff]
    %v135 = vld [vmem:[%s1 + $0x258] sm:$0xff]
    %v136 = vld [vmem:[%s1 + $0x260] sm:$0xff]
    %v137 = vld [vmem:[%s1 + $0x268] sm:$0xff]
    %v138 = vld [vmem:[%s1 + $0x270] sm:$0xff]
    %v139 = vld [vmem:[%s1 + $0x278] sm:$0xff]
    %v140 = vld [vmem:[%s1 + $0x280] sm:$0xff]
    %v141 = vld [vmem:[%s1 + $0x288] sm:$0xff]
    %v142 = vld [vmem:[%s1 + $0x290] sm:$0xff]
    %v143 = vld [vmem:[%s1 + $0x298] sm:$0xff]
    %v144 = vld [vmem:[%s1 + $0x2a0] sm:$0xff]
    %v145 = vld [vmem:[%s1 + $0x2a8] sm:$0xff]
    %v146 = vld [vmem:[%s1 + $0x2b0] sm:$0xff]
    %v147 = vld [vmem:[%s1 + $0x2b8] sm:$0xff]
    %v148 = vld [vmem:[%s1 + $0x2c0] sm:$0xff]
    %v149 = vld [vmem:[%s1 + $0x2c8] sm:$0xff]
    %v150 = vld [vmem:[%s1 + $0x2d0] sm:$0xff]
    %v151 = vld [vmem:[%s1 + $0x2d8] sm:$0xff]
    %v152 = vld [vmem:[%s1 + $0x2e0] sm:$0xff]
    %v153 = vld [vmem:[%s1 + $0x2e8] sm:$0xff]
    %v154 = vld [vmem:[%s1 + $0x2f0] sm:$0xff]
    %v155 = vld [vmem:[%s1 + $0x2f8] sm:$0xff]
    %v156 = vld [vmem:[%s1 + $0x300] sm:$0xff]
    %v157 = vld [vmem:[%s1 + $0x308] sm:$0xff]
    %v158 = vld [vmem:[%s1 + $0x310] sm:$0xff]
    %v159 = vld [vmem:[%s1 + $0x318] sm:$0xff]
    %v160 = vld [vmem:[%s1 + $0x320] sm:$0xff]
    %v161 = vld [vmem:[%s1 + $0x328] sm:$0xff]
    %v162 = vld [vmem:[%s1 + $0x330] sm:$0xff]
    %v163 = vld [vmem:[%s1 + $0x338] sm:$0xff]
    %v164 = vld [vmem:[%s1 + $0x340] sm:$0xff]
    %v165 = vld [vmem:[%s1 + $0x348] sm:$0xff]
    %v166 = vld [vmem:[%s1 + $0x350] sm:$0xff]
    %v167 = vld [vmem:[%s1 + $0x358] sm:$0xff]
    %v168 = vld [vmem:[%s1 + $0x360] sm:$0xff]
    %v169 = vld [vmem:[%s1 + $0x368] sm:$0xff]
    %v170 = vld [vmem:[%s1 + $0x370] sm:$0xff]
    %v171 = vld [vmem:[%s1 + $0x378] sm:$0xff]
    %v172 = vld [vmem:[%s1 + $0x380] sm:$0xff]
    %v173 = vld [vmem:[%s1 + $0x388] sm:$0xff]
    %v174 = vld [vmem:[%s1 + $0x390] sm:$0xff]
    %v175 = vld [vmem:[%s1 + $0x398] sm:$0xff]
    %v176 = vld [vmem:[%s1 + $0x3a0] sm:$0xff]
    %v177 = vld [vmem:[%s1 + $0x3a8] sm:$0xff]
    %v178 = vld [vmem:[%s1 + $0x3b0] sm:$0xff]
    %v179 = vld [vmem:[%s1 + $0x3b8] sm:$0xff]
    %v180 = vld [vmem:[%s1 + $0x3c0] sm:$0xff]
    %v181 = vld [vmem:[%s1 + $0x3c8] sm:$0xff]
    %v182 = vld [vmem:[%s1 + $0x3d0] sm:$0xff]
    %v183 = vld [vmem:[%s1 + $0x3d8] sm:$0xff]
    %v184 = vld [vmem:[%s1 + $0x3e0] sm:$0xff]
    %v185 = vld [vmem:[%s1 + $0x3e8] sm:$0xff]
    %v186 = vld [vmem:[%s1 + $0x3f0] sm:$0xff]
    %v187 = vld [vmem:[%s1 + $0x3f8] sm:$0xff]
    %v188 = vld [vmem:[%s1 + $0x400] sm:$0xff]
    %v189 = vld [vmem:[%s1 + $0x408] sm:$0xff]
    %v190 = vld [vmem:[%s1 + $0x410] sm:$0xff]
    %v191 = vld [vmem:[%s1 + $0x418] sm:$0xff]
    %v192 = vld [vmem:[%s1 + $0x420] sm:$0xff]
    %v193 = vld [vmem:[%s1 + $0x428] sm:$0xff]
    %v194 = vld [vmem:[%s1 + $0x430] sm:$0xff]
    %v195 = vld [vmem:[%s1 + $0x438] sm:$0xff]
    %v196 = vld [vmem:[%s1 + $0x440] sm:$0xff]
    %v197 = vld [vmem:[%s1 + $0x448] sm:$0xff]
    %v198 = vld [vmem:[%s1 + $0x450] sm:$0xff]
    %v199 = vld [vmem:[%s1 + $0x458] sm:$0xff]
    %v200 = vld [vmem:[%s1 + $0x460] sm:$0xff]
    %v201 = vld [vmem:[%s1 + $0x468] sm:$0xff]
    %v202 = vld [vmem:[%s1 + $0x470] sm:$0xff]
    %v203 = vld [vmem:[%s1 + $0x478] sm:$0xff]
    %v204 = vld [vmem:[%s1 + $0x480] sm:$0xff]
    %v205 = vld [vmem:[%s1 + $0x488] sm:$0xff]
    %v206 = vld [vmem:[%s1 + $0x490] sm:$0xff]
    %v207 = vld [vmem:[%s1 + $0x498] sm:$0xff]
    %v208 = vld [vmem:[%s1 + $0x4a0] sm:$0xff]
    %v209 = vld [vmem:[%s1 + $0x4a8] sm:$0xff]
    %v210 = vld [vmem:[%s1 + $0x4b0] sm:$0xff]
    %v211 = vld [vmem:[%s1 + $0x4b8] sm:$0xff]
    %v212 = vld [vmem:[%s1 + $0x4c0] sm:$0xff]
    %v213 = vld [vmem:[%s1 + $0x4c8] sm:$0xff]
    %v214 = vld [vmem:[%s1 + $0x4d0] sm:$0xff]
    %v215 = vld [vmem:[%s1 + $0x4d8] sm:$0xff]
    %v216 = vld [vmem:[%s1 + $0x4e0] sm:$0xff]
    %v217 = vld [vmem:[%s1 + $0x4e8] sm:$0xff]
    %v218 = vld [vmem:[%s1 + $0x4f0] sm:$0xff]
    %v219 = vld [vmem:[%s1 + $0x4f8] sm:$0xff]
    %v220 = vld [vmem:[%s1 + $0x500] sm:$0xff]
    %v221 = vld [vmem:[%s1 + $0x508] sm:$0xff]
    %v222 = vld [vmem:[%s1 + $0x510] sm:$0xff]
    %v223 = vld [vmem:[%s1 + $0x518] sm:$0xff]
    %v224 = vld [vmem:[%s1 + $0x520] sm:$0xff]
    %v225 = vld [vmem:[%s1 + $0x528] sm:$0xff]
    %v226 = vld [vmem:[%s1 + $0x530] sm:$0xff]
    %v227 = vld [vmem:[%s1 + $0x538] sm:$0xff]
    %v228 = vld [vmem:[%s1 + $0x540] sm:$0xff]
    %v229 = vld [vmem:[%s1 + $0x548] sm:$0xff]
    %v230 = vld [vmem:[%s1 + $0x550] sm:$0xff]
    %v231 = vld [vmem:[%s1 + $0x558] sm:$0xff]
    %v232 = vld [vmem:[%s1 + $0x560] sm:$0xff]
    %v233 = vld [vmem:[%s1 + $0x568] sm:$0xff]
    %v234 = vld [vmem:[%s1 + $0x570] sm:$0xff]
    %v235 = vld [vmem:[%s1 + $0x578] sm:$0xff]
    %v236 = vld [vmem:[%s1 + $0x580] sm:$0xff]
    %v237 = vld [vmem:[%s1 + $0x588] sm:$0xff]
    %v238 = vld [vmem:[%s1 + $0x590] sm:$0xff]
    %v239 = vld [vmem:[%s1 + $0x598] sm:$0xff]
    %v240 = vld [vmem:[%s1 + $0x5a0] sm:$0xff]
    %v241 = vld [vmem:[%s1 + $0x5a8] sm:$0xff]
    %v242 = vld [vmem:[%s1 + $0x5b0] sm:$0xff]
    %v243 = vld [vmem:[%s1 + $0x5b8] sm:$0xff]
    %v244 = vld [vmem:[%s1 + $0x5c0] sm:$0xff]
    %v245 = vld [vmem:[%s1 + $0x5c8] sm:$0xff]
    %v246 = vld [vmem:[%s1 + $0x5d0] sm:$0xff]
    %v247 = vld [vmem:[%s1 + $0x5d8] sm:$0xff]
    %v248 = vld [vmem:[%s1 + $0x5e0] sm:$0xff]
    %v249 = vld [vmem:[%s1 + $0x5e8] sm:$0xff]
    %v250 = vld [vmem:[%s1 + $0x5f0] sm:$0xff]
    %v251 = vld [vmem:[%s1 + $0x5f8] sm:$0xff]
    %v252 = vld [vmem:[%s1 + $0x600] sm:$0xff]
    %v253 = vld [vmem:[%s1 + $0x608] sm:$0xff]
    %v254 = vld [vmem:[%s1 + $0x610] sm:$0xff]
    %v255 = vld [vmem:[%s1 + $0x618] sm:$0xff]
    %v256 = vld [vmem:[%s1 + $0x620] sm:$0xff]
    %v257 = vld [vmem:[%s1 + $0x628] sm:$0xff]
    %v258 = vld [vmem:[%s1 + $0x630] sm:$0xff]
    %v259 = vld [vmem:[%s1 + $0x638] sm:$0xff]
    %v260 = vld [vmem:[%s1 + $0x640] sm:$0xff]
    %v261 = vld [vmem:[%s1 + $0x648] sm:$0xff]
    %v262 = vld [vmem:[%s1 + $0x650] sm:$0xff]
    %v263 = vld [vmem:[%s1 + $0x658] sm:$0xff]
    %v264 = vld [vmem:[%s1 + $0x660] sm:$0xff]
    %v265 = vld [vmem:[%s1 + $0x668] sm:$0xff]
    %v266 = vld [vmem:[%s1 + $0x670] sm:$0xff]
    %v267 = vld [vmem:[%s1 + $0x678] sm:$0xff]
    %v268 = vld [vmem:[%s1 + $0x680] sm:$0xff]
    %v269 = vld [vmem:[%s1 + $0x688] sm:$0xff]
    %v270 = vld [vmem:[%s1 + $0x690] sm:$0xff]
    %v271 = vld [vmem:[%s1 + $0x698] sm:$0xff]
    %v272 = vld [vmem:[%s1 + $0x6a0] sm:$0xff]
    %v273 = vld [vmem:[%s1 + $0x6a8] sm:$0xff]
    %v274 = vld [vmem:[%s1 + $0x6b0] sm:$0xff]
    %v275 = vld [vmem:[%s1 + $0x6b8] sm:$0xff]
    %v276 = vld [vmem:[%s1 + $0x6c0] sm:$0xff]
    %v277 = vld [vmem:[%s1 + $0x6c8] sm:$0xff]
    %v278 = vld [vmem:[%s1 + $0x6d0] sm:$0xff]
    %v279 = vld [vmem:[%s1 + $0x6d8] sm:$0xff]
    %v280 = vld [vmem:[%s1 + $0x6e0] sm:$0xff]
    %v281 = vld [vmem:[%s1 + $0x6e8] sm:$0xff]
    %v282 = vld [vmem:[%s1 + $0x6f0] sm:$0xff]
    %v283 = vld [vmem:[%s1 + $0x6f8] sm:$0xff]
    %v284 = vld [vmem:[%s1 + $0x700] sm:$0xff]
    %v285 = vld [vmem:[%s1 + $0x708] sm:$0xff]
    %v286 = vld [vmem:[%s1 + $0x710] sm:$0xff]
    %v287 = vld [vmem:[%s1 + $0x718] sm:$0xff]
    %v288 = vld [vmem:[%s1 + $0x720] sm:$0xff]
    %v289 = vld [vmem:[%s1 + $0x728] sm:$0xff]
    %v290 = vld [vmem:[%s1 + $0x730] sm:$0xff]
    %v291 = vld [vmem:[%s1 + $0x738] sm:$0xff]
    %v292 = vld [vmem:[%s1 + $0x740] sm:$0xff]
    %v293 = vld [vmem:[%s1 + $0x748] sm:$0xff]
    %v294 = vld [vmem:[%s1 + $0x750] sm:$0xff]
    %v295 = vld [vmem:[%s1 + $0x758] sm:$0xff]
    %v296 = vld [vmem:[%s1 + $0x760] sm:$0xff]
    %v297 = vld [vmem:[%s1 + $0x768] sm:$0xff]
    %v298 = vld [vmem:[%s1 + $0x770] sm:$0xff]
    %v299 = vld [vmem:[%s1 + $0x778] sm:$0xff]
    %v300 = vld [vmem:[%s1 + $0x780] sm:$0xff]
    %v301 = vld [vmem:[%s1 + $0x788] sm:$0xff]
    %v302 = vld [vmem:[%s1 + $0x790] sm:$0xff]
    %v303 = vld [vmem:[%s1 + $0x798] sm:$0xff]
    %v304 = vld [vmem:[%s1 + $0x7a0] sm:$0xff]
    %v305 = vld [vmem:[%s1 + $0x7a8] sm:$0xff]
    %v306 = vld [vmem:[%s1 + $0x7b0] sm:$0xff]
    %v307 = vld [vmem:[%s1 + $0x7b8] sm:$0xff]
    %v308 = vld [vmem:[%s1 + $0x7c0] sm:$0xff]
    %v309 = vld [vmem:[%s1 + $0x7c8] sm:$0xff]
    %v310 = vld [vmem:[%s1 + $0x7d0] sm:$0xff]
    %v311 = vld [vmem:[%s1 + $0x7d8] sm:$0xff]
    %v312 = vld [vmem:[%s1 + $0x7e0] sm:$0xff]
    %v313 = vld [vmem:[%s1 + $0x7e8] sm:$0xff]
    %v314 = vld [vmem:[%s1 + $0x7f0] sm:$0xff]
    %v315 = vld [vmem:[%s1 + $0x7f8] sm:$0xff]
    %v316 = vld [vmem:[%s1 + $0x800] sm:$0xff]
    %v317 = vld [vmem:[%s1 + $0x808] sm:$0xff]
    %v318 = vld [vmem:[%s1 + $0x810] sm:$0xff]
    %v319 = vld [vmem:[%s1 + $0x818] sm:$0xff]
    %v320 = vld [vmem:[%s1 + $0x820] sm:$0xff]
    %v321 = vld [vmem:[%s1 + $0x828] sm:$0xff]
    %v322 = vld [vmem:[%s1 + $0x830] sm:$0xff]
    %v323 = vld [vmem:[%s1 + $0x838] sm:$0xff]
    %v324 = vld [vmem:[%s1 + $0x840] sm:$0xff]
    %v325 = vld [vmem:[%s1 + $0x848] sm:$0xff]
    %v326 = vld [vmem:[%s1 + $0x850] sm:$0xff]
    %v327 = vld [vmem:[%s1 + $0x858] sm:$0xff]
    %v328 = vld [vmem:[%s1 + $0x860] sm:$0xff]
    %v329 = vld [vmem:[%s1 + $0x868] sm:$0xff]
    %v330 = vld [vmem:[%s1 + $0x870] sm:$0xff]
    %v331 = vld [vmem:[%s1 + $0x878] sm:$0xff]
    %v332 = vld [vmem:[%s1 + $0x880] sm:$0xff]
    %v333 = vld [vmem:[%s1 + $0x888] sm:$0xff]
    %v334 = vld [vmem:[%s1 + $0x890] sm:$0xff]
    %v335 = vld [vmem:[%s1 + $0x898] sm:$0xff]
    %v336 = vld [vmem:[%s1 + $0x8a0] sm:$0xff]
    %v337 = vld [vmem:[%s1 + $0x8a8] sm:$0xff]
    %v338 = vld [vmem:[%s1 + $0x8b0] sm:$0xff]
    %v339 = vld [vmem:[%s1 + $0x8b8] sm:$0xff]
    %v340 = vld [vmem:[%s1 + $0x8c0] sm:$0xff]
    %v341 = vld [vmem:[%s1 + $0x8c8] sm:$0xff]
    %v342 = vld [vmem:[%s1 + $0x8d0] sm:$0xff]
    %v343 = vld [vmem:[%s1 + $0x8d8] sm:$0xff]
    %v344 = vld [vmem:[%s1 + $0x8e0] sm:$0xff]
    %v345 = vld [vmem:[%s1 + $0x8e8] sm:$0xff]
    %v346 = vld [vmem:[%s1 + $0x8f0] sm:$0xff]
    %v347 = vld [vmem:[%s1 + $0x8f8] sm:$0xff]
    %v348 = vld [vmem:[%s1 + $0x900] sm:$0xff]
    %v349 = vld [vmem:[%s1 + $0x908] sm:$0xff]
    %v350 = vld [vmem:[%s1 + $0x910] sm:$0xff]
    %v351 = vld [vmem:[%s1 + $0x918] sm:$0xff]
    %v352 = vld [vmem:[%s1 + $0x920] sm:$0xff]
    %v353 = vld [vmem:[%s1 + $0x928] sm:$0xff]
    %v354 = vld [vmem:[%s1 + $0x930] sm:$0xff]
    %v355 = vld [vmem:[%s1 + $0x938] sm:$0xff]
    %v356 = vld [vmem:[%s1 + $0x940] sm:$0xff]
    %v357 = vld [vmem:[%s1 + $0x948] sm:$0xff]
    %v358 = vld [vmem:[%s1 + $0x950] sm:$0xff]
    %v359 = vld [vmem:[%s1 + $0x958] sm:$0xff]
    %v360 = vld [vmem:[%s1 + $0x960] sm:$0xff]
    %v361 = vld [vmem:[%s1 + $0x968] sm:$0xff]
    %v362 = vld [vmem:[%s1 + $0x970] sm:$0xff]
    %v363 = vld [vmem:[%s1 + $0x978] sm:$0xff]
    %v364 = vld [vmem:[%s1 + $0x980] sm:$0xff]
    %v365 = vld [vmem:[%s1 + $0x988] sm:$0xff]
    %v366 = vld [vmem:[%s1 + $0x990] sm:$0xff]
    %v367 = vld [vmem:[%s1 + $0x998] sm:$0xff]
    %v368 = vld [vmem:[%s1 + $0x9a0] sm:$0xff]
    %v369 = vld [vmem:[%s1 + $0x9a8] sm:$0xff]
    %v370 = vld [vmem:[%s1 + $0x9b0] sm:$0xff]
    %v371 = vld [vmem:[%s1 + $0x9b8] sm:$0xff]
    %v372 = vld [vmem:[%s1 + $0x9c0] sm:$0xff]
    %v373 = vld [vmem:[%s1 + $0x9c8] sm:$0xff]
    %v374 = vld [vmem:[%s1 + $0x9d0] sm:$0xff]
    %v375 = vld [vmem:[%s1 + $0x9d8] sm:$0xff]
    %v376 = vld [vmem:[%s1 + $0x9e0] sm:$0xff]
    %v377 = vld [vmem:[%s1 + $0x9e8] sm:$0xff]
    %v378 = vld [vmem:[%s1 + $0x9f0] sm:$0xff]
    %v379 = vld [vmem:[%s1 + $0x9f8] sm:$0xff]
    %v380 = vld [vmem:[%s1 + $0xa00] sm:$0xff]
    %v381 = vld [vmem:[%s1 + $0xa08] sm:$0xff]
    %v382 = vld [vmem:[%s1 + $0xa10] sm:$0xff]
    %v383 = vld [vmem:[%s1 + $0xa18] sm:$0xff]
    %v384 = vld [vmem:[%s1 + $0xa20] sm:$0xff]
    %v385 = vld [vmem:[%s1 + $0xa28] sm:$0xff]
    %v386 = vld [vmem:[%s1 + $0xa30] sm:$0xff]
    %v387 = vld [vmem:[%s1 + $0xa38] sm:$0xff]
    %v388 = vld [vmem:[%s1 + $0xa40] sm:$0xff]
    %v389 = vld [vmem:[%s1 + $0xa48] sm:$0xff]
    %v390 = vld [vmem:[%s1 + $0xa50] sm:$0xff]
    %v391 = vld [vmem:[%s1 + $0xa58] sm:$0xff]
    %v392 = vld [vmem:[%s1 + $0xa60] sm:$0xff]
    %v393 = vld [vmem:[%s1 + $0xa68] sm:$0xff]
    %v394 = vld [vmem:[%s1 + $0xa70] sm:$0xff]
    %v395 = vld [vmem:[%s1 + $0xa78] sm:$0xff]
    %v396 = vld [vmem:[%s1 + $0xa80] sm:$0xff]
    %v397 = vld [vmem:[%s1 + $0xa88] sm:$0xff]
    %v398 = vld [vmem:[%s1 + $0xa90] sm:$0xff]
    %v399 = vld [vmem:[%s1 + $0xa98] sm:$0xff]
    %v400 = vld [vmem:[%s1 + $0xaa0] sm:$0xff]
    %v401 = vld [vmem:[%s1 + $0xaa8] sm:$0xff]
    %v402 = vld [vmem:[%s1 + $0xab0] sm:$0xff]
    %v403 = vld [vmem:[%s1 + $0xab8] sm:$0xff]
    %v404 = vld [vmem:[%s1 + $0xac0] sm:$0xff]
    %v405 = vld [vmem:[%s1 + $0xac8] sm:$0xff]
    %v406 = vld [vmem:[%s1 + $0xad0] sm:$0xff]
    %v407 = vld [vmem:[%s1 + $0xad8] sm:$0xff]
    %v408 = vld [vmem:[%s1 + $0xae0] sm:$0xff]
    %v409 = vld [vmem:[%s1 + $0xae8] sm:$0xff]
    %v410 = vld [vmem:[%s1 + $0xaf0] sm:$0xff]
    %v411 = vld [vmem:[%s1 + $0xaf8] sm:$0xff]
    %v412 = vld [vmem:[%s1 + $0xb00] sm:$0xff]
    %v413 = vld [vmem:[%s1 + $0xb08] sm:$0xff]
    %v414 = vld [vmem:[%s1 + $0xb10] sm:$0xff]
    %v415 = vld [vmem:[%s1 + $0xb18] sm:$0xff]
    %v416 = vld [vmem:[%s1 + $0xb20] sm:$0xff]
    %v417 = vld [vmem:[%s1 + $0xb28] sm:$0xff]
    %v418 = vld [vmem:[%s1 + $0xb30] sm:$0xff]
    %v419 = vld [vmem:[%s1 + $0xb38] sm:$0xff]
    %v420 = vld [vmem:[%s1 + $0xb40] sm:$0xff]
    %v421 = vld [vmem:[%s1 + $0xb48] sm:$0xff]
    %v422 = vld [vmem:[%s1 + $0xb50] sm:$0xff]
    %v423 = vld [vmem:[%s1 + $0xb58] sm:$0xff]
    %v424 = vld [vmem:[%s1 + $0xb60] sm:$0xff]
    %v425 = vld [vmem:[%s1 + $0xb68] sm:$0xff]
    %v426 = vld [vmem:[%s1 + $0xb70] sm:$0xff]
    %v427 = vld [vmem:[%s1 + $0xb78] sm:$0xff]
    %v428 = vld [vmem:[%s1 + $0xb80] sm:$0xff]
    %v429 = vld [vmem:[%s1 + $0xb88] sm:$0xff]
    %v430 = vld [vmem:[%s1 + $0xb90] sm:$0xff]
    %v431 = vld [vmem:[%s1 + $0xb98] sm:$0xff]
    %v432 = vld [vmem:[%s1 + $0xba0] sm:$0xff]
    %v433 = vld [vmem:[%s1 + $0xba8] sm:$0xff]
    %v434 = vld [vmem:[%s1 + $0xbb0] sm:$0xff]
    %v435 = vld [vmem:[%s1 + $0xbb8] sm:$0xff]
    %v436 = vld [vmem:[%s1 + $0xbc0] sm:$0xff]
    %v437 = vld [vmem:[%s1 + $0xbc8] sm:$0xff]
    %v438 = vld [vmem:[%s1 + $0xbd0] sm:$0xff]
    %v439 = vld [vmem:[%s1 + $0xbd8] sm:$0xff]
    %v440 = vld [vmem:[%s1 + $0xbe0] sm:$0xff]
    %v441 = vld [vmem:[%s1 + $0xbe8] sm:$0xff]
    %v442 = vld [vmem:[%s1 + $0xbf0] sm:$0xff]
    %v443 = vld [vmem:[%s1 + $0xbf8] sm:$0xff]
    %v828 = vunpack.c.l.b16 %v60
    %v829 = vunpack.c.h.b16 %v60
    %v830 = vunpack.c.l.b16 %v61
    %v831 = vunpack.c.h.b16 %v61
    %v832 = vunpack.c.l.b16 %v62
    %v833 = vunpack.c.h.b16 %v62
    %v834 = vunpack.c.l.b16 %v63
    %v835 = vunpack.c.h.b16 %v63
    %v836 = vunpack.c.l.b16 %v64
    %v837 = vunpack.c.h.b16 %v64
    %v838 = vunpack.c.l.b16 %v65
    %v839 = vunpack.c.h.b16 %v65
    %v840 = vunpack.c.l.b16 %v66
    %v841 = vunpack.c.h.b16 %v66
    %v842 = vunpack.c.l.b16 %v67
    %v843 = vunpack.c.h.b16 %v67
    %v844 = vunpack.c.l.b16 %v68
    %v845 = vunpack.c.h.b16 %v68
    %v846 = vunpack.c.l.b16 %v69
    %v847 = vunpack.c.h.b16 %v69
    %v848 = vunpack.c.l.b16 %v70
    %v849 = vunpack.c.h.b16 %v70
    %v850 = vunpack.c.l.b16 %v71
    %v851 = vunpack.c.h.b16 %v71
    %v852 = vunpack.c.l.b16 %v72
    %v853 = vunpack.c.h.b16 %v72
    %v854 = vunpack.c.l.b16 %v73
    %v855 = vunpack.c.h.b16 %v73
    %v856 = vunpack.c.l.b16 %v74
    %v857 = vunpack.c.h.b16 %v74
    %v858 = vunpack.c.l.b16 %v75
    %v859 = vunpack.c.h.b16 %v75
    %v860 = vunpack.c.l.b16 %v76
    %v861 = vunpack.c.h.b16 %v76
    %v862 = vunpack.c.l.b16 %v77
    %v863 = vunpack.c.h.b16 %v77
    %v864 = vunpack.c.l.b16 %v78
    %v865 = vunpack.c.h.b16 %v78
    %v866 = vunpack.c.l.b16 %v79
    %v867 = vunpack.c.h.b16 %v79
    %v868 = vunpack.c.l.b16 %v80
    %v869 = vunpack.c.h.b16 %v80
    %v870 = vunpack.c.l.b16 %v81
    %v871 = vunpack.c.h.b16 %v81
    %v872 = vunpack.c.l.b16 %v82
    %v873 = vunpack.c.h.b16 %v82
    %v874 = vunpack.c.l.b16 %v83
    %v875 = vunpack.c.h.b16 %v83
    %v876 = vunpack.c.l.b16 %v84
    %v877 = vunpack.c.h.b16 %v84
    %v878 = vunpack.c.l.b16 %v85
    %v879 = vunpack.c.h.b16 %v85
    %v880 = vunpack.c.l.b16 %v86
    %v881 = vunpack.c.h.b16 %v86
    %v882 = vunpack.c.l.b16 %v87
    %v883 = vunpack.c.h.b16 %v87
    %v884 = vunpack.c.l.b16 %v88
    %v885 = vunpack.c.h.b16 %v88
    %v886 = vunpack.c.l.b16 %v89
    %v887 = vunpack.c.h.b16 %v89
    %v888 = vunpack.c.l.b16 %v90
    %v889 = vunpack.c.h.b16 %v90
    %v890 = vunpack.c.l.b16 %v91
    %v891 = vunpack.c.h.b16 %v91
    %v892 = vunpack.c.l.b16 %v92
    %v893 = vunpack.c.h.b16 %v92
    %v894 = vunpack.c.l.b16 %v93
    %v895 = vunpack.c.h.b16 %v93
    %v896 = vunpack.c.l.b16 %v94
    %v897 = vunpack.c.h.b16 %v94
    %v898 = vunpack.c.l.b16 %v95
    %v899 = vunpack.c.h.b16 %v95
    %v900 = vunpack.c.l.b16 %v96
    %v901 = vunpack.c.h.b16 %v96
    %v902 = vunpack.c.l.b16 %v97
    %v903 = vunpack.c.h.b16 %v97
    %v904 = vunpack.c.l.b16 %v98
    %v905 = vunpack.c.h.b16 %v98
    %v906 = vunpack.c.l.b16 %v99
    %v907 = vunpack.c.h.b16 %v99
    %v908 = vunpack.c.l.b16 %v100
    %v909 = vunpack.c.h.b16 %v100
    %v910 = vunpack.c.l.b16 %v101
    %v911 = vunpack.c.h.b16 %v101
    %v912 = vunpack.c.l.b16 %v102
    %v913 = vunpack.c.h.b16 %v102
    %v914 = vunpack.c.l.b16 %v103
    %v915 = vunpack.c.h.b16 %v103
    %v916 = vunpack.c.l.b16 %v104
    %v917 = vunpack.c.h.b16 %v104
    %v918 = vunpack.c.l.b16 %v105
    %v919 = vunpack.c.h.b16 %v105
    %v920 = vunpack.c.l.b16 %v106
    %v921 = vunpack.c.h.b16 %v106
    %v922 = vunpack.c.l.b16 %v107
    %v923 = vunpack.c.h.b16 %v107
    %v924 = vunpack.c.l.b16 %v108
    %v925 = vunpack.c.h.b16 %v108
    %v926 = vunpack.c.l.b16 %v109
    %v927 = vunpack.c.h.b16 %v109
    %v928 = vunpack.c.l.b16 %v110
    %v929 = vunpack.c.h.b16 %v110
    %v930 = vunpack.c.l.b16 %v111
    %v931 = vunpack.c.h.b16 %v111
    %v932 = vunpack.c.l.b16 %v112
    %v933 = vunpack.c.h.b16 %v112
    %v934 = vunpack.c.l.b16 %v113
    %v935 = vunpack.c.h.b16 %v113
    %v936 = vunpack.c.l.b16 %v114
    %v937 = vunpack.c.h.b16 %v114
    %v938 = vunpack.c.l.b16 %v115
    %v939 = vunpack.c.h.b16 %v115
    %v940 = vunpack.c.l.b16 %v116
    %v941 = vunpack.c.h.b16 %v116
    %v942 = vunpack.c.l.b16 %v117
    %v943 = vunpack.c.h.b16 %v117
    %v944 = vunpack.c.l.b16 %v118
    %v945 = vunpack.c.h.b16 %v118
    %v946 = vunpack.c.l.b16 %v119
    %v947 = vunpack.c.h.b16 %v119
    %v948 = vunpack.c.l.b16 %v120
    %v949 = vunpack.c.h.b16 %v120
    %v950 = vunpack.c.l.b16 %v121
    %v951 = vunpack.c.h.b16 %v121
    %v952 = vunpack.c.l.b16 %v122
    %v953 = vunpack.c.h.b16 %v122
    %v954 = vunpack.c.l.b16 %v123
    %v955 = vunpack.c.h.b16 %v123
    %v956 = vunpack.c.l.b16 %v124
    %v957 = vunpack.c.h.b16 %v124
    %v958 = vunpack.c.l.b16 %v125
    %v959 = vunpack.c.h.b16 %v125
    %v960 = vunpack.c.l.b16 %v126
    %v961 = vunpack.c.h.b16 %v126
    %v962 = vunpack.c.l.b16 %v127
    %v963 = vunpack.c.h.b16 %v127
    %v964 = vunpack.c.l.b16 %v128
    %v965 = vunpack.c.h.b16 %v128
    %v966 = vunpack.c.l.b16 %v129
    %v967 = vunpack.c.h.b16 %v129
    %v968 = vunpack.c.l.b16 %v130
    %v969 = vunpack.c.h.b16 %v130
    %v970 = vunpack.c.l.b16 %v131
    %v971 = vunpack.c.h.b16 %v131
    %v972 = vunpack.c.l.b16 %v132
    %v973 = vunpack.c.h.b16 %v132
    %v974 = vunpack.c.l.b16 %v133
    %v975 = vunpack.c.h.b16 %v133
    %v976 = vunpack.c.l.b16 %v134
    %v977 = vunpack.c.h.b16 %v134
    %v978 = vunpack.c.l.b16 %v135
    %v979 = vunpack.c.h.b16 %v135
    %v980 = vunpack.c.l.b16 %v136
    %v981 = vunpack.c.h.b16 %v136
    %v982 = vunpack.c.l.b16 %v137
    %v983 = vunpack.c.h.b16 %v137
    %v984 = vunpack.c.l.b16 %v138
    %v985 = vunpack.c.h.b16 %v138
    %v986 = vunpack.c.l.b16 %v139
    %v987 = vunpack.c.h.b16 %v139
    %v988 = vunpack.c.l.b16 %v140
    %v989 = vunpack.c.h.b16 %v140
    %v990 = vunpack.c.l.b16 %v141
    %v991 = vunpack.c.h.b16 %v141
    %v992 = vunpack.c.l.b16 %v142
    %v993 = vunpack.c.h.b16 %v142
    %v994 = vunpack.c.l.b16 %v143
    %v995 = vunpack.c.h.b16 %v143
    %v996 = vunpack.c.l.b16 %v144
    %v997 = vunpack.c.h.b16 %v144
    %v998 = vunpack.c.l.b16 %v145
    %v999 = vunpack.c.h.b16 %v145
    %v1000 = vunpack.c.l.b16 %v146
    %v1001 = vunpack.c.h.b16 %v146
    %v1002 = vunpack.c.l.b16 %v147
    %v1003 = vunpack.c.h.b16 %v147
    %v1004 = vunpack.c.l.b16 %v148
    %v1005 = vunpack.c.h.b16 %v148
    %v1006 = vunpack.c.l.b16 %v149
    %v1007 = vunpack.c.h.b16 %v149
    %v1008 = vunpack.c.l.b16 %v150
    %v1009 = vunpack.c.h.b16 %v150
    %v1010 = vunpack.c.l.b16 %v151
    %v1011 = vunpack.c.h.b16 %v151
    %v1012 = vunpack.c.l.b16 %v152
    %v1013 = vunpack.c.h.b16 %v152
    %v1014 = vunpack.c.l.b16 %v153
    %v1015 = vunpack.c.h.b16 %v153
    %v1016 = vunpack.c.l.b16 %v154
    %v1017 = vunpack.c.h.b16 %v154
    %v1018 = vunpack.c.l.b16 %v155
    %v1019 = vunpack.c.h.b16 %v155
    %v1020 = vunpack.c.l.b16 %v156
    %v1021 = vunpack.c.h.b16 %v156
    %v1022 = vunpack.c.l.b16 %v157
    %v1023 = vunpack.c.h.b16 %v157
    %v1024 = vunpack.c.l.b16 %v158
    %v1025 = vunpack.c.h.b16 %v158
    %v1026 = vunpack.c.l.b16 %v159
    %v1027 = vunpack.c.h.b16 %v159
    %v1028 = vunpack.c.l.b16 %v160
    %v1029 = vunpack.c.h.b16 %v160
    %v1030 = vunpack.c.l.b16 %v161
    %v1031 = vunpack.c.h.b16 %v161
    %v1032 = vunpack.c.l.b16 %v162
    %v1033 = vunpack.c.h.b16 %v162
    %v1034 = vunpack.c.l.b16 %v163
    %v1035 = vunpack.c.h.b16 %v163
    %v1036 = vunpack.c.l.b16 %v164
    %v1037 = vunpack.c.h.b16 %v164
    %v1038 = vunpack.c.l.b16 %v165
    %v1039 = vunpack.c.h.b16 %v165
    %v1040 = vunpack.c.l.b16 %v166
    %v1041 = vunpack.c.h.b16 %v166
    %v1042 = vunpack.c.l.b16 %v167
    %v1043 = vunpack.c.h.b16 %v167
    %v1044 = vunpack.c.l.b16 %v168
    %v1045 = vunpack.c.h.b16 %v168
    %v1046 = vunpack.c.l.b16 %v169
    %v1047 = vunpack.c.h.b16 %v169
    %v1048 = vunpack.c.l.b16 %v170
    %v1049 = vunpack.c.h.b16 %v170
    %v1050 = vunpack.c.l.b16 %v171
    %v1051 = vunpack.c.h.b16 %v171
    %v1052 = vunpack.c.l.b16 %v172
    %v1053 = vunpack.c.h.b16 %v172
    %v1054 = vunpack.c.l.b16 %v173
    %v1055 = vunpack.c.h.b16 %v173
    %v1056 = vunpack.c.l.b16 %v174
    %v1057 = vunpack.c.h.b16 %v174
    %v1058 = vunpack.c.l.b16 %v175
    %v1059 = vunpack.c.h.b16 %v175
    %v1060 = vunpack.c.l.b16 %v176
    %v1061 = vunpack.c.h.b16 %v176
    %v1062 = vunpack.c.l.b16 %v177
    %v1063 = vunpack.c.h.b16 %v177
    %v1064 = vunpack.c.l.b16 %v178
    %v1065 = vunpack.c.h.b16 %v178
    %v1066 = vunpack.c.l.b16 %v179
    %v1067 = vunpack.c.h.b16 %v179
    %v1068 = vunpack.c.l.b16 %v180
    %v1069 = vunpack.c.h.b16 %v180
    %v1070 = vunpack.c.l.b16 %v181
    %v1071 = vunpack.c.h.b16 %v181
    %v1072 = vunpack.c.l.b16 %v182
    %v1073 = vunpack.c.h.b16 %v182
    %v1074 = vunpack.c.l.b16 %v183
    %v1075 = vunpack.c.h.b16 %v183
    %v1076 = vunpack.c.l.b16 %v184
    %v1077 = vunpack.c.h.b16 %v184
    %v1078 = vunpack.c.l.b16 %v185
    %v1079 = vunpack.c.h.b16 %v185
    %v1080 = vunpack.c.l.b16 %v186
    %v1081 = vunpack.c.h.b16 %v186
    %v1082 = vunpack.c.l.b16 %v187
    %v1083 = vunpack.c.h.b16 %v187
    %v1084 = vunpack.c.l.b16 %v188
    %v1085 = vunpack.c.h.b16 %v188
    %v1086 = vunpack.c.l.b16 %v189
    %v1087 = vunpack.c.h.b16 %v189
    %v1088 = vunpack.c.l.b16 %v190
    %v1089 = vunpack.c.h.b16 %v190
    %v1090 = vunpack.c.l.b16 %v191
    %v1091 = vunpack.c.h.b16 %v191
    %v1092 = vunpack.c.l.b16 %v192
    %v1093 = vunpack.c.h.b16 %v192
    %v1094 = vunpack.c.l.b16 %v193
    %v1095 = vunpack.c.h.b16 %v193
    %v1096 = vunpack.c.l.b16 %v194
    %v1097 = vunpack.c.h.b16 %v194
    %v1098 = vunpack.c.l.b16 %v195
    %v1099 = vunpack.c.h.b16 %v195
    %v1100 = vunpack.c.l.b16 %v196
    %v1101 = vunpack.c.h.b16 %v196
    %v1102 = vunpack.c.l.b16 %v197
    %v1103 = vunpack.c.h.b16 %v197
    %v1104 = vunpack.c.l.b16 %v198
    %v1105 = vunpack.c.h.b16 %v198
    %v1106 = vunpack.c.l.b16 %v199
    %v1107 = vunpack.c.h.b16 %v199
    %v1108 = vunpack.c.l.b16 %v200
    %v1109 = vunpack.c.h.b16 %v200
    %v1110 = vunpack.c.l.b16 %v201
    %v1111 = vunpack.c.h.b16 %v201
    %v1112 = vunpack.c.l.b16 %v202
    %v1113 = vunpack.c.h.b16 %v202
    %v1114 = vunpack.c.l.b16 %v203
    %v1115 = vunpack.c.h.b16 %v203
    %v1116 = vunpack.c.l.b16 %v204
    %v1117 = vunpack.c.h.b16 %v204
    %v1118 = vunpack.c.l.b16 %v205
    %v1119 = vunpack.c.h.b16 %v205
    %v1120 = vunpack.c.l.b16 %v206
    %v1121 = vunpack.c.h.b16 %v206
    %v1122 = vunpack.c.l.b16 %v207
    %v1123 = vunpack.c.h.b16 %v207
    %v1124 = vunpack.c.l.b16 %v208
    %v1125 = vunpack.c.h.b16 %v208
    %v1126 = vunpack.c.l.b16 %v209
    %v1127 = vunpack.c.h.b16 %v209
    %v1128 = vunpack.c.l.b16 %v210
    %v1129 = vunpack.c.h.b16 %v210
    %v1130 = vunpack.c.l.b16 %v211
    %v1131 = vunpack.c.h.b16 %v211
    %v1132 = vunpack.c.l.b16 %v212
    %v1133 = vunpack.c.h.b16 %v212
    %v1134 = vunpack.c.l.b16 %v213
    %v1135 = vunpack.c.h.b16 %v213
    %v1136 = vunpack.c.l.b16 %v214
    %v1137 = vunpack.c.h.b16 %v214
    %v1138 = vunpack.c.l.b16 %v215
    %v1139 = vunpack.c.h.b16 %v215
    %v1140 = vunpack.c.l.b16 %v216
    %v1141 = vunpack.c.h.b16 %v216
    %v1142 = vunpack.c.l.b16 %v217
    %v1143 = vunpack.c.h.b16 %v217
    %v1144 = vunpack.c.l.b16 %v218
    %v1145 = vunpack.c.h.b16 %v218
    %v1146 = vunpack.c.l.b16 %v219
    %v1147 = vunpack.c.h.b16 %v219
    %v1148 = vunpack.c.l.b16 %v220
    %v1149 = vunpack.c.h.b16 %v220
    %v1150 = vunpack.c.l.b16 %v221
    %v1151 = vunpack.c.h.b16 %v221
    %v1152 = vunpack.c.l.b16 %v222
    %v1153 = vunpack.c.h.b16 %v222
    %v1154 = vunpack.c.l.b16 %v223
    %v1155 = vunpack.c.h.b16 %v223
    %v1156 = vunpack.c.l.b16 %v224
    %v1157 = vunpack.c.h.b16 %v224
    %v1158 = vunpack.c.l.b16 %v225
    %v1159 = vunpack.c.h.b16 %v225
    %v1160 = vunpack.c.l.b16 %v226
    %v1161 = vunpack.c.h.b16 %v226
    %v1162 = vunpack.c.l.b16 %v227
    %v1163 = vunpack.c.h.b16 %v227
    %v1164 = vunpack.c.l.b16 %v228
    %v1165 = vunpack.c.h.b16 %v228
    %v1166 = vunpack.c.l.b16 %v229
    %v1167 = vunpack.c.h.b16 %v229
    %v1168 = vunpack.c.l.b16 %v230
    %v1169 = vunpack.c.h.b16 %v230
    %v1170 = vunpack.c.l.b16 %v231
    %v1171 = vunpack.c.h.b16 %v231
    %v1172 = vunpack.c.l.b16 %v232
    %v1173 = vunpack.c.h.b16 %v232
    %v1174 = vunpack.c.l.b16 %v233
    %v1175 = vunpack.c.h.b16 %v233
    %v1176 = vunpack.c.l.b16 %v234
    %v1177 = vunpack.c.h.b16 %v234
    %v1178 = vunpack.c.l.b16 %v235
    %v1179 = vunpack.c.h.b16 %v235
    %v1180 = vunpack.c.l.b16 %v236
    %v1181 = vunpack.c.h.b16 %v236
    %v1182 = vunpack.c.l.b16 %v237
    %v1183 = vunpack.c.h.b16 %v237
    %v1184 = vunpack.c.l.b16 %v238
    %v1185 = vunpack.c.h.b16 %v238
    %v1186 = vunpack.c.l.b16 %v239
    %v1187 = vunpack.c.h.b16 %v239
    %v1188 = vunpack.c.l.b16 %v240
    %v1189 = vunpack.c.h.b16 %v240
    %v1190 = vunpack.c.l.b16 %v241
    %v1191 = vunpack.c.h.b16 %v241
    %v1192 = vunpack.c.l.b16 %v242
    %v1193 = vunpack.c.h.b16 %v242
    %v1194 = vunpack.c.l.b16 %v243
    %v1195 = vunpack.c.h.b16 %v243
    %v1196 = vunpack.c.l.b16 %v244
    %v1197 = vunpack.c.h.b16 %v244
    %v1198 = vunpack.c.l.b16 %v245
    %v1199 = vunpack.c.h.b16 %v245
    %v1200 = vunpack.c.l.b16 %v246
    %v1201 = vunpack.c.h.b16 %v246
    %v1202 = vunpack.c.l.b16 %v247
    %v1203 = vunpack.c.h.b16 %v247
    %v1204 = vunpack.c.l.b16 %v248
    %v1205 = vunpack.c.h.b16 %v248
    %v1206 = vunpack.c.l.b16 %v249
    %v1207 = vunpack.c.h.b16 %v249
    %v1208 = vunpack.c.l.b16 %v250
    %v1209 = vunpack.c.h.b16 %v250
    %v1210 = vunpack.c.l.b16 %v251
    %v1211 = vunpack.c.h.b16 %v251
    %v1212 = vunpack.c.l.b16 %v252
    %v1213 = vunpack.c.h.b16 %v252
    %v1214 = vunpack.c.l.b16 %v253
    %v1215 = vunpack.c.h.b16 %v253
    %v1216 = vunpack.c.l.b16 %v254
    %v1217 = vunpack.c.h.b16 %v254
    %v1218 = vunpack.c.l.b16 %v255
    %v1219 = vunpack.c.h.b16 %v255
    %v1220 = vunpack.c.l.b16 %v256
    %v1221 = vunpack.c.h.b16 %v256
    %v1222 = vunpack.c.l.b16 %v257
    %v1223 = vunpack.c.h.b16 %v257
    %v1224 = vunpack.c.l.b16 %v258
    %v1225 = vunpack.c.h.b16 %v258
    %v1226 = vunpack.c.l.b16 %v259
    %v1227 = vunpack.c.h.b16 %v259
    %v1228 = vunpack.c.l.b16 %v260
    %v1229 = vunpack.c.h.b16 %v260
    %v1230 = vunpack.c.l.b16 %v261
    %v1231 = vunpack.c.h.b16 %v261
    %v1232 = vunpack.c.l.b16 %v262
    %v1233 = vunpack.c.h.b16 %v262
    %v1234 = vunpack.c.l.b16 %v263
    %v1235 = vunpack.c.h.b16 %v263
    %v1236 = vunpack.c.l.b16 %v264
    %v1237 = vunpack.c.h.b16 %v264
    %v1238 = vunpack.c.l.b16 %v265
    %v1239 = vunpack.c.h.b16 %v265
    %v1240 = vunpack.c.l.b16 %v266
    %v1241 = vunpack.c.h.b16 %v266
    %v1242 = vunpack.c.l.b16 %v267
    %v1243 = vunpack.c.h.b16 %v267
    %v1244 = vunpack.c.l.b16 %v268
    %v1245 = vunpack.c.h.b16 %v268
    %v1246 = vunpack.c.l.b16 %v269
    %v1247 = vunpack.c.h.b16 %v269
    %v1248 = vunpack.c.l.b16 %v270
    %v1249 = vunpack.c.h.b16 %v270
    %v1250 = vunpack.c.l.b16 %v271
    %v1251 = vunpack.c.h.b16 %v271
    %v1252 = vunpack.c.l.b16 %v272
    %v1253 = vunpack.c.h.b16 %v272
    %v1254 = vunpack.c.l.b16 %v273
    %v1255 = vunpack.c.h.b16 %v273
    %v1256 = vunpack.c.l.b16 %v274
    %v1257 = vunpack.c.h.b16 %v274
    %v1258 = vunpack.c.l.b16 %v275
    %v1259 = vunpack.c.h.b16 %v275
    %v1260 = vunpack.c.l.b16 %v276
    %v1261 = vunpack.c.h.b16 %v276
    %v1262 = vunpack.c.l.b16 %v277
    %v1263 = vunpack.c.h.b16 %v277
    %v1264 = vunpack.c.l.b16 %v278
    %v1265 = vunpack.c.h.b16 %v278
    %v1266 = vunpack.c.l.b16 %v279
    %v1267 = vunpack.c.h.b16 %v279
    %v1268 = vunpack.c.l.b16 %v280
    %v1269 = vunpack.c.h.b16 %v280
    %v1270 = vunpack.c.l.b16 %v281
    %v1271 = vunpack.c.h.b16 %v281
    %v1272 = vunpack.c.l.b16 %v282
    %v1273 = vunpack.c.h.b16 %v282
    %v1274 = vunpack.c.l.b16 %v283
    %v1275 = vunpack.c.h.b16 %v283
    %v1276 = vunpack.c.l.b16 %v284
    %v1277 = vunpack.c.h.b16 %v284
    %v1278 = vunpack.c.l.b16 %v285
    %v1279 = vunpack.c.h.b16 %v285
    %v1280 = vunpack.c.l.b16 %v286
    %v1281 = vunpack.c.h.b16 %v286
    %v1282 = vunpack.c.l.b16 %v287
    %v1283 = vunpack.c.h.b16 %v287
    %v1284 = vunpack.c.l.b16 %v288
    %v1285 = vunpack.c.h.b16 %v288
    %v1286 = vunpack.c.l.b16 %v289
    %v1287 = vunpack.c.h.b16 %v289
    %v1288 = vunpack.c.l.b16 %v290
    %v1289 = vunpack.c.h.b16 %v290
    %v1290 = vunpack.c.l.b16 %v291
    %v1291 = vunpack.c.h.b16 %v291
    %v1292 = vunpack.c.l.b16 %v292
    %v1293 = vunpack.c.h.b16 %v292
    %v1294 = vunpack.c.l.b16 %v293
    %v1295 = vunpack.c.h.b16 %v293
    %v1296 = vunpack.c.l.b16 %v294
    %v1297 = vunpack.c.h.b16 %v294
    %v1298 = vunpack.c.l.b16 %v295
    %v1299 = vunpack.c.h.b16 %v295
    %v1300 = vunpack.c.l.b16 %v296
    %v1301 = vunpack.c.h.b16 %v296
    %v1302 = vunpack.c.l.b16 %v297
    %v1303 = vunpack.c.h.b16 %v297
    %v1304 = vunpack.c.l.b16 %v298
    %v1305 = vunpack.c.h.b16 %v298
    %v1306 = vunpack.c.l.b16 %v299
    %v1307 = vunpack.c.h.b16 %v299
    %v1308 = vunpack.c.l.b16 %v300
    %v1309 = vunpack.c.h.b16 %v300
    %v1310 = vunpack.c.l.b16 %v301
    %v1311 = vunpack.c.h.b16 %v301
    %v1312 = vunpack.c.l.b16 %v302
    %v1313 = vunpack.c.h.b16 %v302
    %v1314 = vunpack.c.l.b16 %v303
    %v1315 = vunpack.c.h.b16 %v303
    %v1316 = vunpack.c.l.b16 %v304
    %v1317 = vunpack.c.h.b16 %v304
    %v1318 = vunpack.c.l.b16 %v305
    %v1319 = vunpack.c.h.b16 %v305
    %v1320 = vunpack.c.l.b16 %v306
    %v1321 = vunpack.c.h.b16 %v306
    %v1322 = vunpack.c.l.b16 %v307
    %v1323 = vunpack.c.h.b16 %v307
    %v1324 = vunpack.c.l.b16 %v308
    %v1325 = vunpack.c.h.b16 %v308
    %v1326 = vunpack.c.l.b16 %v309
    %v1327 = vunpack.c.h.b16 %v309
    %v1328 = vunpack.c.l.b16 %v310
    %v1329 = vunpack.c.h.b16 %v310
    %v1330 = vunpack.c.l.b16 %v311
    %v1331 = vunpack.c.h.b16 %v311
    %v1332 = vunpack.c.l.b16 %v312
    %v1333 = vunpack.c.h.b16 %v312
    %v1334 = vunpack.c.l.b16 %v313
    %v1335 = vunpack.c.h.b16 %v313
    %v1336 = vunpack.c.l.b16 %v314
    %v1337 = vunpack.c.h.b16 %v314
    %v1338 = vunpack.c.l.b16 %v315
    %v1339 = vunpack.c.h.b16 %v315
    %v1340 = vunpack.c.l.b16 %v316
    %v1341 = vunpack.c.h.b16 %v316
    %v1342 = vunpack.c.l.b16 %v317
    %v1343 = vunpack.c.h.b16 %v317
    %v1344 = vunpack.c.l.b16 %v318
    %v1345 = vunpack.c.h.b16 %v318
    %v1346 = vunpack.c.l.b16 %v319
    %v1347 = vunpack.c.h.b16 %v319
    %v1348 = vunpack.c.l.b16 %v320
    %v1349 = vunpack.c.h.b16 %v320
    %v1350 = vunpack.c.l.b16 %v321
    %v1351 = vunpack.c.h.b16 %v321
    %v1352 = vunpack.c.l.b16 %v322
    %v1353 = vunpack.c.h.b16 %v322
    %v1354 = vunpack.c.l.b16 %v323
    %v1355 = vunpack.c.h.b16 %v323
    %v1356 = vunpack.c.l.b16 %v324
    %v1357 = vunpack.c.h.b16 %v324
    %v1358 = vunpack.c.l.b16 %v325
    %v1359 = vunpack.c.h.b16 %v325
    %v1360 = vunpack.c.l.b16 %v326
    %v1361 = vunpack.c.h.b16 %v326
    %v1362 = vunpack.c.l.b16 %v327
    %v1363 = vunpack.c.h.b16 %v327
    %v1364 = vunpack.c.l.b16 %v328
    %v1365 = vunpack.c.h.b16 %v328
    %v1366 = vunpack.c.l.b16 %v329
    %v1367 = vunpack.c.h.b16 %v329
    %v1368 = vunpack.c.l.b16 %v330
    %v1369 = vunpack.c.h.b16 %v330
    %v1370 = vunpack.c.l.b16 %v331
    %v1371 = vunpack.c.h.b16 %v331
    %v1372 = vunpack.c.l.b16 %v332
    %v1373 = vunpack.c.h.b16 %v332
    %v1374 = vunpack.c.l.b16 %v333
    %v1375 = vunpack.c.h.b16 %v333
    %v1376 = vunpack.c.l.b16 %v334
    %v1377 = vunpack.c.h.b16 %v334
    %v1378 = vunpack.c.l.b16 %v335
    %v1379 = vunpack.c.h.b16 %v335
    %v1380 = vunpack.c.l.b16 %v336
    %v1381 = vunpack.c.h.b16 %v336
    %v1382 = vunpack.c.l.b16 %v337
    %v1383 = vunpack.c.h.b16 %v337
    %v1384 = vunpack.c.l.b16 %v338
    %v1385 = vunpack.c.h.b16 %v338
    %v1386 = vunpack.c.l.b16 %v339
    %v1387 = vunpack.c.h.b16 %v339
    %v1388 = vunpack.c.l.b16 %v340
    %v1389 = vunpack.c.h.b16 %v340
    %v1390 = vunpack.c.l.b16 %v341
    %v1391 = vunpack.c.h.b16 %v341
    %v1392 = vunpack.c.l.b16 %v342
    %v1393 = vunpack.c.h.b16 %v342
    %v1394 = vunpack.c.l.b16 %v343
    %v1395 = vunpack.c.h.b16 %v343
    %v1396 = vunpack.c.l.b16 %v344
    %v1397 = vunpack.c.h.b16 %v344
    %v1398 = vunpack.c.l.b16 %v345
    %v1399 = vunpack.c.h.b16 %v345
    %v1400 = vunpack.c.l.b16 %v346
    %v1401 = vunpack.c.h.b16 %v346
    %v1402 = vunpack.c.l.b16 %v347
    %v1403 = vunpack.c.h.b16 %v347
    %v1404 = vunpack.c.l.b16 %v348
    %v1405 = vunpack.c.h.b16 %v348
    %v1406 = vunpack.c.l.b16 %v349
    %v1407 = vunpack.c.h.b16 %v349
    %v1408 = vunpack.c.l.b16 %v350
    %v1409 = vunpack.c.h.b16 %v350
    %v1410 = vunpack.c.l.b16 %v351
    %v1411 = vunpack.c.h.b16 %v351
    %v1412 = vunpack.c.l.b16 %v352
    %v1413 = vunpack.c.h.b16 %v352
    %v1414 = vunpack.c.l.b16 %v353
    %v1415 = vunpack.c.h.b16 %v353
    %v1416 = vunpack.c.l.b16 %v354
    %v1417 = vunpack.c.h.b16 %v354
    %v1418 = vunpack.c.l.b16 %v355
    %v1419 = vunpack.c.h.b16 %v355
    %v1420 = vunpack.c.l.b16 %v356
    %v1421 = vunpack.c.h.b16 %v356
    %v1422 = vunpack.c.l.b16 %v357
    %v1423 = vunpack.c.h.b16 %v357
    %v1424 = vunpack.c.l.b16 %v358
    %v1425 = vunpack.c.h.b16 %v358
    %v1426 = vunpack.c.l.b16 %v359
    %v1427 = vunpack.c.h.b16 %v359
    %v1428 = vunpack.c.l.b16 %v360
    %v1429 = vunpack.c.h.b16 %v360
    %v1430 = vunpack.c.l.b16 %v361
    %v1431 = vunpack.c.h.b16 %v361
    %v1432 = vunpack.c.l.b16 %v362
    %v1433 = vunpack.c.h.b16 %v362
    %v1434 = vunpack.c.l.b16 %v363
    %v1435 = vunpack.c.h.b16 %v363
    %v1436 = vunpack.c.l.b16 %v364
    %v1437 = vunpack.c.h.b16 %v364
    %v1438 = vunpack.c.l.b16 %v365
    %v1439 = vunpack.c.h.b16 %v365
    %v1440 = vunpack.c.l.b16 %v366
    %v1441 = vunpack.c.h.b16 %v366
    %v1442 = vunpack.c.l.b16 %v367
    %v1443 = vunpack.c.h.b16 %v367
    %v1444 = vunpack.c.l.b16 %v368
    %v1445 = vunpack.c.h.b16 %v368
    %v1446 = vunpack.c.l.b16 %v369
    %v1447 = vunpack.c.h.b16 %v369
    %v1448 = vunpack.c.l.b16 %v370
    %v1449 = vunpack.c.h.b16 %v370
    %v1450 = vunpack.c.l.b16 %v371
    %v1451 = vunpack.c.h.b16 %v371
    %v1452 = vunpack.c.l.b16 %v372
    %v1453 = vunpack.c.h.b16 %v372
    %v1454 = vunpack.c.l.b16 %v373
    %v1455 = vunpack.c.h.b16 %v373
    %v1456 = vunpack.c.l.b16 %v374
    %v1457 = vunpack.c.h.b16 %v374
    %v1458 = vunpack.c.l.b16 %v375
    %v1459 = vunpack.c.h.b16 %v375
    %v1460 = vunpack.c.l.b16 %v376
    %v1461 = vunpack.c.h.b16 %v376
    %v1462 = vunpack.c.l.b16 %v377
    %v1463 = vunpack.c.h.b16 %v377
    %v1464 = vunpack.c.l.b16 %v378
    %v1465 = vunpack.c.h.b16 %v378
    %v1466 = vunpack.c.l.b16 %v379
    %v1467 = vunpack.c.h.b16 %v379
    %v1468 = vunpack.c.l.b16 %v380
    %v1469 = vunpack.c.h.b16 %v380
    %v1470 = vunpack.c.l.b16 %v381
    %v1471 = vunpack.c.h.b16 %v381
    %v1472 = vunpack.c.l.b16 %v382
    %v1473 = vunpack.c.h.b16 %v382
    %v1474 = vunpack.c.l.b16 %v383
    %v1475 = vunpack.c.h.b16 %v383
    %v1476 = vunpack.c.l.b16 %v384
    %v1477 = vunpack.c.h.b16 %v384
    %v1478 = vunpack.c.l.b16 %v385
    %v1479 = vunpack.c.h.b16 %v385
    %v1480 = vunpack.c.l.b16 %v386
    %v1481 = vunpack.c.h.b16 %v386
    %v1482 = vunpack.c.l.b16 %v387
    %v1483 = vunpack.c.h.b16 %v387
    %v1484 = vunpack.c.l.b16 %v388
    %v1485 = vunpack.c.h.b16 %v388
    %v1486 = vunpack.c.l.b16 %v389
    %v1487 = vunpack.c.h.b16 %v389
    %v1488 = vunpack.c.l.b16 %v390
    %v1489 = vunpack.c.h.b16 %v390
    %v1490 = vunpack.c.l.b16 %v391
    %v1491 = vunpack.c.h.b16 %v391
    %v1492 = vunpack.c.l.b16 %v392
    %v1493 = vunpack.c.h.b16 %v392
    %v1494 = vunpack.c.l.b16 %v393
    %v1495 = vunpack.c.h.b16 %v393
    %v1496 = vunpack.c.l.b16 %v394
    %v1497 = vunpack.c.h.b16 %v394
    %v1498 = vunpack.c.l.b16 %v395
    %v1499 = vunpack.c.h.b16 %v395
    %v1500 = vunpack.c.l.b16 %v396
    %v1501 = vunpack.c.h.b16 %v396
    %v1502 = vunpack.c.l.b16 %v397
    %v1503 = vunpack.c.h.b16 %v397
    %v1504 = vunpack.c.l.b16 %v398
    %v1505 = vunpack.c.h.b16 %v398
    %v1506 = vunpack.c.l.b16 %v399
    %v1507 = vunpack.c.h.b16 %v399
    %v1508 = vunpack.c.l.b16 %v400
    %v1509 = vunpack.c.h.b16 %v400
    %v1510 = vunpack.c.l.b16 %v401
    %v1511 = vunpack.c.h.b16 %v401
    %v1512 = vunpack.c.l.b16 %v402
    %v1513 = vunpack.c.h.b16 %v402
    %v1514 = vunpack.c.l.b16 %v403
    %v1515 = vunpack.c.h.b16 %v403
    %v1516 = vunpack.c.l.b16 %v404
    %v1517 = vunpack.c.h.b16 %v404
    %v1518 = vunpack.c.l.b16 %v405
    %v1519 = vunpack.c.h.b16 %v405
    %v1520 = vunpack.c.l.b16 %v406
    %v1521 = vunpack.c.h.b16 %v406
    %v1522 = vunpack.c.l.b16 %v407
    %v1523 = vunpack.c.h.b16 %v407
    %v1524 = vunpack.c.l.b16 %v408
    %v1525 = vunpack.c.h.b16 %v408
    %v1526 = vunpack.c.l.b16 %v409
    %v1527 = vunpack.c.h.b16 %v409
    %v1528 = vunpack.c.l.b16 %v410
    %v1529 = vunpack.c.h.b16 %v410
    %v1530 = vunpack.c.l.b16 %v411
    %v1531 = vunpack.c.h.b16 %v411
    %v1532 = vunpack.c.l.b16 %v412
    %v1533 = vunpack.c.h.b16 %v412
    %v1534 = vunpack.c.l.b16 %v413
    %v1535 = vunpack.c.h.b16 %v413
    %v1536 = vunpack.c.l.b16 %v414
    %v1537 = vunpack.c.h.b16 %v414
    %v1538 = vunpack.c.l.b16 %v415
    %v1539 = vunpack.c.h.b16 %v415
    %v1540 = vunpack.c.l.b16 %v416
    %v1541 = vunpack.c.h.b16 %v416
    %v1542 = vunpack.c.l.b16 %v417
    %v1543 = vunpack.c.h.b16 %v417
    %v1544 = vunpack.c.l.b16 %v418
    %v1545 = vunpack.c.h.b16 %v418
    %v1546 = vunpack.c.l.b16 %v419
    %v1547 = vunpack.c.h.b16 %v419
    %v1548 = vunpack.c.l.b16 %v420
    %v1549 = vunpack.c.h.b16 %v420
    %v1550 = vunpack.c.l.b16 %v421
    %v1551 = vunpack.c.h.b16 %v421
    %v1552 = vunpack.c.l.b16 %v422
    %v1553 = vunpack.c.h.b16 %v422
    %v1554 = vunpack.c.l.b16 %v423
    %v1555 = vunpack.c.h.b16 %v423
    %v1556 = vunpack.c.l.b16 %v424
    %v1557 = vunpack.c.h.b16 %v424
    %v1558 = vunpack.c.l.b16 %v425
    %v1559 = vunpack.c.h.b16 %v425
    %v1560 = vunpack.c.l.b16 %v426
    %v1561 = vunpack.c.h.b16 %v426
    %v1562 = vunpack.c.l.b16 %v427
    %v1563 = vunpack.c.h.b16 %v427
    %v1564 = vunpack.c.l.b16 %v428
    %v1565 = vunpack.c.h.b16 %v428
    %v1566 = vunpack.c.l.b16 %v429
    %v1567 = vunpack.c.h.b16 %v429
    %v1568 = vunpack.c.l.b16 %v430
    %v1569 = vunpack.c.h.b16 %v430
    %v1570 = vunpack.c.l.b16 %v431
    %v1571 = vunpack.c.h.b16 %v431
    %v1572 = vunpack.c.l.b16 %v432
    %v1573 = vunpack.c.h.b16 %v432
    %v1574 = vunpack.c.l.b16 %v433
    %v1575 = vunpack.c.h.b16 %v433
    %v1576 = vunpack.c.l.b16 %v434
    %v1577 = vunpack.c.h.b16 %v434
    %v1578 = vunpack.c.l.b16 %v435
    %v1579 = vunpack.c.h.b16 %v435
    %v1580 = vunpack.c.l.b16 %v436
    %v1581 = vunpack.c.h.b16 %v436
    %v1582 = vunpack.c.l.b16 %v437
    %v1583 = vunpack.c.h.b16 %v437
    %v1584 = vunpack.c.l.b16 %v438
    %v1585 = vunpack.c.h.b16 %v438
    %v1586 = vunpack.c.l.b16 %v439
    %v1587 = vunpack.c.h.b16 %v439
    %v1588 = vunpack.c.l.b16 %v440
    %v1589 = vunpack.c.h.b16 %v440
    %v1590 = vunpack.c.l.b16 %v441
    %v1591 = vunpack.c.h.b16 %v441
    %v1592 = vunpack.c.l.b16 %v442
    %v1593 = vunpack.c.h.b16 %v442
    %v1594 = vunpack.c.l.b16 %v443
    %v1595 = vunpack.c.h.b16 %v443
    %v1596 = vpack.c.b16 %v830, %v828
    %v1597 = vpack.c.b16 %v831, %v829
    %v1598 = vpack.c.b16 %v834, %v832
    %v1599 = vpack.c.b16 %v835, %v833
    %v1600 = vpack.c.b16 %v838, %v836
    %v1601 = vpack.c.b16 %v839, %v837
    %v1602 = vpack.c.b16 %v842, %v840
    %v1603 = vpack.c.b16 %v843, %v841
    %v1604 = vpack.c.b16 %v846, %v844
    %v1605 = vpack.c.b16 %v847, %v845
    %v1606 = vpack.c.b16 %v850, %v848
    %v1607 = vpack.c.b16 %v851, %v849
    %v1608 = vpack.c.b16 %v854, %v852
    %v1609 = vpack.c.b16 %v855, %v853
    %v1610 = vpack.c.b16 %v858, %v856
    %v1611 = vpack.c.b16 %v859, %v857
    %v1612 = vpack.c.b16 %v862, %v860
    %v1613 = vpack.c.b16 %v863, %v861
    %v1614 = vpack.c.b16 %v866, %v864
    %v1615 = vpack.c.b16 %v867, %v865
    %v1616 = vpack.c.b16 %v870, %v868
    %v1617 = vpack.c.b16 %v871, %v869
    %v1618 = vpack.c.b16 %v874, %v872
    %v1619 = vpack.c.b16 %v875, %v873
    %v1620 = vpack.c.b16 %v878, %v876
    %v1621 = vpack.c.b16 %v879, %v877
    %v1622 = vpack.c.b16 %v882, %v880
    %v1623 = vpack.c.b16 %v883, %v881
    %v1624 = vpack.c.b16 %v886, %v884
    %v1625 = vpack.c.b16 %v887, %v885
    %v1626 = vpack.c.b16 %v890, %v888
    %v1627 = vpack.c.b16 %v891, %v889
    %v1628 = vpack.c.b16 %v894, %v892
    %v1629 = vpack.c.b16 %v895, %v893
    %v1630 = vpack.c.b16 %v898, %v896
    %v1631 = vpack.c.b16 %v899, %v897
    %v1632 = vpack.c.b16 %v902, %v900
    %v1633 = vpack.c.b16 %v903, %v901
    %v1634 = vpack.c.b16 %v906, %v904
    %v1635 = vpack.c.b16 %v907, %v905
    %v1636 = vpack.c.b16 %v910, %v908
    %v1637 = vpack.c.b16 %v911, %v909
    %v1638 = vpack.c.b16 %v914, %v912
    %v1639 = vpack.c.b16 %v915, %v913
    %v1640 = vpack.c.b16 %v918, %v916
    %v1641 = vpack.c.b16 %v919, %v917
    %v1642 = vpack.c.b16 %v922, %v920
    %v1643 = vpack.c.b16 %v923, %v921
    %v1644 = vpack.c.b16 %v926, %v924
    %v1645 = vpack.c.b16 %v927, %v925
    %v1646 = vpack.c.b16 %v930, %v928
    %v1647 = vpack.c.b16 %v931, %v929
    %v1648 = vpack.c.b16 %v934, %v932
    %v1649 = vpack.c.b16 %v935, %v933
    %v1650 = vpack.c.b16 %v938, %v936
    %v1651 = vpack.c.b16 %v939, %v937
    %v1652 = vpack.c.b16 %v942, %v940
    %v1653 = vpack.c.b16 %v943, %v941
    %v1654 = vpack.c.b16 %v946, %v944
    %v1655 = vpack.c.b16 %v947, %v945
    %v1656 = vpack.c.b16 %v950, %v948
    %v1657 = vpack.c.b16 %v951, %v949
    %v1658 = vpack.c.b16 %v954, %v952
    %v1659 = vpack.c.b16 %v955, %v953
    %v1660 = vpack.c.b16 %v958, %v956
    %v1661 = vpack.c.b16 %v959, %v957
    %v1662 = vpack.c.b16 %v962, %v960
    %v1663 = vpack.c.b16 %v963, %v961
    %v1664 = vpack.c.b16 %v966, %v964
    %v1665 = vpack.c.b16 %v967, %v965
    %v1666 = vpack.c.b16 %v970, %v968
    %v1667 = vpack.c.b16 %v971, %v969
    %v1668 = vpack.c.b16 %v974, %v972
    %v1669 = vpack.c.b16 %v975, %v973
    %v1670 = vpack.c.b16 %v978, %v976
    %v1671 = vpack.c.b16 %v979, %v977
    %v1672 = vpack.c.b16 %v982, %v980
    %v1673 = vpack.c.b16 %v983, %v981
    %v1674 = vpack.c.b16 %v986, %v984
    %v1675 = vpack.c.b16 %v987, %v985
    %v1676 = vpack.c.b16 %v990, %v988
    %v1677 = vpack.c.b16 %v991, %v989
    %v1678 = vpack.c.b16 %v994, %v992
    %v1679 = vpack.c.b16 %v995, %v993
    %v1680 = vpack.c.b16 %v998, %v996
    %v1681 = vpack.c.b16 %v999, %v997
    %v1682 = vpack.c.b16 %v1002, %v1000
    %v1683 = vpack.c.b16 %v1003, %v1001
    %v1684 = vpack.c.b16 %v1006, %v1004
    %v1685 = vpack.c.b16 %v1007, %v1005
    %v1686 = vpack.c.b16 %v1010, %v1008
    %v1687 = vpack.c.b16 %v1011, %v1009
    %v1688 = vpack.c.b16 %v1014, %v1012
    %v1689 = vpack.c.b16 %v1015, %v1013
    %v1690 = vpack.c.b16 %v1018, %v1016
    %v1691 = vpack.c.b16 %v1019, %v1017
    %v1692 = vpack.c.b16 %v1022, %v1020
    %v1693 = vpack.c.b16 %v1023, %v1021
    %v1694 = vpack.c.b16 %v1026, %v1024
    %v1695 = vpack.c.b16 %v1027, %v1025
    %v1696 = vpack.c.b16 %v1030, %v1028
    %v1697 = vpack.c.b16 %v1031, %v1029
    %v1698 = vpack.c.b16 %v1034, %v1032
    %v1699 = vpack.c.b16 %v1035, %v1033
    %v1700 = vpack.c.b16 %v1038, %v1036
    %v1701 = vpack.c.b16 %v1039, %v1037
    %v1702 = vpack.c.b16 %v1042, %v1040
    %v1703 = vpack.c.b16 %v1043, %v1041
    %v1704 = vpack.c.b16 %v1046, %v1044
    %v1705 = vpack.c.b16 %v1047, %v1045
    %v1706 = vpack.c.b16 %v1050, %v1048
    %v1707 = vpack.c.b16 %v1051, %v1049
    %v1708 = vpack.c.b16 %v1054, %v1052
    %v1709 = vpack.c.b16 %v1055, %v1053
    %v1710 = vpack.c.b16 %v1058, %v1056
    %v1711 = vpack.c.b16 %v1059, %v1057
    %v1712 = vpack.c.b16 %v1062, %v1060
    %v1713 = vpack.c.b16 %v1063, %v1061
    %v1714 = vpack.c.b16 %v1066, %v1064
    %v1715 = vpack.c.b16 %v1067, %v1065
    %v1716 = vpack.c.b16 %v1070, %v1068
    %v1717 = vpack.c.b16 %v1071, %v1069
    %v1718 = vpack.c.b16 %v1074, %v1072
    %v1719 = vpack.c.b16 %v1075, %v1073
    %v1720 = vpack.c.b16 %v1078, %v1076
    %v1721 = vpack.c.b16 %v1079, %v1077
    %v1722 = vpack.c.b16 %v1082, %v1080
    %v1723 = vpack.c.b16 %v1083, %v1081
    %v1724 = vpack.c.b16 %v1086, %v1084
    %v1725 = vpack.c.b16 %v1087, %v1085
    %v1726 = vpack.c.b16 %v1090, %v1088
    %v1727 = vpack.c.b16 %v1091, %v1089
    %v1728 = vpack.c.b16 %v1094, %v1092
    %v1729 = vpack.c.b16 %v1095, %v1093
    %v1730 = vpack.c.b16 %v1098, %v1096
    %v1731 = vpack.c.b16 %v1099, %v1097
    %v1732 = vpack.c.b16 %v1102, %v1100
    %v1733 = vpack.c.b16 %v1103, %v1101
    %v1734 = vpack.c.b16 %v1106, %v1104
    %v1735 = vpack.c.b16 %v1107, %v1105
    %v1736 = vpack.c.b16 %v1110, %v1108
    %v1737 = vpack.c.b16 %v1111, %v1109
    %v1738 = vpack.c.b16 %v1114, %v1112
    %v1739 = vpack.c.b16 %v1115, %v1113
    %v1740 = vpack.c.b16 %v1118, %v1116
    %v1741 = vpack.c.b16 %v1119, %v1117
    %v1742 = vpack.c.b16 %v1122, %v1120
    %v1743 = vpack.c.b16 %v1123, %v1121
    %v1744 = vpack.c.b16 %v1126, %v1124
    %v1745 = vpack.c.b16 %v1127, %v1125
    %v1746 = vpack.c.b16 %v1130, %v1128
    %v1747 = vpack.c.b16 %v1131, %v1129
    %v1748 = vpack.c.b16 %v1134, %v1132
    %v1749 = vpack.c.b16 %v1135, %v1133
    %v1750 = vpack.c.b16 %v1138, %v1136
    %v1751 = vpack.c.b16 %v1139, %v1137
    %v1752 = vpack.c.b16 %v1142, %v1140
    %v1753 = vpack.c.b16 %v1143, %v1141
    %v1754 = vpack.c.b16 %v1146, %v1144
    %v1755 = vpack.c.b16 %v1147, %v1145
    %v1756 = vpack.c.b16 %v1150, %v1148
    %v1757 = vpack.c.b16 %v1151, %v1149
    %v1758 = vpack.c.b16 %v1154, %v1152
    %v1759 = vpack.c.b16 %v1155, %v1153
    %v1760 = vpack.c.b16 %v1158, %v1156
    %v1761 = vpack.c.b16 %v1159, %v1157
    %v1762 = vpack.c.b16 %v1162, %v1160
    %v1763 = vpack.c.b16 %v1163, %v1161
    %v1764 = vpack.c.b16 %v1166, %v1164
    %v1765 = vpack.c.b16 %v1167, %v1165
    %v1766 = vpack.c.b16 %v1170, %v1168
    %v1767 = vpack.c.b16 %v1171, %v1169
    %v1768 = vpack.c.b16 %v1174, %v1172
    %v1769 = vpack.c.b16 %v1175, %v1173
    %v1770 = vpack.c.b16 %v1178, %v1176
    %v1771 = vpack.c.b16 %v1179, %v1177
    %v1772 = vpack.c.b16 %v1182, %v1180
    %v1773 = vpack.c.b16 %v1183, %v1181
    %v1774 = vpack.c.b16 %v1186, %v1184
    %v1775 = vpack.c.b16 %v1187, %v1185
    %v1776 = vpack.c.b16 %v1190, %v1188
    %v1777 = vpack.c.b16 %v1191, %v1189
    %v1778 = vpack.c.b16 %v1194, %v1192
    %v1779 = vpack.c.b16 %v1195, %v1193
    %v1780 = vpack.c.b16 %v1198, %v1196
    %v1781 = vpack.c.b16 %v1199, %v1197
    %v1782 = vpack.c.b16 %v1202, %v1200
    %v1783 = vpack.c.b16 %v1203, %v1201
    %v1784 = vpack.c.b16 %v1206, %v1204
    %v1785 = vpack.c.b16 %v1207, %v1205
    %v1786 = vpack.c.b16 %v1210, %v1208
    %v1787 = vpack.c.b16 %v1211, %v1209
    %v1788 = vpack.c.b16 %v1214, %v1212
    %v1789 = vpack.c.b16 %v1215, %v1213
    %v1790 = vpack.c.b16 %v1218, %v1216
    %v1791 = vpack.c.b16 %v1219, %v1217
    %v1792 = vpack.c.b16 %v1222, %v1220
    %v1793 = vpack.c.b16 %v1223, %v1221
    %v1794 = vpack.c.b16 %v1226, %v1224
    %v1795 = vpack.c.b16 %v1227, %v1225
    %v1796 = vpack.c.b16 %v1230, %v1228
    %v1797 = vpack.c.b16 %v1231, %v1229
    %v1798 = vpack.c.b16 %v1234, %v1232
    %v1799 = vpack.c.b16 %v1235, %v1233
    %v1800 = vpack.c.b16 %v1238, %v1236
    %v1801 = vpack.c.b16 %v1239, %v1237
    %v1802 = vpack.c.b16 %v1242, %v1240
    %v1803 = vpack.c.b16 %v1243, %v1241
    %v1804 = vpack.c.b16 %v1246, %v1244
    %v1805 = vpack.c.b16 %v1247, %v1245
    %v1806 = vpack.c.b16 %v1250, %v1248
    %v1807 = vpack.c.b16 %v1251, %v1249
    %v1808 = vpack.c.b16 %v1254, %v1252
    %v1809 = vpack.c.b16 %v1255, %v1253
    %v1810 = vpack.c.b16 %v1258, %v1256
    %v1811 = vpack.c.b16 %v1259, %v1257
    %v1812 = vpack.c.b16 %v1262, %v1260
    %v1813 = vpack.c.b16 %v1263, %v1261
    %v1814 = vpack.c.b16 %v1266, %v1264
    %v1815 = vpack.c.b16 %v1267, %v1265
    %v1816 = vpack.c.b16 %v1270, %v1268
    %v1817 = vpack.c.b16 %v1271, %v1269
    %v1818 = vpack.c.b16 %v1274, %v1272
    %v1819 = vpack.c.b16 %v1275, %v1273
    %v1820 = vpack.c.b16 %v1278, %v1276
    %v1821 = vpack.c.b16 %v1279, %v1277
    %v1822 = vpack.c.b16 %v1282, %v1280
    %v1823 = vpack.c.b16 %v1283, %v1281
    %v1824 = vpack.c.b16 %v1286, %v1284
    %v1825 = vpack.c.b16 %v1287, %v1285
    %v1826 = vpack.c.b16 %v1290, %v1288
    %v1827 = vpack.c.b16 %v1291, %v1289
    %v1828 = vpack.c.b16 %v1294, %v1292
    %v1829 = vpack.c.b16 %v1295, %v1293
    %v1830 = vpack.c.b16 %v1298, %v1296
    %v1831 = vpack.c.b16 %v1299, %v1297
    %v1832 = vpack.c.b16 %v1302, %v1300
    %v1833 = vpack.c.b16 %v1303, %v1301
    %v1834 = vpack.c.b16 %v1306, %v1304
    %v1835 = vpack.c.b16 %v1307, %v1305
    %v1836 = vpack.c.b16 %v1310, %v1308
    %v1837 = vpack.c.b16 %v1311, %v1309
    %v1838 = vpack.c.b16 %v1314, %v1312
    %v1839 = vpack.c.b16 %v1315, %v1313
    %v1840 = vpack.c.b16 %v1318, %v1316
    %v1841 = vpack.c.b16 %v1319, %v1317
    %v1842 = vpack.c.b16 %v1322, %v1320
    %v1843 = vpack.c.b16 %v1323, %v1321
    %v1844 = vpack.c.b16 %v1326, %v1324
    %v1845 = vpack.c.b16 %v1327, %v1325
    %v1846 = vpack.c.b16 %v1330, %v1328
    %v1847 = vpack.c.b16 %v1331, %v1329
    %v1848 = vpack.c.b16 %v1334, %v1332
    %v1849 = vpack.c.b16 %v1335, %v1333
    %v1850 = vpack.c.b16 %v1338, %v1336
    %v1851 = vpack.c.b16 %v1339, %v1337
    %v1852 = vpack.c.b16 %v1342, %v1340
    %v1853 = vpack.c.b16 %v1343, %v1341
    %v1854 = vpack.c.b16 %v1346, %v1344
    %v1855 = vpack.c.b16 %v1347, %v1345
    %v1856 = vpack.c.b16 %v1350, %v1348
    %v1857 = vpack.c.b16 %v1351, %v1349
    %v1858 = vpack.c.b16 %v1354, %v1352
    %v1859 = vpack.c.b16 %v1355, %v1353
    %v1860 = vpack.c.b16 %v1358, %v1356
    %v1861 = vpack.c.b16 %v1359, %v1357
    %v1862 = vpack.c.b16 %v1362, %v1360
    %v1863 = vpack.c.b16 %v1363, %v1361
    %v1864 = vpack.c.b16 %v1366, %v1364
    %v1865 = vpack.c.b16 %v1367, %v1365
    %v1866 = vpack.c.b16 %v1370, %v1368
    %v1867 = vpack.c.b16 %v1371, %v1369
    %v1868 = vpack.c.b16 %v1374, %v1372
    %v1869 = vpack.c.b16 %v1375, %v1373
    %v1870 = vpack.c.b16 %v1378, %v1376
    %v1871 = vpack.c.b16 %v1379, %v1377
    %v1872 = vpack.c.b16 %v1382, %v1380
    %v1873 = vpack.c.b16 %v1383, %v1381
    %v1874 = vpack.c.b16 %v1386, %v1384
    %v1875 = vpack.c.b16 %v1387, %v1385
    %v1876 = vpack.c.b16 %v1390, %v1388
    %v1877 = vpack.c.b16 %v1391, %v1389
    %v1878 = vpack.c.b16 %v1394, %v1392
    %v1879 = vpack.c.b16 %v1395, %v1393
    %v1880 = vpack.c.b16 %v1398, %v1396
    %v1881 = vpack.c.b16 %v1399, %v1397
    %v1882 = vpack.c.b16 %v1402, %v1400
    %v1883 = vpack.c.b16 %v1403, %v1401
    %v1884 = vpack.c.b16 %v1406, %v1404
    %v1885 = vpack.c.b16 %v1407, %v1405
    %v1886 = vpack.c.b16 %v1410, %v1408
    %v1887 = vpack.c.b16 %v1411, %v1409
    %v1888 = vpack.c.b16 %v1414, %v1412
    %v1889 = vpack.c.b16 %v1415, %v1413
    %v1890 = vpack.c.b16 %v1418, %v1416
    %v1891 = vpack.c.b16 %v1419, %v1417
    %v1892 = vpack.c.b16 %v1422, %v1420
    %v1893 = vpack.c.b16 %v1423, %v1421
    %v1894 = vpack.c.b16 %v1426, %v1424
    %v1895 = vpack.c.b16 %v1427, %v1425
    %v1896 = vpack.c.b16 %v1430, %v1428
    %v1897 = vpack.c.b16 %v1431, %v1429
    %v1898 = vpack.c.b16 %v1434, %v1432
    %v1899 = vpack.c.b16 %v1435, %v1433
    %v1900 = vpack.c.b16 %v1438, %v1436
    %v1901 = vpack.c.b16 %v1439, %v1437
    %v1902 = vpack.c.b16 %v1442, %v1440
    %v1903 = vpack.c.b16 %v1443, %v1441
    %v1904 = vpack.c.b16 %v1446, %v1444
    %v1905 = vpack.c.b16 %v1447, %v1445
    %v1906 = vpack.c.b16 %v1450, %v1448
    %v1907 = vpack.c.b16 %v1451, %v1449
    %v1908 = vpack.c.b16 %v1454, %v1452
    %v1909 = vpack.c.b16 %v1455, %v1453
    %v1910 = vpack.c.b16 %v1458, %v1456
    %v1911 = vpack.c.b16 %v1459, %v1457
    %v1912 = vpack.c.b16 %v1462, %v1460
    %v1913 = vpack.c.b16 %v1463, %v1461
    %v1914 = vpack.c.b16 %v1466, %v1464
    %v1915 = vpack.c.b16 %v1467, %v1465
    %v1916 = vpack.c.b16 %v1470, %v1468
    %v1917 = vpack.c.b16 %v1471, %v1469
    %v1918 = vpack.c.b16 %v1474, %v1472
    %v1919 = vpack.c.b16 %v1475, %v1473
    %v1920 = vpack.c.b16 %v1478, %v1476
    %v1921 = vpack.c.b16 %v1479, %v1477
    %v1922 = vpack.c.b16 %v1482, %v1480
    %v1923 = vpack.c.b16 %v1483, %v1481
    %v1924 = vpack.c.b16 %v1486, %v1484
    %v1925 = vpack.c.b16 %v1487, %v1485
    %v1926 = vpack.c.b16 %v1490, %v1488
    %v1927 = vpack.c.b16 %v1491, %v1489
    %v1928 = vpack.c.b16 %v1494, %v1492
    %v1929 = vpack.c.b16 %v1495, %v1493
    %v1930 = vpack.c.b16 %v1498, %v1496
    %v1931 = vpack.c.b16 %v1499, %v1497
    %v1932 = vpack.c.b16 %v1502, %v1500
    %v1933 = vpack.c.b16 %v1503, %v1501
    %v1934 = vpack.c.b16 %v1506, %v1504
    %v1935 = vpack.c.b16 %v1507, %v1505
    %v1936 = vpack.c.b16 %v1510, %v1508
    %v1937 = vpack.c.b16 %v1511, %v1509
    %v1938 = vpack.c.b16 %v1514, %v1512
    %v1939 = vpack.c.b16 %v1515, %v1513
    %v1940 = vpack.c.b16 %v1518, %v1516
    %v1941 = vpack.c.b16 %v1519, %v1517
    %v1942 = vpack.c.b16 %v1522, %v1520
    %v1943 = vpack.c.b16 %v1523, %v1521
    %v1944 = vpack.c.b16 %v1526, %v1524
    %v1945 = vpack.c.b16 %v1527, %v1525
    %v1946 = vpack.c.b16 %v1530, %v1528
    %v1947 = vpack.c.b16 %v1531, %v1529
    %v1948 = vpack.c.b16 %v1534, %v1532
    %v1949 = vpack.c.b16 %v1535, %v1533
    %v1950 = vpack.c.b16 %v1538, %v1536
    %v1951 = vpack.c.b16 %v1539, %v1537
    %v1952 = vpack.c.b16 %v1542, %v1540
    %v1953 = vpack.c.b16 %v1543, %v1541
    %v1954 = vpack.c.b16 %v1546, %v1544
    %v1955 = vpack.c.b16 %v1547, %v1545
    %v1956 = vpack.c.b16 %v1550, %v1548
    %v1957 = vpack.c.b16 %v1551, %v1549
    %v1958 = vpack.c.b16 %v1554, %v1552
    %v1959 = vpack.c.b16 %v1555, %v1553
    %v1960 = vpack.c.b16 %v1558, %v1556
    %v1961 = vpack.c.b16 %v1559, %v1557
    %v1962 = vpack.c.b16 %v1562, %v1560
    %v1963 = vpack.c.b16 %v1563, %v1561
    %v1964 = vpack.c.b16 %v1566, %v1564
    %v1965 = vpack.c.b16 %v1567, %v1565
    %v1966 = vpack.c.b16 %v1570, %v1568
    %v1967 = vpack.c.b16 %v1571, %v1569
    %v1968 = vpack.c.b16 %v1574, %v1572
    %v1969 = vpack.c.b16 %v1575, %v1573
    %v1970 = vpack.c.b16 %v1578, %v1576
    %v1971 = vpack.c.b16 %v1579, %v1577
    %v1972 = vpack.c.b16 %v1582, %v1580
    %v1973 = vpack.c.b16 %v1583, %v1581
    %v1974 = vpack.c.b16 %v1586, %v1584
    %v1975 = vpack.c.b16 %v1587, %v1585
    %v1976 = vpack.c.b16 %v1590, %v1588
    %v1977 = vpack.c.b16 %v1591, %v1589
    %v1978 = vpack.c.b16 %v1594, %v1592
    %v1979 = vpack.c.b16 %v1595, %v1593
    %v2189 = vunpack.c.l.b16 %v43
    %v2190 = vunpack.c.l.b16 %v44
    %v2191 = vunpack.c.l.b16 %v45
    %v2192 = vunpack.c.l.b16 %v46
    %v2193 = vunpack.c.l.b16 %v47
    %v2194 = vunpack.c.l.b16 %v48
    %v2195 = vunpack.c.l.b16 %v49
    %v2196 = vunpack.c.l.b16 %v50
    %v2197 = vunpack.c.l.b16 %v51
    %v2198 = vunpack.c.l.b16 %v52
    %v2199 = vunpack.c.l.b16 %v53
    %v2200 = vunpack.c.l.b16 %v54
    %v2201 = vunpack.c.l.b16 %v55
    %v2202 = vunpack.c.l.b16 %v56
    %v2203 = vunpack.c.l.b16 %v57
    %v2204 = vunpack.c.l.b16 %v58
    %v2205 = vunpack.c.l.b16 %v59
    %v2206 = vpack.c.b16 %v2190, %v2189
    %v2207 = vpack.c.b16 %v2192, %v2191
    %v2208 = vpack.c.b16 %v2194, %v2193
    %v2209 = vpack.c.b16 %v2196, %v2195
    %v2210 = vpack.c.b16 %v2198, %v2197
    %v2211 = vpack.c.b16 %v2200, %v2199
    %v2212 = vpack.c.b16 %v2202, %v2201
    %v2213 = vpack.c.b16 %v2204, %v2203
    %v2214 = vpack.c.b16 %v2205, %v2205
    %vm2223 = vcmask 7168
    %v2225 = vsel %vm2223, %v1597, 0
    %v2228 = vsel %vm2223, %v1599, 0
    %v2231 = vsel %vm2223, %v1601, 0
    %v2234 = vsel %vm2223, %v1603, 0
    %v2237 = vsel %vm2223, %v1605, 0
    %v2240 = vsel %vm2223, %v1607, 0
    %v2243 = vsel %vm2223, %v1609, 0
    %v2246 = vsel %vm2223, %v1611, 0
    %v2249 = vsel %vm2223, %v1613, 0
    %v2252 = vsel %vm2223, %v1615, 0
    %v2255 = vsel %vm2223, %v1617, 0
    %v2258 = vsel %vm2223, %v1619, 0
    %v2261 = vsel %vm2223, %v1621, 0
    %v2264 = vsel %vm2223, %v1623, 0
    %v2267 = vsel %vm2223, %v1625, 0
    %v2270 = vsel %vm2223, %v1627, 0
    %v2273 = vsel %vm2223, %v1629, 0
    %v2276 = vsel %vm2223, %v1631, 0
    %v2279 = vsel %vm2223, %v1633, 0
    %v2282 = vsel %vm2223, %v1635, 0
    %v2285 = vsel %vm2223, %v1637, 0
    %v2288 = vsel %vm2223, %v1639, 0
    %v2291 = vsel %vm2223, %v1641, 0
    %v2294 = vsel %vm2223, %v1643, 0
    %v2297 = vsel %vm2223, %v1645, 0
    %v2300 = vsel %vm2223, %v1647, 0
    %v2303 = vsel %vm2223, %v1649, 0
    %v2306 = vsel %vm2223, %v1651, 0
    %v2309 = vsel %vm2223, %v1653, 0
    %v2312 = vsel %vm2223, %v1655, 0
    %v2315 = vsel %vm2223, %v1657, 0
    %v2318 = vsel %vm2223, %v1659, 0
    %v2321 = vsel %vm2223, %v1661, 0
    %v2324 = vsel %vm2223, %v1663, 0
    %v2327 = vsel %vm2223, %v1665, 0
    %v2330 = vsel %vm2223, %v1667, 0
    %v2333 = vsel %vm2223, %v1669, 0
    %v2336 = vsel %vm2223, %v1671, 0
    %v2339 = vsel %vm2223, %v1673, 0
    %v2342 = vsel %vm2223, %v1675, 0
    %v2345 = vsel %vm2223, %v1677, 0
    %v2348 = vsel %vm2223, %v1679, 0
    %v2351 = vsel %vm2223, %v1681, 0
    %v2354 = vsel %vm2223, %v1683, 0
    %v2357 = vsel %vm2223, %v1685, 0
    %v2360 = vsel %vm2223, %v1687, 0
    %v2363 = vsel %vm2223, %v1689, 0
    %v2366 = vsel %vm2223, %v1691, 0
    %v2369 = vsel %vm2223, %v1693, 0
    %v2372 = vsel %vm2223, %v1695, 0
    %v2375 = vsel %vm2223, %v1697, 0
    %v2378 = vsel %vm2223, %v1699, 0
    %v2381 = vsel %vm2223, %v1701, 0
    %v2384 = vsel %vm2223, %v1703, 0
    %v2387 = vsel %vm2223, %v1705, 0
    %v2390 = vsel %vm2223, %v1707, 0
    %v2393 = vsel %vm2223, %v1709, 0
    %v2396 = vsel %vm2223, %v1711, 0
    %v2399 = vsel %vm2223, %v1713, 0
    %v2402 = vsel %vm2223, %v1715, 0
    %v2405 = vsel %vm2223, %v1717, 0
    %v2408 = vsel %vm2223, %v1719, 0
    %v2411 = vsel %vm2223, %v1721, 0
    %v2414 = vsel %vm2223, %v1723, 0
    %v2417 = vsel %vm2223, %v1725, 0
    %v2420 = vsel %vm2223, %v1727, 0
    %v2423 = vsel %vm2223, %v1729, 0
    %v2426 = vsel %vm2223, %v1731, 0
    %v2429 = vsel %vm2223, %v1733, 0
    %v2432 = vsel %vm2223, %v1735, 0
    %v2435 = vsel %vm2223, %v1737, 0
    %v2438 = vsel %vm2223, %v1739, 0
    %v2441 = vsel %vm2223, %v1741, 0
    %v2444 = vsel %vm2223, %v1743, 0
    %v2447 = vsel %vm2223, %v1745, 0
    %v2450 = vsel %vm2223, %v1747, 0
    %v2453 = vsel %vm2223, %v1749, 0
    %v2456 = vsel %vm2223, %v1751, 0
    %v2459 = vsel %vm2223, %v1753, 0
    %v2462 = vsel %vm2223, %v1755, 0
    %v2465 = vsel %vm2223, %v1757, 0
    %v2468 = vsel %vm2223, %v1759, 0
    %v2471 = vsel %vm2223, %v1761, 0
    %v2474 = vsel %vm2223, %v1763, 0
    %v2477 = vsel %vm2223, %v1765, 0
    %v2480 = vsel %vm2223, %v1767, 0
    %v2483 = vsel %vm2223, %v1769, 0
    %v2486 = vsel %vm2223, %v1771, 0
    %v2489 = vsel %vm2223, %v1773, 0
    %v2492 = vsel %vm2223, %v1775, 0
    %v2495 = vsel %vm2223, %v1777, 0
    %v2498 = vsel %vm2223, %v1779, 0
    %v2501 = vsel %vm2223, %v1781, 0
    %v2504 = vsel %vm2223, %v1783, 0
    %v2507 = vsel %vm2223, %v1785, 0
    %v2510 = vsel %vm2223, %v1787, 0
    %v2513 = vsel %vm2223, %v1789, 0
    %v2516 = vsel %vm2223, %v1791, 0
    %v2519 = vsel %vm2223, %v1793, 0
    %v2522 = vsel %vm2223, %v1795, 0
    %v2525 = vsel %vm2223, %v1797, 0
    %v2528 = vsel %vm2223, %v1799, 0
    %v2531 = vsel %vm2223, %v1801, 0
    %v2534 = vsel %vm2223, %v1803, 0
    %v2537 = vsel %vm2223, %v1805, 0
    %v2540 = vsel %vm2223, %v1807, 0
    %v2543 = vsel %vm2223, %v1809, 0
    %v2546 = vsel %vm2223, %v1811, 0
    %v2549 = vsel %vm2223, %v1813, 0
    %v2552 = vsel %vm2223, %v1815, 0
    %v2555 = vsel %vm2223, %v1817, 0
    %v2558 = vsel %vm2223, %v1819, 0
    %v2561 = vsel %vm2223, %v1821, 0
    %v2564 = vsel %vm2223, %v1823, 0
    %v2567 = vsel %vm2223, %v1825, 0
    %v2570 = vsel %vm2223, %v1827, 0
    %v2573 = vsel %vm2223, %v1829, 0
    %v2576 = vsel %vm2223, %v1831, 0
    %v2579 = vsel %vm2223, %v1833, 0
    %v2582 = vsel %vm2223, %v1835, 0
    %v2585 = vsel %vm2223, %v1837, 0
    %v2588 = vsel %vm2223, %v1839, 0
    %v2591 = vsel %vm2223, %v1841, 0
    %v2594 = vsel %vm2223, %v1843, 0
    %v2597 = vsel %vm2223, %v1845, 0
    %v2600 = vsel %vm2223, %v1847, 0
    %v2603 = vsel %vm2223, %v1849, 0
    %v2606 = vsel %vm2223, %v1851, 0
    %v2609 = vsel %vm2223, %v1853, 0
    %v2612 = vsel %vm2223, %v1855, 0
    %v2615 = vsel %vm2223, %v1857, 0
    %v2618 = vsel %vm2223, %v1859, 0
    %v2621 = vsel %vm2223, %v1861, 0
    %v2624 = vsel %vm2223, %v1863, 0
    %v2627 = vsel %vm2223, %v1865, 0
    %v2630 = vsel %vm2223, %v1867, 0
    %v2633 = vsel %vm2223, %v1869, 0
    %v2636 = vsel %vm2223, %v1871, 0
    %v2639 = vsel %vm2223, %v1873, 0
    %v2642 = vsel %vm2223, %v1875, 0
    %v2645 = vsel %vm2223, %v1877, 0
    %v2648 = vsel %vm2223, %v1879, 0
    %v2651 = vsel %vm2223, %v1881, 0
    %v2654 = vsel %vm2223, %v1883, 0
    %v2657 = vsel %vm2223, %v1885, 0
    %v2660 = vsel %vm2223, %v1887, 0
    %v2663 = vsel %vm2223, %v1889, 0
    %v2666 = vsel %vm2223, %v1891, 0
    %v2669 = vsel %vm2223, %v1893, 0
    %v2672 = vsel %vm2223, %v1895, 0
    %v2675 = vsel %vm2223, %v1897, 0
    %v2678 = vsel %vm2223, %v1899, 0
    %v2681 = vsel %vm2223, %v1901, 0
    %v2684 = vsel %vm2223, %v1903, 0
    %v2687 = vsel %vm2223, %v1905, 0
    %v2690 = vsel %vm2223, %v1907, 0
    %v2693 = vsel %vm2223, %v1909, 0
    %v2696 = vsel %vm2223, %v1911, 0
    %v2699 = vsel %vm2223, %v1913, 0
    %v2702 = vsel %vm2223, %v1915, 0
    %v2705 = vsel %vm2223, %v1917, 0
    %v2708 = vsel %vm2223, %v1919, 0
    %v2711 = vsel %vm2223, %v1921, 0
    %v2714 = vsel %vm2223, %v1923, 0
    %v2717 = vsel %vm2223, %v1925, 0
    %v2720 = vsel %vm2223, %v1927, 0
    %v2723 = vsel %vm2223, %v1929, 0
    %v2726 = vsel %vm2223, %v1931, 0
    %v2729 = vsel %vm2223, %v1933, 0
    %v2732 = vsel %vm2223, %v1935, 0
    %v2735 = vsel %vm2223, %v1937, 0
    %v2738 = vsel %vm2223, %v1939, 0
    %v2741 = vsel %vm2223, %v1941, 0
    %v2744 = vsel %vm2223, %v1943, 0
    %v2747 = vsel %vm2223, %v1945, 0
    %v2750 = vsel %vm2223, %v1947, 0
    %v2753 = vsel %vm2223, %v1949, 0
    %v2756 = vsel %vm2223, %v1951, 0
    %v2759 = vsel %vm2223, %v1953, 0
    %v2762 = vsel %vm2223, %v1955, 0
    %v2765 = vsel %vm2223, %v1957, 0
    %v2768 = vsel %vm2223, %v1959, 0
    %v2771 = vsel %vm2223, %v1961, 0
    %v2774 = vsel %vm2223, %v1963, 0
    %v2777 = vsel %vm2223, %v1965, 0
    %v2780 = vsel %vm2223, %v1967, 0
    %v2783 = vsel %vm2223, %v1969, 0
    %v2786 = vsel %vm2223, %v1971, 0
    %v2789 = vsel %vm2223, %v1973, 0
    %v2792 = vsel %vm2223, %v1975, 0
    %v2795 = vsel %vm2223, %v1977, 0
    %v2798 = vsel %vm2223, %v1979, 0
    %vm2800 = vcmask 1040384
    %v2801 = vsel 0, 4294967295, 65535
    %v2802 = vsel %vm2800, %v2801, 0
    %v2804 = vand.u32 %v2214, %v2802
    %2806 = vmatprep.subr.bf16.mxu0 0
    %2807 = vmatpush1.bf16.msra.mxu0 %v2206
    %2808 = vmatprep.subr.bf16.mxu0 0
    %2809 = vmatpush1.bf16.msra.mxu0 %v2207
    %2810 = vmatprep.subr.bf16.mxu0 0
    %2811 = vmatpush1.bf16.msra.mxu0 %v2208
    %2812 = vmatprep.subr.bf16.mxu0 0
    %2813 = vmatpush1.bf16.msra.mxu0 %v2209
    %2814 = vmatprep.subr.bf16.mxu0 0
    %2815 = vmatpush1.bf16.msra.mxu0 %v2210
    %2816 = vmatprep.subr.bf16.mxu0 0
    %2817 = vmatpush1.bf16.msra.mxu0 %v2211
    %2818 = vmatprep.subr.bf16.mxu0 0
    %2819 = vmatpush1.bf16.msra.mxu0 %v2212
    %2820 = vmatprep.subr.bf16.mxu0 0
    %2821 = vmatpush1.bf16.msra.mxu0 %v2213
    %2822 = vmatprep.subr.bf16.mxu0 0
    %2823 = vmatpush1.bf16.msra.mxu0 %v2804
    %2824 = vmatprep.subr.bf16.mxu0 0
    %2825 = vmatpush1.bf16.msra.mxu0 0
    %2826 = vmatprep.subr.bf16.mxu0 0
    %2827 = vmatpush1.bf16.msra.mxu0 0
    %2828 = vmatprep.subr.bf16.mxu0 0
    %2829 = vmatpush1.bf16.msra.mxu0 0
    %2830 = vmatprep.subr.bf16.mxu0 0
    %2831 = vmatpush1.bf16.msra.mxu0 0
    %2832 = vmatprep.subr.bf16.mxu0 0
    %2833 = vmatpush1.bf16.msra.mxu0 0
    %2834 = vmatprep.subr.bf16.mxu0 0
    %2835 = vmatpush1.bf16.msra.mxu0 0
    %2836 = vmatprep.subr.bf16.mxu0 0
    %2837 = vmatpush1.bf16.msra.mxu0 0
    %2838 = vmatprep.mubr.bf16.mxu0 %v2225
    %2839 = vmatmul.mubr.bf16.gmra.mrb[0].mxu0 %v1596
    %v2840 = vpop.f32.mrb[0].mxu0
    %v2841 = vadd.f32 0.0, %v2840
    %v2842 = vpop.f32.mrb[0].mxu0
    %v2843 = vpop.f32.mrb[0].mxu0
    %v2844 = vadd.f32 0.0, %v2843
    %v2845 = vpop.f32.mrb[0].mxu0
    %2846 = vmatprep.mubr.bf16.mxu0 %v2228
    %2847 = vmatmul.mubr.bf16.gmra.mrb[0].mxu0 %v1598
    %v2848 = vpop.f32.mrb[0].mxu0
    %v2849 = vadd.f32 0.0, %v2848
    %v2850 = vpop.f32.mrb[0].mxu0
    %v2851 = vpop.f32.mrb[0].mxu0
    %v2852 = vadd.f32 0.0, %v2851
    %v2853 = vpop.f32.mrb[0].mxu0
    %2854 = vmatprep.mubr.bf16.mxu0 %v2231
    %2855 = vmatmul.mubr.bf16.gmra.mrb[0].mxu0 %v1600
    %v2856 = vpop.f32.mrb[0].mxu0
    %v2857 = vadd.f32 0.0, %v2856
    %v2858 = vpop.f32.mrb[0].mxu0
    %v2859 = vpop.f32.mrb[0].mxu0
    %v2860 = vadd.f32 0.0, %v2859
    %v2861 = vpop.f32.mrb[0].mxu0
    %2862 = vmatprep.mubr.bf16.mxu0 %v2234
    %2863 = vmatmul.mubr.bf16.gmra.mrb[0].mxu0 %v1602
    %v2864 = vpop.f32.mrb[0].mxu0
    %v2865 = vadd.f32 0.0, %v2864
    %v2866 = vpop.f32.mrb[0].mxu0
    %v2867 = vpop.f32.mrb[0].mxu0
    %v2868 = vadd.f32 0.0, %v2867
    %v2869 = vpop.f32.mrb[0].mxu0
    %2870 = vmatprep.mubr.bf16.mxu0 %v2237
    %2871 = vmatmul.mubr.bf16.gmra.mrb[0].mxu0 %v1604
    %v2872 = vpop.f32.mrb[0].mxu0
    %v2873 = vadd.f32 0.0, %v2872
    %v2874 = vpop.f32.mrb[0].mxu0
    %v2875 = vpop.f32.mrb[0].mxu0
    %v2876 = vadd.f32 0.0, %v2875
    %v2877 = vpop.f32.mrb[0].mxu0
    %2878 = vmatprep.mubr.bf16.mxu0 %v2240
    %2879 = vmatmul.mubr.bf16.gmra.mrb[0].mxu0 %v1606
    %v2880 = vpop.f32.mrb[0].mxu0
    %v2881 = vadd.f32 0.0, %v2880
    %v2882 = vpop.f32.mrb[0].mxu0
    %v2883 = vpop.f32.mrb[0].mxu0
    %v2884 = vadd.f32 0.0, %v2883
    %v2885 = vpop.f32.mrb[0].mxu0
    %2886 = vmatprep.mubr.bf16.mxu0 %v2243
    %2887 = vmatmul.mubr.bf16.gmra.mrb[0].mxu0 %v1608
    %v2888 = vpop.f32.mrb[0].mxu0
    %v2889 = vadd.f32 0.0, %v2888
    %v2890 = vpop.f32.mrb[0].mxu0
    %v2891 = vpop.f32.mrb[0].mxu0
    %v2892 = vadd.f32 0.0, %v2891
    %v2893 = vpop.f32.mrb[0].mxu0
    %2894 = vmatprep.mubr.bf16.mxu0 %v2246
    %2895 = vmatmul.mubr.bf16.gmra.mrb[0].mxu0 %v1610
    %v2896 = vpop.f32.mrb[0].mxu0
    %v2897 = vadd.f32 0.0, %v2896
    %v2898 = vpop.f32.mrb[0].mxu0
    %v2899 = vpop.f32.mrb[0].mxu0
    %v2900 = vadd.f32 0.0, %v2899
    %v2901 = vpop.f32.mrb[0].mxu0
    %2902 = vmatprep.mubr.bf16.mxu0 %v2249
    %2903 = vmatmul.mubr.bf16.gmra.mrb[0].mxu0 %v1612
    %v2904 = vpop.f32.mrb[0].mxu0
    %v2905 = vadd.f32 0.0, %v2904
    %v2906 = vpop.f32.mrb[0].mxu0
    %v2907 = vpop.f32.mrb[0].mxu0
    %v2908 = vadd.f32 0.0, %v2907
    %v2909 = vpop.f32.mrb[0].mxu0
    %2910 = vmatprep.mubr.bf16.mxu0 %v2252
    %2911 = vmatmul.mubr.bf16.gmra.mrb[0].mxu0 %v1614
    %v2912 = vpop.f32.mrb[0].mxu0
    %v2913 = vadd.f32 0.0, %v2912
    %v2914 = vpop.f32.mrb[0].mxu0
    %v2915 = vpop.f32.mrb[0].mxu0
    %v2916 = vadd.f32 0.0, %v2915
    %v2917 = vpop.f32.mrb[0].mxu0
    %2918 = vmatprep.mubr.bf16.mxu0 %v2255
    %2919 = vmatmul.mubr.bf16.gmra.mrb[0].mxu0 %v1616
    %v2920 = vpop.f32.mrb[0].mxu0
    %v2921 = vadd.f32 0.0, %v2920
    %v2922 = vpop.f32.mrb[0].mxu0
    %v2923 = vpop.f32.mrb[0].mxu0
    %v2924 = vadd.f32 0.0, %v2923
    %v2925 = vpop.f32.mrb[0].mxu0
    %2926 = vmatprep.mubr.bf16.mxu0 %v2258
    %2927 = vmatmul.mubr.bf16.gmra.mrb[0].mxu0 %v1618
    %v2928 = vpop.f32.mrb[0].mxu0
    %v2929 = vadd.f32 0.0, %v2928
    %v2930 = vpop.f32.mrb[0].mxu0
    %v2931 = vpop.f32.mrb[0].mxu0
    %v2932 = vadd.f32 0.0, %v2931
    %v2933 = vpop.f32.mrb[0].mxu0
    %2934 = vmatprep.mubr.bf16.mxu0 %v2261
    %2935 = vmatmul.mubr.bf16.gmra.mrb[0].mxu0 %v1620
    %v2936 = vpop.f32.mrb[0].mxu0
    %v2937 = vadd.f32 0.0, %v2936
    %v2938 = vpop.f32.mrb[0].mxu0
    %v2939 = vpop.f32.mrb[0].mxu0
    %v2940 = vadd.f32 0.0, %v2939
    %v2941 = vpop.f32.mrb[0].mxu0
    %2942 = vmatprep.mubr.bf16.mxu0 %v2264
    %2943 = vmatmul.mubr.bf16.gmra.mrb[0].mxu0 %v1622
    %v2944 = vpop.f32.mrb[0].mxu0
    %v2945 = vadd.f32 0.0, %v2944
    %v2946 = vpop.f32.mrb[0].mxu0
    %v2947 = vpop.f32.mrb[0].mxu0
    %v2948 = vadd.f32 0.0, %v2947
    %v2949 = vpop.f32.mrb[0].mxu0
    %2950 = vmatprep.mubr.bf16.mxu0 %v2267
    %2951 = vmatmul.mubr.bf16.gmra.mrb[0].mxu0 %v1624
    %v2952 = vpop.f32.mrb[0].mxu0
    %v2953 = vadd.f32 0.0, %v2952
    %v2954 = vpop.f32.mrb[0].mxu0
    %v2955 = vpop.f32.mrb[0].mxu0
    %v2956 = vadd.f32 0.0, %v2955
    %v2957 = vpop.f32.mrb[0].mxu0
    %2958 = vmatprep.mubr.bf16.mxu0 %v2270
    %2959 = vmatmul.mubr.bf16.gmra.mrb[0].mxu0 %v1626
    %v2960 = vpop.f32.mrb[0].mxu0
    %v2961 = vadd.f32 0.0, %v2960
    %v2962 = vpop.f32.mrb[0].mxu0
    %v2963 = vpop.f32.mrb[0].mxu0
    %v2964 = vadd.f32 0.0, %v2963
    %v2965 = vpop.f32.mrb[0].mxu0
    %2966 = vmatprep.mubr.bf16.mxu0 %v2273
    %2967 = vmatmul.mubr.bf16.gmra.mrb[0].mxu0 %v1628
    %v2968 = vpop.f32.mrb[0].mxu0
    %v2969 = vadd.f32 0.0, %v2968
    %v2970 = vpop.f32.mrb[0].mxu0
    %v2971 = vpop.f32.mrb[0].mxu0
    %v2972 = vadd.f32 0.0, %v2971
    %v2973 = vpop.f32.mrb[0].mxu0
    %2974 = vmatprep.mubr.bf16.mxu0 %v2276
    %2975 = vmatmul.mubr.bf16.gmra.mrb[0].mxu0 %v1630
    %v2976 = vpop.f32.mrb[0].mxu0
    %v2977 = vadd.f32 0.0, %v2976
    %v2978 = vpop.f32.mrb[0].mxu0
    %v2979 = vpop.f32.mrb[0].mxu0
    %v2980 = vadd.f32 0.0, %v2979
    %v2981 = vpop.f32.mrb[0].mxu0
    %2982 = vmatprep.mubr.bf16.mxu0 %v2279
    %2983 = vmatmul.mubr.bf16.gmra.mrb[0].mxu0 %v1632
    %v2984 = vpop.f32.mrb[0].mxu0
    %v2985 = vadd.f32 0.0, %v2984
    %v2986 = vpop.f32.mrb[0].mxu0
    %v2987 = vpop.f32.mrb[0].mxu0
    %v2988 = vadd.f32 0.0, %v2987
    %v2989 = vpop.f32.mrb[0].mxu0
    %2990 = vmatprep.mubr.bf16.mxu0 %v2282
    %2991 = vmatmul.mubr.bf16.gmra.mrb[0].mxu0 %v1634
    %v2992 = vpop.f32.mrb[0].mxu0
    %v2993 = vadd.f32 0.0, %v2992
    %v2994 = vpop.f32.mrb[0].mxu0
    %v2995 = vpop.f32.mrb[0].mxu0
    %v2996 = vadd.f32 0.0, %v2995
    %v2997 = vpop.f32.mrb[0].mxu0
    %2998 = vmatprep.mubr.bf16.mxu0 %v2285
    %2999 = vmatmul.mubr.bf16.gmra.mrb[0].mxu0 %v1636
    %v3000 = vpop.f32.mrb[0].mxu0
    %v3001 = vadd.f32 0.0, %v3000
    %v3002 = vpop.f32.mrb[0].mxu0
    %v3003 = vpop.f32.mrb[0].mxu0
    %v3004 = vadd.f32 0.0, %v3003
    %v3005 = vpop.f32.mrb[0].mxu0
    %3006 = vmatprep.mubr.bf16.mxu0 %v2288
    %3007 = vmatmul.mubr.bf16.gmra.mrb[0].mxu0 %v1638
    %v3008 = vpop.f32.mrb[0].mxu0
    %v3009 = vadd.f32 0.0, %v3008
    %v3010 = vpop.f32.mrb[0].mxu0
    %v3011 = vpop.f32.mrb[0].mxu0
    %v3012 = vadd.f32 0.0, %v3011
    %v3013 = vpop.f32.mrb[0].mxu0
    %3014 = vmatprep.mubr.bf16.mxu0 %v2291
    %3015 = vmatmul.mubr.bf16.gmra.mrb[0].mxu0 %v1640
    %v3016 = vpop.f32.mrb[0].mxu0
    %v3017 = vadd.f32 0.0, %v3016
    %v3018 = vpop.f32.mrb[0].mxu0
    %v3019 = vpop.f32.mrb[0].mxu0
    %v3020 = vadd.f32 0.0, %v3019
    %v3021 = vpop.f32.mrb[0].mxu0
    %3022 = vmatprep.mubr.bf16.mxu0 %v2294
    %3023 = vmatmul.mubr.bf16.gmra.mrb[0].mxu0 %v1642
    %v3024 = vpop.f32.mrb[0].mxu0
    %v3025 = vadd.f32 0.0, %v3024
    %v3026 = vpop.f32.mrb[0].mxu0
    %v3027 = vpop.f32.mrb[0].mxu0
    %v3028 = vadd.f32 0.0, %v3027
    %v3029 = vpop.f32.mrb[0].mxu0
    %3030 = vmatprep.mubr.bf16.mxu0 %v2297
    %3031 = vmatmul.mubr.bf16.gmra.mrb[0].mxu0 %v1644
    %v3032 = vpop.f32.mrb[0].mxu0
    %v3033 = vadd.f32 0.0, %v3032
    %v3034 = vpop.f32.mrb[0].mxu0
    %v3035 = vpop.f32.mrb[0].mxu0
    %v3036 = vadd.f32 0.0, %v3035
    %v3037 = vpop.f32.mrb[0].mxu0
    %3038 = vmatprep.mubr.bf16.mxu0 %v2300
    %3039 = vmatmul.mubr.bf16.gmra.mrb[0].mxu0 %v1646
    %v3040 = vpop.f32.mrb[0].mxu0
    %v3041 = vadd.f32 0.0, %v3040
    %v3042 = vpop.f32.mrb[0].mxu0
    %v3043 = vpop.f32.mrb[0].mxu0
    %v3044 = vadd.f32 0.0, %v3043
    %v3045 = vpop.f32.mrb[0].mxu0
    %3046 = vmatprep.mubr.bf16.mxu0 %v2303
    %3047 = vmatmul.mubr.bf16.gmra.mrb[0].mxu0 %v1648
    %v3048 = vpop.f32.mrb[0].mxu0
    %v3049 = vadd.f32 0.0, %v3048
    %v3050 = vpop.f32.mrb[0].mxu0
    %v3051 = vpop.f32.mrb[0].mxu0
    %v3052 = vadd.f32 0.0, %v3051
    %v3053 = vpop.f32.mrb[0].mxu0
    %3054 = vmatprep.mubr.bf16.mxu0 %v2306
    %3055 = vmatmul.mubr.bf16.gmra.mrb[0].mxu0 %v1650
    %v3056 = vpop.f32.mrb[0].mxu0
    %v3057 = vadd.f32 0.0, %v3056
    %v3058 = vpop.f32.mrb[0].mxu0
    %v3059 = vpop.f32.mrb[0].mxu0
    %v3060 = vadd.f32 0.0, %v3059
    %v3061 = vpop.f32.mrb[0].mxu0
    %3062 = vmatprep.mubr.bf16.mxu0 %v2309
    %3063 = vmatmul.mubr.bf16.gmra.mrb[0].mxu0 %v1652
    %v3064 = vpop.f32.mrb[0].mxu0
    %v3065 = vadd.f32 0.0, %v3064
    %v3066 = vpop.f32.mrb[0].mxu0
    %v3067 = vpop.f32.mrb[0].mxu0
    %v3068 = vadd.f32 0.0, %v3067
    %v3069 = vpop.f32.mrb[0].mxu0
    %3070 = vmatprep.mubr.bf16.mxu0 %v2312
    %3071 = vmatmul.mubr.bf16.gmra.mrb[0].mxu0 %v1654
    %v3072 = vpop.f32.mrb[0].mxu0
    %v3073 = vadd.f32 0.0, %v3072
    %v3074 = vpop.f32.mrb[0].mxu0
    %v3075 = vpop.f32.mrb[0].mxu0
    %v3076 = vadd.f32 0.0, %v3075
    %v3077 = vpop.f32.mrb[0].mxu0
    %3078 = vmatprep.mubr.bf16.mxu0 %v2315
    %3079 = vmatmul.mubr.bf16.gmra.mrb[0].mxu0 %v1656
    %v3080 = vpop.f32.mrb[0].mxu0
    %v3081 = vadd.f32 0.0, %v3080
    %v3082 = vpop.f32.mrb[0].mxu0
    %v3083 = vpop.f32.mrb[0].mxu0
    %v3084 = vadd.f32 0.0, %v3083
    %v3085 = vpop.f32.mrb[0].mxu0
    %3086 = vmatprep.mubr.bf16.mxu0 %v2318
    %3087 = vmatmul.mubr.bf16.gmra.mrb[0].mxu0 %v1658
    %v3088 = vpop.f32.mrb[0].mxu0
    %v3089 = vadd.f32 0.0, %v3088
    %v3090 = vpop.f32.mrb[0].mxu0
    %v3091 = vpop.f32.mrb[0].mxu0
    %v3092 = vadd.f32 0.0, %v3091
    %v3093 = vpop.f32.mrb[0].mxu0
    %3094 = vmatprep.mubr.bf16.mxu0 %v2321
    %3095 = vmatmul.mubr.bf16.gmra.mrb[0].mxu0 %v1660
    %v3096 = vpop.f32.mrb[0].mxu0
    %v3097 = vadd.f32 0.0, %v3096
    %v3098 = vpop.f32.mrb[0].mxu0
    %v3099 = vpop.f32.mrb[0].mxu0
    %v3100 = vadd.f32 0.0, %v3099
    %v3101 = vpop.f32.mrb[0].mxu0
    %3102 = vmatprep.mubr.bf16.mxu0 %v2324
    %3103 = vmatmul.mubr.bf16.gmra.mrb[0].mxu0 %v1662
    %v3104 = vpop.f32.mrb[0].mxu0
    %v3105 = vadd.f32 0.0, %v3104
    %v3106 = vpop.f32.mrb[0].mxu0
    %v3107 = vpop.f32.mrb[0].mxu0
    %v3108 = vadd.f32 0.0, %v3107
    %v3109 = vpop.f32.mrb[0].mxu0
    %3110 = vmatprep.mubr.bf16.mxu0 %v2327
    %3111 = vmatmul.mubr.bf16.gmra.mrb[0].mxu0 %v1664
    %v3112 = vpop.f32.mrb[0].mxu0
    %v3113 = vadd.f32 0.0, %v3112
    %v3114 = vpop.f32.mrb[0].mxu0
    %v3115 = vpop.f32.mrb[0].mxu0
    %v3116 = vadd.f32 0.0, %v3115
    %v3117 = vpop.f32.mrb[0].mxu0
    %3118 = vmatprep.mubr.bf16.mxu0 %v2330
    %3119 = vmatmul.mubr.bf16.gmra.mrb[0].mxu0 %v1666
    %v3120 = vpop.f32.mrb[0].mxu0
    %v3121 = vadd.f32 0.0, %v3120
    %v3122 = vpop.f32.mrb[0].mxu0
    %v3123 = vpop.f32.mrb[0].mxu0
    %v3124 = vadd.f32 0.0, %v3123
    %v3125 = vpop.f32.mrb[0].mxu0
    %3126 = vmatprep.mubr.bf16.mxu0 %v2333
    %3127 = vmatmul.mubr.bf16.gmra.mrb[0].mxu0 %v1668
    %v3128 = vpop.f32.mrb[0].mxu0
    %v3129 = vadd.f32 0.0, %v3128
    %v3130 = vpop.f32.mrb[0].mxu0
    %v3131 = vpop.f32.mrb[0].mxu0
    %v3132 = vadd.f32 0.0, %v3131
    %v3133 = vpop.f32.mrb[0].mxu0
    %3134 = vmatprep.mubr.bf16.mxu0 %v2336
    %3135 = vmatmul.mubr.bf16.gmra.mrb[0].mxu0 %v1670
    %v3136 = vpop.f32.mrb[0].mxu0
    %v3137 = vadd.f32 0.0, %v3136
    %v3138 = vpop.f32.mrb[0].mxu0
    %v3139 = vpop.f32.mrb[0].mxu0
    %v3140 = vadd.f32 0.0, %v3139
    %v3141 = vpop.f32.mrb[0].mxu0
    %3142 = vmatprep.mubr.bf16.mxu0 %v2339
    %3143 = vmatmul.mubr.bf16.gmra.mrb[0].mxu0 %v1672
    %v3144 = vpop.f32.mrb[0].mxu0
    %v3145 = vadd.f32 0.0, %v3144
    %v3146 = vpop.f32.mrb[0].mxu0
    %v3147 = vpop.f32.mrb[0].mxu0
    %v3148 = vadd.f32 0.0, %v3147
    %v3149 = vpop.f32.mrb[0].mxu0
    %3150 = vmatprep.mubr.bf16.mxu0 %v2342
    %3151 = vmatmul.mubr.bf16.gmra.mrb[0].mxu0 %v1674
    %v3152 = vpop.f32.mrb[0].mxu0
    %v3153 = vadd.f32 0.0, %v3152
    %v3154 = vpop.f32.mrb[0].mxu0
    %v3155 = vpop.f32.mrb[0].mxu0
    %v3156 = vadd.f32 0.0, %v3155
    %v3157 = vpop.f32.mrb[0].mxu0
    %3158 = vmatprep.mubr.bf16.mxu0 %v2345
    %3159 = vmatmul.mubr.bf16.gmra.mrb[0].mxu0 %v1676
    %v3160 = vpop.f32.mrb[0].mxu0
    %v3161 = vadd.f32 0.0, %v3160
    %v3162 = vpop.f32.mrb[0].mxu0
    %v3163 = vpop.f32.mrb[0].mxu0
    %v3164 = vadd.f32 0.0, %v3163
    %v3165 = vpop.f32.mrb[0].mxu0
    %3166 = vmatprep.mubr.bf16.mxu0 %v2348
    %3167 = vmatmul.mubr.bf16.gmra.mrb[0].mxu0 %v1678
    %v3168 = vpop.f32.mrb[0].mxu0
    %v3169 = vadd.f32 0.0, %v3168
    %v3170 = vpop.f32.mrb[0].mxu0
    %v3171 = vpop.f32.mrb[0].mxu0
    %v3172 = vadd.f32 0.0, %v3171
    %v3173 = vpop.f32.mrb[0].mxu0
    %3174 = vmatprep.mubr.bf16.mxu0 %v2351
    %3175 = vmatmul.mubr.bf16.gmra.mrb[0].mxu0 %v1680
    %v3176 = vpop.f32.mrb[0].mxu0
    %v3177 = vadd.f32 0.0, %v3176
    %v3178 = vpop.f32.mrb[0].mxu0
    %v3179 = vpop.f32.mrb[0].mxu0
    %v3180 = vadd.f32 0.0, %v3179
    %v3181 = vpop.f32.mrb[0].mxu0
    %3182 = vmatprep.mubr.bf16.mxu0 %v2354
    %3183 = vmatmul.mubr.bf16.gmra.mrb[0].mxu0 %v1682
    %v3184 = vpop.f32.mrb[0].mxu0
    %v3185 = vadd.f32 0.0, %v3184
    %v3186 = vpop.f32.mrb[0].mxu0
    %v3187 = vpop.f32.mrb[0].mxu0
    %v3188 = vadd.f32 0.0, %v3187
    %v3189 = vpop.f32.mrb[0].mxu0
    %3190 = vmatprep.mubr.bf16.mxu0 %v2357
    %3191 = vmatmul.mubr.bf16.gmra.mrb[0].mxu0 %v1684
    %v3192 = vpop.f32.mrb[0].mxu0
    %v3193 = vadd.f32 0.0, %v3192
    %v3194 = vpop.f32.mrb[0].mxu0
    %v3195 = vpop.f32.mrb[0].mxu0
    %v3196 = vadd.f32 0.0, %v3195
    %v3197 = vpop.f32.mrb[0].mxu0
    %3198 = vmatprep.mubr.bf16.mxu0 %v2360
    %3199 = vmatmul.mubr.bf16.gmra.mrb[0].mxu0 %v1686
    %v3200 = vpop.f32.mrb[0].mxu0
    %v3201 = vadd.f32 0.0, %v3200
    %v3202 = vpop.f32.mrb[0].mxu0
    %v3203 = vpop.f32.mrb[0].mxu0
    %v3204 = vadd.f32 0.0, %v3203
    %v3205 = vpop.f32.mrb[0].mxu0
    %3206 = vmatprep.mubr.bf16.mxu0 %v2363
    %3207 = vmatmul.mubr.bf16.gmra.mrb[0].mxu0 %v1688
    %v3208 = vpop.f32.mrb[0].mxu0
    %v3209 = vadd.f32 0.0, %v3208
    %v3210 = vpop.f32.mrb[0].mxu0
    %v3211 = vpop.f32.mrb[0].mxu0
    %v3212 = vadd.f32 0.0, %v3211
    %v3213 = vpop.f32.mrb[0].mxu0
    %3214 = vmatprep.mubr.bf16.mxu0 %v2366
    %3215 = vmatmul.mubr.bf16.gmra.mrb[0].mxu0 %v1690
    %v3216 = vpop.f32.mrb[0].mxu0
    %v3217 = vadd.f32 0.0, %v3216
    %v3218 = vpop.f32.mrb[0].mxu0
    %v3219 = vpop.f32.mrb[0].mxu0
    %v3220 = vadd.f32 0.0, %v3219
    %v3221 = vpop.f32.mrb[0].mxu0
    %3222 = vmatprep.mubr.bf16.mxu0 %v2369
    %3223 = vmatmul.mubr.bf16.gmra.mrb[0].mxu0 %v1692
    %v3224 = vpop.f32.mrb[0].mxu0
    %v3225 = vadd.f32 0.0, %v3224
    %v3226 = vpop.f32.mrb[0].mxu0
    %v3227 = vpop.f32.mrb[0].mxu0
    %v3228 = vadd.f32 0.0, %v3227
    %v3229 = vpop.f32.mrb[0].mxu0
    %3230 = vmatprep.mubr.bf16.mxu0 %v2372
    %3231 = vmatmul.mubr.bf16.gmra.mrb[0].mxu0 %v1694
    %v3232 = vpop.f32.mrb[0].mxu0
    %v3233 = vadd.f32 0.0, %v3232
    %v3234 = vpop.f32.mrb[0].mxu0
    %v3235 = vpop.f32.mrb[0].mxu0
    %v3236 = vadd.f32 0.0, %v3235
    %v3237 = vpop.f32.mrb[0].mxu0
    %3238 = vmatprep.mubr.bf16.mxu0 %v2375
    %3239 = vmatmul.mubr.bf16.gmra.mrb[0].mxu0 %v1696
    %v3240 = vpop.f32.mrb[0].mxu0
    %v3241 = vadd.f32 0.0, %v3240
    %v3242 = vpop.f32.mrb[0].mxu0
    %v3243 = vpop.f32.mrb[0].mxu0
    %v3244 = vadd.f32 0.0, %v3243
    %v3245 = vpop.f32.mrb[0].mxu0
    %3246 = vmatprep.mubr.bf16.mxu0 %v2378
    %3247 = vmatmul.mubr.bf16.gmra.mrb[0].mxu0 %v1698
    %v3248 = vpop.f32.mrb[0].mxu0
    %v3249 = vadd.f32 0.0, %v3248
    %v3250 = vpop.f32.mrb[0].mxu0
    %v3251 = vpop.f32.mrb[0].mxu0
    %v3252 = vadd.f32 0.0, %v3251
    %v3253 = vpop.f32.mrb[0].mxu0
    %3254 = vmatprep.mubr.bf16.mxu0 %v2381
    %3255 = vmatmul.mubr.bf16.gmra.mrb[0].mxu0 %v1700
    %v3256 = vpop.f32.mrb[0].mxu0
    %v3257 = vadd.f32 0.0, %v3256
    %v3258 = vpop.f32.mrb[0].mxu0
    %v3259 = vpop.f32.mrb[0].mxu0
    %v3260 = vadd.f32 0.0, %v3259
    %v3261 = vpop.f32.mrb[0].mxu0
    %3262 = vmatprep.mubr.bf16.mxu0 %v2384
    %3263 = vmatmul.mubr.bf16.gmra.mrb[0].mxu0 %v1702
    %v3264 = vpop.f32.mrb[0].mxu0
    %v3265 = vadd.f32 0.0, %v3264
    %v3266 = vpop.f32.mrb[0].mxu0
    %v3267 = vpop.f32.mrb[0].mxu0
    %v3268 = vadd.f32 0.0, %v3267
    %v3269 = vpop.f32.mrb[0].mxu0
    %3270 = vmatprep.mubr.bf16.mxu0 %v2387
    %3271 = vmatmul.mubr.bf16.gmra.mrb[0].mxu0 %v1704
    %v3272 = vpop.f32.mrb[0].mxu0
    %v3273 = vadd.f32 0.0, %v3272
    %v3274 = vpop.f32.mrb[0].mxu0
    %v3275 = vpop.f32.mrb[0].mxu0
    %v3276 = vadd.f32 0.0, %v3275
    %v3277 = vpop.f32.mrb[0].mxu0
    %3278 = vmatprep.mubr.bf16.mxu0 %v2390
    %3279 = vmatmul.mubr.bf16.gmra.mrb[0].mxu0 %v1706
    %v3280 = vpop.f32.mrb[0].mxu0
    %v3281 = vadd.f32 0.0, %v3280
    %v3282 = vpop.f32.mrb[0].mxu0
    %v3283 = vpop.f32.mrb[0].mxu0
    %v3284 = vadd.f32 0.0, %v3283
    %v3285 = vpop.f32.mrb[0].mxu0
    %3286 = vmatprep.mubr.bf16.mxu0 %v2393
    %3287 = vmatmul.mubr.bf16.gmra.mrb[0].mxu0 %v1708
    %v3288 = vpop.f32.mrb[0].mxu0
    %v3289 = vadd.f32 0.0, %v3288
    %v3290 = vpop.f32.mrb[0].mxu0
    %v3291 = vpop.f32.mrb[0].mxu0
    %v3292 = vadd.f32 0.0, %v3291
    %v3293 = vpop.f32.mrb[0].mxu0
    %3294 = vmatprep.mubr.bf16.mxu0 %v2396
    %3295 = vmatmul.mubr.bf16.gmra.mrb[0].mxu0 %v1710
    %v3296 = vpop.f32.mrb[0].mxu0
    %v3297 = vadd.f32 0.0, %v3296
    %v3298 = vpop.f32.mrb[0].mxu0
    %v3299 = vpop.f32.mrb[0].mxu0
    %v3300 = vadd.f32 0.0, %v3299
    %v3301 = vpop.f32.mrb[0].mxu0
    %3302 = vmatprep.mubr.bf16.mxu0 %v2399
    %3303 = vmatmul.mubr.bf16.gmra.mrb[0].mxu0 %v1712
    %v3304 = vpop.f32.mrb[0].mxu0
    %v3305 = vadd.f32 0.0, %v3304
    %v3306 = vpop.f32.mrb[0].mxu0
    %v3307 = vpop.f32.mrb[0].mxu0
    %v3308 = vadd.f32 0.0, %v3307
    %v3309 = vpop.f32.mrb[0].mxu0
    %3310 = vmatprep.mubr.bf16.mxu0 %v2402
    %3311 = vmatmul.mubr.bf16.gmra.mrb[0].mxu0 %v1714
    %v3312 = vpop.f32.mrb[0].mxu0
    %v3313 = vadd.f32 0.0, %v3312
    %v3314 = vpop.f32.mrb[0].mxu0
    %v3315 = vpop.f32.mrb[0].mxu0
    %v3316 = vadd.f32 0.0, %v3315
    %v3317 = vpop.f32.mrb[0].mxu0
    %3318 = vmatprep.mubr.bf16.mxu0 %v2405
    %3319 = vmatmul.mubr.bf16.gmra.mrb[0].mxu0 %v1716
    %v3320 = vpop.f32.mrb[0].mxu0
    %v3321 = vadd.f32 0.0, %v3320
    %v3322 = vpop.f32.mrb[0].mxu0
    %v3323 = vpop.f32.mrb[0].mxu0
    %v3324 = vadd.f32 0.0, %v3323
    %v3325 = vpop.f32.mrb[0].mxu0
    %3326 = vmatprep.mubr.bf16.mxu0 %v2408
    %3327 = vmatmul.mubr.bf16.gmra.mrb[0].mxu0 %v1718
    %v3328 = vpop.f32.mrb[0].mxu0
    %v3329 = vadd.f32 0.0, %v3328
    %v3330 = vpop.f32.mrb[0].mxu0
    %v3331 = vpop.f32.mrb[0].mxu0
    %v3332 = vadd.f32 0.0, %v3331
    %v3333 = vpop.f32.mrb[0].mxu0
    %3334 = vmatprep.mubr.bf16.mxu0 %v2411
    %3335 = vmatmul.mubr.bf16.gmra.mrb[0].mxu0 %v1720
    %v3336 = vpop.f32.mrb[0].mxu0
    %v3337 = vadd.f32 0.0, %v3336
    %v3338 = vpop.f32.mrb[0].mxu0
    %v3339 = vpop.f32.mrb[0].mxu0
    %v3340 = vadd.f32 0.0, %v3339
    %v3341 = vpop.f32.mrb[0].mxu0
    %3342 = vmatprep.mubr.bf16.mxu0 %v2414
    %3343 = vmatmul.mubr.bf16.gmra.mrb[0].mxu0 %v1722
    %v3344 = vpop.f32.mrb[0].mxu0
    %v3345 = vadd.f32 0.0, %v3344
    %v3346 = vpop.f32.mrb[0].mxu0
    %v3347 = vpop.f32.mrb[0].mxu0
    %v3348 = vadd.f32 0.0, %v3347
    %v3349 = vpop.f32.mrb[0].mxu0
    %3350 = vmatprep.mubr.bf16.mxu0 %v2417
    %3351 = vmatmul.mubr.bf16.gmra.mrb[0].mxu0 %v1724
    %v3352 = vpop.f32.mrb[0].mxu0
    %v3353 = vadd.f32 0.0, %v3352
    %v3354 = vpop.f32.mrb[0].mxu0
    %v3355 = vpop.f32.mrb[0].mxu0
    %v3356 = vadd.f32 0.0, %v3355
    %v3357 = vpop.f32.mrb[0].mxu0
    %3358 = vmatprep.mubr.bf16.mxu0 %v2420
    %3359 = vmatmul.mubr.bf16.gmra.mrb[0].mxu0 %v1726
    %v3360 = vpop.f32.mrb[0].mxu0
    %v3361 = vadd.f32 0.0, %v3360
    %v3362 = vpop.f32.mrb[0].mxu0
    %v3363 = vpop.f32.mrb[0].mxu0
    %v3364 = vadd.f32 0.0, %v3363
    %v3365 = vpop.f32.mrb[0].mxu0
    %3366 = vmatprep.mubr.bf16.mxu0 %v2423
    %3367 = vmatmul.mubr.bf16.gmra.mrb[0].mxu0 %v1728
    %v3368 = vpop.f32.mrb[0].mxu0
    %v3369 = vadd.f32 0.0, %v3368
    %v3370 = vpop.f32.mrb[0].mxu0
    %v3371 = vpop.f32.mrb[0].mxu0
    %v3372 = vadd.f32 0.0, %v3371
    %v3373 = vpop.f32.mrb[0].mxu0
    %3374 = vmatprep.mubr.bf16.mxu0 %v2426
    %3375 = vmatmul.mubr.bf16.gmra.mrb[0].mxu0 %v1730
    %v3376 = vpop.f32.mrb[0].mxu0
    %v3377 = vadd.f32 0.0, %v3376
    %v3378 = vpop.f32.mrb[0].mxu0
    %v3379 = vpop.f32.mrb[0].mxu0
    %v3380 = vadd.f32 0.0, %v3379
    %v3381 = vpop.f32.mrb[0].mxu0
    %3382 = vmatprep.mubr.bf16.mxu0 %v2429
    %3383 = vmatmul.mubr.bf16.gmra.mrb[0].mxu0 %v1732
    %v3384 = vpop.f32.mrb[0].mxu0
    %v3385 = vadd.f32 0.0, %v3384
    %v3386 = vpop.f32.mrb[0].mxu0
    %v3387 = vpop.f32.mrb[0].mxu0
    %v3388 = vadd.f32 0.0, %v3387
    %v3389 = vpop.f32.mrb[0].mxu0
    %3390 = vmatprep.mubr.bf16.mxu0 %v2432
    %3391 = vmatmul.mubr.bf16.gmra.mrb[0].mxu0 %v1734
    %v3392 = vpop.f32.mrb[0].mxu0
    %v3393 = vadd.f32 0.0, %v3392
    %v3394 = vpop.f32.mrb[0].mxu0
    %v3395 = vpop.f32.mrb[0].mxu0
    %v3396 = vadd.f32 0.0, %v3395
    %v3397 = vpop.f32.mrb[0].mxu0
    %3398 = vmatprep.mubr.bf16.mxu0 %v2435
    %3399 = vmatmul.mubr.bf16.gmra.mrb[0].mxu0 %v1736
    %v3400 = vpop.f32.mrb[0].mxu0
    %v3401 = vadd.f32 0.0, %v3400
    %v3402 = vpop.f32.mrb[0].mxu0
    %v3403 = vpop.f32.mrb[0].mxu0
    %v3404 = vadd.f32 0.0, %v3403
    %v3405 = vpop.f32.mrb[0].mxu0
    %3406 = vmatprep.mubr.bf16.mxu0 %v2438
    %3407 = vmatmul.mubr.bf16.gmra.mrb[0].mxu0 %v1738
    %v3408 = vpop.f32.mrb[0].mxu0
    %v3409 = vadd.f32 0.0, %v3408
    %v3410 = vpop.f32.mrb[0].mxu0
    %v3411 = vpop.f32.mrb[0].mxu0
    %v3412 = vadd.f32 0.0, %v3411
    %v3413 = vpop.f32.mrb[0].mxu0
    %3414 = vmatprep.mubr.bf16.mxu0 %v2441
    %3415 = vmatmul.mubr.bf16.gmra.mrb[0].mxu0 %v1740
    %v3416 = vpop.f32.mrb[0].mxu0
    %v3417 = vadd.f32 0.0, %v3416
    %v3418 = vpop.f32.mrb[0].mxu0
    %v3419 = vpop.f32.mrb[0].mxu0
    %v3420 = vadd.f32 0.0, %v3419
    %v3421 = vpop.f32.mrb[0].mxu0
    %3422 = vmatprep.mubr.bf16.mxu0 %v2444
    %3423 = vmatmul.mubr.bf16.gmra.mrb[0].mxu0 %v1742
    %v3424 = vpop.f32.mrb[0].mxu0
    %v3425 = vadd.f32 0.0, %v3424
    %v3426 = vpop.f32.mrb[0].mxu0
    %v3427 = vpop.f32.mrb[0].mxu0
    %v3428 = vadd.f32 0.0, %v3427
    %v3429 = vpop.f32.mrb[0].mxu0
    %3430 = vmatprep.mubr.bf16.mxu0 %v2447
    %3431 = vmatmul.mubr.bf16.gmra.mrb[0].mxu0 %v1744
    %v3432 = vpop.f32.mrb[0].mxu0
    %v3433 = vadd.f32 0.0, %v3432
    %v3434 = vpop.f32.mrb[0].mxu0
    %v3435 = vpop.f32.mrb[0].mxu0
    %v3436 = vadd.f32 0.0, %v3435
    %v3437 = vpop.f32.mrb[0].mxu0
    %3438 = vmatprep.mubr.bf16.mxu0 %v2450
    %3439 = vmatmul.mubr.bf16.gmra.mrb[0].mxu0 %v1746
    %v3440 = vpop.f32.mrb[0].mxu0
    %v3441 = vadd.f32 0.0, %v3440
    %v3442 = vpop.f32.mrb[0].mxu0
    %v3443 = vpop.f32.mrb[0].mxu0
    %v3444 = vadd.f32 0.0, %v3443
    %v3445 = vpop.f32.mrb[0].mxu0
    %3446 = vmatprep.mubr.bf16.mxu0 %v2453
    %3447 = vmatmul.mubr.bf16.gmra.mrb[0].mxu0 %v1748
    %v3448 = vpop.f32.mrb[0].mxu0
    %v3449 = vadd.f32 0.0, %v3448
    %v3450 = vpop.f32.mrb[0].mxu0
    %v3451 = vpop.f32.mrb[0].mxu0
    %v3452 = vadd.f32 0.0, %v3451
    %v3453 = vpop.f32.mrb[0].mxu0
    %3454 = vmatprep.mubr.bf16.mxu0 %v2456
    %3455 = vmatmul.mubr.bf16.gmra.mrb[0].mxu0 %v1750
    %v3456 = vpop.f32.mrb[0].mxu0
    %v3457 = vadd.f32 0.0, %v3456
    %v3458 = vpop.f32.mrb[0].mxu0
    %v3459 = vpop.f32.mrb[0].mxu0
    %v3460 = vadd.f32 0.0, %v3459
    %v3461 = vpop.f32.mrb[0].mxu0
    %3462 = vmatprep.mubr.bf16.mxu0 %v2459
    %3463 = vmatmul.mubr.bf16.gmra.mrb[0].mxu0 %v1752
    %v3464 = vpop.f32.mrb[0].mxu0
    %v3465 = vadd.f32 0.0, %v3464
    %v3466 = vpop.f32.mrb[0].mxu0
    %v3467 = vpop.f32.mrb[0].mxu0
    %v3468 = vadd.f32 0.0, %v3467
    %v3469 = vpop.f32.mrb[0].mxu0
    %3470 = vmatprep.mubr.bf16.mxu0 %v2462
    %3471 = vmatmul.mubr.bf16.gmra.mrb[0].mxu0 %v1754
    %v3472 = vpop.f32.mrb[0].mxu0
    %v3473 = vadd.f32 0.0, %v3472
    %v3474 = vpop.f32.mrb[0].mxu0
    %v3475 = vpop.f32.mrb[0].mxu0
    %v3476 = vadd.f32 0.0, %v3475
    %v3477 = vpop.f32.mrb[0].mxu0
    %3478 = vmatprep.mubr.bf16.mxu0 %v2465
    %3479 = vmatmul.mubr.bf16.gmra.mrb[0].mxu0 %v1756
    %v3480 = vpop.f32.mrb[0].mxu0
    %v3481 = vadd.f32 0.0, %v3480
    %v3482 = vpop.f32.mrb[0].mxu0
    %v3483 = vpop.f32.mrb[0].mxu0
    %v3484 = vadd.f32 0.0, %v3483
    %v3485 = vpop.f32.mrb[0].mxu0
    %3486 = vmatprep.mubr.bf16.mxu0 %v2468
    %3487 = vmatmul.mubr.bf16.gmra.mrb[0].mxu0 %v1758
    %v3488 = vpop.f32.mrb[0].mxu0
    %v3489 = vadd.f32 0.0, %v3488
    %v3490 = vpop.f32.mrb[0].mxu0
    %v3491 = vpop.f32.mrb[0].mxu0
    %v3492 = vadd.f32 0.0, %v3491
    %v3493 = vpop.f32.mrb[0].mxu0
    %3494 = vmatprep.mubr.bf16.mxu0 %v2471
    %3495 = vmatmul.mubr.bf16.gmra.mrb[0].mxu0 %v1760
    %v3496 = vpop.f32.mrb[0].mxu0
    %v3497 = vadd.f32 0.0, %v3496
    %v3498 = vpop.f32.mrb[0].mxu0
    %v3499 = vpop.f32.mrb[0].mxu0
    %v3500 = vadd.f32 0.0, %v3499
    %v3501 = vpop.f32.mrb[0].mxu0
    %3502 = vmatprep.mubr.bf16.mxu0 %v2474
    %3503 = vmatmul.mubr.bf16.gmra.mrb[0].mxu0 %v1762
    %v3504 = vpop.f32.mrb[0].mxu0
    %v3505 = vadd.f32 0.0, %v3504
    %v3506 = vpop.f32.mrb[0].mxu0
    %v3507 = vpop.f32.mrb[0].mxu0
    %v3508 = vadd.f32 0.0, %v3507
    %v3509 = vpop.f32.mrb[0].mxu0
    %3510 = vmatprep.mubr.bf16.mxu0 %v2477
    %3511 = vmatmul.mubr.bf16.gmra.mrb[0].mxu0 %v1764
    %v3512 = vpop.f32.mrb[0].mxu0
    %v3513 = vadd.f32 0.0, %v3512
    %v3514 = vpop.f32.mrb[0].mxu0
    %v3515 = vpop.f32.mrb[0].mxu0
    %v3516 = vadd.f32 0.0, %v3515
    %v3517 = vpop.f32.mrb[0].mxu0
    %3518 = vmatprep.mubr.bf16.mxu0 %v2480
    %3519 = vmatmul.mubr.bf16.gmra.mrb[0].mxu0 %v1766
    %v3520 = vpop.f32.mrb[0].mxu0
    %v3521 = vadd.f32 0.0, %v3520
    %v3522 = vpop.f32.mrb[0].mxu0
    %v3523 = vpop.f32.mrb[0].mxu0
    %v3524 = vadd.f32 0.0, %v3523
    %v3525 = vpop.f32.mrb[0].mxu0
    %3526 = vmatprep.mubr.bf16.mxu0 %v2483
    %3527 = vmatmul.mubr.bf16.gmra.mrb[0].mxu0 %v1768
    %v3528 = vpop.f32.mrb[0].mxu0
    %v3529 = vadd.f32 0.0, %v3528
    %v3530 = vpop.f32.mrb[0].mxu0
    %v3531 = vpop.f32.mrb[0].mxu0
    %v3532 = vadd.f32 0.0, %v3531
    %v3533 = vpop.f32.mrb[0].mxu0
    %3534 = vmatprep.mubr.bf16.mxu0 %v2486
    %3535 = vmatmul.mubr.bf16.gmra.mrb[0].mxu0 %v1770
    %v3536 = vpop.f32.mrb[0].mxu0
    %v3537 = vadd.f32 0.0, %v3536
    %v3538 = vpop.f32.mrb[0].mxu0
    %v3539 = vpop.f32.mrb[0].mxu0
    %v3540 = vadd.f32 0.0, %v3539
    %v3541 = vpop.f32.mrb[0].mxu0
    %3542 = vmatprep.mubr.bf16.mxu0 %v2489
    %3543 = vmatmul.mubr.bf16.gmra.mrb[0].mxu0 %v1772
    %v3544 = vpop.f32.mrb[0].mxu0
    %v3545 = vadd.f32 0.0, %v3544
    %v3546 = vpop.f32.mrb[0].mxu0
    %v3547 = vpop.f32.mrb[0].mxu0
    %v3548 = vadd.f32 0.0, %v3547
    %v3549 = vpop.f32.mrb[0].mxu0
    %3550 = vmatprep.mubr.bf16.mxu0 %v2492
    %3551 = vmatmul.mubr.bf16.gmra.mrb[0].mxu0 %v1774
    %v3552 = vpop.f32.mrb[0].mxu0
    %v3553 = vadd.f32 0.0, %v3552
    %v3554 = vpop.f32.mrb[0].mxu0
    %v3555 = vpop.f32.mrb[0].mxu0
    %v3556 = vadd.f32 0.0, %v3555
    %v3557 = vpop.f32.mrb[0].mxu0
    %3558 = vmatprep.mubr.bf16.mxu0 %v2495
    %3559 = vmatmul.mubr.bf16.gmra.mrb[0].mxu0 %v1776
    %v3560 = vpop.f32.mrb[0].mxu0
    %v3561 = vadd.f32 0.0, %v3560
    %v3562 = vpop.f32.mrb[0].mxu0
    %v3563 = vpop.f32.mrb[0].mxu0
    %v3564 = vadd.f32 0.0, %v3563
    %v3565 = vpop.f32.mrb[0].mxu0
    %3566 = vmatprep.mubr.bf16.mxu0 %v2498
    %3567 = vmatmul.mubr.bf16.gmra.mrb[0].mxu0 %v1778
    %v3568 = vpop.f32.mrb[0].mxu0
    %v3569 = vadd.f32 0.0, %v3568
    %v3570 = vpop.f32.mrb[0].mxu0
    %v3571 = vpop.f32.mrb[0].mxu0
    %v3572 = vadd.f32 0.0, %v3571
    %v3573 = vpop.f32.mrb[0].mxu0
    %3574 = vmatprep.mubr.bf16.mxu0 %v2501
    %3575 = vmatmul.mubr.bf16.gmra.mrb[0].mxu0 %v1780
    %v3576 = vpop.f32.mrb[0].mxu0
    %v3577 = vadd.f32 0.0, %v3576
    %v3578 = vpop.f32.mrb[0].mxu0
    %v3579 = vpop.f32.mrb[0].mxu0
    %v3580 = vadd.f32 0.0, %v3579
    %v3581 = vpop.f32.mrb[0].mxu0
    %3582 = vmatprep.mubr.bf16.mxu0 %v2504
    %3583 = vmatmul.mubr.bf16.gmra.mrb[0].mxu0 %v1782
    %v3584 = vpop.f32.mrb[0].mxu0
    %v3585 = vadd.f32 0.0, %v3584
    %v3586 = vpop.f32.mrb[0].mxu0
    %v3587 = vpop.f32.mrb[0].mxu0
    %v3588 = vadd.f32 0.0, %v3587
    %v3589 = vpop.f32.mrb[0].mxu0
    %3590 = vmatprep.mubr.bf16.mxu0 %v2507
    %3591 = vmatmul.mubr.bf16.gmra.mrb[0].mxu0 %v1784
    %v3592 = vpop.f32.mrb[0].mxu0
    %v3593 = vadd.f32 0.0, %v3592
    %v3594 = vpop.f32.mrb[0].mxu0
    %v3595 = vpop.f32.mrb[0].mxu0
    %v3596 = vadd.f32 0.0, %v3595
    %v3597 = vpop.f32.mrb[0].mxu0
    %3598 = vmatprep.mubr.bf16.mxu0 %v2510
    %3599 = vmatmul.mubr.bf16.gmra.mrb[0].mxu0 %v1786
    %v3600 = vpop.f32.mrb[0].mxu0
    %v3601 = vadd.f32 0.0, %v3600
    %v3602 = vpop.f32.mrb[0].mxu0
    %v3603 = vpop.f32.mrb[0].mxu0
    %v3604 = vadd.f32 0.0, %v3603
    %v3605 = vpop.f32.mrb[0].mxu0
    %3606 = vmatprep.mubr.bf16.mxu0 %v2513
    %3607 = vmatmul.mubr.bf16.gmra.mrb[0].mxu0 %v1788
    %v3608 = vpop.f32.mrb[0].mxu0
    %v3609 = vadd.f32 0.0, %v3608
    %v3610 = vpop.f32.mrb[0].mxu0
    %v3611 = vpop.f32.mrb[0].mxu0
    %v3612 = vadd.f32 0.0, %v3611
    %v3613 = vpop.f32.mrb[0].mxu0
    %3614 = vmatprep.mubr.bf16.mxu0 %v2516
    %3615 = vmatmul.mubr.bf16.gmra.mrb[0].mxu0 %v1790
    %v3616 = vpop.f32.mrb[0].mxu0
    %v3617 = vadd.f32 0.0, %v3616
    %v3618 = vpop.f32.mrb[0].mxu0
    %v3619 = vpop.f32.mrb[0].mxu0
    %v3620 = vadd.f32 0.0, %v3619
    %v3621 = vpop.f32.mrb[0].mxu0
    %3622 = vmatprep.mubr.bf16.mxu0 %v2519
    %3623 = vmatmul.mubr.bf16.gmra.mrb[0].mxu0 %v1792
    %v3624 = vpop.f32.mrb[0].mxu0
    %v3625 = vadd.f32 0.0, %v3624
    %v3626 = vpop.f32.mrb[0].mxu0
    %v3627 = vpop.f32.mrb[0].mxu0
    %v3628 = vadd.f32 0.0, %v3627
    %v3629 = vpop.f32.mrb[0].mxu0
    %3630 = vmatprep.mubr.bf16.mxu0 %v2522
    %3631 = vmatmul.mubr.bf16.gmra.mrb[0].mxu0 %v1794
    %v3632 = vpop.f32.mrb[0].mxu0
    %v3633 = vadd.f32 0.0, %v3632
    %v3634 = vpop.f32.mrb[0].mxu0
    %v3635 = vpop.f32.mrb[0].mxu0
    %v3636 = vadd.f32 0.0, %v3635
    %v3637 = vpop.f32.mrb[0].mxu0
    %3638 = vmatprep.mubr.bf16.mxu0 %v2525
    %3639 = vmatmul.mubr.bf16.gmra.mrb[0].mxu0 %v1796
    %v3640 = vpop.f32.mrb[0].mxu0
    %v3641 = vadd.f32 0.0, %v3640
    %v3642 = vpop.f32.mrb[0].mxu0
    %v3643 = vpop.f32.mrb[0].mxu0
    %v3644 = vadd.f32 0.0, %v3643
    %v3645 = vpop.f32.mrb[0].mxu0
    %3646 = vmatprep.mubr.bf16.mxu0 %v2528
    %3647 = vmatmul.mubr.bf16.gmra.mrb[0].mxu0 %v1798
    %v3648 = vpop.f32.mrb[0].mxu0
    %v3649 = vadd.f32 0.0, %v3648
    %v3650 = vpop.f32.mrb[0].mxu0
    %v3651 = vpop.f32.mrb[0].mxu0
    %v3652 = vadd.f32 0.0, %v3651
    %v3653 = vpop.f32.mrb[0].mxu0
    %3654 = vmatprep.mubr.bf16.mxu0 %v2531
    %3655 = vmatmul.mubr.bf16.gmra.mrb[0].mxu0 %v1800
    %v3656 = vpop.f32.mrb[0].mxu0
    %v3657 = vadd.f32 0.0, %v3656
    %v3658 = vpop.f32.mrb[0].mxu0
    %v3659 = vpop.f32.mrb[0].mxu0
    %v3660 = vadd.f32 0.0, %v3659
    %v3661 = vpop.f32.mrb[0].mxu0
    %3662 = vmatprep.mubr.bf16.mxu0 %v2534
    %3663 = vmatmul.mubr.bf16.gmra.mrb[0].mxu0 %v1802
    %v3664 = vpop.f32.mrb[0].mxu0
    %v3665 = vadd.f32 0.0, %v3664
    %v3666 = vpop.f32.mrb[0].mxu0
    %v3667 = vpop.f32.mrb[0].mxu0
    %v3668 = vadd.f32 0.0, %v3667
    %v3669 = vpop.f32.mrb[0].mxu0
    %3670 = vmatprep.mubr.bf16.mxu0 %v2537
    %3671 = vmatmul.mubr.bf16.gmra.mrb[0].mxu0 %v1804
    %v3672 = vpop.f32.mrb[0].mxu0
    %v3673 = vadd.f32 0.0, %v3672
    %v3674 = vpop.f32.mrb[0].mxu0
    %v3675 = vpop.f32.mrb[0].mxu0
    %v3676 = vadd.f32 0.0, %v3675
    %v3677 = vpop.f32.mrb[0].mxu0
    %3678 = vmatprep.mubr.bf16.mxu0 %v2540
    %3679 = vmatmul.mubr.bf16.gmra.mrb[0].mxu0 %v1806
    %v3680 = vpop.f32.mrb[0].mxu0
    %v3681 = vadd.f32 0.0, %v3680
    %v3682 = vpop.f32.mrb[0].mxu0
    %v3683 = vpop.f32.mrb[0].mxu0
    %v3684 = vadd.f32 0.0, %v3683
    %v3685 = vpop.f32.mrb[0].mxu0
    %3686 = vmatprep.mubr.bf16.mxu0 %v2543
    %3687 = vmatmul.mubr.bf16.gmra.mrb[0].mxu0 %v1808
    %v3688 = vpop.f32.mrb[0].mxu0
    %v3689 = vadd.f32 0.0, %v3688
    %v3690 = vpop.f32.mrb[0].mxu0
    %v3691 = vpop.f32.mrb[0].mxu0
    %v3692 = vadd.f32 0.0, %v3691
    %v3693 = vpop.f32.mrb[0].mxu0
    %3694 = vmatprep.mubr.bf16.mxu0 %v2546
    %3695 = vmatmul.mubr.bf16.gmra.mrb[0].mxu0 %v1810
    %v3696 = vpop.f32.mrb[0].mxu0
    %v3697 = vadd.f32 0.0, %v3696
    %v3698 = vpop.f32.mrb[0].mxu0
    %v3699 = vpop.f32.mrb[0].mxu0
    %v3700 = vadd.f32 0.0, %v3699
    %v3701 = vpop.f32.mrb[0].mxu0
    %3702 = vmatprep.mubr.bf16.mxu0 %v2549
    %3703 = vmatmul.mubr.bf16.gmra.mrb[0].mxu0 %v1812
    %v3704 = vpop.f32.mrb[0].mxu0
    %v3705 = vadd.f32 0.0, %v3704
    %v3706 = vpop.f32.mrb[0].mxu0
    %v3707 = vpop.f32.mrb[0].mxu0
    %v3708 = vadd.f32 0.0, %v3707
    %v3709 = vpop.f32.mrb[0].mxu0
    %3710 = vmatprep.mubr.bf16.mxu0 %v2552
    %3711 = vmatmul.mubr.bf16.gmra.mrb[0].mxu0 %v1814
    %v3712 = vpop.f32.mrb[0].mxu0
    %v3713 = vadd.f32 0.0, %v3712
    %v3714 = vpop.f32.mrb[0].mxu0
    %v3715 = vpop.f32.mrb[0].mxu0
    %v3716 = vadd.f32 0.0, %v3715
    %v3717 = vpop.f32.mrb[0].mxu0
    %3718 = vmatprep.mubr.bf16.mxu0 %v2555
    %3719 = vmatmul.mubr.bf16.gmra.mrb[0].mxu0 %v1816
    %v3720 = vpop.f32.mrb[0].mxu0
    %v3721 = vadd.f32 0.0, %v3720
    %v3722 = vpop.f32.mrb[0].mxu0
    %v3723 = vpop.f32.mrb[0].mxu0
    %v3724 = vadd.f32 0.0, %v3723
    %v3725 = vpop.f32.mrb[0].mxu0
    %3726 = vmatprep.mubr.bf16.mxu0 %v2558
    %3727 = vmatmul.mubr.bf16.gmra.mrb[0].mxu0 %v1818
    %v3728 = vpop.f32.mrb[0].mxu0
    %v3729 = vadd.f32 0.0, %v3728
    %v3730 = vpop.f32.mrb[0].mxu0
    %v3731 = vpop.f32.mrb[0].mxu0
    %v3732 = vadd.f32 0.0, %v3731
    %v3733 = vpop.f32.mrb[0].mxu0
    %3734 = vmatprep.mubr.bf16.mxu0 %v2561
    %3735 = vmatmul.mubr.bf16.gmra.mrb[0].mxu0 %v1820
    %v3736 = vpop.f32.mrb[0].mxu0
    %v3737 = vadd.f32 0.0, %v3736
    %v3738 = vpop.f32.mrb[0].mxu0
    %v3739 = vpop.f32.mrb[0].mxu0
    %v3740 = vadd.f32 0.0, %v3739
    %v3741 = vpop.f32.mrb[0].mxu0
    %3742 = vmatprep.mubr.bf16.mxu0 %v2564
    %3743 = vmatmul.mubr.bf16.gmra.mrb[0].mxu0 %v1822
    %v3744 = vpop.f32.mrb[0].mxu0
    %v3745 = vadd.f32 0.0, %v3744
    %v3746 = vpop.f32.mrb[0].mxu0
    %v3747 = vpop.f32.mrb[0].mxu0
    %v3748 = vadd.f32 0.0, %v3747
    %v3749 = vpop.f32.mrb[0].mxu0
    %3750 = vmatprep.mubr.bf16.mxu0 %v2567
    %3751 = vmatmul.mubr.bf16.gmra.mrb[0].mxu0 %v1824
    %v3752 = vpop.f32.mrb[0].mxu0
    %v3753 = vadd.f32 0.0, %v3752
    %v3754 = vpop.f32.mrb[0].mxu0
    %v3755 = vpop.f32.mrb[0].mxu0
    %v3756 = vadd.f32 0.0, %v3755
    %v3757 = vpop.f32.mrb[0].mxu0
    %3758 = vmatprep.mubr.bf16.mxu0 %v2570
    %3759 = vmatmul.mubr.bf16.gmra.mrb[0].mxu0 %v1826
    %v3760 = vpop.f32.mrb[0].mxu0
    %v3761 = vadd.f32 0.0, %v3760
    %v3762 = vpop.f32.mrb[0].mxu0
    %v3763 = vpop.f32.mrb[0].mxu0
    %v3764 = vadd.f32 0.0, %v3763
    %v3765 = vpop.f32.mrb[0].mxu0
    %3766 = vmatprep.mubr.bf16.mxu0 %v2573
    %3767 = vmatmul.mubr.bf16.gmra.mrb[0].mxu0 %v1828
    %v3768 = vpop.f32.mrb[0].mxu0
    %v3769 = vadd.f32 0.0, %v3768
    %v3770 = vpop.f32.mrb[0].mxu0
    %v3771 = vpop.f32.mrb[0].mxu0
    %v3772 = vadd.f32 0.0, %v3771
    %v3773 = vpop.f32.mrb[0].mxu0
    %3774 = vmatprep.mubr.bf16.mxu0 %v2576
    %3775 = vmatmul.mubr.bf16.gmra.mrb[0].mxu0 %v1830
    %v3776 = vpop.f32.mrb[0].mxu0
    %v3777 = vadd.f32 0.0, %v3776
    %v3778 = vpop.f32.mrb[0].mxu0
    %v3779 = vpop.f32.mrb[0].mxu0
    %v3780 = vadd.f32 0.0, %v3779
    %v3781 = vpop.f32.mrb[0].mxu0
    %3782 = vmatprep.mubr.bf16.mxu0 %v2579
    %3783 = vmatmul.mubr.bf16.gmra.mrb[0].mxu0 %v1832
    %v3784 = vpop.f32.mrb[0].mxu0
    %v3785 = vadd.f32 0.0, %v3784
    %v3786 = vpop.f32.mrb[0].mxu0
    %v3787 = vpop.f32.mrb[0].mxu0
    %v3788 = vadd.f32 0.0, %v3787
    %v3789 = vpop.f32.mrb[0].mxu0
    %3790 = vmatprep.mubr.bf16.mxu0 %v2582
    %3791 = vmatmul.mubr.bf16.gmra.mrb[0].mxu0 %v1834
    %v3792 = vpop.f32.mrb[0].mxu0
    %v3793 = vadd.f32 0.0, %v3792
    %v3794 = vpop.f32.mrb[0].mxu0
    %v3795 = vpop.f32.mrb[0].mxu0
    %v3796 = vadd.f32 0.0, %v3795
    %v3797 = vpop.f32.mrb[0].mxu0
    %3798 = vmatprep.mubr.bf16.mxu0 %v2585
    %3799 = vmatmul.mubr.bf16.gmra.mrb[0].mxu0 %v1836
    %v3800 = vpop.f32.mrb[0].mxu0
    %v3801 = vadd.f32 0.0, %v3800
    %v3802 = vpop.f32.mrb[0].mxu0
    %v3803 = vpop.f32.mrb[0].mxu0
    %v3804 = vadd.f32 0.0, %v3803
    %v3805 = vpop.f32.mrb[0].mxu0
    %3806 = vmatprep.mubr.bf16.mxu0 %v2588
    %3807 = vmatmul.mubr.bf16.gmra.mrb[0].mxu0 %v1838
    %v3808 = vpop.f32.mrb[0].mxu0
    %v3809 = vadd.f32 0.0, %v3808
    %v3810 = vpop.f32.mrb[0].mxu0
    %v3811 = vpop.f32.mrb[0].mxu0
    %v3812 = vadd.f32 0.0, %v3811
    %v3813 = vpop.f32.mrb[0].mxu0
    %3814 = vmatprep.mubr.bf16.mxu0 %v2591
    %3815 = vmatmul.mubr.bf16.gmra.mrb[0].mxu0 %v1840
    %v3816 = vpop.f32.mrb[0].mxu0
    %v3817 = vadd.f32 0.0, %v3816
    %v3818 = vpop.f32.mrb[0].mxu0
    %v3819 = vpop.f32.mrb[0].mxu0
    %v3820 = vadd.f32 0.0, %v3819
    %v3821 = vpop.f32.mrb[0].mxu0
    %3822 = vmatprep.mubr.bf16.mxu0 %v2594
    %3823 = vmatmul.mubr.bf16.gmra.mrb[0].mxu0 %v1842
    %v3824 = vpop.f32.mrb[0].mxu0
    %v3825 = vadd.f32 0.0, %v3824
    %v3826 = vpop.f32.mrb[0].mxu0
    %v3827 = vpop.f32.mrb[0].mxu0
    %v3828 = vadd.f32 0.0, %v3827
    %v3829 = vpop.f32.mrb[0].mxu0
    %3830 = vmatprep.mubr.bf16.mxu0 %v2597
    %3831 = vmatmul.mubr.bf16.gmra.mrb[0].mxu0 %v1844
    %v3832 = vpop.f32.mrb[0].mxu0
    %v3833 = vadd.f32 0.0, %v3832
    %v3834 = vpop.f32.mrb[0].mxu0
    %v3835 = vpop.f32.mrb[0].mxu0
    %v3836 = vadd.f32 0.0, %v3835
    %v3837 = vpop.f32.mrb[0].mxu0
    %3838 = vmatprep.mubr.bf16.mxu0 %v2600
    %3839 = vmatmul.mubr.bf16.gmra.mrb[0].mxu0 %v1846
    %v3840 = vpop.f32.mrb[0].mxu0
    %v3841 = vadd.f32 0.0, %v3840
    %v3842 = vpop.f32.mrb[0].mxu0
    %v3843 = vpop.f32.mrb[0].mxu0
    %v3844 = vadd.f32 0.0, %v3843
    %v3845 = vpop.f32.mrb[0].mxu0
    %3846 = vmatprep.mubr.bf16.mxu0 %v2603
    %3847 = vmatmul.mubr.bf16.gmra.mrb[0].mxu0 %v1848
    %v3848 = vpop.f32.mrb[0].mxu0
    %v3849 = vadd.f32 0.0, %v3848
    %v3850 = vpop.f32.mrb[0].mxu0
    %v3851 = vpop.f32.mrb[0].mxu0
    %v3852 = vadd.f32 0.0, %v3851
    %v3853 = vpop.f32.mrb[0].mxu0
    %3854 = vmatprep.mubr.bf16.mxu0 %v2606
    %3855 = vmatmul.mubr.bf16.gmra.mrb[0].mxu0 %v1850
    %v3856 = vpop.f32.mrb[0].mxu0
    %v3857 = vadd.f32 0.0, %v3856
    %v3858 = vpop.f32.mrb[0].mxu0
    %v3859 = vpop.f32.mrb[0].mxu0
    %v3860 = vadd.f32 0.0, %v3859
    %v3861 = vpop.f32.mrb[0].mxu0
    %3862 = vmatprep.mubr.bf16.mxu0 %v2609
    %3863 = vmatmul.mubr.bf16.gmra.mrb[0].mxu0 %v1852
    %v3864 = vpop.f32.mrb[0].mxu0
    %v3865 = vadd.f32 0.0, %v3864
    %v3866 = vpop.f32.mrb[0].mxu0
    %v3867 = vpop.f32.mrb[0].mxu0
    %v3868 = vadd.f32 0.0, %v3867
    %v3869 = vpop.f32.mrb[0].mxu0
    %3870 = vmatprep.mubr.bf16.mxu0 %v2612
    %3871 = vmatmul.mubr.bf16.gmra.mrb[0].mxu0 %v1854
    %v3872 = vpop.f32.mrb[0].mxu0
    %v3873 = vadd.f32 0.0, %v3872
    %v3874 = vpop.f32.mrb[0].mxu0
    %v3875 = vpop.f32.mrb[0].mxu0
    %v3876 = vadd.f32 0.0, %v3875
    %v3877 = vpop.f32.mrb[0].mxu0
    %3878 = vmatprep.mubr.bf16.mxu0 %v2615
    %3879 = vmatmul.mubr.bf16.gmra.mrb[0].mxu0 %v1856
    %v3880 = vpop.f32.mrb[0].mxu0
    %v3881 = vadd.f32 0.0, %v3880
    %v3882 = vpop.f32.mrb[0].mxu0
    %v3883 = vpop.f32.mrb[0].mxu0
    %v3884 = vadd.f32 0.0, %v3883
    %v3885 = vpop.f32.mrb[0].mxu0
    %3886 = vmatprep.mubr.bf16.mxu0 %v2618
    %3887 = vmatmul.mubr.bf16.gmra.mrb[0].mxu0 %v1858
    %v3888 = vpop.f32.mrb[0].mxu0
    %v3889 = vadd.f32 0.0, %v3888
    %v3890 = vpop.f32.mrb[0].mxu0
    %v3891 = vpop.f32.mrb[0].mxu0
    %v3892 = vadd.f32 0.0, %v3891
    %v3893 = vpop.f32.mrb[0].mxu0
    %3894 = vmatprep.mubr.bf16.mxu0 %v2621
    %3895 = vmatmul.mubr.bf16.gmra.mrb[0].mxu0 %v1860
    %v3896 = vpop.f32.mrb[0].mxu0
    %v3897 = vadd.f32 0.0, %v3896
    %v3898 = vpop.f32.mrb[0].mxu0
    %v3899 = vpop.f32.mrb[0].mxu0
    %v3900 = vadd.f32 0.0, %v3899
    %v3901 = vpop.f32.mrb[0].mxu0
    %3902 = vmatprep.mubr.bf16.mxu0 %v2624
    %3903 = vmatmul.mubr.bf16.gmra.mrb[0].mxu0 %v1862
    %v3904 = vpop.f32.mrb[0].mxu0
    %v3905 = vadd.f32 0.0, %v3904
    %v3906 = vpop.f32.mrb[0].mxu0
    %v3907 = vpop.f32.mrb[0].mxu0
    %v3908 = vadd.f32 0.0, %v3907
    %v3909 = vpop.f32.mrb[0].mxu0
    %3910 = vmatprep.mubr.bf16.mxu0 %v2627
    %3911 = vmatmul.mubr.bf16.gmra.mrb[0].mxu0 %v1864
    %v3912 = vpop.f32.mrb[0].mxu0
    %v3913 = vadd.f32 0.0, %v3912
    %v3914 = vpop.f32.mrb[0].mxu0
    %v3915 = vpop.f32.mrb[0].mxu0
    %v3916 = vadd.f32 0.0, %v3915
    %v3917 = vpop.f32.mrb[0].mxu0
    %3918 = vmatprep.mubr.bf16.mxu0 %v2630
    %3919 = vmatmul.mubr.bf16.gmra.mrb[0].mxu0 %v1866
    %v3920 = vpop.f32.mrb[0].mxu0
    %v3921 = vadd.f32 0.0, %v3920
    %v3922 = vpop.f32.mrb[0].mxu0
    %v3923 = vpop.f32.mrb[0].mxu0
    %v3924 = vadd.f32 0.0, %v3923
    %v3925 = vpop.f32.mrb[0].mxu0
    %3926 = vmatprep.mubr.bf16.mxu0 %v2633
    %3927 = vmatmul.mubr.bf16.gmra.mrb[0].mxu0 %v1868
    %v3928 = vpop.f32.mrb[0].mxu0
    %v3929 = vadd.f32 0.0, %v3928
    %v3930 = vpop.f32.mrb[0].mxu0
    %v3931 = vpop.f32.mrb[0].mxu0
    %v3932 = vadd.f32 0.0, %v3931
    %v3933 = vpop.f32.mrb[0].mxu0
    %3934 = vmatprep.mubr.bf16.mxu0 %v2636
    %3935 = vmatmul.mubr.bf16.gmra.mrb[0].mxu0 %v1870
    %v3936 = vpop.f32.mrb[0].mxu0
    %v3937 = vadd.f32 0.0, %v3936
    %v3938 = vpop.f32.mrb[0].mxu0
    %v3939 = vpop.f32.mrb[0].mxu0
    %v3940 = vadd.f32 0.0, %v3939
    %v3941 = vpop.f32.mrb[0].mxu0
    %3942 = vmatprep.mubr.bf16.mxu0 %v2639
    %3943 = vmatmul.mubr.bf16.gmra.mrb[0].mxu0 %v1872
    %v3944 = vpop.f32.mrb[0].mxu0
    %v3945 = vadd.f32 0.0, %v3944
    %v3946 = vpop.f32.mrb[0].mxu0
    %v3947 = vpop.f32.mrb[0].mxu0
    %v3948 = vadd.f32 0.0, %v3947
    %v3949 = vpop.f32.mrb[0].mxu0
    %3950 = vmatprep.mubr.bf16.mxu0 %v2642
    %3951 = vmatmul.mubr.bf16.gmra.mrb[0].mxu0 %v1874
    %v3952 = vpop.f32.mrb[0].mxu0
    %v3953 = vadd.f32 0.0, %v3952
    %v3954 = vpop.f32.mrb[0].mxu0
    %v3955 = vpop.f32.mrb[0].mxu0
    %v3956 = vadd.f32 0.0, %v3955
    %v3957 = vpop.f32.mrb[0].mxu0
    %3958 = vmatprep.mubr.bf16.mxu0 %v2645
    %3959 = vmatmul.mubr.bf16.gmra.mrb[0].mxu0 %v1876
    %v3960 = vpop.f32.mrb[0].mxu0
    %v3961 = vadd.f32 0.0, %v3960
    %v3962 = vpop.f32.mrb[0].mxu0
    %v3963 = vpop.f32.mrb[0].mxu0
    %v3964 = vadd.f32 0.0, %v3963
    %v3965 = vpop.f32.mrb[0].mxu0
    %3966 = vmatprep.mubr.bf16.mxu0 %v2648
    %3967 = vmatmul.mubr.bf16.gmra.mrb[0].mxu0 %v1878
    %v3968 = vpop.f32.mrb[0].mxu0
    %v3969 = vadd.f32 0.0, %v3968
    %v3970 = vpop.f32.mrb[0].mxu0
    %v3971 = vpop.f32.mrb[0].mxu0
    %v3972 = vadd.f32 0.0, %v3971
    %v3973 = vpop.f32.mrb[0].mxu0
    %3974 = vmatprep.mubr.bf16.mxu0 %v2651
    %3975 = vmatmul.mubr.bf16.gmra.mrb[0].mxu0 %v1880
    %v3976 = vpop.f32.mrb[0].mxu0
    %v3977 = vadd.f32 0.0, %v3976
    %v3978 = vpop.f32.mrb[0].mxu0
    %v3979 = vpop.f32.mrb[0].mxu0
    %v3980 = vadd.f32 0.0, %v3979
    %v3981 = vpop.f32.mrb[0].mxu0
    %3982 = vmatprep.mubr.bf16.mxu0 %v2654
    %3983 = vmatmul.mubr.bf16.gmra.mrb[0].mxu0 %v1882
    %v3984 = vpop.f32.mrb[0].mxu0
    %v3985 = vadd.f32 0.0, %v3984
    %v3986 = vpop.f32.mrb[0].mxu0
    %v3987 = vpop.f32.mrb[0].mxu0
    %v3988 = vadd.f32 0.0, %v3987
    %v3989 = vpop.f32.mrb[0].mxu0
    %3990 = vmatprep.mubr.bf16.mxu0 %v2657
    %3991 = vmatmul.mubr.bf16.gmra.mrb[0].mxu0 %v1884
    %v3992 = vpop.f32.mrb[0].mxu0
    %v3993 = vadd.f32 0.0, %v3992
    %v3994 = vpop.f32.mrb[0].mxu0
    %v3995 = vpop.f32.mrb[0].mxu0
    %v3996 = vadd.f32 0.0, %v3995
    %v3997 = vpop.f32.mrb[0].mxu0
    %3998 = vmatprep.mubr.bf16.mxu0 %v2660
    %3999 = vmatmul.mubr.bf16.gmra.mrb[0].mxu0 %v1886
    %v4000 = vpop.f32.mrb[0].mxu0
    %v4001 = vadd.f32 0.0, %v4000
    %v4002 = vpop.f32.mrb[0].mxu0
    %v4003 = vpop.f32.mrb[0].mxu0
    %v4004 = vadd.f32 0.0, %v4003
    %v4005 = vpop.f32.mrb[0].mxu0
    %4006 = vmatprep.mubr.bf16.mxu0 %v2663
    %4007 = vmatmul.mubr.bf16.gmra.mrb[0].mxu0 %v1888
    %v4008 = vpop.f32.mrb[0].mxu0
    %v4009 = vadd.f32 0.0, %v4008
    %v4010 = vpop.f32.mrb[0].mxu0
    %v4011 = vpop.f32.mrb[0].mxu0
    %v4012 = vadd.f32 0.0, %v4011
    %v4013 = vpop.f32.mrb[0].mxu0
    %4014 = vmatprep.mubr.bf16.mxu0 %v2666
    %4015 = vmatmul.mubr.bf16.gmra.mrb[0].mxu0 %v1890
    %v4016 = vpop.f32.mrb[0].mxu0
    %v4017 = vadd.f32 0.0, %v4016
    %v4018 = vpop.f32.mrb[0].mxu0
    %v4019 = vpop.f32.mrb[0].mxu0
    %v4020 = vadd.f32 0.0, %v4019
    %v4021 = vpop.f32.mrb[0].mxu0
    %4022 = vmatprep.mubr.bf16.mxu0 %v2669
    %4023 = vmatmul.mubr.bf16.gmra.mrb[0].mxu0 %v1892
    %v4024 = vpop.f32.mrb[0].mxu0
    %v4025 = vadd.f32 0.0, %v4024
    %v4026 = vpop.f32.mrb[0].mxu0
    %v4027 = vpop.f32.mrb[0].mxu0
    %v4028 = vadd.f32 0.0, %v4027
    %v4029 = vpop.f32.mrb[0].mxu0
    %4030 = vmatprep.mubr.bf16.mxu0 %v2672
    %4031 = vmatmul.mubr.bf16.gmra.mrb[0].mxu0 %v1894
    %v4032 = vpop.f32.mrb[0].mxu0
    %v4033 = vadd.f32 0.0, %v4032
    %v4034 = vpop.f32.mrb[0].mxu0
    %v4035 = vpop.f32.mrb[0].mxu0
    %v4036 = vadd.f32 0.0, %v4035
    %v4037 = vpop.f32.mrb[0].mxu0
    %4038 = vmatprep.mubr.bf16.mxu0 %v2675
    %4039 = vmatmul.mubr.bf16.gmra.mrb[0].mxu0 %v1896
    %v4040 = vpop.f32.mrb[0].mxu0
    %v4041 = vadd.f32 0.0, %v4040
    %v4042 = vpop.f32.mrb[0].mxu0
    %v4043 = vpop.f32.mrb[0].mxu0
    %v4044 = vadd.f32 0.0, %v4043
    %v4045 = vpop.f32.mrb[0].mxu0
    %4046 = vmatprep.mubr.bf16.mxu0 %v2678
    %4047 = vmatmul.mubr.bf16.gmra.mrb[0].mxu0 %v1898
    %v4048 = vpop.f32.mrb[0].mxu0
    %v4049 = vadd.f32 0.0, %v4048
    %v4050 = vpop.f32.mrb[0].mxu0
    %v4051 = vpop.f32.mrb[0].mxu0
    %v4052 = vadd.f32 0.0, %v4051
    %v4053 = vpop.f32.mrb[0].mxu0
    %4054 = vmatprep.mubr.bf16.mxu0 %v2681
    %4055 = vmatmul.mubr.bf16.gmra.mrb[0].mxu0 %v1900
    %v4056 = vpop.f32.mrb[0].mxu0
    %v4057 = vadd.f32 0.0, %v4056
    %v4058 = vpop.f32.mrb[0].mxu0
    %v4059 = vpop.f32.mrb[0].mxu0
    %v4060 = vadd.f32 0.0, %v4059
    %v4061 = vpop.f32.mrb[0].mxu0
    %4062 = vmatprep.mubr.bf16.mxu0 %v2684
    %4063 = vmatmul.mubr.bf16.gmra.mrb[0].mxu0 %v1902
    %v4064 = vpop.f32.mrb[0].mxu0
    %v4065 = vadd.f32 0.0, %v4064
    %v4066 = vpop.f32.mrb[0].mxu0
    %v4067 = vpop.f32.mrb[0].mxu0
    %v4068 = vadd.f32 0.0, %v4067
    %v4069 = vpop.f32.mrb[0].mxu0
    %4070 = vmatprep.mubr.bf16.mxu0 %v2687
    %4071 = vmatmul.mubr.bf16.gmra.mrb[0].mxu0 %v1904
    %v4072 = vpop.f32.mrb[0].mxu0
    %v4073 = vadd.f32 0.0, %v4072
    %v4074 = vpop.f32.mrb[0].mxu0
    %v4075 = vpop.f32.mrb[0].mxu0
    %v4076 = vadd.f32 0.0, %v4075
    %v4077 = vpop.f32.mrb[0].mxu0
    %4078 = vmatprep.mubr.bf16.mxu0 %v2690
    %4079 = vmatmul.mubr.bf16.gmra.mrb[0].mxu0 %v1906
    %v4080 = vpop.f32.mrb[0].mxu0
    %v4081 = vadd.f32 0.0, %v4080
    %v4082 = vpop.f32.mrb[0].mxu0
    %v4083 = vpop.f32.mrb[0].mxu0
    %v4084 = vadd.f32 0.0, %v4083
    %v4085 = vpop.f32.mrb[0].mxu0
    %4086 = vmatprep.mubr.bf16.mxu0 %v2693
    %4087 = vmatmul.mubr.bf16.gmra.mrb[0].mxu0 %v1908
    %v4088 = vpop.f32.mrb[0].mxu0
    %v4089 = vadd.f32 0.0, %v4088
    %v4090 = vpop.f32.mrb[0].mxu0
    %v4091 = vpop.f32.mrb[0].mxu0
    %v4092 = vadd.f32 0.0, %v4091
    %v4093 = vpop.f32.mrb[0].mxu0
    %4094 = vmatprep.mubr.bf16.mxu0 %v2696
    %4095 = vmatmul.mubr.bf16.gmra.mrb[0].mxu0 %v1910
    %v4096 = vpop.f32.mrb[0].mxu0
    %v4097 = vadd.f32 0.0, %v4096
    %v4098 = vpop.f32.mrb[0].mxu0
    %v4099 = vpop.f32.mrb[0].mxu0
    %v4100 = vadd.f32 0.0, %v4099
    %v4101 = vpop.f32.mrb[0].mxu0
    %4102 = vmatprep.mubr.bf16.mxu0 %v2699
    %4103 = vmatmul.mubr.bf16.gmra.mrb[0].mxu0 %v1912
    %v4104 = vpop.f32.mrb[0].mxu0
    %v4105 = vadd.f32 0.0, %v4104
    %v4106 = vpop.f32.mrb[0].mxu0
    %v4107 = vpop.f32.mrb[0].mxu0
    %v4108 = vadd.f32 0.0, %v4107
    %v4109 = vpop.f32.mrb[0].mxu0
    %4110 = vmatprep.mubr.bf16.mxu0 %v2702
    %4111 = vmatmul.mubr.bf16.gmra.mrb[0].mxu0 %v1914
    %v4112 = vpop.f32.mrb[0].mxu0
    %v4113 = vadd.f32 0.0, %v4112
    %v4114 = vpop.f32.mrb[0].mxu0
    %v4115 = vpop.f32.mrb[0].mxu0
    %v4116 = vadd.f32 0.0, %v4115
    %v4117 = vpop.f32.mrb[0].mxu0
    %4118 = vmatprep.mubr.bf16.mxu0 %v2705
    %4119 = vmatmul.mubr.bf16.gmra.mrb[0].mxu0 %v1916
    %v4120 = vpop.f32.mrb[0].mxu0
    %v4121 = vadd.f32 0.0, %v4120
    %v4122 = vpop.f32.mrb[0].mxu0
    %v4123 = vpop.f32.mrb[0].mxu0
    %v4124 = vadd.f32 0.0, %v4123
    %v4125 = vpop.f32.mrb[0].mxu0
    %4126 = vmatprep.mubr.bf16.mxu0 %v2708
    %4127 = vmatmul.mubr.bf16.gmra.mrb[0].mxu0 %v1918
    %v4128 = vpop.f32.mrb[0].mxu0
    %v4129 = vadd.f32 0.0, %v4128
    %v4130 = vpop.f32.mrb[0].mxu0
    %v4131 = vpop.f32.mrb[0].mxu0
    %v4132 = vadd.f32 0.0, %v4131
    %v4133 = vpop.f32.mrb[0].mxu0
    %4134 = vmatprep.mubr.bf16.mxu0 %v2711
    %4135 = vmatmul.mubr.bf16.gmra.mrb[0].mxu0 %v1920
    %v4136 = vpop.f32.mrb[0].mxu0
    %v4137 = vadd.f32 0.0, %v4136
    %v4138 = vpop.f32.mrb[0].mxu0
    %v4139 = vpop.f32.mrb[0].mxu0
    %v4140 = vadd.f32 0.0, %v4139
    %v4141 = vpop.f32.mrb[0].mxu0
    %4142 = vmatprep.mubr.bf16.mxu0 %v2714
    %4143 = vmatmul.mubr.bf16.gmra.mrb[0].mxu0 %v1922
    %v4144 = vpop.f32.mrb[0].mxu0
    %v4145 = vadd.f32 0.0, %v4144
    %v4146 = vpop.f32.mrb[0].mxu0
    %v4147 = vpop.f32.mrb[0].mxu0
    %v4148 = vadd.f32 0.0, %v4147
    %v4149 = vpop.f32.mrb[0].mxu0
    %4150 = vmatprep.mubr.bf16.mxu0 %v2717
    %4151 = vmatmul.mubr.bf16.gmra.mrb[0].mxu0 %v1924
    %v4152 = vpop.f32.mrb[0].mxu0
    %v4153 = vadd.f32 0.0, %v4152
    %v4154 = vpop.f32.mrb[0].mxu0
    %v4155 = vpop.f32.mrb[0].mxu0
    %v4156 = vadd.f32 0.0, %v4155
    %v4157 = vpop.f32.mrb[0].mxu0
    %4158 = vmatprep.mubr.bf16.mxu0 %v2720
    %4159 = vmatmul.mubr.bf16.gmra.mrb[0].mxu0 %v1926
    %v4160 = vpop.f32.mrb[0].mxu0
    %v4161 = vadd.f32 0.0, %v4160
    %v4162 = vpop.f32.mrb[0].mxu0
    %v4163 = vpop.f32.mrb[0].mxu0
    %v4164 = vadd.f32 0.0, %v4163
    %v4165 = vpop.f32.mrb[0].mxu0
    %4166 = vmatprep.mubr.bf16.mxu0 %v2723
    %4167 = vmatmul.mubr.bf16.gmra.mrb[0].mxu0 %v1928
    %v4168 = vpop.f32.mrb[0].mxu0
    %v4169 = vadd.f32 0.0, %v4168
    %v4170 = vpop.f32.mrb[0].mxu0
    %v4171 = vpop.f32.mrb[0].mxu0
    %v4172 = vadd.f32 0.0, %v4171
    %v4173 = vpop.f32.mrb[0].mxu0
    %4174 = vmatprep.mubr.bf16.mxu0 %v2726
    %4175 = vmatmul.mubr.bf16.gmra.mrb[0].mxu0 %v1930
    %v4176 = vpop.f32.mrb[0].mxu0
    %v4177 = vadd.f32 0.0, %v4176
    %v4178 = vpop.f32.mrb[0].mxu0
    %v4179 = vpop.f32.mrb[0].mxu0
    %v4180 = vadd.f32 0.0, %v4179
    %v4181 = vpop.f32.mrb[0].mxu0
    %4182 = vmatprep.mubr.bf16.mxu0 %v2729
    %4183 = vmatmul.mubr.bf16.gmra.mrb[0].mxu0 %v1932
    %v4184 = vpop.f32.mrb[0].mxu0
    %v4185 = vadd.f32 0.0, %v4184
    %v4186 = vpop.f32.mrb[0].mxu0
    %v4187 = vpop.f32.mrb[0].mxu0
    %v4188 = vadd.f32 0.0, %v4187
    %v4189 = vpop.f32.mrb[0].mxu0
    %4190 = vmatprep.mubr.bf16.mxu0 %v2732
    %4191 = vmatmul.mubr.bf16.gmra.mrb[0].mxu0 %v1934
    %v4192 = vpop.f32.mrb[0].mxu0
    %v4193 = vadd.f32 0.0, %v4192
    %v4194 = vpop.f32.mrb[0].mxu0
    %v4195 = vpop.f32.mrb[0].mxu0
    %v4196 = vadd.f32 0.0, %v4195
    %v4197 = vpop.f32.mrb[0].mxu0
    %4198 = vmatprep.mubr.bf16.mxu0 %v2735
    %4199 = vmatmul.mubr.bf16.gmra.mrb[0].mxu0 %v1936
    %v4200 = vpop.f32.mrb[0].mxu0
    %v4201 = vadd.f32 0.0, %v4200
    %v4202 = vpop.f32.mrb[0].mxu0
    %v4203 = vpop.f32.mrb[0].mxu0
    %v4204 = vadd.f32 0.0, %v4203
    %v4205 = vpop.f32.mrb[0].mxu0
    %4206 = vmatprep.mubr.bf16.mxu0 %v2738
    %4207 = vmatmul.mubr.bf16.gmra.mrb[0].mxu0 %v1938
    %v4208 = vpop.f32.mrb[0].mxu0
    %v4209 = vadd.f32 0.0, %v4208
    %v4210 = vpop.f32.mrb[0].mxu0
    %v4211 = vpop.f32.mrb[0].mxu0
    %v4212 = vadd.f32 0.0, %v4211
    %v4213 = vpop.f32.mrb[0].mxu0
    %4214 = vmatprep.mubr.bf16.mxu0 %v2741
    %4215 = vmatmul.mubr.bf16.gmra.mrb[0].mxu0 %v1940
    %v4216 = vpop.f32.mrb[0].mxu0
    %v4217 = vadd.f32 0.0, %v4216
    %v4218 = vpop.f32.mrb[0].mxu0
    %v4219 = vpop.f32.mrb[0].mxu0
    %v4220 = vadd.f32 0.0, %v4219
    %v4221 = vpop.f32.mrb[0].mxu0
    %4222 = vmatprep.mubr.bf16.mxu0 %v2744
    %4223 = vmatmul.mubr.bf16.gmra.mrb[0].mxu0 %v1942
    %v4224 = vpop.f32.mrb[0].mxu0
    %v4225 = vadd.f32 0.0, %v4224
    %v4226 = vpop.f32.mrb[0].mxu0
    %v4227 = vpop.f32.mrb[0].mxu0
    %v4228 = vadd.f32 0.0, %v4227
    %v4229 = vpop.f32.mrb[0].mxu0
    %4230 = vmatprep.mubr.bf16.mxu0 %v2747
    %4231 = vmatmul.mubr.bf16.gmra.mrb[0].mxu0 %v1944
    %v4232 = vpop.f32.mrb[0].mxu0
    %v4233 = vadd.f32 0.0, %v4232
    %v4234 = vpop.f32.mrb[0].mxu0
    %v4235 = vpop.f32.mrb[0].mxu0
    %v4236 = vadd.f32 0.0, %v4235
    %v4237 = vpop.f32.mrb[0].mxu0
    %4238 = vmatprep.mubr.bf16.mxu0 %v2750
    %4239 = vmatmul.mubr.bf16.gmra.mrb[0].mxu0 %v1946
    %v4240 = vpop.f32.mrb[0].mxu0
    %v4241 = vadd.f32 0.0, %v4240
    %v4242 = vpop.f32.mrb[0].mxu0
    %v4243 = vpop.f32.mrb[0].mxu0
    %v4244 = vadd.f32 0.0, %v4243
    %v4245 = vpop.f32.mrb[0].mxu0
    %4246 = vmatprep.mubr.bf16.mxu0 %v2753
    %4247 = vmatmul.mubr.bf16.gmra.mrb[0].mxu0 %v1948
    %v4248 = vpop.f32.mrb[0].mxu0
    %v4249 = vadd.f32 0.0, %v4248
    %v4250 = vpop.f32.mrb[0].mxu0
    %v4251 = vpop.f32.mrb[0].mxu0
    %v4252 = vadd.f32 0.0, %v4251
    %v4253 = vpop.f32.mrb[0].mxu0
    %4254 = vmatprep.mubr.bf16.mxu0 %v2756
    %4255 = vmatmul.mubr.bf16.gmra.mrb[0].mxu0 %v1950
    %v4256 = vpop.f32.mrb[0].mxu0
    %v4257 = vadd.f32 0.0, %v4256
    %v4258 = vpop.f32.mrb[0].mxu0
    %v4259 = vpop.f32.mrb[0].mxu0
    %v4260 = vadd.f32 0.0, %v4259
    %v4261 = vpop.f32.mrb[0].mxu0
    %4262 = vmatprep.mubr.bf16.mxu0 %v2759
    %4263 = vmatmul.mubr.bf16.gmra.mrb[0].mxu0 %v1952
    %v4264 = vpop.f32.mrb[0].mxu0
    %v4265 = vadd.f32 0.0, %v4264
    %v4266 = vpop.f32.mrb[0].mxu0
    %v4267 = vpop.f32.mrb[0].mxu0
    %v4268 = vadd.f32 0.0, %v4267
    %v4269 = vpop.f32.mrb[0].mxu0
    %4270 = vmatprep.mubr.bf16.mxu0 %v2762
    %4271 = vmatmul.mubr.bf16.gmra.mrb[0].mxu0 %v1954
    %v4272 = vpop.f32.mrb[0].mxu0
    %v4273 = vadd.f32 0.0, %v4272
    %v4274 = vpop.f32.mrb[0].mxu0
    %v4275 = vpop.f32.mrb[0].mxu0
    %v4276 = vadd.f32 0.0, %v4275
    %v4277 = vpop.f32.mrb[0].mxu0
    %4278 = vmatprep.mubr.bf16.mxu0 %v2765
    %4279 = vmatmul.mubr.bf16.gmra.mrb[0].mxu0 %v1956
    %v4280 = vpop.f32.mrb[0].mxu0
    %v4281 = vadd.f32 0.0, %v4280
    %v4282 = vpop.f32.mrb[0].mxu0
    %v4283 = vpop.f32.mrb[0].mxu0
    %v4284 = vadd.f32 0.0, %v4283
    %v4285 = vpop.f32.mrb[0].mxu0
    %4286 = vmatprep.mubr.bf16.mxu0 %v2768
    %4287 = vmatmul.mubr.bf16.gmra.mrb[0].mxu0 %v1958
    %v4288 = vpop.f32.mrb[0].mxu0
    %v4289 = vadd.f32 0.0, %v4288
    %v4290 = vpop.f32.mrb[0].mxu0
    %v4291 = vpop.f32.mrb[0].mxu0
    %v4292 = vadd.f32 0.0, %v4291
    %v4293 = vpop.f32.mrb[0].mxu0
    %4294 = vmatprep.mubr.bf16.mxu0 %v2771
    %4295 = vmatmul.mubr.bf16.gmra.mrb[0].mxu0 %v1960
    %v4296 = vpop.f32.mrb[0].mxu0
    %v4297 = vadd.f32 0.0, %v4296
    %v4298 = vpop.f32.mrb[0].mxu0
    %v4299 = vpop.f32.mrb[0].mxu0
    %v4300 = vadd.f32 0.0, %v4299
    %v4301 = vpop.f32.mrb[0].mxu0
    %4302 = vmatprep.mubr.bf16.mxu0 %v2774
    %4303 = vmatmul.mubr.bf16.gmra.mrb[0].mxu0 %v1962
    %v4304 = vpop.f32.mrb[0].mxu0
    %v4305 = vadd.f32 0.0, %v4304
    %v4306 = vpop.f32.mrb[0].mxu0
    %v4307 = vpop.f32.mrb[0].mxu0
    %v4308 = vadd.f32 0.0, %v4307
    %v4309 = vpop.f32.mrb[0].mxu0
    %4310 = vmatprep.mubr.bf16.mxu0 %v2777
    %4311 = vmatmul.mubr.bf16.gmra.mrb[0].mxu0 %v1964
    %v4312 = vpop.f32.mrb[0].mxu0
    %v4313 = vadd.f32 0.0, %v4312
    %v4314 = vpop.f32.mrb[0].mxu0
    %v4315 = vpop.f32.mrb[0].mxu0
    %v4316 = vadd.f32 0.0, %v4315
    %v4317 = vpop.f32.mrb[0].mxu0
    %4318 = vmatprep.mubr.bf16.mxu0 %v2780
    %4319 = vmatmul.mubr.bf16.gmra.mrb[0].mxu0 %v1966
    %v4320 = vpop.f32.mrb[0].mxu0
    %v4321 = vadd.f32 0.0, %v4320
    %v4322 = vpop.f32.mrb[0].mxu0
    %v4323 = vpop.f32.mrb[0].mxu0
    %v4324 = vadd.f32 0.0, %v4323
    %v4325 = vpop.f32.mrb[0].mxu0
    %4326 = vmatprep.mubr.bf16.mxu0 %v2783
    %4327 = vmatmul.mubr.bf16.gmra.mrb[0].mxu0 %v1968
    %v4328 = vpop.f32.mrb[0].mxu0
    %v4329 = vadd.f32 0.0, %v4328
    %v4330 = vpop.f32.mrb[0].mxu0
    %v4331 = vpop.f32.mrb[0].mxu0
    %v4332 = vadd.f32 0.0, %v4331
    %v4333 = vpop.f32.mrb[0].mxu0
    %4334 = vmatprep.mubr.bf16.mxu0 %v2786
    %4335 = vmatmul.mubr.bf16.gmra.mrb[0].mxu0 %v1970
    %v4336 = vpop.f32.mrb[0].mxu0
    %v4337 = vadd.f32 0.0, %v4336
    %v4338 = vpop.f32.mrb[0].mxu0
    %v4339 = vpop.f32.mrb[0].mxu0
    %v4340 = vadd.f32 0.0, %v4339
    %v4341 = vpop.f32.mrb[0].mxu0
    %4342 = vmatprep.mubr.bf16.mxu0 %v2789
    %4343 = vmatmul.mubr.bf16.gmra.mrb[0].mxu0 %v1972
    %v4344 = vpop.f32.mrb[0].mxu0
    %v4345 = vadd.f32 0.0, %v4344
    %v4346 = vpop.f32.mrb[0].mxu0
    %v4347 = vpop.f32.mrb[0].mxu0
    %v4348 = vadd.f32 0.0, %v4347
    %v4349 = vpop.f32.mrb[0].mxu0
    %4350 = vmatprep.mubr.bf16.mxu0 %v2792
    %4351 = vmatmul.mubr.bf16.gmra.mrb[0].mxu0 %v1974
    %v4352 = vpop.f32.mrb[0].mxu0
    %v4353 = vadd.f32 0.0, %v4352
    %v4354 = vpop.f32.mrb[0].mxu0
    %v4355 = vpop.f32.mrb[0].mxu0
    %v4356 = vadd.f32 0.0, %v4355
    %v4357 = vpop.f32.mrb[0].mxu0
    %4358 = vmatprep.mubr.bf16.mxu0 %v2795
    %4359 = vmatmul.mubr.bf16.gmra.mrb[0].mxu0 %v1976
    %v4360 = vpop.f32.mrb[0].mxu0
    %v4361 = vadd.f32 0.0, %v4360
    %v4362 = vpop.f32.mrb[0].mxu0
    %v4363 = vpop.f32.mrb[0].mxu0
    %v4364 = vadd.f32 0.0, %v4363
    %v4365 = vpop.f32.mrb[0].mxu0
    %4366 = vmatprep.mubr.bf16.mxu0 %v2798
    %4367 = vmatmul.mubr.bf16.gmra.mrb[0].mxu0 %v1978
    %v4368 = vpop.f32.mrb[0].mxu0
    %v4369 = vadd.f32 0.0, %v4368
    %v4370 = vpop.f32.mrb[0].mxu0
    %v4371 = vpop.f32.mrb[0].mxu0
    %v4372 = vadd.f32 0.0, %v4371
    %v4373 = vpop.f32.mrb[0].mxu0
    %4374 = vdwg.mxu0
    %vm4375 = vcmp.gt.f32.partialorder %v2841, 0.0
    %vm4376 = vcmp.gt.f32.partialorder %v2844, 0.0
    %vm4377 = vcmp.gt.f32.partialorder %v2849, 0.0
    %vm4378 = vcmp.gt.f32.partialorder %v2852, 0.0
    %vm4379 = vcmp.gt.f32.partialorder %v2857, 0.0
    %vm4380 = vcmp.gt.f32.partialorder %v2860, 0.0
    %vm4381 = vcmp.gt.f32.partialorder %v2865, 0.0
    %vm4382 = vcmp.gt.f32.partialorder %v2868, 0.0
    %vm4383 = vcmp.gt.f32.partialorder %v2873, 0.0
    %vm4384 = vcmp.gt.f32.partialorder %v2876, 0.0
    %vm4385 = vcmp.gt.f32.partialorder %v2881, 0.0
    %vm4386 = vcmp.gt.f32.partialorder %v2884, 0.0
    %vm4387 = vcmp.gt.f32.partialorder %v2889, 0.0
    %vm4388 = vcmp.gt.f32.partialorder %v2892, 0.0
    %vm4389 = vcmp.gt.f32.partialorder %v2897, 0.0
    %vm4390 = vcmp.gt.f32.partialorder %v2900, 0.0
    %vm4391 = vcmp.gt.f32.partialorder %v2905, 0.0
    %vm4392 = vcmp.gt.f32.partialorder %v2908, 0.0
    %vm4393 = vcmp.gt.f32.partialorder %v2913, 0.0
    %vm4394 = vcmp.gt.f32.partialorder %v2916, 0.0
    %vm4395 = vcmp.gt.f32.partialorder %v2921, 0.0
    %vm4396 = vcmp.gt.f32.partialorder %v2924, 0.0
    %vm4397 = vcmp.gt.f32.partialorder %v2929, 0.0
    %vm4398 = vcmp.gt.f32.partialorder %v2932, 0.0
    %vm4399 = vcmp.gt.f32.partialorder %v2937, 0.0
    %vm4400 = vcmp.gt.f32.partialorder %v2940, 0.0
    %vm4401 = vcmp.gt.f32.partialorder %v2945, 0.0
    %vm4402 = vcmp.gt.f32.partialorder %v2948, 0.0
    %vm4403 = vcmp.gt.f32.partialorder %v2953, 0.0
    %vm4404 = vcmp.gt.f32.partialorder %v2956, 0.0
    %vm4405 = vcmp.gt.f32.partialorder %v2961, 0.0
    %vm4406 = vcmp.gt.f32.partialorder %v2964, 0.0
    %vm4407 = vcmp.gt.f32.partialorder %v2969, 0.0
    %vm4408 = vcmp.gt.f32.partialorder %v2972, 0.0
    %vm4409 = vcmp.gt.f32.partialorder %v2977, 0.0
    %vm4410 = vcmp.gt.f32.partialorder %v2980, 0.0
    %vm4411 = vcmp.gt.f32.partialorder %v2985, 0.0
    %vm4412 = vcmp.gt.f32.partialorder %v2988, 0.0
    %vm4413 = vcmp.gt.f32.partialorder %v2993, 0.0
    %vm4414 = vcmp.gt.f32.partialorder %v2996, 0.0
    %vm4415 = vcmp.gt.f32.partialorder %v3001, 0.0
    %vm4416 = vcmp.gt.f32.partialorder %v3004, 0.0
    %vm4417 = vcmp.gt.f32.partialorder %v3009, 0.0
    %vm4418 = vcmp.gt.f32.partialorder %v3012, 0.0
    %vm4419 = vcmp.gt.f32.partialorder %v3017, 0.0
    %vm4420 = vcmp.gt.f32.partialorder %v3020, 0.0
    %vm4421 = vcmp.gt.f32.partialorder %v3025, 0.0
    %vm4422 = vcmp.gt.f32.partialorder %v3028, 0.0
    %vm4423 = vcmp.gt.f32.partialorder %v3033, 0.0
    %vm4424 = vcmp.gt.f32.partialorder %v3036, 0.0
    %vm4425 = vcmp.gt.f32.partialorder %v3041, 0.0
    %vm4426 = vcmp.gt.f32.partialorder %v3044, 0.0
    %vm4427 = vcmp.gt.f32.partialorder %v3049, 0.0
    %vm4428 = vcmp.gt.f32.partialorder %v3052, 0.0
    %vm4429 = vcmp.gt.f32.partialorder %v3057, 0.0
    %vm4430 = vcmp.gt.f32.partialorder %v3060, 0.0
    %vm4431 = vcmp.gt.f32.partialorder %v3065, 0.0
    %vm4432 = vcmp.gt.f32.partialorder %v3068, 0.0
    %vm4433 = vcmp.gt.f32.partialorder %v3073, 0.0
    %vm4434 = vcmp.gt.f32.partialorder %v3076, 0.0
    %vm4435 = vcmp.gt.f32.partialorder %v3081, 0.0
    %vm4436 = vcmp.gt.f32.partialorder %v3084, 0.0
    %vm4437 = vcmp.gt.f32.partialorder %v3089, 0.0
    %vm4438 = vcmp.gt.f32.partialorder %v3092, 0.0
    %vm4439 = vcmp.gt.f32.partialorder %v3097, 0.0
    %vm4440 = vcmp.gt.f32.partialorder %v3100, 0.0
    %vm4441 = vcmp.gt.f32.partialorder %v3105, 0.0
    %vm4442 = vcmp.gt.f32.partialorder %v3108, 0.0
    %vm4443 = vcmp.gt.f32.partialorder %v3113, 0.0
    %vm4444 = vcmp.gt.f32.partialorder %v3116, 0.0
    %vm4445 = vcmp.gt.f32.partialorder %v3121, 0.0
    %vm4446 = vcmp.gt.f32.partialorder %v3124, 0.0
    %vm4447 = vcmp.gt.f32.partialorder %v3129, 0.0
    %vm4448 = vcmp.gt.f32.partialorder %v3132, 0.0
    %vm4449 = vcmp.gt.f32.partialorder %v3137, 0.0
    %vm4450 = vcmp.gt.f32.partialorder %v3140, 0.0
    %vm4451 = vcmp.gt.f32.partialorder %v3145, 0.0
    %vm4452 = vcmp.gt.f32.partialorder %v3148, 0.0
    %vm4453 = vcmp.gt.f32.partialorder %v3153, 0.0
    %vm4454 = vcmp.gt.f32.partialorder %v3156, 0.0
    %vm4455 = vcmp.gt.f32.partialorder %v3161, 0.0
    %vm4456 = vcmp.gt.f32.partialorder %v3164, 0.0
    %vm4457 = vcmp.gt.f32.partialorder %v3169, 0.0
    %vm4458 = vcmp.gt.f32.partialorder %v3172, 0.0
    %vm4459 = vcmp.gt.f32.partialorder %v3177, 0.0
    %vm4460 = vcmp.gt.f32.partialorder %v3180, 0.0
    %vm4461 = vcmp.gt.f32.partialorder %v3185, 0.0
    %vm4462 = vcmp.gt.f32.partialorder %v3188, 0.0
    %vm4463 = vcmp.gt.f32.partialorder %v3193, 0.0
    %vm4464 = vcmp.gt.f32.partialorder %v3196, 0.0
    %vm4465 = vcmp.gt.f32.partialorder %v3201, 0.0
    %vm4466 = vcmp.gt.f32.partialorder %v3204, 0.0
    %vm4467 = vcmp.gt.f32.partialorder %v3209, 0.0
    %vm4468 = vcmp.gt.f32.partialorder %v3212, 0.0
    %vm4469 = vcmp.gt.f32.partialorder %v3217, 0.0
    %vm4470 = vcmp.gt.f32.partialorder %v3220, 0.0
    %vm4471 = vcmp.gt.f32.partialorder %v3225, 0.0
    %vm4472 = vcmp.gt.f32.partialorder %v3228, 0.0
    %vm4473 = vcmp.gt.f32.partialorder %v3233, 0.0
    %vm4474 = vcmp.gt.f32.partialorder %v3236, 0.0
    %vm4475 = vcmp.gt.f32.partialorder %v3241, 0.0
    %vm4476 = vcmp.gt.f32.partialorder %v3244, 0.0
    %vm4477 = vcmp.gt.f32.partialorder %v3249, 0.0
    %vm4478 = vcmp.gt.f32.partialorder %v3252, 0.0
    %vm4479 = vcmp.gt.f32.partialorder %v3257, 0.0
    %vm4480 = vcmp.gt.f32.partialorder %v3260, 0.0
    %vm4481 = vcmp.gt.f32.partialorder %v3265, 0.0
    %vm4482 = vcmp.gt.f32.partialorder %v3268, 0.0
    %vm4483 = vcmp.gt.f32.partialorder %v3273, 0.0
    %vm4484 = vcmp.gt.f32.partialorder %v3276, 0.0
    %vm4485 = vcmp.gt.f32.partialorder %v3281, 0.0
    %vm4486 = vcmp.gt.f32.partialorder %v3284, 0.0
    %vm4487 = vcmp.gt.f32.partialorder %v3289, 0.0
    %vm4488 = vcmp.gt.f32.partialorder %v3292, 0.0
    %vm4489 = vcmp.gt.f32.partialorder %v3297, 0.0
    %vm4490 = vcmp.gt.f32.partialorder %v3300, 0.0
    %vm4491 = vcmp.gt.f32.partialorder %v3305, 0.0
    %vm4492 = vcmp.gt.f32.partialorder %v3308, 0.0
    %vm4493 = vcmp.gt.f32.partialorder %v3313, 0.0
    %vm4494 = vcmp.gt.f32.partialorder %v3316, 0.0
    %vm4495 = vcmp.gt.f32.partialorder %v3321, 0.0
    %vm4496 = vcmp.gt.f32.partialorder %v3324, 0.0
    %vm4497 = vcmp.gt.f32.partialorder %v3329, 0.0
    %vm4498 = vcmp.gt.f32.partialorder %v3332, 0.0
    %vm4499 = vcmp.gt.f32.partialorder %v3337, 0.0
    %vm4500 = vcmp.gt.f32.partialorder %v3340, 0.0
    %vm4501 = vcmp.gt.f32.partialorder %v3345, 0.0
    %vm4502 = vcmp.gt.f32.partialorder %v3348, 0.0
    %vm4503 = vcmp.gt.f32.partialorder %v3353, 0.0
    %vm4504 = vcmp.gt.f32.partialorder %v3356, 0.0
    %vm4505 = vcmp.gt.f32.partialorder %v3361, 0.0
    %vm4506 = vcmp.gt.f32.partialorder %v3364, 0.0
    %vm4507 = vcmp.gt.f32.partialorder %v3369, 0.0
    %vm4508 = vcmp.gt.f32.partialorder %v3372, 0.0
    %vm4509 = vcmp.gt.f32.partialorder %v3377, 0.0
    %vm4510 = vcmp.gt.f32.partialorder %v3380, 0.0
    %vm4511 = vcmp.gt.f32.partialorder %v3385, 0.0
    %vm4512 = vcmp.gt.f32.partialorder %v3388, 0.0
    %vm4513 = vcmp.gt.f32.partialorder %v3393, 0.0
    %vm4514 = vcmp.gt.f32.partialorder %v3396, 0.0
    %vm4515 = vcmp.gt.f32.partialorder %v3401, 0.0
    %vm4516 = vcmp.gt.f32.partialorder %v3404, 0.0
    %vm4517 = vcmp.gt.f32.partialorder %v3409, 0.0
    %vm4518 = vcmp.gt.f32.partialorder %v3412, 0.0
    %vm4519 = vcmp.gt.f32.partialorder %v3417, 0.0
    %vm4520 = vcmp.gt.f32.partialorder %v3420, 0.0
    %vm4521 = vcmp.gt.f32.partialorder %v3425, 0.0
    %vm4522 = vcmp.gt.f32.partialorder %v3428, 0.0
    %vm4523 = vcmp.gt.f32.partialorder %v3433, 0.0
    %vm4524 = vcmp.gt.f32.partialorder %v3436, 0.0
    %vm4525 = vcmp.gt.f32.partialorder %v3441, 0.0
    %vm4526 = vcmp.gt.f32.partialorder %v3444, 0.0
    %vm4527 = vcmp.gt.f32.partialorder %v3449, 0.0
    %vm4528 = vcmp.gt.f32.partialorder %v3452, 0.0
    %vm4529 = vcmp.gt.f32.partialorder %v3457, 0.0
    %vm4530 = vcmp.gt.f32.partialorder %v3460, 0.0
    %vm4531 = vcmp.gt.f32.partialorder %v3465, 0.0
    %vm4532 = vcmp.gt.f32.partialorder %v3468, 0.0
    %vm4533 = vcmp.gt.f32.partialorder %v3473, 0.0
    %vm4534 = vcmp.gt.f32.partialorder %v3476, 0.0
    %vm4535 = vcmp.gt.f32.partialorder %v3481, 0.0
    %vm4536 = vcmp.gt.f32.partialorder %v3484, 0.0
    %vm4537 = vcmp.gt.f32.partialorder %v3489, 0.0
    %vm4538 = vcmp.gt.f32.partialorder %v3492, 0.0
    %vm4539 = vcmp.gt.f32.partialorder %v3497, 0.0
    %vm4540 = vcmp.gt.f32.partialorder %v3500, 0.0
    %vm4541 = vcmp.gt.f32.partialorder %v3505, 0.0
    %vm4542 = vcmp.gt.f32.partialorder %v3508, 0.0
    %vm4543 = vcmp.gt.f32.partialorder %v3513, 0.0
    %vm4544 = vcmp.gt.f32.partialorder %v3516, 0.0
    %vm4545 = vcmp.gt.f32.partialorder %v3521, 0.0
    %vm4546 = vcmp.gt.f32.partialorder %v3524, 0.0
    %vm4547 = vcmp.gt.f32.partialorder %v3529, 0.0
    %vm4548 = vcmp.gt.f32.partialorder %v3532, 0.0
    %vm4549 = vcmp.gt.f32.partialorder %v3537, 0.0
    %vm4550 = vcmp.gt.f32.partialorder %v3540, 0.0
    %vm4551 = vcmp.gt.f32.partialorder %v3545, 0.0
    %vm4552 = vcmp.gt.f32.partialorder %v3548, 0.0
    %vm4553 = vcmp.gt.f32.partialorder %v3553, 0.0
    %vm4554 = vcmp.gt.f32.partialorder %v3556, 0.0
    %vm4555 = vcmp.gt.f32.partialorder %v3561, 0.0
    %vm4556 = vcmp.gt.f32.partialorder %v3564, 0.0
    %vm4557 = vcmp.gt.f32.partialorder %v3569, 0.0
    %vm4558 = vcmp.gt.f32.partialorder %v3572, 0.0
    %vm4559 = vcmp.gt.f32.partialorder %v3577, 0.0
    %vm4560 = vcmp.gt.f32.partialorder %v3580, 0.0
    %vm4561 = vcmp.gt.f32.partialorder %v3585, 0.0
    %vm4562 = vcmp.gt.f32.partialorder %v3588, 0.0
    %vm4563 = vcmp.gt.f32.partialorder %v3593, 0.0
    %vm4564 = vcmp.gt.f32.partialorder %v3596, 0.0
    %vm4565 = vcmp.gt.f32.partialorder %v3601, 0.0
    %vm4566 = vcmp.gt.f32.partialorder %v3604, 0.0
    %vm4567 = vcmp.gt.f32.partialorder %v3609, 0.0
    %vm4568 = vcmp.gt.f32.partialorder %v3612, 0.0
    %vm4569 = vcmp.gt.f32.partialorder %v3617, 0.0
    %vm4570 = vcmp.gt.f32.partialorder %v3620, 0.0
    %vm4571 = vcmp.gt.f32.partialorder %v3625, 0.0
    %vm4572 = vcmp.gt.f32.partialorder %v3628, 0.0
    %vm4573 = vcmp.gt.f32.partialorder %v3633, 0.0
    %vm4574 = vcmp.gt.f32.partialorder %v3636, 0.0
    %vm4575 = vcmp.gt.f32.partialorder %v3641, 0.0
    %vm4576 = vcmp.gt.f32.partialorder %v3644, 0.0
    %vm4577 = vcmp.gt.f32.partialorder %v3649, 0.0
    %vm4578 = vcmp.gt.f32.partialorder %v3652, 0.0
    %vm4579 = vcmp.gt.f32.partialorder %v3657, 0.0
    %vm4580 = vcmp.gt.f32.partialorder %v3660, 0.0
    %vm4581 = vcmp.gt.f32.partialorder %v3665, 0.0
    %vm4582 = vcmp.gt.f32.partialorder %v3668, 0.0
    %vm4583 = vcmp.gt.f32.partialorder %v3673, 0.0
    %vm4584 = vcmp.gt.f32.partialorder %v3676, 0.0
    %vm4585 = vcmp.gt.f32.partialorder %v3681, 0.0
    %vm4586 = vcmp.gt.f32.partialorder %v3684, 0.0
    %vm4587 = vcmp.gt.f32.partialorder %v3689, 0.0
    %vm4588 = vcmp.gt.f32.partialorder %v3692, 0.0
    %vm4589 = vcmp.gt.f32.partialorder %v3697, 0.0
    %vm4590 = vcmp.gt.f32.partialorder %v3700, 0.0
    %vm4591 = vcmp.gt.f32.partialorder %v3705, 0.0
    %vm4592 = vcmp.gt.f32.partialorder %v3708, 0.0
    %vm4593 = vcmp.gt.f32.partialorder %v3713, 0.0
    %vm4594 = vcmp.gt.f32.partialorder %v3716, 0.0
    %vm4595 = vcmp.gt.f32.partialorder %v3721, 0.0
    %vm4596 = vcmp.gt.f32.partialorder %v3724, 0.0
    %vm4597 = vcmp.gt.f32.partialorder %v3729, 0.0
    %vm4598 = vcmp.gt.f32.partialorder %v3732, 0.0
    %vm4599 = vcmp.gt.f32.partialorder %v3737, 0.0
    %vm4600 = vcmp.gt.f32.partialorder %v3740, 0.0
    %vm4601 = vcmp.gt.f32.partialorder %v3745, 0.0
    %vm4602 = vcmp.gt.f32.partialorder %v3748, 0.0
    %vm4603 = vcmp.gt.f32.partialorder %v3753, 0.0
    %vm4604 = vcmp.gt.f32.partialorder %v3756, 0.0
    %vm4605 = vcmp.gt.f32.partialorder %v3761, 0.0
    %vm4606 = vcmp.gt.f32.partialorder %v3764, 0.0
    %vm4607 = vcmp.gt.f32.partialorder %v3769, 0.0
    %vm4608 = vcmp.gt.f32.partialorder %v3772, 0.0
    %vm4609 = vcmp.gt.f32.partialorder %v3777, 0.0
    %vm4610 = vcmp.gt.f32.partialorder %v3780, 0.0
    %vm4611 = vcmp.gt.f32.partialorder %v3785, 0.0
    %vm4612 = vcmp.gt.f32.partialorder %v3788, 0.0
    %vm4613 = vcmp.gt.f32.partialorder %v3793, 0.0
    %vm4614 = vcmp.gt.f32.partialorder %v3796, 0.0
    %vm4615 = vcmp.gt.f32.partialorder %v3801, 0.0
    %vm4616 = vcmp.gt.f32.partialorder %v3804, 0.0
    %vm4617 = vcmp.gt.f32.partialorder %v3809, 0.0
    %vm4618 = vcmp.gt.f32.partialorder %v3812, 0.0
    %vm4619 = vcmp.gt.f32.partialorder %v3817, 0.0
    %vm4620 = vcmp.gt.f32.partialorder %v3820, 0.0
    %vm4621 = vcmp.gt.f32.partialorder %v3825, 0.0
    %vm4622 = vcmp.gt.f32.partialorder %v3828, 0.0
    %vm4623 = vcmp.gt.f32.partialorder %v3833, 0.0
    %vm4624 = vcmp.gt.f32.partialorder %v3836, 0.0
    %vm4625 = vcmp.gt.f32.partialorder %v3841, 0.0
    %vm4626 = vcmp.gt.f32.partialorder %v3844, 0.0
    %vm4627 = vcmp.gt.f32.partialorder %v3849, 0.0
    %vm4628 = vcmp.gt.f32.partialorder %v3852, 0.0
    %vm4629 = vcmp.gt.f32.partialorder %v3857, 0.0
    %vm4630 = vcmp.gt.f32.partialorder %v3860, 0.0
    %vm4631 = vcmp.gt.f32.partialorder %v3865, 0.0
    %vm4632 = vcmp.gt.f32.partialorder %v3868, 0.0
    %vm4633 = vcmp.gt.f32.partialorder %v3873, 0.0
    %vm4634 = vcmp.gt.f32.partialorder %v3876, 0.0
    %vm4635 = vcmp.gt.f32.partialorder %v3881, 0.0
    %vm4636 = vcmp.gt.f32.partialorder %v3884, 0.0
    %vm4637 = vcmp.gt.f32.partialorder %v3889, 0.0
    %vm4638 = vcmp.gt.f32.partialorder %v3892, 0.0
    %vm4639 = vcmp.gt.f32.partialorder %v3897, 0.0
    %vm4640 = vcmp.gt.f32.partialorder %v3900, 0.0
    %vm4641 = vcmp.gt.f32.partialorder %v3905, 0.0
    %vm4642 = vcmp.gt.f32.partialorder %v3908, 0.0
    %vm4643 = vcmp.gt.f32.partialorder %v3913, 0.0
    %vm4644 = vcmp.gt.f32.partialorder %v3916, 0.0
    %vm4645 = vcmp.gt.f32.partialorder %v3921, 0.0
    %vm4646 = vcmp.gt.f32.partialorder %v3924, 0.0
    %vm4647 = vcmp.gt.f32.partialorder %v3929, 0.0
    %vm4648 = vcmp.gt.f32.partialorder %v3932, 0.0
    %vm4649 = vcmp.gt.f32.partialorder %v3937, 0.0
    %vm4650 = vcmp.gt.f32.partialorder %v3940, 0.0
    %vm4651 = vcmp.gt.f32.partialorder %v3945, 0.0
    %vm4652 = vcmp.gt.f32.partialorder %v3948, 0.0
    %vm4653 = vcmp.gt.f32.partialorder %v3953, 0.0
    %vm4654 = vcmp.gt.f32.partialorder %v3956, 0.0
    %vm4655 = vcmp.gt.f32.partialorder %v3961, 0.0
    %vm4656 = vcmp.gt.f32.partialorder %v3964, 0.0
    %vm4657 = vcmp.gt.f32.partialorder %v3969, 0.0
    %vm4658 = vcmp.gt.f32.partialorder %v3972, 0.0
    %vm4659 = vcmp.gt.f32.partialorder %v3977, 0.0
    %vm4660 = vcmp.gt.f32.partialorder %v3980, 0.0
    %vm4661 = vcmp.gt.f32.partialorder %v3985, 0.0
    %vm4662 = vcmp.gt.f32.partialorder %v3988, 0.0
    %vm4663 = vcmp.gt.f32.partialorder %v3993, 0.0
    %vm4664 = vcmp.gt.f32.partialorder %v3996, 0.0
    %vm4665 = vcmp.gt.f32.partialorder %v4001, 0.0
    %vm4666 = vcmp.gt.f32.partialorder %v4004, 0.0
    %vm4667 = vcmp.gt.f32.partialorder %v4009, 0.0
    %vm4668 = vcmp.gt.f32.partialorder %v4012, 0.0
    %vm4669 = vcmp.gt.f32.partialorder %v4017, 0.0
    %vm4670 = vcmp.gt.f32.partialorder %v4020, 0.0
    %vm4671 = vcmp.gt.f32.partialorder %v4025, 0.0
    %vm4672 = vcmp.gt.f32.partialorder %v4028, 0.0
    %vm4673 = vcmp.gt.f32.partialorder %v4033, 0.0
    %vm4674 = vcmp.gt.f32.partialorder %v4036, 0.0
    %vm4675 = vcmp.gt.f32.partialorder %v4041, 0.0
    %vm4676 = vcmp.gt.f32.partialorder %v4044, 0.0
    %vm4677 = vcmp.gt.f32.partialorder %v4049, 0.0
    %vm4678 = vcmp.gt.f32.partialorder %v4052, 0.0
    %vm4679 = vcmp.gt.f32.partialorder %v4057, 0.0
    %vm4680 = vcmp.gt.f32.partialorder %v4060, 0.0
    %vm4681 = vcmp.gt.f32.partialorder %v4065, 0.0
    %vm4682 = vcmp.gt.f32.partialorder %v4068, 0.0
    %vm4683 = vcmp.gt.f32.partialorder %v4073, 0.0
    %vm4684 = vcmp.gt.f32.partialorder %v4076, 0.0
    %vm4685 = vcmp.gt.f32.partialorder %v4081, 0.0
    %vm4686 = vcmp.gt.f32.partialorder %v4084, 0.0
    %vm4687 = vcmp.gt.f32.partialorder %v4089, 0.0
    %vm4688 = vcmp.gt.f32.partialorder %v4092, 0.0
    %vm4689 = vcmp.gt.f32.partialorder %v4097, 0.0
    %vm4690 = vcmp.gt.f32.partialorder %v4100, 0.0
    %vm4691 = vcmp.gt.f32.partialorder %v4105, 0.0
    %vm4692 = vcmp.gt.f32.partialorder %v4108, 0.0
    %vm4693 = vcmp.gt.f32.partialorder %v4113, 0.0
    %vm4694 = vcmp.gt.f32.partialorder %v4116, 0.0
    %vm4695 = vcmp.gt.f32.partialorder %v4121, 0.0
    %vm4696 = vcmp.gt.f32.partialorder %v4124, 0.0
    %vm4697 = vcmp.gt.f32.partialorder %v4129, 0.0
    %vm4698 = vcmp.gt.f32.partialorder %v4132, 0.0
    %vm4699 = vcmp.gt.f32.partialorder %v4137, 0.0
    %vm4700 = vcmp.gt.f32.partialorder %v4140, 0.0
    %vm4701 = vcmp.gt.f32.partialorder %v4145, 0.0
    %vm4702 = vcmp.gt.f32.partialorder %v4148, 0.0
    %vm4703 = vcmp.gt.f32.partialorder %v4153, 0.0
    %vm4704 = vcmp.gt.f32.partialorder %v4156, 0.0
    %vm4705 = vcmp.gt.f32.partialorder %v4161, 0.0
    %vm4706 = vcmp.gt.f32.partialorder %v4164, 0.0
    %vm4707 = vcmp.gt.f32.partialorder %v4169, 0.0
    %vm4708 = vcmp.gt.f32.partialorder %v4172, 0.0
    %vm4709 = vcmp.gt.f32.partialorder %v4177, 0.0
    %vm4710 = vcmp.gt.f32.partialorder %v4180, 0.0
    %vm4711 = vcmp.gt.f32.partialorder %v4185, 0.0
    %vm4712 = vcmp.gt.f32.partialorder %v4188, 0.0
    %vm4713 = vcmp.gt.f32.partialorder %v4193, 0.0
    %vm4714 = vcmp.gt.f32.partialorder %v4196, 0.0
    %vm4715 = vcmp.gt.f32.partialorder %v4201, 0.0
    %vm4716 = vcmp.gt.f32.partialorder %v4204, 0.0
    %vm4717 = vcmp.gt.f32.partialorder %v4209, 0.0
    %vm4718 = vcmp.gt.f32.partialorder %v4212, 0.0
    %vm4719 = vcmp.gt.f32.partialorder %v4217, 0.0
    %vm4720 = vcmp.gt.f32.partialorder %v4220, 0.0
    %vm4721 = vcmp.gt.f32.partialorder %v4225, 0.0
    %vm4722 = vcmp.gt.f32.partialorder %v4228, 0.0
    %vm4723 = vcmp.gt.f32.partialorder %v4233, 0.0
    %vm4724 = vcmp.gt.f32.partialorder %v4236, 0.0
    %vm4725 = vcmp.gt.f32.partialorder %v4241, 0.0
    %vm4726 = vcmp.gt.f32.partialorder %v4244, 0.0
    %vm4727 = vcmp.gt.f32.partialorder %v4249, 0.0
    %vm4728 = vcmp.gt.f32.partialorder %v4252, 0.0
    %vm4729 = vcmp.gt.f32.partialorder %v4257, 0.0
    %vm4730 = vcmp.gt.f32.partialorder %v4260, 0.0
    %vm4731 = vcmp.gt.f32.partialorder %v4265, 0.0
    %vm4732 = vcmp.gt.f32.partialorder %v4268, 0.0
    %vm4733 = vcmp.gt.f32.partialorder %v4273, 0.0
    %vm4734 = vcmp.gt.f32.partialorder %v4276, 0.0
    %vm4735 = vcmp.gt.f32.partialorder %v4281, 0.0
    %vm4736 = vcmp.gt.f32.partialorder %v4284, 0.0
    %vm4737 = vcmp.gt.f32.partialorder %v4289, 0.0
    %vm4738 = vcmp.gt.f32.partialorder %v4292, 0.0
    %vm4739 = vcmp.gt.f32.partialorder %v4297, 0.0
    %vm4740 = vcmp.gt.f32.partialorder %v4300, 0.0
    %vm4741 = vcmp.gt.f32.partialorder %v4305, 0.0
    %vm4742 = vcmp.gt.f32.partialorder %v4308, 0.0
    %vm4743 = vcmp.gt.f32.partialorder %v4313, 0.0
    %vm4744 = vcmp.gt.f32.partialorder %v4316, 0.0
    %vm4745 = vcmp.gt.f32.partialorder %v4321, 0.0
    %vm4746 = vcmp.gt.f32.partialorder %v4324, 0.0
    %vm4747 = vcmp.gt.f32.partialorder %v4329, 0.0
    %vm4748 = vcmp.gt.f32.partialorder %v4332, 0.0
    %vm4749 = vcmp.gt.f32.partialorder %v4337, 0.0
    %vm4750 = vcmp.gt.f32.partialorder %v4340, 0.0
    %vm4751 = vcmp.gt.f32.partialorder %v4345, 0.0
    %vm4752 = vcmp.gt.f32.partialorder %v4348, 0.0
    %vm4753 = vcmp.gt.f32.partialorder %v4353, 0.0
    %vm4754 = vcmp.gt.f32.partialorder %v4356, 0.0
    %vm4755 = vcmp.gt.f32.partialorder %v4361, 0.0
    %vm4756 = vcmp.gt.f32.partialorder %v4364, 0.0
    %vm4757 = vcmp.gt.f32.partialorder %v4369, 0.0
    %vm4758 = vcmp.gt.f32.partialorder %v4372, 0.0
    %v4759 = vmul.f32 %v2841, 0.01
    %v4760 = vmul.f32 %v2844, 0.01
    %v4761 = vmul.f32 %v2849, 0.01
    %v4762 = vmul.f32 %v2852, 0.01
    %v4763 = vmul.f32 %v2857, 0.01
    %v4764 = vmul.f32 %v2860, 0.01
    %v4765 = vmul.f32 %v2865, 0.01
    %v4766 = vmul.f32 %v2868, 0.01
    %v4767 = vmul.f32 %v2873, 0.01
    %v4768 = vmul.f32 %v2876, 0.01
    %v4769 = vmul.f32 %v2881, 0.01
    %v4770 = vmul.f32 %v2884, 0.01
    %v4771 = vmul.f32 %v2889, 0.01
    %v4772 = vmul.f32 %v2892, 0.01
    %v4773 = vmul.f32 %v2897, 0.01
    %v4774 = vmul.f32 %v2900, 0.01
    %v4775 = vmul.f32 %v2905, 0.01
    %v4776 = vmul.f32 %v2908, 0.01
    %v4777 = vmul.f32 %v2913, 0.01
    %v4778 = vmul.f32 %v2916, 0.01
    %v4779 = vmul.f32 %v2921, 0.01
    %v4780 = vmul.f32 %v2924, 0.01
    %v4781 = vmul.f32 %v2929, 0.01
    %v4782 = vmul.f32 %v2932, 0.01
    %v4783 = vmul.f32 %v2937, 0.01
    %v4784 = vmul.f32 %v2940, 0.01
    %v4785 = vmul.f32 %v2945, 0.01
    %v4786 = vmul.f32 %v2948, 0.01
    %v4787 = vmul.f32 %v2953, 0.01
    %v4788 = vmul.f32 %v2956, 0.01
    %v4789 = vmul.f32 %v2961, 0.01
    %v4790 = vmul.f32 %v2964, 0.01
    %v4791 = vmul.f32 %v2969, 0.01
    %v4792 = vmul.f32 %v2972, 0.01
    %v4793 = vmul.f32 %v2977, 0.01
    %v4794 = vmul.f32 %v2980, 0.01
    %v4795 = vmul.f32 %v2985, 0.01
    %v4796 = vmul.f32 %v2988, 0.01
    %v4797 = vmul.f32 %v2993, 0.01
    %v4798 = vmul.f32 %v2996, 0.01
    %v4799 = vmul.f32 %v3001, 0.01
    %v4800 = vmul.f32 %v3004, 0.01
    %v4801 = vmul.f32 %v3009, 0.01
    %v4802 = vmul.f32 %v3012, 0.01
    %v4803 = vmul.f32 %v3017, 0.01
    %v4804 = vmul.f32 %v3020, 0.01
    %v4805 = vmul.f32 %v3025, 0.01
    %v4806 = vmul.f32 %v3028, 0.01
    %v4807 = vmul.f32 %v3033, 0.01
    %v4808 = vmul.f32 %v3036, 0.01
    %v4809 = vmul.f32 %v3041, 0.01
    %v4810 = vmul.f32 %v3044, 0.01
    %v4811 = vmul.f32 %v3049, 0.01
    %v4812 = vmul.f32 %v3052, 0.01
    %v4813 = vmul.f32 %v3057, 0.01
    %v4814 = vmul.f32 %v3060, 0.01
    %v4815 = vmul.f32 %v3065, 0.01
    %v4816 = vmul.f32 %v3068, 0.01
    %v4817 = vmul.f32 %v3073, 0.01
    %v4818 = vmul.f32 %v3076, 0.01
    %v4819 = vmul.f32 %v3081, 0.01
    %v4820 = vmul.f32 %v3084, 0.01
    %v4821 = vmul.f32 %v3089, 0.01
    %v4822 = vmul.f32 %v3092, 0.01
    %v4823 = vmul.f32 %v3097, 0.01
    %v4824 = vmul.f32 %v3100, 0.01
    %v4825 = vmul.f32 %v3105, 0.01
    %v4826 = vmul.f32 %v3108, 0.01
    %v4827 = vmul.f32 %v3113, 0.01
    %v4828 = vmul.f32 %v3116, 0.01
    %v4829 = vmul.f32 %v3121, 0.01
    %v4830 = vmul.f32 %v3124, 0.01
    %v4831 = vmul.f32 %v3129, 0.01
    %v4832 = vmul.f32 %v3132, 0.01
    %v4833 = vmul.f32 %v3137, 0.01
    %v4834 = vmul.f32 %v3140, 0.01
    %v4835 = vmul.f32 %v3145, 0.01
    %v4836 = vmul.f32 %v3148, 0.01
    %v4837 = vmul.f32 %v3153, 0.01
    %v4838 = vmul.f32 %v3156, 0.01
    %v4839 = vmul.f32 %v3161, 0.01
    %v4840 = vmul.f32 %v3164, 0.01
    %v4841 = vmul.f32 %v3169, 0.01
    %v4842 = vmul.f32 %v3172, 0.01
    %v4843 = vmul.f32 %v3177, 0.01
    %v4844 = vmul.f32 %v3180, 0.01
    %v4845 = vmul.f32 %v3185, 0.01
    %v4846 = vmul.f32 %v3188, 0.01
    %v4847 = vmul.f32 %v3193, 0.01
    %v4848 = vmul.f32 %v3196, 0.01
    %v4849 = vmul.f32 %v3201, 0.01
    %v4850 = vmul.f32 %v3204, 0.01
    %v4851 = vmul.f32 %v3209, 0.01
    %v4852 = vmul.f32 %v3212, 0.01
    %v4853 = vmul.f32 %v3217, 0.01
    %v4854 = vmul.f32 %v3220, 0.01
    %v4855 = vmul.f32 %v3225, 0.01
    %v4856 = vmul.f32 %v3228, 0.01
    %v4857 = vmul.f32 %v3233, 0.01
    %v4858 = vmul.f32 %v3236, 0.01
    %v4859 = vmul.f32 %v3241, 0.01
    %v4860 = vmul.f32 %v3244, 0.01
    %v4861 = vmul.f32 %v3249, 0.01
    %v4862 = vmul.f32 %v3252, 0.01
    %v4863 = vmul.f32 %v3257, 0.01
    %v4864 = vmul.f32 %v3260, 0.01
    %v4865 = vmul.f32 %v3265, 0.01
    %v4866 = vmul.f32 %v3268, 0.01
    %v4867 = vmul.f32 %v3273, 0.01
    %v4868 = vmul.f32 %v3276, 0.01
    %v4869 = vmul.f32 %v3281, 0.01
    %v4870 = vmul.f32 %v3284, 0.01
    %v4871 = vmul.f32 %v3289, 0.01
    %v4872 = vmul.f32 %v3292, 0.01
    %v4873 = vmul.f32 %v3297, 0.01
    %v4874 = vmul.f32 %v3300, 0.01
    %v4875 = vmul.f32 %v3305, 0.01
    %v4876 = vmul.f32 %v3308, 0.01
    %v4877 = vmul.f32 %v3313, 0.01
    %v4878 = vmul.f32 %v3316, 0.01
    %v4879 = vmul.f32 %v3321, 0.01
    %v4880 = vmul.f32 %v3324, 0.01
    %v4881 = vmul.f32 %v3329, 0.01
    %v4882 = vmul.f32 %v3332, 0.01
    %v4883 = vmul.f32 %v3337, 0.01
    %v4884 = vmul.f32 %v3340, 0.01
    %v4885 = vmul.f32 %v3345, 0.01
    %v4886 = vmul.f32 %v3348, 0.01
    %v4887 = vmul.f32 %v3353, 0.01
    %v4888 = vmul.f32 %v3356, 0.01
    %v4889 = vmul.f32 %v3361, 0.01
    %v4890 = vmul.f32 %v3364, 0.01
    %v4891 = vmul.f32 %v3369, 0.01
    %v4892 = vmul.f32 %v3372, 0.01
    %v4893 = vmul.f32 %v3377, 0.01
    %v4894 = vmul.f32 %v3380, 0.01
    %v4895 = vmul.f32 %v3385, 0.01
    %v4896 = vmul.f32 %v3388, 0.01
    %v4897 = vmul.f32 %v3393, 0.01
    %v4898 = vmul.f32 %v3396, 0.01
    %v4899 = vmul.f32 %v3401, 0.01
    %v4900 = vmul.f32 %v3404, 0.01
    %v4901 = vmul.f32 %v3409, 0.01
    %v4902 = vmul.f32 %v3412, 0.01
    %v4903 = vmul.f32 %v3417, 0.01
    %v4904 = vmul.f32 %v3420, 0.01
    %v4905 = vmul.f32 %v3425, 0.01
    %v4906 = vmul.f32 %v3428, 0.01
    %v4907 = vmul.f32 %v3433, 0.01
    %v4908 = vmul.f32 %v3436, 0.01
    %v4909 = vmul.f32 %v3441, 0.01
    %v4910 = vmul.f32 %v3444, 0.01
    %v4911 = vmul.f32 %v3449, 0.01
    %v4912 = vmul.f32 %v3452, 0.01
    %v4913 = vmul.f32 %v3457, 0.01
    %v4914 = vmul.f32 %v3460, 0.01
    %v4915 = vmul.f32 %v3465, 0.01
    %v4916 = vmul.f32 %v3468, 0.01
    %v4917 = vmul.f32 %v3473, 0.01
    %v4918 = vmul.f32 %v3476, 0.01
    %v4919 = vmul.f32 %v3481, 0.01
    %v4920 = vmul.f32 %v3484, 0.01
    %v4921 = vmul.f32 %v3489, 0.01
    %v4922 = vmul.f32 %v3492, 0.01
    %v4923 = vmul.f32 %v3497, 0.01
    %v4924 = vmul.f32 %v3500, 0.01
    %v4925 = vmul.f32 %v3505, 0.01
    %v4926 = vmul.f32 %v3508, 0.01
    %v4927 = vmul.f32 %v3513, 0.01
    %v4928 = vmul.f32 %v3516, 0.01
    %v4929 = vmul.f32 %v3521, 0.01
    %v4930 = vmul.f32 %v3524, 0.01
    %v4931 = vmul.f32 %v3529, 0.01
    %v4932 = vmul.f32 %v3532, 0.01
    %v4933 = vmul.f32 %v3537, 0.01
    %v4934 = vmul.f32 %v3540, 0.01
    %v4935 = vmul.f32 %v3545, 0.01
    %v4936 = vmul.f32 %v3548, 0.01
    %v4937 = vmul.f32 %v3553, 0.01
    %v4938 = vmul.f32 %v3556, 0.01
    %v4939 = vmul.f32 %v3561, 0.01
    %v4940 = vmul.f32 %v3564, 0.01
    %v4941 = vmul.f32 %v3569, 0.01
    %v4942 = vmul.f32 %v3572, 0.01
    %v4943 = vmul.f32 %v3577, 0.01
    %v4944 = vmul.f32 %v3580, 0.01
    %v4945 = vmul.f32 %v3585, 0.01
    %v4946 = vmul.f32 %v3588, 0.01
    %v4947 = vmul.f32 %v3593, 0.01
    %v4948 = vmul.f32 %v3596, 0.01
    %v4949 = vmul.f32 %v3601, 0.01
    %v4950 = vmul.f32 %v3604, 0.01
    %v4951 = vmul.f32 %v3609, 0.01
    %v4952 = vmul.f32 %v3612, 0.01
    %v4953 = vmul.f32 %v3617, 0.01
    %v4954 = vmul.f32 %v3620, 0.01
    %v4955 = vmul.f32 %v3625, 0.01
    %v4956 = vmul.f32 %v3628, 0.01
    %v4957 = vmul.f32 %v3633, 0.01
    %v4958 = vmul.f32 %v3636, 0.01
    %v4959 = vmul.f32 %v3641, 0.01
    %v4960 = vmul.f32 %v3644, 0.01
    %v4961 = vmul.f32 %v3649, 0.01
    %v4962 = vmul.f32 %v3652, 0.01
    %v4963 = vmul.f32 %v3657, 0.01
    %v4964 = vmul.f32 %v3660, 0.01
    %v4965 = vmul.f32 %v3665, 0.01
    %v4966 = vmul.f32 %v3668, 0.01
    %v4967 = vmul.f32 %v3673, 0.01
    %v4968 = vmul.f32 %v3676, 0.01
    %v4969 = vmul.f32 %v3681, 0.01
    %v4970 = vmul.f32 %v3684, 0.01
    %v4971 = vmul.f32 %v3689, 0.01
    %v4972 = vmul.f32 %v3692, 0.01
    %v4973 = vmul.f32 %v3697, 0.01
    %v4974 = vmul.f32 %v3700, 0.01
    %v4975 = vmul.f32 %v3705, 0.01
    %v4976 = vmul.f32 %v3708, 0.01
    %v4977 = vmul.f32 %v3713, 0.01
    %v4978 = vmul.f32 %v3716, 0.01
    %v4979 = vmul.f32 %v3721, 0.01
    %v4980 = vmul.f32 %v3724, 0.01
    %v4981 = vmul.f32 %v3729, 0.01
    %v4982 = vmul.f32 %v3732, 0.01
    %v4983 = vmul.f32 %v3737, 0.01
    %v4984 = vmul.f32 %v3740, 0.01
    %v4985 = vmul.f32 %v3745, 0.01
    %v4986 = vmul.f32 %v3748, 0.01
    %v4987 = vmul.f32 %v3753, 0.01
    %v4988 = vmul.f32 %v3756, 0.01
    %v4989 = vmul.f32 %v3761, 0.01
    %v4990 = vmul.f32 %v3764, 0.01
    %v4991 = vmul.f32 %v3769, 0.01
    %v4992 = vmul.f32 %v3772, 0.01
    %v4993 = vmul.f32 %v3777, 0.01
    %v4994 = vmul.f32 %v3780, 0.01
    %v4995 = vmul.f32 %v3785, 0.01
    %v4996 = vmul.f32 %v3788, 0.01
    %v4997 = vmul.f32 %v3793, 0.01
    %v4998 = vmul.f32 %v3796, 0.01
    %v4999 = vmul.f32 %v3801, 0.01
    %v5000 = vmul.f32 %v3804, 0.01
    %v5001 = vmul.f32 %v3809, 0.01
    %v5002 = vmul.f32 %v3812, 0.01
    %v5003 = vmul.f32 %v3817, 0.01
    %v5004 = vmul.f32 %v3820, 0.01
    %v5005 = vmul.f32 %v3825, 0.01
    %v5006 = vmul.f32 %v3828, 0.01
    %v5007 = vmul.f32 %v3833, 0.01
    %v5008 = vmul.f32 %v3836, 0.01
    %v5009 = vmul.f32 %v3841, 0.01
    %v5010 = vmul.f32 %v3844, 0.01
    %v5011 = vmul.f32 %v3849, 0.01
    %v5012 = vmul.f32 %v3852, 0.01
    %v5013 = vmul.f32 %v3857, 0.01
    %v5014 = vmul.f32 %v3860, 0.01
    %v5015 = vmul.f32 %v3865, 0.01
    %v5016 = vmul.f32 %v3868, 0.01
    %v5017 = vmul.f32 %v3873, 0.01
    %v5018 = vmul.f32 %v3876, 0.01
    %v5019 = vmul.f32 %v3881, 0.01
    %v5020 = vmul.f32 %v3884, 0.01
    %v5021 = vmul.f32 %v3889, 0.01
    %v5022 = vmul.f32 %v3892, 0.01
    %v5023 = vmul.f32 %v3897, 0.01
    %v5024 = vmul.f32 %v3900, 0.01
    %v5025 = vmul.f32 %v3905, 0.01
    %v5026 = vmul.f32 %v3908, 0.01
    %v5027 = vmul.f32 %v3913, 0.01
    %v5028 = vmul.f32 %v3916, 0.01
    %v5029 = vmul.f32 %v3921, 0.01
    %v5030 = vmul.f32 %v3924, 0.01
    %v5031 = vmul.f32 %v3929, 0.01
    %v5032 = vmul.f32 %v3932, 0.01
    %v5033 = vmul.f32 %v3937, 0.01
    %v5034 = vmul.f32 %v3940, 0.01
    %v5035 = vmul.f32 %v3945, 0.01
    %v5036 = vmul.f32 %v3948, 0.01
    %v5037 = vmul.f32 %v3953, 0.01
    %v5038 = vmul.f32 %v3956, 0.01
    %v5039 = vmul.f32 %v3961, 0.01
    %v5040 = vmul.f32 %v3964, 0.01
    %v5041 = vmul.f32 %v3969, 0.01
    %v5042 = vmul.f32 %v3972, 0.01
    %v5043 = vmul.f32 %v3977, 0.01
    %v5044 = vmul.f32 %v3980, 0.01
    %v5045 = vmul.f32 %v3985, 0.01
    %v5046 = vmul.f32 %v3988, 0.01
    %v5047 = vmul.f32 %v3993, 0.01
    %v5048 = vmul.f32 %v3996, 0.01
    %v5049 = vmul.f32 %v4001, 0.01
    %v5050 = vmul.f32 %v4004, 0.01
    %v5051 = vmul.f32 %v4009, 0.01
    %v5052 = vmul.f32 %v4012, 0.01
    %v5053 = vmul.f32 %v4017, 0.01
    %v5054 = vmul.f32 %v4020, 0.01
    %v5055 = vmul.f32 %v4025, 0.01
    %v5056 = vmul.f32 %v4028, 0.01
    %v5057 = vmul.f32 %v4033, 0.01
    %v5058 = vmul.f32 %v4036, 0.01
    %v5059 = vmul.f32 %v4041, 0.01
    %v5060 = vmul.f32 %v4044, 0.01
    %v5061 = vmul.f32 %v4049, 0.01
    %v5062 = vmul.f32 %v4052, 0.01
    %v5063 = vmul.f32 %v4057, 0.01
    %v5064 = vmul.f32 %v4060, 0.01
    %v5065 = vmul.f32 %v4065, 0.01
    %v5066 = vmul.f32 %v4068, 0.01
    %v5067 = vmul.f32 %v4073, 0.01
    %v5068 = vmul.f32 %v4076, 0.01
    %v5069 = vmul.f32 %v4081, 0.01
    %v5070 = vmul.f32 %v4084, 0.01
    %v5071 = vmul.f32 %v4089, 0.01
    %v5072 = vmul.f32 %v4092, 0.01
    %v5073 = vmul.f32 %v4097, 0.01
    %v5074 = vmul.f32 %v4100, 0.01
    %v5075 = vmul.f32 %v4105, 0.01
    %v5076 = vmul.f32 %v4108, 0.01
    %v5077 = vmul.f32 %v4113, 0.01
    %v5078 = vmul.f32 %v4116, 0.01
    %v5079 = vmul.f32 %v4121, 0.01
    %v5080 = vmul.f32 %v4124, 0.01
    %v5081 = vmul.f32 %v4129, 0.01
    %v5082 = vmul.f32 %v4132, 0.01
    %v5083 = vmul.f32 %v4137, 0.01
    %v5084 = vmul.f32 %v4140, 0.01
    %v5085 = vmul.f32 %v4145, 0.01
    %v5086 = vmul.f32 %v4148, 0.01
    %v5087 = vmul.f32 %v4153, 0.01
    %v5088 = vmul.f32 %v4156, 0.01
    %v5089 = vmul.f32 %v4161, 0.01
    %v5090 = vmul.f32 %v4164, 0.01
    %v5091 = vmul.f32 %v4169, 0.01
    %v5092 = vmul.f32 %v4172, 0.01
    %v5093 = vmul.f32 %v4177, 0.01
    %v5094 = vmul.f32 %v4180, 0.01
    %v5095 = vmul.f32 %v4185, 0.01
    %v5096 = vmul.f32 %v4188, 0.01
    %v5097 = vmul.f32 %v4193, 0.01
    %v5098 = vmul.f32 %v4196, 0.01
    %v5099 = vmul.f32 %v4201, 0.01
    %v5100 = vmul.f32 %v4204, 0.01
    %v5101 = vmul.f32 %v4209, 0.01
    %v5102 = vmul.f32 %v4212, 0.01
    %v5103 = vmul.f32 %v4217, 0.01
    %v5104 = vmul.f32 %v4220, 0.01
    %v5105 = vmul.f32 %v4225, 0.01
    %v5106 = vmul.f32 %v4228, 0.01
    %v5107 = vmul.f32 %v4233, 0.01
    %v5108 = vmul.f32 %v4236, 0.01
    %v5109 = vmul.f32 %v4241, 0.01
    %v5110 = vmul.f32 %v4244, 0.01
    %v5111 = vmul.f32 %v4249, 0.01
    %v5112 = vmul.f32 %v4252, 0.01
    %v5113 = vmul.f32 %v4257, 0.01
    %v5114 = vmul.f32 %v4260, 0.01
    %v5115 = vmul.f32 %v4265, 0.01
    %v5116 = vmul.f32 %v4268, 0.01
    %v5117 = vmul.f32 %v4273, 0.01
    %v5118 = vmul.f32 %v4276, 0.01
    %v5119 = vmul.f32 %v4281, 0.01
    %v5120 = vmul.f32 %v4284, 0.01
    %v5121 = vmul.f32 %v4289, 0.01
    %v5122 = vmul.f32 %v4292, 0.01
    %v5123 = vmul.f32 %v4297, 0.01
    %v5124 = vmul.f32 %v4300, 0.01
    %v5125 = vmul.f32 %v4305, 0.01
    %v5126 = vmul.f32 %v4308, 0.01
    %v5127 = vmul.f32 %v4313, 0.01
    %v5128 = vmul.f32 %v4316, 0.01
    %v5129 = vmul.f32 %v4321, 0.01
    %v5130 = vmul.f32 %v4324, 0.01
    %v5131 = vmul.f32 %v4329, 0.01
    %v5132 = vmul.f32 %v4332, 0.01
    %v5133 = vmul.f32 %v4337, 0.01
    %v5134 = vmul.f32 %v4340, 0.01
    %v5135 = vmul.f32 %v4345, 0.01
    %v5136 = vmul.f32 %v4348, 0.01
    %v5137 = vmul.f32 %v4353, 0.01
    %v5138 = vmul.f32 %v4356, 0.01
    %v5139 = vmul.f32 %v4361, 0.01
    %v5140 = vmul.f32 %v4364, 0.01
    %v5141 = vmul.f32 %v4369, 0.01
    %v5142 = vmul.f32 %v4372, 0.01
    %v5143 = vsel %vm4375, %v2841, %v4759
    %v5144 = vsel %vm4376, %v2844, %v4760
    %v5145 = vsel %vm4377, %v2849, %v4761
    %v5146 = vsel %vm4378, %v2852, %v4762
    %v5147 = vsel %vm4379, %v2857, %v4763
    %v5148 = vsel %vm4380, %v2860, %v4764
    %v5149 = vsel %vm4381, %v2865, %v4765
    %v5150 = vsel %vm4382, %v2868, %v4766
    %v5151 = vsel %vm4383, %v2873, %v4767
    %v5152 = vsel %vm4384, %v2876, %v4768
    %v5153 = vsel %vm4385, %v2881, %v4769
    %v5154 = vsel %vm4386, %v2884, %v4770
    %v5155 = vsel %vm4387, %v2889, %v4771
    %v5156 = vsel %vm4388, %v2892, %v4772
    %v5157 = vsel %vm4389, %v2897, %v4773
    %v5158 = vsel %vm4390, %v2900, %v4774
    %v5159 = vsel %vm4391, %v2905, %v4775
    %v5160 = vsel %vm4392, %v2908, %v4776
    %v5161 = vsel %vm4393, %v2913, %v4777
    %v5162 = vsel %vm4394, %v2916, %v4778
    %v5163 = vsel %vm4395, %v2921, %v4779
    %v5164 = vsel %vm4396, %v2924, %v4780
    %v5165 = vsel %vm4397, %v2929, %v4781
    %v5166 = vsel %vm4398, %v2932, %v4782
    %v5167 = vsel %vm4399, %v2937, %v4783
    %v5168 = vsel %vm4400, %v2940, %v4784
    %v5169 = vsel %vm4401, %v2945, %v4785
    %v5170 = vsel %vm4402, %v2948, %v4786
    %v5171 = vsel %vm4403, %v2953, %v4787
    %v5172 = vsel %vm4404, %v2956, %v4788
    %v5173 = vsel %vm4405, %v2961, %v4789
    %v5174 = vsel %vm4406, %v2964, %v4790
    %v5175 = vsel %vm4407, %v2969, %v4791
    %v5176 = vsel %vm4408, %v2972, %v4792
    %v5177 = vsel %vm4409, %v2977, %v4793
    %v5178 = vsel %vm4410, %v2980, %v4794
    %v5179 = vsel %vm4411, %v2985, %v4795
    %v5180 = vsel %vm4412, %v2988, %v4796
    %v5181 = vsel %vm4413, %v2993, %v4797
    %v5182 = vsel %vm4414, %v2996, %v4798
    %v5183 = vsel %vm4415, %v3001, %v4799
    %v5184 = vsel %vm4416, %v3004, %v4800
    %v5185 = vsel %vm4417, %v3009, %v4801
    %v5186 = vsel %vm4418, %v3012, %v4802
    %v5187 = vsel %vm4419, %v3017, %v4803
    %v5188 = vsel %vm4420, %v3020, %v4804
    %v5189 = vsel %vm4421, %v3025, %v4805
    %v5190 = vsel %vm4422, %v3028, %v4806
    %v5191 = vsel %vm4423, %v3033, %v4807
    %v5192 = vsel %vm4424, %v3036, %v4808
    %v5193 = vsel %vm4425, %v3041, %v4809
    %v5194 = vsel %vm4426, %v3044, %v4810
    %v5195 = vsel %vm4427, %v3049, %v4811
    %v5196 = vsel %vm4428, %v3052, %v4812
    %v5197 = vsel %vm4429, %v3057, %v4813
    %v5198 = vsel %vm4430, %v3060, %v4814
    %v5199 = vsel %vm4431, %v3065, %v4815
    %v5200 = vsel %vm4432, %v3068, %v4816
    %v5201 = vsel %vm4433, %v3073, %v4817
    %v5202 = vsel %vm4434, %v3076, %v4818
    %v5203 = vsel %vm4435, %v3081, %v4819
    %v5204 = vsel %vm4436, %v3084, %v4820
    %v5205 = vsel %vm4437, %v3089, %v4821
    %v5206 = vsel %vm4438, %v3092, %v4822
    %v5207 = vsel %vm4439, %v3097, %v4823
    %v5208 = vsel %vm4440, %v3100, %v4824
    %v5209 = vsel %vm4441, %v3105, %v4825
    %v5210 = vsel %vm4442, %v3108, %v4826
    %v5211 = vsel %vm4443, %v3113, %v4827
    %v5212 = vsel %vm4444, %v3116, %v4828
    %v5213 = vsel %vm4445, %v3121, %v4829
    %v5214 = vsel %vm4446, %v3124, %v4830
    %v5215 = vsel %vm4447, %v3129, %v4831
    %v5216 = vsel %vm4448, %v3132, %v4832
    %v5217 = vsel %vm4449, %v3137, %v4833
    %v5218 = vsel %vm4450, %v3140, %v4834
    %v5219 = vsel %vm4451, %v3145, %v4835
    %v5220 = vsel %vm4452, %v3148, %v4836
    %v5221 = vsel %vm4453, %v3153, %v4837
    %v5222 = vsel %vm4454, %v3156, %v4838
    %v5223 = vsel %vm4455, %v3161, %v4839
    %v5224 = vsel %vm4456, %v3164, %v4840
    %v5225 = vsel %vm4457, %v3169, %v4841
    %v5226 = vsel %vm4458, %v3172, %v4842
    %v5227 = vsel %vm4459, %v3177, %v4843
    %v5228 = vsel %vm4460, %v3180, %v4844
    %v5229 = vsel %vm4461, %v3185, %v4845
    %v5230 = vsel %vm4462, %v3188, %v4846
    %v5231 = vsel %vm4463, %v3193, %v4847
    %v5232 = vsel %vm4464, %v3196, %v4848
    %v5233 = vsel %vm4465, %v3201, %v4849
    %v5234 = vsel %vm4466, %v3204, %v4850
    %v5235 = vsel %vm4467, %v3209, %v4851
    %v5236 = vsel %vm4468, %v3212, %v4852
    %v5237 = vsel %vm4469, %v3217, %v4853
    %v5238 = vsel %vm4470, %v3220, %v4854
    %v5239 = vsel %vm4471, %v3225, %v4855
    %v5240 = vsel %vm4472, %v3228, %v4856
    %v5241 = vsel %vm4473, %v3233, %v4857
    %v5242 = vsel %vm4474, %v3236, %v4858
    %v5243 = vsel %vm4475, %v3241, %v4859
    %v5244 = vsel %vm4476, %v3244, %v4860
    %v5245 = vsel %vm4477, %v3249, %v4861
    %v5246 = vsel %vm4478, %v3252, %v4862
    %v5247 = vsel %vm4479, %v3257, %v4863
    %v5248 = vsel %vm4480, %v3260, %v4864
    %v5249 = vsel %vm4481, %v3265, %v4865
    %v5250 = vsel %vm4482, %v3268, %v4866
    %v5251 = vsel %vm4483, %v3273, %v4867
    %v5252 = vsel %vm4484, %v3276, %v4868
    %v5253 = vsel %vm4485, %v3281, %v4869
    %v5254 = vsel %vm4486, %v3284, %v4870
    %v5255 = vsel %vm4487, %v3289, %v4871
    %v5256 = vsel %vm4488, %v3292, %v4872
    %v5257 = vsel %vm4489, %v3297, %v4873
    %v5258 = vsel %vm4490, %v3300, %v4874
    %v5259 = vsel %vm4491, %v3305, %v4875
    %v5260 = vsel %vm4492, %v3308, %v4876
    %v5261 = vsel %vm4493, %v3313, %v4877
    %v5262 = vsel %vm4494, %v3316, %v4878
    %v5263 = vsel %vm4495, %v3321, %v4879
    %v5264 = vsel %vm4496, %v3324, %v4880
    %v5265 = vsel %vm4497, %v3329, %v4881
    %v5266 = vsel %vm4498, %v3332, %v4882
    %v5267 = vsel %vm4499, %v3337, %v4883
    %v5268 = vsel %vm4500, %v3340, %v4884
    %v5269 = vsel %vm4501, %v3345, %v4885
    %v5270 = vsel %vm4502, %v3348, %v4886
    %v5271 = vsel %vm4503, %v3353, %v4887
    %v5272 = vsel %vm4504, %v3356, %v4888
    %v5273 = vsel %vm4505, %v3361, %v4889
    %v5274 = vsel %vm4506, %v3364, %v4890
    %v5275 = vsel %vm4507, %v3369, %v4891
    %v5276 = vsel %vm4508, %v3372, %v4892
    %v5277 = vsel %vm4509, %v3377, %v4893
    %v5278 = vsel %vm4510, %v3380, %v4894
    %v5279 = vsel %vm4511, %v3385, %v4895
    %v5280 = vsel %vm4512, %v3388, %v4896
    %v5281 = vsel %vm4513, %v3393, %v4897
    %v5282 = vsel %vm4514, %v3396, %v4898
    %v5283 = vsel %vm4515, %v3401, %v4899
    %v5284 = vsel %vm4516, %v3404, %v4900
    %v5285 = vsel %vm4517, %v3409, %v4901
    %v5286 = vsel %vm4518, %v3412, %v4902
    %v5287 = vsel %vm4519, %v3417, %v4903
    %v5288 = vsel %vm4520, %v3420, %v4904
    %v5289 = vsel %vm4521, %v3425, %v4905
    %v5290 = vsel %vm4522, %v3428, %v4906
    %v5291 = vsel %vm4523, %v3433, %v4907
    %v5292 = vsel %vm4524, %v3436, %v4908
    %v5293 = vsel %vm4525, %v3441, %v4909
    %v5294 = vsel %vm4526, %v3444, %v4910
    %v5295 = vsel %vm4527, %v3449, %v4911
    %v5296 = vsel %vm4528, %v3452, %v4912
    %v5297 = vsel %vm4529, %v3457, %v4913
    %v5298 = vsel %vm4530, %v3460, %v4914
    %v5299 = vsel %vm4531, %v3465, %v4915
    %v5300 = vsel %vm4532, %v3468, %v4916
    %v5301 = vsel %vm4533, %v3473, %v4917
    %v5302 = vsel %vm4534, %v3476, %v4918
    %v5303 = vsel %vm4535, %v3481, %v4919
    %v5304 = vsel %vm4536, %v3484, %v4920
    %v5305 = vsel %vm4537, %v3489, %v4921
    %v5306 = vsel %vm4538, %v3492, %v4922
    %v5307 = vsel %vm4539, %v3497, %v4923
    %v5308 = vsel %vm4540, %v3500, %v4924
    %v5309 = vsel %vm4541, %v3505, %v4925
    %v5310 = vsel %vm4542, %v3508, %v4926
    %v5311 = vsel %vm4543, %v3513, %v4927
    %v5312 = vsel %vm4544, %v3516, %v4928
    %v5313 = vsel %vm4545, %v3521, %v4929
    %v5314 = vsel %vm4546, %v3524, %v4930
    %v5315 = vsel %vm4547, %v3529, %v4931
    %v5316 = vsel %vm4548, %v3532, %v4932
    %v5317 = vsel %vm4549, %v3537, %v4933
    %v5318 = vsel %vm4550, %v3540, %v4934
    %v5319 = vsel %vm4551, %v3545, %v4935
    %v5320 = vsel %vm4552, %v3548, %v4936
    %v5321 = vsel %vm4553, %v3553, %v4937
    %v5322 = vsel %vm4554, %v3556, %v4938
    %v5323 = vsel %vm4555, %v3561, %v4939
    %v5324 = vsel %vm4556, %v3564, %v4940
    %v5325 = vsel %vm4557, %v3569, %v4941
    %v5326 = vsel %vm4558, %v3572, %v4942
    %v5327 = vsel %vm4559, %v3577, %v4943
    %v5328 = vsel %vm4560, %v3580, %v4944
    %v5329 = vsel %vm4561, %v3585, %v4945
    %v5330 = vsel %vm4562, %v3588, %v4946
    %v5331 = vsel %vm4563, %v3593, %v4947
    %v5332 = vsel %vm4564, %v3596, %v4948
    %v5333 = vsel %vm4565, %v3601, %v4949
    %v5334 = vsel %vm4566, %v3604, %v4950
    %v5335 = vsel %vm4567, %v3609, %v4951
    %v5336 = vsel %vm4568, %v3612, %v4952
    %v5337 = vsel %vm4569, %v3617, %v4953
    %v5338 = vsel %vm4570, %v3620, %v4954
    %v5339 = vsel %vm4571, %v3625, %v4955
    %v5340 = vsel %vm4572, %v3628, %v4956
    %v5341 = vsel %vm4573, %v3633, %v4957
    %v5342 = vsel %vm4574, %v3636, %v4958
    %v5343 = vsel %vm4575, %v3641, %v4959
    %v5344 = vsel %vm4576, %v3644, %v4960
    %v5345 = vsel %vm4577, %v3649, %v4961
    %v5346 = vsel %vm4578, %v3652, %v4962
    %v5347 = vsel %vm4579, %v3657, %v4963
    %v5348 = vsel %vm4580, %v3660, %v4964
    %v5349 = vsel %vm4581, %v3665, %v4965
    %v5350 = vsel %vm4582, %v3668, %v4966
    %v5351 = vsel %vm4583, %v3673, %v4967
    %v5352 = vsel %vm4584, %v3676, %v4968
    %v5353 = vsel %vm4585, %v3681, %v4969
    %v5354 = vsel %vm4586, %v3684, %v4970
    %v5355 = vsel %vm4587, %v3689, %v4971
    %v5356 = vsel %vm4588, %v3692, %v4972
    %v5357 = vsel %vm4589, %v3697, %v4973
    %v5358 = vsel %vm4590, %v3700, %v4974
    %v5359 = vsel %vm4591, %v3705, %v4975
    %v5360 = vsel %vm4592, %v3708, %v4976
    %v5361 = vsel %vm4593, %v3713, %v4977
    %v5362 = vsel %vm4594, %v3716, %v4978
    %v5363 = vsel %vm4595, %v3721, %v4979
    %v5364 = vsel %vm4596, %v3724, %v4980
    %v5365 = vsel %vm4597, %v3729, %v4981
    %v5366 = vsel %vm4598, %v3732, %v4982
    %v5367 = vsel %vm4599, %v3737, %v4983
    %v5368 = vsel %vm4600, %v3740, %v4984
    %v5369 = vsel %vm4601, %v3745, %v4985
    %v5370 = vsel %vm4602, %v3748, %v4986
    %v5371 = vsel %vm4603, %v3753, %v4987
    %v5372 = vsel %vm4604, %v3756, %v4988
    %v5373 = vsel %vm4605, %v3761, %v4989
    %v5374 = vsel %vm4606, %v3764, %v4990
    %v5375 = vsel %vm4607, %v3769, %v4991
    %v5376 = vsel %vm4608, %v3772, %v4992
    %v5377 = vsel %vm4609, %v3777, %v4993
    %v5378 = vsel %vm4610, %v3780, %v4994
    %v5379 = vsel %vm4611, %v3785, %v4995
    %v5380 = vsel %vm4612, %v3788, %v4996
    %v5381 = vsel %vm4613, %v3793, %v4997
    %v5382 = vsel %vm4614, %v3796, %v4998
    %v5383 = vsel %vm4615, %v3801, %v4999
    %v5384 = vsel %vm4616, %v3804, %v5000
    %v5385 = vsel %vm4617, %v3809, %v5001
    %v5386 = vsel %vm4618, %v3812, %v5002
    %v5387 = vsel %vm4619, %v3817, %v5003
    %v5388 = vsel %vm4620, %v3820, %v5004
    %v5389 = vsel %vm4621, %v3825, %v5005
    %v5390 = vsel %vm4622, %v3828, %v5006
    %v5391 = vsel %vm4623, %v3833, %v5007
    %v5392 = vsel %vm4624, %v3836, %v5008
    %v5393 = vsel %vm4625, %v3841, %v5009
    %v5394 = vsel %vm4626, %v3844, %v5010
    %v5395 = vsel %vm4627, %v3849, %v5011
    %v5396 = vsel %vm4628, %v3852, %v5012
    %v5397 = vsel %vm4629, %v3857, %v5013
    %v5398 = vsel %vm4630, %v3860, %v5014
    %v5399 = vsel %vm4631, %v3865, %v5015
    %v5400 = vsel %vm4632, %v3868, %v5016
    %v5401 = vsel %vm4633, %v3873, %v5017
    %v5402 = vsel %vm4634, %v3876, %v5018
    %v5403 = vsel %vm4635, %v3881, %v5019
    %v5404 = vsel %vm4636, %v3884, %v5020
    %v5405 = vsel %vm4637, %v3889, %v5021
    %v5406 = vsel %vm4638, %v3892, %v5022
    %v5407 = vsel %vm4639, %v3897, %v5023
    %v5408 = vsel %vm4640, %v3900, %v5024
    %v5409 = vsel %vm4641, %v3905, %v5025
    %v5410 = vsel %vm4642, %v3908, %v5026
    %v5411 = vsel %vm4643, %v3913, %v5027
    %v5412 = vsel %vm4644, %v3916, %v5028
    %v5413 = vsel %vm4645, %v3921, %v5029
    %v5414 = vsel %vm4646, %v3924, %v5030
    %v5415 = vsel %vm4647, %v3929, %v5031
    %v5416 = vsel %vm4648, %v3932, %v5032
    %v5417 = vsel %vm4649, %v3937, %v5033
    %v5418 = vsel %vm4650, %v3940, %v5034
    %v5419 = vsel %vm4651, %v3945, %v5035
    %v5420 = vsel %vm4652, %v3948, %v5036
    %v5421 = vsel %vm4653, %v3953, %v5037
    %v5422 = vsel %vm4654, %v3956, %v5038
    %v5423 = vsel %vm4655, %v3961, %v5039
    %v5424 = vsel %vm4656, %v3964, %v5040
    %v5425 = vsel %vm4657, %v3969, %v5041
    %v5426 = vsel %vm4658, %v3972, %v5042
    %v5427 = vsel %vm4659, %v3977, %v5043
    %v5428 = vsel %vm4660, %v3980, %v5044
    %v5429 = vsel %vm4661, %v3985, %v5045
    %v5430 = vsel %vm4662, %v3988, %v5046
    %v5431 = vsel %vm4663, %v3993, %v5047
    %v5432 = vsel %vm4664, %v3996, %v5048
    %v5433 = vsel %vm4665, %v4001, %v5049
    %v5434 = vsel %vm4666, %v4004, %v5050
    %v5435 = vsel %vm4667, %v4009, %v5051
    %v5436 = vsel %vm4668, %v4012, %v5052
    %v5437 = vsel %vm4669, %v4017, %v5053
    %v5438 = vsel %vm4670, %v4020, %v5054
    %v5439 = vsel %vm4671, %v4025, %v5055
    %v5440 = vsel %vm4672, %v4028, %v5056
    %v5441 = vsel %vm4673, %v4033, %v5057
    %v5442 = vsel %vm4674, %v4036, %v5058
    %v5443 = vsel %vm4675, %v4041, %v5059
    %v5444 = vsel %vm4676, %v4044, %v5060
    %v5445 = vsel %vm4677, %v4049, %v5061
    %v5446 = vsel %vm4678, %v4052, %v5062
    %v5447 = vsel %vm4679, %v4057, %v5063
    %v5448 = vsel %vm4680, %v4060, %v5064
    %v5449 = vsel %vm4681, %v4065, %v5065
    %v5450 = vsel %vm4682, %v4068, %v5066
    %v5451 = vsel %vm4683, %v4073, %v5067
    %v5452 = vsel %vm4684, %v4076, %v5068
    %v5453 = vsel %vm4685, %v4081, %v5069
    %v5454 = vsel %vm4686, %v4084, %v5070
    %v5455 = vsel %vm4687, %v4089, %v5071
    %v5456 = vsel %vm4688, %v4092, %v5072
    %v5457 = vsel %vm4689, %v4097, %v5073
    %v5458 = vsel %vm4690, %v4100, %v5074
    %v5459 = vsel %vm4691, %v4105, %v5075
    %v5460 = vsel %vm4692, %v4108, %v5076
    %v5461 = vsel %vm4693, %v4113, %v5077
    %v5462 = vsel %vm4694, %v4116, %v5078
    %v5463 = vsel %vm4695, %v4121, %v5079
    %v5464 = vsel %vm4696, %v4124, %v5080
    %v5465 = vsel %vm4697, %v4129, %v5081
    %v5466 = vsel %vm4698, %v4132, %v5082
    %v5467 = vsel %vm4699, %v4137, %v5083
    %v5468 = vsel %vm4700, %v4140, %v5084
    %v5469 = vsel %vm4701, %v4145, %v5085
    %v5470 = vsel %vm4702, %v4148, %v5086
    %v5471 = vsel %vm4703, %v4153, %v5087
    %v5472 = vsel %vm4704, %v4156, %v5088
    %v5473 = vsel %vm4705, %v4161, %v5089
    %v5474 = vsel %vm4706, %v4164, %v5090
    %v5475 = vsel %vm4707, %v4169, %v5091
    %v5476 = vsel %vm4708, %v4172, %v5092
    %v5477 = vsel %vm4709, %v4177, %v5093
    %v5478 = vsel %vm4710, %v4180, %v5094
    %v5479 = vsel %vm4711, %v4185, %v5095
    %v5480 = vsel %vm4712, %v4188, %v5096
    %v5481 = vsel %vm4713, %v4193, %v5097
    %v5482 = vsel %vm4714, %v4196, %v5098
    %v5483 = vsel %vm4715, %v4201, %v5099
    %v5484 = vsel %vm4716, %v4204, %v5100
    %v5485 = vsel %vm4717, %v4209, %v5101
    %v5486 = vsel %vm4718, %v4212, %v5102
    %v5487 = vsel %vm4719, %v4217, %v5103
    %v5488 = vsel %vm4720, %v4220, %v5104
    %v5489 = vsel %vm4721, %v4225, %v5105
    %v5490 = vsel %vm4722, %v4228, %v5106
    %v5491 = vsel %vm4723, %v4233, %v5107
    %v5492 = vsel %vm4724, %v4236, %v5108
    %v5493 = vsel %vm4725, %v4241, %v5109
    %v5494 = vsel %vm4726, %v4244, %v5110
    %v5495 = vsel %vm4727, %v4249, %v5111
    %v5496 = vsel %vm4728, %v4252, %v5112
    %v5497 = vsel %vm4729, %v4257, %v5113
    %v5498 = vsel %vm4730, %v4260, %v5114
    %v5499 = vsel %vm4731, %v4265, %v5115
    %v5500 = vsel %vm4732, %v4268, %v5116
    %v5501 = vsel %vm4733, %v4273, %v5117
    %v5502 = vsel %vm4734, %v4276, %v5118
    %v5503 = vsel %vm4735, %v4281, %v5119
    %v5504 = vsel %vm4736, %v4284, %v5120
    %v5505 = vsel %vm4737, %v4289, %v5121
    %v5506 = vsel %vm4738, %v4292, %v5122
    %v5507 = vsel %vm4739, %v4297, %v5123
    %v5508 = vsel %vm4740, %v4300, %v5124
    %v5509 = vsel %vm4741, %v4305, %v5125
    %v5510 = vsel %vm4742, %v4308, %v5126
    %v5511 = vsel %vm4743, %v4313, %v5127
    %v5512 = vsel %vm4744, %v4316, %v5128
    %v5513 = vsel %vm4745, %v4321, %v5129
    %v5514 = vsel %vm4746, %v4324, %v5130
    %v5515 = vsel %vm4747, %v4329, %v5131
    %v5516 = vsel %vm4748, %v4332, %v5132
    %v5517 = vsel %vm4749, %v4337, %v5133
    %v5518 = vsel %vm4750, %v4340, %v5134
    %v5519 = vsel %vm4751, %v4345, %v5135
    %v5520 = vsel %vm4752, %v4348, %v5136
    %v5521 = vsel %vm4753, %v4353, %v5137
    %v5522 = vsel %vm4754, %v4356, %v5138
    %v5523 = vsel %vm4755, %v4361, %v5139
    %v5524 = vsel %vm4756, %v4364, %v5140
    %v5525 = vsel %vm4757, %v4369, %v5141
    %v5526 = vsel %vm4758, %v4372, %v5142
    %v5527 = vpack.c.bf16 %v5144, %v5143
    %v5528 = vpack.c.bf16 %v5146, %v5145
    %v5529 = vpack.c.bf16 %v5148, %v5147
    %v5530 = vpack.c.bf16 %v5150, %v5149
    %v5531 = vpack.c.bf16 %v5152, %v5151
    %v5532 = vpack.c.bf16 %v5154, %v5153
    %v5533 = vpack.c.bf16 %v5156, %v5155
    %v5534 = vpack.c.bf16 %v5158, %v5157
    %v5535 = vpack.c.bf16 %v5160, %v5159
    %v5536 = vpack.c.bf16 %v5162, %v5161
    %v5537 = vpack.c.bf16 %v5164, %v5163
    %v5538 = vpack.c.bf16 %v5166, %v5165
    %v5539 = vpack.c.bf16 %v5168, %v5167
    %v5540 = vpack.c.bf16 %v5170, %v5169
    %v5541 = vpack.c.bf16 %v5172, %v5171
    %v5542 = vpack.c.bf16 %v5174, %v5173
    %v5543 = vpack.c.bf16 %v5176, %v5175
    %v5544 = vpack.c.bf16 %v5178, %v5177
    %v5545 = vpack.c.bf16 %v5180, %v5179
    %v5546 = vpack.c.bf16 %v5182, %v5181
    %v5547 = vpack.c.bf16 %v5184, %v5183
    %v5548 = vpack.c.bf16 %v5186, %v5185
    %v5549 = vpack.c.bf16 %v5188, %v5187
    %v5550 = vpack.c.bf16 %v5190, %v5189
    %v5551 = vpack.c.bf16 %v5192, %v5191
    %v5552 = vpack.c.bf16 %v5194, %v5193
    %v5553 = vpack.c.bf16 %v5196, %v5195
    %v5554 = vpack.c.bf16 %v5198, %v5197
    %v5555 = vpack.c.bf16 %v5200, %v5199
    %v5556 = vpack.c.bf16 %v5202, %v5201
    %v5557 = vpack.c.bf16 %v5204, %v5203
    %v5558 = vpack.c.bf16 %v5206, %v5205
    %v5559 = vpack.c.bf16 %v5208, %v5207
    %v5560 = vpack.c.bf16 %v5210, %v5209
    %v5561 = vpack.c.bf16 %v5212, %v5211
    %v5562 = vpack.c.bf16 %v5214, %v5213
    %v5563 = vpack.c.bf16 %v5216, %v5215
    %v5564 = vpack.c.bf16 %v5218, %v5217
    %v5565 = vpack.c.bf16 %v5220, %v5219
    %v5566 = vpack.c.bf16 %v5222, %v5221
    %v5567 = vpack.c.bf16 %v5224, %v5223
    %v5568 = vpack.c.bf16 %v5226, %v5225
    %v5569 = vpack.c.bf16 %v5228, %v5227
    %v5570 = vpack.c.bf16 %v5230, %v5229
    %v5571 = vpack.c.bf16 %v5232, %v5231
    %v5572 = vpack.c.bf16 %v5234, %v5233
    %v5573 = vpack.c.bf16 %v5236, %v5235
    %v5574 = vpack.c.bf16 %v5238, %v5237
    %v5575 = vpack.c.bf16 %v5240, %v5239
    %v5576 = vpack.c.bf16 %v5242, %v5241
    %v5577 = vpack.c.bf16 %v5244, %v5243
    %v5578 = vpack.c.bf16 %v5246, %v5245
    %v5579 = vpack.c.bf16 %v5248, %v5247
    %v5580 = vpack.c.bf16 %v5250, %v5249
    %v5581 = vpack.c.bf16 %v5252, %v5251
    %v5582 = vpack.c.bf16 %v5254, %v5253
    %v5583 = vpack.c.bf16 %v5256, %v5255
    %v5584 = vpack.c.bf16 %v5258, %v5257
    %v5585 = vpack.c.bf16 %v5260, %v5259
    %v5586 = vpack.c.bf16 %v5262, %v5261
    %v5587 = vpack.c.bf16 %v5264, %v5263
    %v5588 = vpack.c.bf16 %v5266, %v5265
    %v5589 = vpack.c.bf16 %v5268, %v5267
    %v5590 = vpack.c.bf16 %v5270, %v5269
    %v5591 = vpack.c.bf16 %v5272, %v5271
    %v5592 = vpack.c.bf16 %v5274, %v5273
    %v5593 = vpack.c.bf16 %v5276, %v5275
    %v5594 = vpack.c.bf16 %v5278, %v5277
    %v5595 = vpack.c.bf16 %v5280, %v5279
    %v5596 = vpack.c.bf16 %v5282, %v5281
    %v5597 = vpack.c.bf16 %v5284, %v5283
    %v5598 = vpack.c.bf16 %v5286, %v5285
    %v5599 = vpack.c.bf16 %v5288, %v5287
    %v5600 = vpack.c.bf16 %v5290, %v5289
    %v5601 = vpack.c.bf16 %v5292, %v5291
    %v5602 = vpack.c.bf16 %v5294, %v5293
    %v5603 = vpack.c.bf16 %v5296, %v5295
    %v5604 = vpack.c.bf16 %v5298, %v5297
    %v5605 = vpack.c.bf16 %v5300, %v5299
    %v5606 = vpack.c.bf16 %v5302, %v5301
    %v5607 = vpack.c.bf16 %v5304, %v5303
    %v5608 = vpack.c.bf16 %v5306, %v5305
    %v5609 = vpack.c.bf16 %v5308, %v5307
    %v5610 = vpack.c.bf16 %v5310, %v5309
    %v5611 = vpack.c.bf16 %v5312, %v5311
    %v5612 = vpack.c.bf16 %v5314, %v5313
    %v5613 = vpack.c.bf16 %v5316, %v5315
    %v5614 = vpack.c.bf16 %v5318, %v5317
    %v5615 = vpack.c.bf16 %v5320, %v5319
    %v5616 = vpack.c.bf16 %v5322, %v5321
    %v5617 = vpack.c.bf16 %v5324, %v5323
    %v5618 = vpack.c.bf16 %v5326, %v5325
    %v5619 = vpack.c.bf16 %v5328, %v5327
    %v5620 = vpack.c.bf16 %v5330, %v5329
    %v5621 = vpack.c.bf16 %v5332, %v5331
    %v5622 = vpack.c.bf16 %v5334, %v5333
    %v5623 = vpack.c.bf16 %v5336, %v5335
    %v5624 = vpack.c.bf16 %v5338, %v5337
    %v5625 = vpack.c.bf16 %v5340, %v5339
    %v5626 = vpack.c.bf16 %v5342, %v5341
    %v5627 = vpack.c.bf16 %v5344, %v5343
    %v5628 = vpack.c.bf16 %v5346, %v5345
    %v5629 = vpack.c.bf16 %v5348, %v5347
    %v5630 = vpack.c.bf16 %v5350, %v5349
    %v5631 = vpack.c.bf16 %v5352, %v5351
    %v5632 = vpack.c.bf16 %v5354, %v5353
    %v5633 = vpack.c.bf16 %v5356, %v5355
    %v5634 = vpack.c.bf16 %v5358, %v5357
    %v5635 = vpack.c.bf16 %v5360, %v5359
    %v5636 = vpack.c.bf16 %v5362, %v5361
    %v5637 = vpack.c.bf16 %v5364, %v5363
    %v5638 = vpack.c.bf16 %v5366, %v5365
    %v5639 = vpack.c.bf16 %v5368, %v5367
    %v5640 = vpack.c.bf16 %v5370, %v5369
    %v5641 = vpack.c.bf16 %v5372, %v5371
    %v5642 = vpack.c.bf16 %v5374, %v5373
    %v5643 = vpack.c.bf16 %v5376, %v5375
    %v5644 = vpack.c.bf16 %v5378, %v5377
    %v5645 = vpack.c.bf16 %v5380, %v5379
    %v5646 = vpack.c.bf16 %v5382, %v5381
    %v5647 = vpack.c.bf16 %v5384, %v5383
    %v5648 = vpack.c.bf16 %v5386, %v5385
    %v5649 = vpack.c.bf16 %v5388, %v5387
    %v5650 = vpack.c.bf16 %v5390, %v5389
    %v5651 = vpack.c.bf16 %v5392, %v5391
    %v5652 = vpack.c.bf16 %v5394, %v5393
    %v5653 = vpack.c.bf16 %v5396, %v5395
    %v5654 = vpack.c.bf16 %v5398, %v5397
    %v5655 = vpack.c.bf16 %v5400, %v5399
    %v5656 = vpack.c.bf16 %v5402, %v5401
    %v5657 = vpack.c.bf16 %v5404, %v5403
    %v5658 = vpack.c.bf16 %v5406, %v5405
    %v5659 = vpack.c.bf16 %v5408, %v5407
    %v5660 = vpack.c.bf16 %v5410, %v5409
    %v5661 = vpack.c.bf16 %v5412, %v5411
    %v5662 = vpack.c.bf16 %v5414, %v5413
    %v5663 = vpack.c.bf16 %v5416, %v5415
    %v5664 = vpack.c.bf16 %v5418, %v5417
    %v5665 = vpack.c.bf16 %v5420, %v5419
    %v5666 = vpack.c.bf16 %v5422, %v5421
    %v5667 = vpack.c.bf16 %v5424, %v5423
    %v5668 = vpack.c.bf16 %v5426, %v5425
    %v5669 = vpack.c.bf16 %v5428, %v5427
    %v5670 = vpack.c.bf16 %v5430, %v5429
    %v5671 = vpack.c.bf16 %v5432, %v5431
    %v5672 = vpack.c.bf16 %v5434, %v5433
    %v5673 = vpack.c.bf16 %v5436, %v5435
    %v5674 = vpack.c.bf16 %v5438, %v5437
    %v5675 = vpack.c.bf16 %v5440, %v5439
    %v5676 = vpack.c.bf16 %v5442, %v5441
    %v5677 = vpack.c.bf16 %v5444, %v5443
    %v5678 = vpack.c.bf16 %v5446, %v5445
    %v5679 = vpack.c.bf16 %v5448, %v5447
    %v5680 = vpack.c.bf16 %v5450, %v5449
    %v5681 = vpack.c.bf16 %v5452, %v5451
    %v5682 = vpack.c.bf16 %v5454, %v5453
    %v5683 = vpack.c.bf16 %v5456, %v5455
    %v5684 = vpack.c.bf16 %v5458, %v5457
    %v5685 = vpack.c.bf16 %v5460, %v5459
    %v5686 = vpack.c.bf16 %v5462, %v5461
    %v5687 = vpack.c.bf16 %v5464, %v5463
    %v5688 = vpack.c.bf16 %v5466, %v5465
    %v5689 = vpack.c.bf16 %v5468, %v5467
    %v5690 = vpack.c.bf16 %v5470, %v5469
    %v5691 = vpack.c.bf16 %v5472, %v5471
    %v5692 = vpack.c.bf16 %v5474, %v5473
    %v5693 = vpack.c.bf16 %v5476, %v5475
    %v5694 = vpack.c.bf16 %v5478, %v5477
    %v5695 = vpack.c.bf16 %v5480, %v5479
    %v5696 = vpack.c.bf16 %v5482, %v5481
    %v5697 = vpack.c.bf16 %v5484, %v5483
    %v5698 = vpack.c.bf16 %v5486, %v5485
    %v5699 = vpack.c.bf16 %v5488, %v5487
    %v5700 = vpack.c.bf16 %v5490, %v5489
    %v5701 = vpack.c.bf16 %v5492, %v5491
    %v5702 = vpack.c.bf16 %v5494, %v5493
    %v5703 = vpack.c.bf16 %v5496, %v5495
    %v5704 = vpack.c.bf16 %v5498, %v5497
    %v5705 = vpack.c.bf16 %v5500, %v5499
    %v5706 = vpack.c.bf16 %v5502, %v5501
    %v5707 = vpack.c.bf16 %v5504, %v5503
    %v5708 = vpack.c.bf16 %v5506, %v5505
    %v5709 = vpack.c.bf16 %v5508, %v5507
    %v5710 = vpack.c.bf16 %v5510, %v5509
    %v5711 = vpack.c.bf16 %v5512, %v5511
    %v5712 = vpack.c.bf16 %v5514, %v5513
    %v5713 = vpack.c.bf16 %v5516, %v5515
    %v5714 = vpack.c.bf16 %v5518, %v5517
    %v5715 = vpack.c.bf16 %v5520, %v5519
    %v5716 = vpack.c.bf16 %v5522, %v5521
    %v5717 = vpack.c.bf16 %v5524, %v5523
    %v5718 = vpack.c.bf16 %v5526, %v5525
    %v5719 = vld [vmem:[%s2] sm:$0xf]
    %s5720 = scalar_lea.vmem %s2, 4
    %v5721 = vld [vmem:[%s5720] sm:$0xf]
    %vm5722 = vcmask 64512
    %v5724 = vsel %vm5722, %v5551, 0
    %v5727 = vsel %vm5722, %v5552, 0
    %v5730 = vsel %vm5722, %v5553, 0
    %v5733 = vsel %vm5722, %v5554, 0
    %v5736 = vsel %vm5722, %v5555, 0
    %v5739 = vsel %vm5722, %v5556, 0
    %v5742 = vsel %vm5722, %v5557, 0
    %v5745 = vsel %vm5722, %v5558, 0
    %v5748 = vsel %vm5722, %v5559, 0
    %v5751 = vsel %vm5722, %v5560, 0
    %v5754 = vsel %vm5722, %v5561, 0
    %v5757 = vsel %vm5722, %v5562, 0
    %v5760 = vsel %vm5722, %v5563, 0
    %v5763 = vsel %vm5722, %v5564, 0
    %v5766 = vsel %vm5722, %v5565, 0
    %v5769 = vsel %vm5722, %v5566, 0
    %v5772 = vsel %vm5722, %v5567, 0
    %v5775 = vsel %vm5722, %v5568, 0
    %v5778 = vsel %vm5722, %v5569, 0
    %v5781 = vsel %vm5722, %v5570, 0
    %v5784 = vsel %vm5722, %v5571, 0
    %v5787 = vsel %vm5722, %v5572, 0
    %v5790 = vsel %vm5722, %v5573, 0
    %v5793 = vsel %vm5722, %v5574, 0
    %vm5795 = vcmask 1043456
    %v5797 = vsel %vm5795, %v5721, 0
    %5799 = vmatprep.subr.bf16.mxu0 0
    %5800 = vmatpush1.bf16.msra.mxu0 %v5797
    %5801 = vmatprep.subr.bf16.mxu0 0
    %5802 = vmatpush1.bf16.msra.mxu0 0
    %5803 = vmatprep.subr.bf16.mxu0 0
    %5804 = vmatpush1.bf16.msra.mxu0 0
    %5805 = vmatprep.subr.bf16.mxu0 0
    %5806 = vmatpush1.bf16.msra.mxu0 0
    %5807 = vmatprep.subr.bf16.mxu0 0
    %5808 = vmatpush1.bf16.msra.mxu0 0
    %5809 = vmatprep.subr.bf16.mxu0 0
    %5810 = vmatpush1.bf16.msra.mxu0 0
    %5811 = vmatprep.subr.bf16.mxu0 0
    %5812 = vmatpush1.bf16.msra.mxu0 0
    %5813 = vmatprep.subr.bf16.mxu0 0
    %5814 = vmatpush1.bf16.msra.mxu0 0
    %5815 = vmatprep.subr.bf16.mxu0 0
    %5816 = vmatpush1.bf16.msra.mxu0 0
    %5817 = vmatprep.subr.bf16.mxu0 0
    %5818 = vmatpush1.bf16.msra.mxu0 0
    %5819 = vmatprep.subr.bf16.mxu0 0
    %5820 = vmatpush1.bf16.msra.mxu0 0
    %5821 = vmatprep.subr.bf16.mxu0 0
    %5822 = vmatpush1.bf16.msra.mxu0 0
    %5823 = vmatprep.subr.bf16.mxu0 0
    %5824 = vmatpush1.bf16.msra.mxu0 0
    %5825 = vmatprep.subr.bf16.mxu0 0
    %5826 = vmatpush1.bf16.msra.mxu0 0
    %5827 = vmatprep.subr.bf16.mxu0 0
    %5828 = vmatpush1.bf16.msra.mxu0 0
    %5829 = vmatprep.subr.bf16.mxu0 0
    %5830 = vmatpush1.bf16.msra.mxu0 0
    %5831 = vmatprep.mubr.bf16.mxu0 0
    %5832 = vmatmul.mubr.bf16.gmra.mrb[0].mxu0 %v5724
    %v5833 = vpop.f32.mrb[0].mxu0
    %v5834 = vadd.f32 0.0, %v5833
    %v5835 = vpop.f32.mrb[0].mxu0
    %v5836 = vpop.f32.mrb[0].mxu0
    %v5837 = vadd.f32 0.0, %v5836
    %v5838 = vpop.f32.mrb[0].mxu0
    %5839 = vmatprep.mubr.bf16.mxu0 0
    %5840 = vmatmul.mubr.bf16.gmra.mrb[0].mxu0 %v5727
    %v5841 = vpop.f32.mrb[0].mxu0
    %v5842 = vadd.f32 0.0, %v5841
    %v5843 = vpop.f32.mrb[0].mxu0
    %v5844 = vpop.f32.mrb[0].mxu0
    %v5845 = vadd.f32 0.0, %v5844
    %v5846 = vpop.f32.mrb[0].mxu0
    %5847 = vmatprep.mubr.bf16.mxu0 0
    %5848 = vmatmul.mubr.bf16.gmra.mrb[0].mxu0 %v5730
    %v5849 = vpop.f32.mrb[0].mxu0
    %v5850 = vadd.f32 0.0, %v5849
    %v5851 = vpop.f32.mrb[0].mxu0
    %v5852 = vpop.f32.mrb[0].mxu0
    %v5853 = vadd.f32 0.0, %v5852
    %v5854 = vpop.f32.mrb[0].mxu0
    %5855 = vmatprep.mubr.bf16.mxu0 0
    %5856 = vmatmul.mubr.bf16.gmra.mrb[0].mxu0 %v5733
    %v5857 = vpop.f32.mrb[0].mxu0
    %v5858 = vadd.f32 0.0, %v5857
    %v5859 = vpop.f32.mrb[0].mxu0
    %v5860 = vpop.f32.mrb[0].mxu0
    %v5861 = vadd.f32 0.0, %v5860
    %v5862 = vpop.f32.mrb[0].mxu0
    %5863 = vmatprep.mubr.bf16.mxu0 0
    %5864 = vmatmul.mubr.bf16.gmra.mrb[0].mxu0 %v5736
    %v5865 = vpop.f32.mrb[0].mxu0
    %v5866 = vadd.f32 0.0, %v5865
    %v5867 = vpop.f32.mrb[0].mxu0
    %v5868 = vpop.f32.mrb[0].mxu0
    %v5869 = vadd.f32 0.0, %v5868
    %v5870 = vpop.f32.mrb[0].mxu0
    %5871 = vmatprep.mubr.bf16.mxu0 0
    %5872 = vmatmul.mubr.bf16.gmra.mrb[0].mxu0 %v5739
    %v5873 = vpop.f32.mrb[0].mxu0
    %v5874 = vadd.f32 0.0, %v5873
    %v5875 = vpop.f32.mrb[0].mxu0
    %v5876 = vpop.f32.mrb[0].mxu0
    %v5877 = vadd.f32 0.0, %v5876
    %v5878 = vpop.f32.mrb[0].mxu0
    %5879 = vmatprep.mubr.bf16.mxu0 0
    %5880 = vmatmul.mubr.bf16.gmra.mrb[0].mxu0 %v5742
    %v5881 = vpop.f32.mrb[0].mxu0
    %v5882 = vadd.f32 0.0, %v5881
    %v5883 = vpop.f32.mrb[0].mxu0
    %v5884 = vpop.f32.mrb[0].mxu0
    %v5885 = vadd.f32 0.0, %v5884
    %v5886 = vpop.f32.mrb[0].mxu0
    %5887 = vmatprep.mubr.bf16.mxu0 0
    %5888 = vmatmul.mubr.bf16.gmra.mrb[0].mxu0 %v5745
    %v5889 = vpop.f32.mrb[0].mxu0
    %v5890 = vadd.f32 0.0, %v5889
    %v5891 = vpop.f32.mrb[0].mxu0
    %v5892 = vpop.f32.mrb[0].mxu0
    %v5893 = vadd.f32 0.0, %v5892
    %v5894 = vpop.f32.mrb[0].mxu0
    %5895 = vmatprep.mubr.bf16.mxu0 0
    %5896 = vmatmul.mubr.bf16.gmra.mrb[0].mxu0 %v5748
    %v5897 = vpop.f32.mrb[0].mxu0
    %v5898 = vadd.f32 0.0, %v5897
    %v5899 = vpop.f32.mrb[0].mxu0
    %v5900 = vpop.f32.mrb[0].mxu0
    %v5901 = vadd.f32 0.0, %v5900
    %v5902 = vpop.f32.mrb[0].mxu0
    %5903 = vmatprep.mubr.bf16.mxu0 0
    %5904 = vmatmul.mubr.bf16.gmra.mrb[0].mxu0 %v5751
    %v5905 = vpop.f32.mrb[0].mxu0
    %v5906 = vadd.f32 0.0, %v5905
    %v5907 = vpop.f32.mrb[0].mxu0
    %v5908 = vpop.f32.mrb[0].mxu0
    %v5909 = vadd.f32 0.0, %v5908
    %v5910 = vpop.f32.mrb[0].mxu0
    %5911 = vmatprep.mubr.bf16.mxu0 0
    %5912 = vmatmul.mubr.bf16.gmra.mrb[0].mxu0 %v5754
    %v5913 = vpop.f32.mrb[0].mxu0
    %v5914 = vadd.f32 0.0, %v5913
    %v5915 = vpop.f32.mrb[0].mxu0
    %v5916 = vpop.f32.mrb[0].mxu0
    %v5917 = vadd.f32 0.0, %v5916
    %v5918 = vpop.f32.mrb[0].mxu0
    %5919 = vmatprep.mubr.bf16.mxu0 0
    %5920 = vmatmul.mubr.bf16.gmra.mrb[0].mxu0 %v5757
    %v5921 = vpop.f32.mrb[0].mxu0
    %v5922 = vadd.f32 0.0, %v5921
    %v5923 = vpop.f32.mrb[0].mxu0
    %v5924 = vpop.f32.mrb[0].mxu0
    %v5925 = vadd.f32 0.0, %v5924
    %v5926 = vpop.f32.mrb[0].mxu0
    %5927 = vmatprep.mubr.bf16.mxu0 0
    %5928 = vmatmul.mubr.bf16.gmra.mrb[0].mxu0 %v5760
    %v5929 = vpop.f32.mrb[0].mxu0
    %v5930 = vadd.f32 0.0, %v5929
    %v5931 = vpop.f32.mrb[0].mxu0
    %v5932 = vpop.f32.mrb[0].mxu0
    %v5933 = vadd.f32 0.0, %v5932
    %v5934 = vpop.f32.mrb[0].mxu0
    %5935 = vmatprep.mubr.bf16.mxu0 0
    %5936 = vmatmul.mubr.bf16.gmra.mrb[0].mxu0 %v5763
    %v5937 = vpop.f32.mrb[0].mxu0
    %v5938 = vadd.f32 0.0, %v5937
    %v5939 = vpop.f32.mrb[0].mxu0
    %v5940 = vpop.f32.mrb[0].mxu0
    %v5941 = vadd.f32 0.0, %v5940
    %v5942 = vpop.f32.mrb[0].mxu0
    %5943 = vmatprep.mubr.bf16.mxu0 0
    %5944 = vmatmul.mubr.bf16.gmra.mrb[0].mxu0 %v5766
    %v5945 = vpop.f32.mrb[0].mxu0
    %v5946 = vadd.f32 0.0, %v5945
    %v5947 = vpop.f32.mrb[0].mxu0
    %v5948 = vpop.f32.mrb[0].mxu0
    %v5949 = vadd.f32 0.0, %v5948
    %v5950 = vpop.f32.mrb[0].mxu0
    %5951 = vmatprep.mubr.bf16.mxu0 0
    %5952 = vmatmul.mubr.bf16.gmra.mrb[0].mxu0 %v5769
    %v5953 = vpop.f32.mrb[0].mxu0
    %v5954 = vadd.f32 0.0, %v5953
    %v5955 = vpop.f32.mrb[0].mxu0
    %v5956 = vpop.f32.mrb[0].mxu0
    %v5957 = vadd.f32 0.0, %v5956
    %v5958 = vpop.f32.mrb[0].mxu0
    %5959 = vmatprep.mubr.bf16.mxu0 0
    %5960 = vmatmul.mubr.bf16.gmra.mrb[0].mxu0 %v5772
    %v5961 = vpop.f32.mrb[0].mxu0
    %v5962 = vadd.f32 0.0, %v5961
    %v5963 = vpop.f32.mrb[0].mxu0
    %v5964 = vpop.f32.mrb[0].mxu0
    %v5965 = vadd.f32 0.0, %v5964
    %v5966 = vpop.f32.mrb[0].mxu0
    %5967 = vmatprep.mubr.bf16.mxu0 0
    %5968 = vmatmul.mubr.bf16.gmra.mrb[0].mxu0 %v5775
    %v5969 = vpop.f32.mrb[0].mxu0
    %v5970 = vadd.f32 0.0, %v5969
    %v5971 = vpop.f32.mrb[0].mxu0
    %v5972 = vpop.f32.mrb[0].mxu0
    %v5973 = vadd.f32 0.0, %v5972
    %v5974 = vpop.f32.mrb[0].mxu0
    %5975 = vmatprep.mubr.bf16.mxu0 0
    %5976 = vmatmul.mubr.bf16.gmra.mrb[0].mxu0 %v5778
    %v5977 = vpop.f32.mrb[0].mxu0
    %v5978 = vadd.f32 0.0, %v5977
    %v5979 = vpop.f32.mrb[0].mxu0
    %v5980 = vpop.f32.mrb[0].mxu0
    %v5981 = vadd.f32 0.0, %v5980
    %v5982 = vpop.f32.mrb[0].mxu0
    %5983 = vmatprep.mubr.bf16.mxu0 0
    %5984 = vmatmul.mubr.bf16.gmra.mrb[0].mxu0 %v5781
    %v5985 = vpop.f32.mrb[0].mxu0
    %v5986 = vadd.f32 0.0, %v5985
    %v5987 = vpop.f32.mrb[0].mxu0
    %v5988 = vpop.f32.mrb[0].mxu0
    %v5989 = vadd.f32 0.0, %v5988
    %v5990 = vpop.f32.mrb[0].mxu0
    %5991 = vmatprep.mubr.bf16.mxu0 0
    %5992 = vmatmul.mubr.bf16.gmra.mrb[0].mxu0 %v5784
    %v5993 = vpop.f32.mrb[0].mxu0
    %v5994 = vadd.f32 0.0, %v5993
    %v5995 = vpop.f32.mrb[0].mxu0
    %v5996 = vpop.f32.mrb[0].mxu0
    %v5997 = vadd.f32 0.0, %v5996
    %v5998 = vpop.f32.mrb[0].mxu0
    %5999 = vmatprep.mubr.bf16.mxu0 0
    %6000 = vmatmul.mubr.bf16.gmra.mrb[0].mxu0 %v5787
    %v6001 = vpop.f32.mrb[0].mxu0
    %v6002 = vadd.f32 0.0, %v6001
    %v6003 = vpop.f32.mrb[0].mxu0
    %v6004 = vpop.f32.mrb[0].mxu0
    %v6005 = vadd.f32 0.0, %v6004
    %v6006 = vpop.f32.mrb[0].mxu0
    %6007 = vmatprep.mubr.bf16.mxu0 0
    %6008 = vmatmul.mubr.bf16.gmra.mrb[0].mxu0 %v5790
    %v6009 = vpop.f32.mrb[0].mxu0
    %v6010 = vadd.f32 0.0, %v6009
    %v6011 = vpop.f32.mrb[0].mxu0
    %v6012 = vpop.f32.mrb[0].mxu0
    %v6013 = vadd.f32 0.0, %v6012
    %v6014 = vpop.f32.mrb[0].mxu0
    %6015 = vmatprep.mubr.bf16.mxu0 0
    %6016 = vmatmul.mubr.bf16.gmra.mrb[0].mxu0 %v5793
    %v6017 = vpop.f32.mrb[0].mxu0
    %v6018 = vadd.f32 0.0, %v6017
    %v6019 = vpop.f32.mrb[0].mxu0
    %v6020 = vpop.f32.mrb[0].mxu0
    %v6021 = vadd.f32 0.0, %v6020
    %v6022 = vpop.f32.mrb[0].mxu0
    %6023 = vdwg.mxu0
    %v6025 = vsel %vm5722, %v5527, 0
    %v6028 = vsel %vm5722, %v5528, 0
    %v6031 = vsel %vm5722, %v5529, 0
    %v6034 = vsel %vm5722, %v5530, 0
    %v6037 = vsel %vm5722, %v5531, 0
    %v6040 = vsel %vm5722, %v5532, 0
    %v6043 = vsel %vm5722, %v5533, 0
    %v6046 = vsel %vm5722, %v5534, 0
    %v6049 = vsel %vm5722, %v5535, 0
    %v6052 = vsel %vm5722, %v5536, 0
    %v6055 = vsel %vm5722, %v5537, 0
    %v6058 = vsel %vm5722, %v5538, 0
    %v6061 = vsel %vm5722, %v5539, 0
    %v6064 = vsel %vm5722, %v5540, 0
    %v6067 = vsel %vm5722, %v5541, 0
    %v6070 = vsel %vm5722, %v5542, 0
    %v6073 = vsel %vm5722, %v5543, 0
    %v6076 = vsel %vm5722, %v5544, 0
    %v6079 = vsel %vm5722, %v5545, 0
    %v6082 = vsel %vm5722, %v5546, 0
    %v6085 = vsel %vm5722, %v5547, 0
    %v6088 = vsel %vm5722, %v5548, 0
    %v6091 = vsel %vm5722, %v5549, 0
    %v6094 = vsel %vm5722, %v5550, 0
    %v6097 = vsel %vm5795, %v5719, 0
    %6099 = vmatprep.subr.bf16.mxu0 0
    %6100 = vmatpush1.bf16.msra.mxu0 %v6097
    %6101 = vmatprep.subr.bf16.mxu0 0
    %6102 = vmatpush1.bf16.msra.mxu0 0
    %6103 = vmatprep.subr.bf16.mxu0 0
    %6104 = vmatpush1.bf16.msra.mxu0 0
    %6105 = vmatprep.subr.bf16.mxu0 0
    %6106 = vmatpush1.bf16.msra.mxu0 0
    %6107 = vmatprep.subr.bf16.mxu0 0
    %6108 = vmatpush1.bf16.msra.mxu0 0
    %6109 = vmatprep.subr.bf16.mxu0 0
    %6110 = vmatpush1.bf16.msra.mxu0 0
    %6111 = vmatprep.subr.bf16.mxu0 0
    %6112 = vmatpush1.bf16.msra.mxu0 0
    %6113 = vmatprep.subr.bf16.mxu0 0
    %6114 = vmatpush1.bf16.msra.mxu0 0
    %6115 = vmatprep.subr.bf16.mxu0 0
    %6116 = vmatpush1.bf16.msra.mxu0 0
    %6117 = vmatprep.subr.bf16.mxu0 0
    %6118 = vmatpush1.bf16.msra.mxu0 0
    %6119 = vmatprep.subr.bf16.mxu0 0
    %6120 = vmatpush1.bf16.msra.mxu0 0
    %6121 = vmatprep.subr.bf16.mxu0 0
    %6122 = vmatpush1.bf16.msra.mxu0 0
    %6123 = vmatprep.subr.bf16.mxu0 0
    %6124 = vmatpush1.bf16.msra.mxu0 0
    %6125 = vmatprep.subr.bf16.mxu0 0
    %6126 = vmatpush1.bf16.msra.mxu0 0
    %6127 = vmatprep.subr.bf16.mxu0 0
    %6128 = vmatpush1.bf16.msra.mxu0 0
    %6129 = vmatprep.subr.bf16.mxu0 0
    %6130 = vmatpush1.bf16.msra.mxu0 0
    %6131 = vmatprep.mubr.bf16.mxu0 0
    %6132 = vmatmul.mubr.bf16.gmra.mrb[0].mxu0 %v6025
    %v6133 = vpop.f32.mrb[0].mxu0
    %v6134 = vadd.f32 %v5834, %v6133
    %v6135 = vpop.f32.mrb[0].mxu0
    %v6136 = vpop.f32.mrb[0].mxu0
    %v6137 = vadd.f32 %v5837, %v6136
    %v6138 = vpop.f32.mrb[0].mxu0
    %6139 = vmatprep.mubr.bf16.mxu0 0
    %6140 = vmatmul.mubr.bf16.gmra.mrb[0].mxu0 %v6028
    %v6141 = vpop.f32.mrb[0].mxu0
    %v6142 = vadd.f32 %v5842, %v6141
    %v6143 = vpop.f32.mrb[0].mxu0
    %v6144 = vpop.f32.mrb[0].mxu0
    %v6145 = vadd.f32 %v5845, %v6144
    %v6146 = vpop.f32.mrb[0].mxu0
    %6147 = vmatprep.mubr.bf16.mxu0 0
    %6148 = vmatmul.mubr.bf16.gmra.mrb[0].mxu0 %v6031
    %v6149 = vpop.f32.mrb[0].mxu0
    %v6150 = vadd.f32 %v5850, %v6149
    %v6151 = vpop.f32.mrb[0].mxu0
    %v6152 = vpop.f32.mrb[0].mxu0
    %v6153 = vadd.f32 %v5853, %v6152
    %v6154 = vpop.f32.mrb[0].mxu0
    %6155 = vmatprep.mubr.bf16.mxu0 0
    %6156 = vmatmul.mubr.bf16.gmra.mrb[0].mxu0 %v6034
    %v6157 = vpop.f32.mrb[0].mxu0
    %v6158 = vadd.f32 %v5858, %v6157
    %v6159 = vpop.f32.mrb[0].mxu0
    %v6160 = vpop.f32.mrb[0].mxu0
    %v6161 = vadd.f32 %v5861, %v6160
    %v6162 = vpop.f32.mrb[0].mxu0
    %6163 = vmatprep.mubr.bf16.mxu0 0
    %6164 = vmatmul.mubr.bf16.gmra.mrb[0].mxu0 %v6037
    %v6165 = vpop.f32.mrb[0].mxu0
    %v6166 = vadd.f32 %v5866, %v6165
    %v6167 = vpop.f32.mrb[0].mxu0
    %v6168 = vpop.f32.mrb[0].mxu0
    %v6169 = vadd.f32 %v5869, %v6168
    %v6170 = vpop.f32.mrb[0].mxu0
    %6171 = vmatprep.mubr.bf16.mxu0 0
    %6172 = vmatmul.mubr.bf16.gmra.mrb[0].mxu0 %v6040
    %v6173 = vpop.f32.mrb[0].mxu0
    %v6174 = vadd.f32 %v5874, %v6173
    %v6175 = vpop.f32.mrb[0].mxu0
    %v6176 = vpop.f32.mrb[0].mxu0
    %v6177 = vadd.f32 %v5877, %v6176
    %v6178 = vpop.f32.mrb[0].mxu0
    %6179 = vmatprep.mubr.bf16.mxu0 0
    %6180 = vmatmul.mubr.bf16.gmra.mrb[0].mxu0 %v6043
    %v6181 = vpop.f32.mrb[0].mxu0
    %v6182 = vadd.f32 %v5882, %v6181
    %v6183 = vpop.f32.mrb[0].mxu0
    %v6184 = vpop.f32.mrb[0].mxu0
    %v6185 = vadd.f32 %v5885, %v6184
    %v6186 = vpop.f32.mrb[0].mxu0
    %6187 = vmatprep.mubr.bf16.mxu0 0
    %6188 = vmatmul.mubr.bf16.gmra.mrb[0].mxu0 %v6046
    %v6189 = vpop.f32.mrb[0].mxu0
    %v6190 = vadd.f32 %v5890, %v6189
    %v6191 = vpop.f32.mrb[0].mxu0
    %v6192 = vpop.f32.mrb[0].mxu0
    %v6193 = vadd.f32 %v5893, %v6192
    %v6194 = vpop.f32.mrb[0].mxu0
    %6195 = vmatprep.mubr.bf16.mxu0 0
    %6196 = vmatmul.mubr.bf16.gmra.mrb[0].mxu0 %v6049
    %v6197 = vpop.f32.mrb[0].mxu0
    %v6198 = vadd.f32 %v5898, %v6197
    %v6199 = vpop.f32.mrb[0].mxu0
    %v6200 = vpop.f32.mrb[0].mxu0
    %v6201 = vadd.f32 %v5901, %v6200
    %v6202 = vpop.f32.mrb[0].mxu0
    %6203 = vmatprep.mubr.bf16.mxu0 0
    %6204 = vmatmul.mubr.bf16.gmra.mrb[0].mxu0 %v6052
    %v6205 = vpop.f32.mrb[0].mxu0
    %v6206 = vadd.f32 %v5906, %v6205
    %v6207 = vpop.f32.mrb[0].mxu0
    %v6208 = vpop.f32.mrb[0].mxu0
    %v6209 = vadd.f32 %v5909, %v6208
    %v6210 = vpop.f32.mrb[0].mxu0
    %6211 = vmatprep.mubr.bf16.mxu0 0
    %6212 = vmatmul.mubr.bf16.gmra.mrb[0].mxu0 %v6055
    %v6213 = vpop.f32.mrb[0].mxu0
    %v6214 = vadd.f32 %v5914, %v6213
    %v6215 = vpop.f32.mrb[0].mxu0
    %v6216 = vpop.f32.mrb[0].mxu0
    %v6217 = vadd.f32 %v5917, %v6216
    %v6218 = vpop.f32.mrb[0].mxu0
    %6219 = vmatprep.mubr.bf16.mxu0 0
    %6220 = vmatmul.mubr.bf16.gmra.mrb[0].mxu0 %v6058
    %v6221 = vpop.f32.mrb[0].mxu0
    %v6222 = vadd.f32 %v5922, %v6221
    %v6223 = vpop.f32.mrb[0].mxu0
    %v6224 = vpop.f32.mrb[0].mxu0
    %v6225 = vadd.f32 %v5925, %v6224
    %v6226 = vpop.f32.mrb[0].mxu0
    %6227 = vmatprep.mubr.bf16.mxu0 0
    %6228 = vmatmul.mubr.bf16.gmra.mrb[0].mxu0 %v6061
    %v6229 = vpop.f32.mrb[0].mxu0
    %v6230 = vadd.f32 %v5930, %v6229
    %v6231 = vpop.f32.mrb[0].mxu0
    %v6232 = vpop.f32.mrb[0].mxu0
    %v6233 = vadd.f32 %v5933, %v6232
    %v6234 = vpop.f32.mrb[0].mxu0
    %6235 = vmatprep.mubr.bf16.mxu0 0
    %6236 = vmatmul.mubr.bf16.gmra.mrb[0].mxu0 %v6064
    %v6237 = vpop.f32.mrb[0].mxu0
    %v6238 = vadd.f32 %v5938, %v6237
    %v6239 = vpop.f32.mrb[0].mxu0
    %v6240 = vpop.f32.mrb[0].mxu0
    %v6241 = vadd.f32 %v5941, %v6240
    %v6242 = vpop.f32.mrb[0].mxu0
    %6243 = vmatprep.mubr.bf16.mxu0 0
    %6244 = vmatmul.mubr.bf16.gmra.mrb[0].mxu0 %v6067
    %v6245 = vpop.f32.mrb[0].mxu0
    %v6246 = vadd.f32 %v5946, %v6245
    %v6247 = vpop.f32.mrb[0].mxu0
    %v6248 = vpop.f32.mrb[0].mxu0
    %v6249 = vadd.f32 %v5949, %v6248
    %v6250 = vpop.f32.mrb[0].mxu0
    %6251 = vmatprep.mubr.bf16.mxu0 0
    %6252 = vmatmul.mubr.bf16.gmra.mrb[0].mxu0 %v6070
    %v6253 = vpop.f32.mrb[0].mxu0
    %v6254 = vadd.f32 %v5954, %v6253
    %v6255 = vpop.f32.mrb[0].mxu0
    %v6256 = vpop.f32.mrb[0].mxu0
    %v6257 = vadd.f32 %v5957, %v6256
    %v6258 = vpop.f32.mrb[0].mxu0
    %6259 = vmatprep.mubr.bf16.mxu0 0
    %6260 = vmatmul.mubr.bf16.gmra.mrb[0].mxu0 %v6073
    %v6261 = vpop.f32.mrb[0].mxu0
    %v6262 = vadd.f32 %v5962, %v6261
    %v6263 = vpop.f32.mrb[0].mxu0
    %v6264 = vpop.f32.mrb[0].mxu0
    %v6265 = vadd.f32 %v5965, %v6264
    %v6266 = vpop.f32.mrb[0].mxu0
    %6267 = vmatprep.mubr.bf16.mxu0 0
    %6268 = vmatmul.mubr.bf16.gmra.mrb[0].mxu0 %v6076
    %v6269 = vpop.f32.mrb[0].mxu0
    %v6270 = vadd.f32 %v5970, %v6269
    %v6271 = vpop.f32.mrb[0].mxu0
    %v6272 = vpop.f32.mrb[0].mxu0
    %v6273 = vadd.f32 %v5973, %v6272
    %v6274 = vpop.f32.mrb[0].mxu0
    %6275 = vmatprep.mubr.bf16.mxu0 0
    %6276 = vmatmul.mubr.bf16.gmra.mrb[0].mxu0 %v6079
    %v6277 = vpop.f32.mrb[0].mxu0
    %v6278 = vadd.f32 %v5978, %v6277
    %v6279 = vpop.f32.mrb[0].mxu0
    %v6280 = vpop.f32.mrb[0].mxu0
    %v6281 = vadd.f32 %v5981, %v6280
    %v6282 = vpop.f32.mrb[0].mxu0
    %6283 = vmatprep.mubr.bf16.mxu0 0
    %6284 = vmatmul.mubr.bf16.gmra.mrb[0].mxu0 %v6082
    %v6285 = vpop.f32.mrb[0].mxu0
    %v6286 = vadd.f32 %v5986, %v6285
    %v6287 = vpop.f32.mrb[0].mxu0
    %v6288 = vpop.f32.mrb[0].mxu0
    %v6289 = vadd.f32 %v5989, %v6288
    %v6290 = vpop.f32.mrb[0].mxu0
    %6291 = vmatprep.mubr.bf16.mxu0 0
    %6292 = vmatmul.mubr.bf16.gmra.mrb[0].mxu0 %v6085
    %v6293 = vpop.f32.mrb[0].mxu0
    %v6294 = vadd.f32 %v5994, %v6293
    %v6295 = vpop.f32.mrb[0].mxu0
    %v6296 = vpop.f32.mrb[0].mxu0
    %v6297 = vadd.f32 %v5997, %v6296
    %v6298 = vpop.f32.mrb[0].mxu0
    %6299 = vmatprep.mubr.bf16.mxu0 0
    %6300 = vmatmul.mubr.bf16.gmra.mrb[0].mxu0 %v6088
    %v6301 = vpop.f32.mrb[0].mxu0
    %v6302 = vadd.f32 %v6002, %v6301
    %v6303 = vpop.f32.mrb[0].mxu0
    %v6304 = vpop.f32.mrb[0].mxu0
    %v6305 = vadd.f32 %v6005, %v6304
    %v6306 = vpop.f32.mrb[0].mxu0
    %6307 = vmatprep.mubr.bf16.mxu0 0
    %6308 = vmatmul.mubr.bf16.gmra.mrb[0].mxu0 %v6091
    %v6309 = vpop.f32.mrb[0].mxu0
    %v6310 = vadd.f32 %v6010, %v6309
    %v6311 = vpop.f32.mrb[0].mxu0
    %v6312 = vpop.f32.mrb[0].mxu0
    %v6313 = vadd.f32 %v6013, %v6312
    %v6314 = vpop.f32.mrb[0].mxu0
    %6315 = vmatprep.mubr.bf16.mxu0 0
    %6316 = vmatmul.mubr.bf16.gmra.mrb[0].mxu0 %v6094
    %v6317 = vpop.f32.mrb[0].mxu0
    %v6318 = vadd.f32 %v6018, %v6317
    %v6319 = vpop.f32.mrb[0].mxu0
    %v6320 = vpop.f32.mrb[0].mxu0
    %v6321 = vadd.f32 %v6021, %v6320
    %v6322 = vpop.f32.mrb[0].mxu0
    %6323 = vdwg.mxu0
    %s6324 = scalar_lea.vmem %s2, 8
    %v6325 = vld [vmem:[%s6324] sm:$0xf]
    %v6327 = vsel %vm5722, %v5575, 0
    %v6330 = vsel %vm5722, %v5576, 0
    %v6333 = vsel %vm5722, %v5577, 0
    %v6336 = vsel %vm5722, %v5578, 0
    %v6339 = vsel %vm5722, %v5579, 0
    %v6342 = vsel %vm5722, %v5580, 0
    %v6345 = vsel %vm5722, %v5581, 0
    %v6348 = vsel %vm5722, %v5582, 0
    %v6351 = vsel %vm5722, %v5583, 0
    %v6354 = vsel %vm5722, %v5584, 0
    %v6357 = vsel %vm5722, %v5585, 0
    %v6360 = vsel %vm5722, %v5586, 0
    %v6363 = vsel %vm5722, %v5587, 0
    %v6366 = vsel %vm5722, %v5588, 0
    %v6369 = vsel %vm5722, %v5589, 0
    %v6372 = vsel %vm5722, %v5590, 0
    %v6375 = vsel %vm5722, %v5591, 0
    %v6378 = vsel %vm5722, %v5592, 0
    %v6381 = vsel %vm5722, %v5593, 0
    %v6384 = vsel %vm5722, %v5594, 0
    %v6387 = vsel %vm5722, %v5595, 0
    %v6390 = vsel %vm5722, %v5596, 0
    %v6393 = vsel %vm5722, %v5597, 0
    %v6396 = vsel %vm5722, %v5598, 0
    %v6399 = vsel %vm5795, %v6325, 0
    %6401 = vmatprep.subr.bf16.mxu0 0
    %6402 = vmatpush1.bf16.msra.mxu0 %v6399
    %6403 = vmatprep.subr.bf16.mxu0 0
    %6404 = vmatpush1.bf16.msra.mxu0 0
    %6405 = vmatprep.subr.bf16.mxu0 0
    %6406 = vmatpush1.bf16.msra.mxu0 0
    %6407 = vmatprep.subr.bf16.mxu0 0
    %6408 = vmatpush1.bf16.msra.mxu0 0
    %6409 = vmatprep.subr.bf16.mxu0 0
    %6410 = vmatpush1.bf16.msra.mxu0 0
    %6411 = vmatprep.subr.bf16.mxu0 0
    %6412 = vmatpush1.bf16.msra.mxu0 0
    %6413 = vmatprep.subr.bf16.mxu0 0
    %6414 = vmatpush1.bf16.msra.mxu0 0
    %6415 = vmatprep.subr.bf16.mxu0 0
    %6416 = vmatpush1.bf16.msra.mxu0 0
    %6417 = vmatprep.subr.bf16.mxu0 0
    %6418 = vmatpush1.bf16.msra.mxu0 0
    %6419 = vmatprep.subr.bf16.mxu0 0
    %6420 = vmatpush1.bf16.msra.mxu0 0
    %6421 = vmatprep.subr.bf16.mxu0 0
    %6422 = vmatpush1.bf16.msra.mxu0 0
    %6423 = vmatprep.subr.bf16.mxu0 0
    %6424 = vmatpush1.bf16.msra.mxu0 0
    %6425 = vmatprep.subr.bf16.mxu0 0
    %6426 = vmatpush1.bf16.msra.mxu0 0
    %6427 = vmatprep.subr.bf16.mxu0 0
    %6428 = vmatpush1.bf16.msra.mxu0 0
    %6429 = vmatprep.subr.bf16.mxu0 0
    %6430 = vmatpush1.bf16.msra.mxu0 0
    %6431 = vmatprep.subr.bf16.mxu0 0
    %6432 = vmatpush1.bf16.msra.mxu0 0
    %6433 = vmatprep.mubr.bf16.mxu0 0
    %6434 = vmatmul.mubr.bf16.gmra.mrb[0].mxu0 %v6327
    %v6435 = vpop.f32.mrb[0].mxu0
    %v6436 = vadd.f32 0.0, %v6435
    %v6437 = vpop.f32.mrb[0].mxu0
    %v6438 = vpop.f32.mrb[0].mxu0
    %v6439 = vadd.f32 0.0, %v6438
    %v6440 = vpop.f32.mrb[0].mxu0
    %6441 = vmatprep.mubr.bf16.mxu0 0
    %6442 = vmatmul.mubr.bf16.gmra.mrb[0].mxu0 %v6330
    %v6443 = vpop.f32.mrb[0].mxu0
    %v6444 = vadd.f32 0.0, %v6443
    %v6445 = vpop.f32.mrb[0].mxu0
    %v6446 = vpop.f32.mrb[0].mxu0
    %v6447 = vadd.f32 0.0, %v6446
    %v6448 = vpop.f32.mrb[0].mxu0
    %6449 = vmatprep.mubr.bf16.mxu0 0
    %6450 = vmatmul.mubr.bf16.gmra.mrb[0].mxu0 %v6333
    %v6451 = vpop.f32.mrb[0].mxu0
    %v6452 = vadd.f32 0.0, %v6451
    %v6453 = vpop.f32.mrb[0].mxu0
    %v6454 = vpop.f32.mrb[0].mxu0
    %v6455 = vadd.f32 0.0, %v6454
    %v6456 = vpop.f32.mrb[0].mxu0
    %6457 = vmatprep.mubr.bf16.mxu0 0
    %6458 = vmatmul.mubr.bf16.gmra.mrb[0].mxu0 %v6336
    %v6459 = vpop.f32.mrb[0].mxu0
    %v6460 = vadd.f32 0.0, %v6459
    %v6461 = vpop.f32.mrb[0].mxu0
    %v6462 = vpop.f32.mrb[0].mxu0
    %v6463 = vadd.f32 0.0, %v6462
    %v6464 = vpop.f32.mrb[0].mxu0
    %6465 = vmatprep.mubr.bf16.mxu0 0
    %6466 = vmatmul.mubr.bf16.gmra.mrb[0].mxu0 %v6339
    %v6467 = vpop.f32.mrb[0].mxu0
    %v6468 = vadd.f32 0.0, %v6467
    %v6469 = vpop.f32.mrb[0].mxu0
    %v6470 = vpop.f32.mrb[0].mxu0
    %v6471 = vadd.f32 0.0, %v6470
    %v6472 = vpop.f32.mrb[0].mxu0
    %6473 = vmatprep.mubr.bf16.mxu0 0
    %6474 = vmatmul.mubr.bf16.gmra.mrb[0].mxu0 %v6342
    %v6475 = vpop.f32.mrb[0].mxu0
    %v6476 = vadd.f32 0.0, %v6475
    %v6477 = vpop.f32.mrb[0].mxu0
    %v6478 = vpop.f32.mrb[0].mxu0
    %v6479 = vadd.f32 0.0, %v6478
    %v6480 = vpop.f32.mrb[0].mxu0
    %6481 = vmatprep.mubr.bf16.mxu0 0
    %6482 = vmatmul.mubr.bf16.gmra.mrb[0].mxu0 %v6345
    %v6483 = vpop.f32.mrb[0].mxu0
    %v6484 = vadd.f32 0.0, %v6483
    %v6485 = vpop.f32.mrb[0].mxu0
    %v6486 = vpop.f32.mrb[0].mxu0
    %v6487 = vadd.f32 0.0, %v6486
    %v6488 = vpop.f32.mrb[0].mxu0
    %6489 = vmatprep.mubr.bf16.mxu0 0
    %6490 = vmatmul.mubr.bf16.gmra.mrb[0].mxu0 %v6348
    %v6491 = vpop.f32.mrb[0].mxu0
    %v6492 = vadd.f32 0.0, %v6491
    %v6493 = vpop.f32.mrb[0].mxu0
    %v6494 = vpop.f32.mrb[0].mxu0
    %v6495 = vadd.f32 0.0, %v6494
    %v6496 = vpop.f32.mrb[0].mxu0
    %6497 = vmatprep.mubr.bf16.mxu0 0
    %6498 = vmatmul.mubr.bf16.gmra.mrb[0].mxu0 %v6351
    %v6499 = vpop.f32.mrb[0].mxu0
    %v6500 = vadd.f32 0.0, %v6499
    %v6501 = vpop.f32.mrb[0].mxu0
    %v6502 = vpop.f32.mrb[0].mxu0
    %v6503 = vadd.f32 0.0, %v6502
    %v6504 = vpop.f32.mrb[0].mxu0
    %6505 = vmatprep.mubr.bf16.mxu0 0
    %6506 = vmatmul.mubr.bf16.gmra.mrb[0].mxu0 %v6354
    %v6507 = vpop.f32.mrb[0].mxu0
    %v6508 = vadd.f32 0.0, %v6507
    %v6509 = vpop.f32.mrb[0].mxu0
    %v6510 = vpop.f32.mrb[0].mxu0
    %v6511 = vadd.f32 0.0, %v6510
    %v6512 = vpop.f32.mrb[0].mxu0
    %6513 = vmatprep.mubr.bf16.mxu0 0
    %6514 = vmatmul.mubr.bf16.gmra.mrb[0].mxu0 %v6357
    %v6515 = vpop.f32.mrb[0].mxu0
    %v6516 = vadd.f32 0.0, %v6515
    %v6517 = vpop.f32.mrb[0].mxu0
    %v6518 = vpop.f32.mrb[0].mxu0
    %v6519 = vadd.f32 0.0, %v6518
    %v6520 = vpop.f32.mrb[0].mxu0
    %6521 = vmatprep.mubr.bf16.mxu0 0
    %6522 = vmatmul.mubr.bf16.gmra.mrb[0].mxu0 %v6360
    %v6523 = vpop.f32.mrb[0].mxu0
    %v6524 = vadd.f32 0.0, %v6523
    %v6525 = vpop.f32.mrb[0].mxu0
    %v6526 = vpop.f32.mrb[0].mxu0
    %v6527 = vadd.f32 0.0, %v6526
    %v6528 = vpop.f32.mrb[0].mxu0
    %6529 = vmatprep.mubr.bf16.mxu0 0
    %6530 = vmatmul.mubr.bf16.gmra.mrb[0].mxu0 %v6363
    %v6531 = vpop.f32.mrb[0].mxu0
    %v6532 = vadd.f32 0.0, %v6531
    %v6533 = vpop.f32.mrb[0].mxu0
    %v6534 = vpop.f32.mrb[0].mxu0
    %v6535 = vadd.f32 0.0, %v6534
    %v6536 = vpop.f32.mrb[0].mxu0
    %6537 = vmatprep.mubr.bf16.mxu0 0
    %6538 = vmatmul.mubr.bf16.gmra.mrb[0].mxu0 %v6366
    %v6539 = vpop.f32.mrb[0].mxu0
    %v6540 = vadd.f32 0.0, %v6539
    %v6541 = vpop.f32.mrb[0].mxu0
    %v6542 = vpop.f32.mrb[0].mxu0
    %v6543 = vadd.f32 0.0, %v6542
    %v6544 = vpop.f32.mrb[0].mxu0
    %6545 = vmatprep.mubr.bf16.mxu0 0
    %6546 = vmatmul.mubr.bf16.gmra.mrb[0].mxu0 %v6369
    %v6547 = vpop.f32.mrb[0].mxu0
    %v6548 = vadd.f32 0.0, %v6547
    %v6549 = vpop.f32.mrb[0].mxu0
    %v6550 = vpop.f32.mrb[0].mxu0
    %v6551 = vadd.f32 0.0, %v6550
    %v6552 = vpop.f32.mrb[0].mxu0
    %6553 = vmatprep.mubr.bf16.mxu0 0
    %6554 = vmatmul.mubr.bf16.gmra.mrb[0].mxu0 %v6372
    %v6555 = vpop.f32.mrb[0].mxu0
    %v6556 = vadd.f32 0.0, %v6555
    %v6557 = vpop.f32.mrb[0].mxu0
    %v6558 = vpop.f32.mrb[0].mxu0
    %v6559 = vadd.f32 0.0, %v6558
    %v6560 = vpop.f32.mrb[0].mxu0
    %6561 = vmatprep.mubr.bf16.mxu0 0
    %6562 = vmatmul.mubr.bf16.gmra.mrb[0].mxu0 %v6375
    %v6563 = vpop.f32.mrb[0].mxu0
    %v6564 = vadd.f32 0.0, %v6563
    %v6565 = vpop.f32.mrb[0].mxu0
    %v6566 = vpop.f32.mrb[0].mxu0
    %v6567 = vadd.f32 0.0, %v6566
    %v6568 = vpop.f32.mrb[0].mxu0
    %6569 = vmatprep.mubr.bf16.mxu0 0
    %6570 = vmatmul.mubr.bf16.gmra.mrb[0].mxu0 %v6378
    %v6571 = vpop.f32.mrb[0].mxu0
    %v6572 = vadd.f32 0.0, %v6571
    %v6573 = vpop.f32.mrb[0].mxu0
    %v6574 = vpop.f32.mrb[0].mxu0
    %v6575 = vadd.f32 0.0, %v6574
    %v6576 = vpop.f32.mrb[0].mxu0
    %6577 = vmatprep.mubr.bf16.mxu0 0
    %6578 = vmatmul.mubr.bf16.gmra.mrb[0].mxu0 %v6381
    %v6579 = vpop.f32.mrb[0].mxu0
    %v6580 = vadd.f32 0.0, %v6579
    %v6581 = vpop.f32.mrb[0].mxu0
    %v6582 = vpop.f32.mrb[0].mxu0
    %v6583 = vadd.f32 0.0, %v6582
    %v6584 = vpop.f32.mrb[0].mxu0
    %6585 = vmatprep.mubr.bf16.mxu0 0
    %6586 = vmatmul.mubr.bf16.gmra.mrb[0].mxu0 %v6384
    %v6587 = vpop.f32.mrb[0].mxu0
    %v6588 = vadd.f32 0.0, %v6587
    %v6589 = vpop.f32.mrb[0].mxu0
    %v6590 = vpop.f32.mrb[0].mxu0
    %v6591 = vadd.f32 0.0, %v6590
    %v6592 = vpop.f32.mrb[0].mxu0
    %6593 = vmatprep.mubr.bf16.mxu0 0
    %6594 = vmatmul.mubr.bf16.gmra.mrb[0].mxu0 %v6387
    %v6595 = vpop.f32.mrb[0].mxu0
    %v6596 = vadd.f32 0.0, %v6595
    %v6597 = vpop.f32.mrb[0].mxu0
    %v6598 = vpop.f32.mrb[0].mxu0
    %v6599 = vadd.f32 0.0, %v6598
    %v6600 = vpop.f32.mrb[0].mxu0
    %6601 = vmatprep.mubr.bf16.mxu0 0
    %6602 = vmatmul.mubr.bf16.gmra.mrb[0].mxu0 %v6390
    %v6603 = vpop.f32.mrb[0].mxu0
    %v6604 = vadd.f32 0.0, %v6603
    %v6605 = vpop.f32.mrb[0].mxu0
    %v6606 = vpop.f32.mrb[0].mxu0
    %v6607 = vadd.f32 0.0, %v6606
    %v6608 = vpop.f32.mrb[0].mxu0
    %6609 = vmatprep.mubr.bf16.mxu0 0
    %6610 = vmatmul.mubr.bf16.gmra.mrb[0].mxu0 %v6393
    %v6611 = vpop.f32.mrb[0].mxu0
    %v6612 = vadd.f32 0.0, %v6611
    %v6613 = vpop.f32.mrb[0].mxu0
    %v6614 = vpop.f32.mrb[0].mxu0
    %v6615 = vadd.f32 0.0, %v6614
    %v6616 = vpop.f32.mrb[0].mxu0
    %6617 = vmatprep.mubr.bf16.mxu0 0
    %6618 = vmatmul.mubr.bf16.gmra.mrb[0].mxu0 %v6396
    %v6619 = vpop.f32.mrb[0].mxu0
    %v6620 = vadd.f32 0.0, %v6619
    %v6621 = vpop.f32.mrb[0].mxu0
    %v6622 = vpop.f32.mrb[0].mxu0
    %v6623 = vadd.f32 0.0, %v6622
    %v6624 = vpop.f32.mrb[0].mxu0
    %6625 = vdwg.mxu0
    %v6626 = vadd.f32 %v6134, %v6436
    %v6627 = vadd.f32 %v6137, %v6439
    %v6628 = vadd.f32 %v6142, %v6444
    %v6629 = vadd.f32 %v6145, %v6447
    %v6630 = vadd.f32 %v6150, %v6452
    %v6631 = vadd.f32 %v6153, %v6455
    %v6632 = vadd.f32 %v6158, %v6460
    %v6633 = vadd.f32 %v6161, %v6463
    %v6634 = vadd.f32 %v6166, %v6468
    %v6635 = vadd.f32 %v6169, %v6471
    %v6636 = vadd.f32 %v6174, %v6476
    %v6637 = vadd.f32 %v6177, %v6479
    %v6638 = vadd.f32 %v6182, %v6484
    %v6639 = vadd.f32 %v6185, %v6487
    %v6640 = vadd.f32 %v6190, %v6492
    %v6641 = vadd.f32 %v6193, %v6495
    %v6642 = vadd.f32 %v6198, %v6500
    %v6643 = vadd.f32 %v6201, %v6503
    %v6644 = vadd.f32 %v6206, %v6508
    %v6645 = vadd.f32 %v6209, %v6511
    %v6646 = vadd.f32 %v6214, %v6516
    %v6647 = vadd.f32 %v6217, %v6519
    %v6648 = vadd.f32 %v6222, %v6524
    %v6649 = vadd.f32 %v6225, %v6527
    %v6650 = vadd.f32 %v6230, %v6532
    %v6651 = vadd.f32 %v6233, %v6535
    %v6652 = vadd.f32 %v6238, %v6540
    %v6653 = vadd.f32 %v6241, %v6543
    %v6654 = vadd.f32 %v6246, %v6548
    %v6655 = vadd.f32 %v6249, %v6551
    %v6656 = vadd.f32 %v6254, %v6556
    %v6657 = vadd.f32 %v6257, %v6559
    %v6658 = vadd.f32 %v6262, %v6564
    %v6659 = vadd.f32 %v6265, %v6567
    %v6660 = vadd.f32 %v6270, %v6572
    %v6661 = vadd.f32 %v6273, %v6575
    %v6662 = vadd.f32 %v6278, %v6580
    %v6663 = vadd.f32 %v6281, %v6583
    %v6664 = vadd.f32 %v6286, %v6588
    %v6665 = vadd.f32 %v6289, %v6591
    %v6666 = vadd.f32 %v6294, %v6596
    %v6667 = vadd.f32 %v6297, %v6599
    %v6668 = vadd.f32 %v6302, %v6604
    %v6669 = vadd.f32 %v6305, %v6607
    %v6670 = vadd.f32 %v6310, %v6612
    %v6671 = vadd.f32 %v6313, %v6615
    %v6672 = vadd.f32 %v6318, %v6620
    %v6673 = vadd.f32 %v6321, %v6623
    %s6674 = scalar_lea.vmem %s2, 12
    %v6675 = vld [vmem:[%s6674] sm:$0xf]
    %v6677 = vsel %vm5722, %v5599, 0
    %v6680 = vsel %vm5722, %v5600, 0
    %v6683 = vsel %vm5722, %v5601, 0
    %v6686 = vsel %vm5722, %v5602, 0
    %v6689 = vsel %vm5722, %v5603, 0
    %v6692 = vsel %vm5722, %v5604, 0
    %v6695 = vsel %vm5722, %v5605, 0
    %v6698 = vsel %vm5722, %v5606, 0
    %v6701 = vsel %vm5722, %v5607, 0
    %v6704 = vsel %vm5722, %v5608, 0
    %v6707 = vsel %vm5722, %v5609, 0
    %v6710 = vsel %vm5722, %v5610, 0
    %v6713 = vsel %vm5722, %v5611, 0
    %v6716 = vsel %vm5722, %v5612, 0
    %v6719 = vsel %vm5722, %v5613, 0
    %v6722 = vsel %vm5722, %v5614, 0
    %v6725 = vsel %vm5722, %v5615, 0
    %v6728 = vsel %vm5722, %v5616, 0
    %v6731 = vsel %vm5722, %v5617, 0
    %v6734 = vsel %vm5722, %v5618, 0
    %v6737 = vsel %vm5722, %v5619, 0
    %v6740 = vsel %vm5722, %v5620, 0
    %v6743 = vsel %vm5722, %v5621, 0
    %v6746 = vsel %vm5722, %v5622, 0
    %v6749 = vsel %vm5795, %v6675, 0
    %6751 = vmatprep.subr.bf16.mxu0 0
    %6752 = vmatpush1.bf16.msra.mxu0 %v6749
    %6753 = vmatprep.subr.bf16.mxu0 0
    %6754 = vmatpush1.bf16.msra.mxu0 0
    %6755 = vmatprep.subr.bf16.mxu0 0
    %6756 = vmatpush1.bf16.msra.mxu0 0
    %6757 = vmatprep.subr.bf16.mxu0 0
    %6758 = vmatpush1.bf16.msra.mxu0 0
    %6759 = vmatprep.subr.bf16.mxu0 0
    %6760 = vmatpush1.bf16.msra.mxu0 0
    %6761 = vmatprep.subr.bf16.mxu0 0
    %6762 = vmatpush1.bf16.msra.mxu0 0
    %6763 = vmatprep.subr.bf16.mxu0 0
    %6764 = vmatpush1.bf16.msra.mxu0 0
    %6765 = vmatprep.subr.bf16.mxu0 0
    %6766 = vmatpush1.bf16.msra.mxu0 0
    %6767 = vmatprep.subr.bf16.mxu0 0
    %6768 = vmatpush1.bf16.msra.mxu0 0
    %6769 = vmatprep.subr.bf16.mxu0 0
    %6770 = vmatpush1.bf16.msra.mxu0 0
    %6771 = vmatprep.subr.bf16.mxu0 0
    %6772 = vmatpush1.bf16.msra.mxu0 0
    %6773 = vmatprep.subr.bf16.mxu0 0
    %6774 = vmatpush1.bf16.msra.mxu0 0
    %6775 = vmatprep.subr.bf16.mxu0 0
    %6776 = vmatpush1.bf16.msra.mxu0 0
    %6777 = vmatprep.subr.bf16.mxu0 0
    %6778 = vmatpush1.bf16.msra.mxu0 0
    %6779 = vmatprep.subr.bf16.mxu0 0
    %6780 = vmatpush1.bf16.msra.mxu0 0
    %6781 = vmatprep.subr.bf16.mxu0 0
    %6782 = vmatpush1.bf16.msra.mxu0 0
    %6783 = vmatprep.mubr.bf16.mxu0 0
    %6784 = vmatmul.mubr.bf16.gmra.mrb[0].mxu0 %v6677
    %v6785 = vpop.f32.mrb[0].mxu0
    %v6786 = vadd.f32 0.0, %v6785
    %v6787 = vpop.f32.mrb[0].mxu0
    %v6788 = vpop.f32.mrb[0].mxu0
    %v6789 = vadd.f32 0.0, %v6788
    %v6790 = vpop.f32.mrb[0].mxu0
    %6791 = vmatprep.mubr.bf16.mxu0 0
    %6792 = vmatmul.mubr.bf16.gmra.mrb[0].mxu0 %v6680
    %v6793 = vpop.f32.mrb[0].mxu0
    %v6794 = vadd.f32 0.0, %v6793
    %v6795 = vpop.f32.mrb[0].mxu0
    %v6796 = vpop.f32.mrb[0].mxu0
    %v6797 = vadd.f32 0.0, %v6796
    %v6798 = vpop.f32.mrb[0].mxu0
    %6799 = vmatprep.mubr.bf16.mxu0 0
    %6800 = vmatmul.mubr.bf16.gmra.mrb[0].mxu0 %v6683
    %v6801 = vpop.f32.mrb[0].mxu0
    %v6802 = vadd.f32 0.0, %v6801
    %v6803 = vpop.f32.mrb[0].mxu0
    %v6804 = vpop.f32.mrb[0].mxu0
    %v6805 = vadd.f32 0.0, %v6804
    %v6806 = vpop.f32.mrb[0].mxu0
    %6807 = vmatprep.mubr.bf16.mxu0 0
    %6808 = vmatmul.mubr.bf16.gmra.mrb[0].mxu0 %v6686
    %v6809 = vpop.f32.mrb[0].mxu0
    %v6810 = vadd.f32 0.0, %v6809
    %v6811 = vpop.f32.mrb[0].mxu0
    %v6812 = vpop.f32.mrb[0].mxu0
    %v6813 = vadd.f32 0.0, %v6812
    %v6814 = vpop.f32.mrb[0].mxu0
    %6815 = vmatprep.mubr.bf16.mxu0 0
    %6816 = vmatmul.mubr.bf16.gmra.mrb[0].mxu0 %v6689
    %v6817 = vpop.f32.mrb[0].mxu0
    %v6818 = vadd.f32 0.0, %v6817
    %v6819 = vpop.f32.mrb[0].mxu0
    %v6820 = vpop.f32.mrb[0].mxu0
    %v6821 = vadd.f32 0.0, %v6820
    %v6822 = vpop.f32.mrb[0].mxu0
    %6823 = vmatprep.mubr.bf16.mxu0 0
    %6824 = vmatmul.mubr.bf16.gmra.mrb[0].mxu0 %v6692
    %v6825 = vpop.f32.mrb[0].mxu0
    %v6826 = vadd.f32 0.0, %v6825
    %v6827 = vpop.f32.mrb[0].mxu0
    %v6828 = vpop.f32.mrb[0].mxu0
    %v6829 = vadd.f32 0.0, %v6828
    %v6830 = vpop.f32.mrb[0].mxu0
    %6831 = vmatprep.mubr.bf16.mxu0 0
    %6832 = vmatmul.mubr.bf16.gmra.mrb[0].mxu0 %v6695
    %v6833 = vpop.f32.mrb[0].mxu0
    %v6834 = vadd.f32 0.0, %v6833
    %v6835 = vpop.f32.mrb[0].mxu0
    %v6836 = vpop.f32.mrb[0].mxu0
    %v6837 = vadd.f32 0.0, %v6836
    %v6838 = vpop.f32.mrb[0].mxu0
    %6839 = vmatprep.mubr.bf16.mxu0 0
    %6840 = vmatmul.mubr.bf16.gmra.mrb[0].mxu0 %v6698
    %v6841 = vpop.f32.mrb[0].mxu0
    %v6842 = vadd.f32 0.0, %v6841
    %v6843 = vpop.f32.mrb[0].mxu0
    %v6844 = vpop.f32.mrb[0].mxu0
    %v6845 = vadd.f32 0.0, %v6844
    %v6846 = vpop.f32.mrb[0].mxu0
    %6847 = vmatprep.mubr.bf16.mxu0 0
    %6848 = vmatmul.mubr.bf16.gmra.mrb[0].mxu0 %v6701
    %v6849 = vpop.f32.mrb[0].mxu0
    %v6850 = vadd.f32 0.0, %v6849
    %v6851 = vpop.f32.mrb[0].mxu0
    %v6852 = vpop.f32.mrb[0].mxu0
    %v6853 = vadd.f32 0.0, %v6852
    %v6854 = vpop.f32.mrb[0].mxu0
    %6855 = vmatprep.mubr.bf16.mxu0 0
    %6856 = vmatmul.mubr.bf16.gmra.mrb[0].mxu0 %v6704
    %v6857 = vpop.f32.mrb[0].mxu0
    %v6858 = vadd.f32 0.0, %v6857
    %v6859 = vpop.f32.mrb[0].mxu0
    %v6860 = vpop.f32.mrb[0].mxu0
    %v6861 = vadd.f32 0.0, %v6860
    %v6862 = vpop.f32.mrb[0].mxu0
    %6863 = vmatprep.mubr.bf16.mxu0 0
    %6864 = vmatmul.mubr.bf16.gmra.mrb[0].mxu0 %v6707
    %v6865 = vpop.f32.mrb[0].mxu0
    %v6866 = vadd.f32 0.0, %v6865
    %v6867 = vpop.f32.mrb[0].mxu0
    %v6868 = vpop.f32.mrb[0].mxu0
    %v6869 = vadd.f32 0.0, %v6868
    %v6870 = vpop.f32.mrb[0].mxu0
    %6871 = vmatprep.mubr.bf16.mxu0 0
    %6872 = vmatmul.mubr.bf16.gmra.mrb[0].mxu0 %v6710
    %v6873 = vpop.f32.mrb[0].mxu0
    %v6874 = vadd.f32 0.0, %v6873
    %v6875 = vpop.f32.mrb[0].mxu0
    %v6876 = vpop.f32.mrb[0].mxu0
    %v6877 = vadd.f32 0.0, %v6876
    %v6878 = vpop.f32.mrb[0].mxu0
    %6879 = vmatprep.mubr.bf16.mxu0 0
    %6880 = vmatmul.mubr.bf16.gmra.mrb[0].mxu0 %v6713
    %v6881 = vpop.f32.mrb[0].mxu0
    %v6882 = vadd.f32 0.0, %v6881
    %v6883 = vpop.f32.mrb[0].mxu0
    %v6884 = vpop.f32.mrb[0].mxu0
    %v6885 = vadd.f32 0.0, %v6884
    %v6886 = vpop.f32.mrb[0].mxu0
    %6887 = vmatprep.mubr.bf16.mxu0 0
    %6888 = vmatmul.mubr.bf16.gmra.mrb[0].mxu0 %v6716
    %v6889 = vpop.f32.mrb[0].mxu0
    %v6890 = vadd.f32 0.0, %v6889
    %v6891 = vpop.f32.mrb[0].mxu0
    %v6892 = vpop.f32.mrb[0].mxu0
    %v6893 = vadd.f32 0.0, %v6892
    %v6894 = vpop.f32.mrb[0].mxu0
    %6895 = vmatprep.mubr.bf16.mxu0 0
    %6896 = vmatmul.mubr.bf16.gmra.mrb[0].mxu0 %v6719
    %v6897 = vpop.f32.mrb[0].mxu0
    %v6898 = vadd.f32 0.0, %v6897
    %v6899 = vpop.f32.mrb[0].mxu0
    %v6900 = vpop.f32.mrb[0].mxu0
    %v6901 = vadd.f32 0.0, %v6900
    %v6902 = vpop.f32.mrb[0].mxu0
    %6903 = vmatprep.mubr.bf16.mxu0 0
    %6904 = vmatmul.mubr.bf16.gmra.mrb[0].mxu0 %v6722
    %v6905 = vpop.f32.mrb[0].mxu0
    %v6906 = vadd.f32 0.0, %v6905
    %v6907 = vpop.f32.mrb[0].mxu0
    %v6908 = vpop.f32.mrb[0].mxu0
    %v6909 = vadd.f32 0.0, %v6908
    %v6910 = vpop.f32.mrb[0].mxu0
    %6911 = vmatprep.mubr.bf16.mxu0 0
    %6912 = vmatmul.mubr.bf16.gmra.mrb[0].mxu0 %v6725
    %v6913 = vpop.f32.mrb[0].mxu0
    %v6914 = vadd.f32 0.0, %v6913
    %v6915 = vpop.f32.mrb[0].mxu0
    %v6916 = vpop.f32.mrb[0].mxu0
    %v6917 = vadd.f32 0.0, %v6916
    %v6918 = vpop.f32.mrb[0].mxu0
    %6919 = vmatprep.mubr.bf16.mxu0 0
    %6920 = vmatmul.mubr.bf16.gmra.mrb[0].mxu0 %v6728
    %v6921 = vpop.f32.mrb[0].mxu0
    %v6922 = vadd.f32 0.0, %v6921
    %v6923 = vpop.f32.mrb[0].mxu0
    %v6924 = vpop.f32.mrb[0].mxu0
    %v6925 = vadd.f32 0.0, %v6924
    %v6926 = vpop.f32.mrb[0].mxu0
    %6927 = vmatprep.mubr.bf16.mxu0 0
    %6928 = vmatmul.mubr.bf16.gmra.mrb[0].mxu0 %v6731
    %v6929 = vpop.f32.mrb[0].mxu0
    %v6930 = vadd.f32 0.0, %v6929
    %v6931 = vpop.f32.mrb[0].mxu0
    %v6932 = vpop.f32.mrb[0].mxu0
    %v6933 = vadd.f32 0.0, %v6932
    %v6934 = vpop.f32.mrb[0].mxu0
    %6935 = vmatprep.mubr.bf16.mxu0 0
    %6936 = vmatmul.mubr.bf16.gmra.mrb[0].mxu0 %v6734
    %v6937 = vpop.f32.mrb[0].mxu0
    %v6938 = vadd.f32 0.0, %v6937
    %v6939 = vpop.f32.mrb[0].mxu0
    %v6940 = vpop.f32.mrb[0].mxu0
    %v6941 = vadd.f32 0.0, %v6940
    %v6942 = vpop.f32.mrb[0].mxu0
    %6943 = vmatprep.mubr.bf16.mxu0 0
    %6944 = vmatmul.mubr.bf16.gmra.mrb[0].mxu0 %v6737
    %v6945 = vpop.f32.mrb[0].mxu0
    %v6946 = vadd.f32 0.0, %v6945
    %v6947 = vpop.f32.mrb[0].mxu0
    %v6948 = vpop.f32.mrb[0].mxu0
    %v6949 = vadd.f32 0.0, %v6948
    %v6950 = vpop.f32.mrb[0].mxu0
    %6951 = vmatprep.mubr.bf16.mxu0 0
    %6952 = vmatmul.mubr.bf16.gmra.mrb[0].mxu0 %v6740
    %v6953 = vpop.f32.mrb[0].mxu0
    %v6954 = vadd.f32 0.0, %v6953
    %v6955 = vpop.f32.mrb[0].mxu0
    %v6956 = vpop.f32.mrb[0].mxu0
    %v6957 = vadd.f32 0.0, %v6956
    %v6958 = vpop.f32.mrb[0].mxu0
    %6959 = vmatprep.mubr.bf16.mxu0 0
    %6960 = vmatmul.mubr.bf16.gmra.mrb[0].mxu0 %v6743
    %v6961 = vpop.f32.mrb[0].mxu0
    %v6962 = vadd.f32 0.0, %v6961
    %v6963 = vpop.f32.mrb[0].mxu0
    %v6964 = vpop.f32.mrb[0].mxu0
    %v6965 = vadd.f32 0.0, %v6964
    %v6966 = vpop.f32.mrb[0].mxu0
    %6967 = vmatprep.mubr.bf16.mxu0 0
    %6968 = vmatmul.mubr.bf16.gmra.mrb[0].mxu0 %v6746
    %v6969 = vpop.f32.mrb[0].mxu0
    %v6970 = vadd.f32 0.0, %v6969
    %v6971 = vpop.f32.mrb[0].mxu0
    %v6972 = vpop.f32.mrb[0].mxu0
    %v6973 = vadd.f32 0.0, %v6972
    %v6974 = vpop.f32.mrb[0].mxu0
    %6975 = vdwg.mxu0
    %v6976 = vadd.f32 %v6626, %v6786
    %v6977 = vadd.f32 %v6627, %v6789
    %v6978 = vadd.f32 %v6628, %v6794
    %v6979 = vadd.f32 %v6629, %v6797
    %v6980 = vadd.f32 %v6630, %v6802
    %v6981 = vadd.f32 %v6631, %v6805
    %v6982 = vadd.f32 %v6632, %v6810
    %v6983 = vadd.f32 %v6633, %v6813
    %v6984 = vadd.f32 %v6634, %v6818
    %v6985 = vadd.f32 %v6635, %v6821
    %v6986 = vadd.f32 %v6636, %v6826
    %v6987 = vadd.f32 %v6637, %v6829
    %v6988 = vadd.f32 %v6638, %v6834
    %v6989 = vadd.f32 %v6639, %v6837
    %v6990 = vadd.f32 %v6640, %v6842
    %v6991 = vadd.f32 %v6641, %v6845
    %v6992 = vadd.f32 %v6642, %v6850
    %v6993 = vadd.f32 %v6643, %v6853
    %v6994 = vadd.f32 %v6644, %v6858
    %v6995 = vadd.f32 %v6645, %v6861
    %v6996 = vadd.f32 %v6646, %v6866
    %v6997 = vadd.f32 %v6647, %v6869
    %v6998 = vadd.f32 %v6648, %v6874
    %v6999 = vadd.f32 %v6649, %v6877
    %v7000 = vadd.f32 %v6650, %v6882
    %v7001 = vadd.f32 %v6651, %v6885
    %v7002 = vadd.f32 %v6652, %v6890
    %v7003 = vadd.f32 %v6653, %v6893
    %v7004 = vadd.f32 %v6654, %v6898
    %v7005 = vadd.f32 %v6655, %v6901
    %v7006 = vadd.f32 %v6656, %v6906
    %v7007 = vadd.f32 %v6657, %v6909
    %v7008 = vadd.f32 %v6658, %v6914
    %v7009 = vadd.f32 %v6659, %v6917
    %v7010 = vadd.f32 %v6660, %v6922
    %v7011 = vadd.f32 %v6661, %v6925
    %v7012 = vadd.f32 %v6662, %v6930
    %v7013 = vadd.f32 %v6663, %v6933
    %v7014 = vadd.f32 %v6664, %v6938
    %v7015 = vadd.f32 %v6665, %v6941
    %v7016 = vadd.f32 %v6666, %v6946
    %v7017 = vadd.f32 %v6667, %v6949
    %v7018 = vadd.f32 %v6668, %v6954
    %v7019 = vadd.f32 %v6669, %v6957
    %v7020 = vadd.f32 %v6670, %v6962
    %v7021 = vadd.f32 %v6671, %v6965
    %v7022 = vadd.f32 %v6672, %v6970
    %v7023 = vadd.f32 %v6673, %v6973
    %s7024 = scalar_lea.vmem %s2, 16
    %v7025 = vld [vmem:[%s7024] sm:$0xf]
    %v7027 = vsel %vm5722, %v5623, 0
    %v7030 = vsel %vm5722, %v5624, 0
    %v7033 = vsel %vm5722, %v5625, 0
    %v7036 = vsel %vm5722, %v5626, 0
    %v7039 = vsel %vm5722, %v5627, 0
    %v7042 = vsel %vm5722, %v5628, 0
    %v7045 = vsel %vm5722, %v5629, 0
    %v7048 = vsel %vm5722, %v5630, 0
    %v7051 = vsel %vm5722, %v5631, 0
    %v7054 = vsel %vm5722, %v5632, 0
    %v7057 = vsel %vm5722, %v5633, 0
    %v7060 = vsel %vm5722, %v5634, 0
    %v7063 = vsel %vm5722, %v5635, 0
    %v7066 = vsel %vm5722, %v5636, 0
    %v7069 = vsel %vm5722, %v5637, 0
    %v7072 = vsel %vm5722, %v5638, 0
    %v7075 = vsel %vm5722, %v5639, 0
    %v7078 = vsel %vm5722, %v5640, 0
    %v7081 = vsel %vm5722, %v5641, 0
    %v7084 = vsel %vm5722, %v5642, 0
    %v7087 = vsel %vm5722, %v5643, 0
    %v7090 = vsel %vm5722, %v5644, 0
    %v7093 = vsel %vm5722, %v5645, 0
    %v7096 = vsel %vm5722, %v5646, 0
    %v7099 = vsel %vm5795, %v7025, 0
    %7101 = vmatprep.subr.bf16.mxu0 0
    %7102 = vmatpush1.bf16.msra.mxu0 %v7099
    %7103 = vmatprep.subr.bf16.mxu0 0
    %7104 = vmatpush1.bf16.msra.mxu0 0
    %7105 = vmatprep.subr.bf16.mxu0 0
    %7106 = vmatpush1.bf16.msra.mxu0 0
    %7107 = vmatprep.subr.bf16.mxu0 0
    %7108 = vmatpush1.bf16.msra.mxu0 0
    %7109 = vmatprep.subr.bf16.mxu0 0
    %7110 = vmatpush1.bf16.msra.mxu0 0
    %7111 = vmatprep.subr.bf16.mxu0 0
    %7112 = vmatpush1.bf16.msra.mxu0 0
    %7113 = vmatprep.subr.bf16.mxu0 0
    %7114 = vmatpush1.bf16.msra.mxu0 0
    %7115 = vmatprep.subr.bf16.mxu0 0
    %7116 = vmatpush1.bf16.msra.mxu0 0
    %7117 = vmatprep.subr.bf16.mxu0 0
    %7118 = vmatpush1.bf16.msra.mxu0 0
    %7119 = vmatprep.subr.bf16.mxu0 0
    %7120 = vmatpush1.bf16.msra.mxu0 0
    %7121 = vmatprep.subr.bf16.mxu0 0
    %7122 = vmatpush1.bf16.msra.mxu0 0
    %7123 = vmatprep.subr.bf16.mxu0 0
    %7124 = vmatpush1.bf16.msra.mxu0 0
    %7125 = vmatprep.subr.bf16.mxu0 0
    %7126 = vmatpush1.bf16.msra.mxu0 0
    %7127 = vmatprep.subr.bf16.mxu0 0
    %7128 = vmatpush1.bf16.msra.mxu0 0
    %7129 = vmatprep.subr.bf16.mxu0 0
    %7130 = vmatpush1.bf16.msra.mxu0 0
    %7131 = vmatprep.subr.bf16.mxu0 0
    %7132 = vmatpush1.bf16.msra.mxu0 0
    %7133 = vmatprep.mubr.bf16.mxu0 0
    %7134 = vmatmul.mubr.bf16.gmra.mrb[0].mxu0 %v7027
    %v7135 = vpop.f32.mrb[0].mxu0
    %v7136 = vadd.f32 0.0, %v7135
    %v7137 = vpop.f32.mrb[0].mxu0
    %v7138 = vpop.f32.mrb[0].mxu0
    %v7139 = vadd.f32 0.0, %v7138
    %v7140 = vpop.f32.mrb[0].mxu0
    %7141 = vmatprep.mubr.bf16.mxu0 0
    %7142 = vmatmul.mubr.bf16.gmra.mrb[0].mxu0 %v7030
    %v7143 = vpop.f32.mrb[0].mxu0
    %v7144 = vadd.f32 0.0, %v7143
    %v7145 = vpop.f32.mrb[0].mxu0
    %v7146 = vpop.f32.mrb[0].mxu0
    %v7147 = vadd.f32 0.0, %v7146
    %v7148 = vpop.f32.mrb[0].mxu0
    %7149 = vmatprep.mubr.bf16.mxu0 0
    %7150 = vmatmul.mubr.bf16.gmra.mrb[0].mxu0 %v7033
    %v7151 = vpop.f32.mrb[0].mxu0
    %v7152 = vadd.f32 0.0, %v7151
    %v7153 = vpop.f32.mrb[0].mxu0
    %v7154 = vpop.f32.mrb[0].mxu0
    %v7155 = vadd.f32 0.0, %v7154
    %v7156 = vpop.f32.mrb[0].mxu0
    %7157 = vmatprep.mubr.bf16.mxu0 0
    %7158 = vmatmul.mubr.bf16.gmra.mrb[0].mxu0 %v7036
    %v7159 = vpop.f32.mrb[0].mxu0
    %v7160 = vadd.f32 0.0, %v7159
    %v7161 = vpop.f32.mrb[0].mxu0
    %v7162 = vpop.f32.mrb[0].mxu0
    %v7163 = vadd.f32 0.0, %v7162
    %v7164 = vpop.f32.mrb[0].mxu0
    %7165 = vmatprep.mubr.bf16.mxu0 0
    %7166 = vmatmul.mubr.bf16.gmra.mrb[0].mxu0 %v7039
    %v7167 = vpop.f32.mrb[0].mxu0
    %v7168 = vadd.f32 0.0, %v7167
    %v7169 = vpop.f32.mrb[0].mxu0
    %v7170 = vpop.f32.mrb[0].mxu0
    %v7171 = vadd.f32 0.0, %v7170
    %v7172 = vpop.f32.mrb[0].mxu0
    %7173 = vmatprep.mubr.bf16.mxu0 0
    %7174 = vmatmul.mubr.bf16.gmra.mrb[0].mxu0 %v7042
    %v7175 = vpop.f32.mrb[0].mxu0
    %v7176 = vadd.f32 0.0, %v7175
    %v7177 = vpop.f32.mrb[0].mxu0
    %v7178 = vpop.f32.mrb[0].mxu0
    %v7179 = vadd.f32 0.0, %v7178
    %v7180 = vpop.f32.mrb[0].mxu0
    %7181 = vmatprep.mubr.bf16.mxu0 0
    %7182 = vmatmul.mubr.bf16.gmra.mrb[0].mxu0 %v7045
    %v7183 = vpop.f32.mrb[0].mxu0
    %v7184 = vadd.f32 0.0, %v7183
    %v7185 = vpop.f32.mrb[0].mxu0
    %v7186 = vpop.f32.mrb[0].mxu0
    %v7187 = vadd.f32 0.0, %v7186
    %v7188 = vpop.f32.mrb[0].mxu0
    %7189 = vmatprep.mubr.bf16.mxu0 0
    %7190 = vmatmul.mubr.bf16.gmra.mrb[0].mxu0 %v7048
    %v7191 = vpop.f32.mrb[0].mxu0
    %v7192 = vadd.f32 0.0, %v7191
    %v7193 = vpop.f32.mrb[0].mxu0
    %v7194 = vpop.f32.mrb[0].mxu0
    %v7195 = vadd.f32 0.0, %v7194
    %v7196 = vpop.f32.mrb[0].mxu0
    %7197 = vmatprep.mubr.bf16.mxu0 0
    %7198 = vmatmul.mubr.bf16.gmra.mrb[0].mxu0 %v7051
    %v7199 = vpop.f32.mrb[0].mxu0
    %v7200 = vadd.f32 0.0, %v7199
    %v7201 = vpop.f32.mrb[0].mxu0
    %v7202 = vpop.f32.mrb[0].mxu0
    %v7203 = vadd.f32 0.0, %v7202
    %v7204 = vpop.f32.mrb[0].mxu0
    %7205 = vmatprep.mubr.bf16.mxu0 0
    %7206 = vmatmul.mubr.bf16.gmra.mrb[0].mxu0 %v7054
    %v7207 = vpop.f32.mrb[0].mxu0
    %v7208 = vadd.f32 0.0, %v7207
    %v7209 = vpop.f32.mrb[0].mxu0
    %v7210 = vpop.f32.mrb[0].mxu0
    %v7211 = vadd.f32 0.0, %v7210
    %v7212 = vpop.f32.mrb[0].mxu0
    %7213 = vmatprep.mubr.bf16.mxu0 0
    %7214 = vmatmul.mubr.bf16.gmra.mrb[0].mxu0 %v7057
    %v7215 = vpop.f32.mrb[0].mxu0
    %v7216 = vadd.f32 0.0, %v7215
    %v7217 = vpop.f32.mrb[0].mxu0
    %v7218 = vpop.f32.mrb[0].mxu0
    %v7219 = vadd.f32 0.0, %v7218
    %v7220 = vpop.f32.mrb[0].mxu0
    %7221 = vmatprep.mubr.bf16.mxu0 0
    %7222 = vmatmul.mubr.bf16.gmra.mrb[0].mxu0 %v7060
    %v7223 = vpop.f32.mrb[0].mxu0
    %v7224 = vadd.f32 0.0, %v7223
    %v7225 = vpop.f32.mrb[0].mxu0
    %v7226 = vpop.f32.mrb[0].mxu0
    %v7227 = vadd.f32 0.0, %v7226
    %v7228 = vpop.f32.mrb[0].mxu0
    %7229 = vmatprep.mubr.bf16.mxu0 0
    %7230 = vmatmul.mubr.bf16.gmra.mrb[0].mxu0 %v7063
    %v7231 = vpop.f32.mrb[0].mxu0
    %v7232 = vadd.f32 0.0, %v7231
    %v7233 = vpop.f32.mrb[0].mxu0
    %v7234 = vpop.f32.mrb[0].mxu0
    %v7235 = vadd.f32 0.0, %v7234
    %v7236 = vpop.f32.mrb[0].mxu0
    %7237 = vmatprep.mubr.bf16.mxu0 0
    %7238 = vmatmul.mubr.bf16.gmra.mrb[0].mxu0 %v7066
    %v7239 = vpop.f32.mrb[0].mxu0
    %v7240 = vadd.f32 0.0, %v7239
    %v7241 = vpop.f32.mrb[0].mxu0
    %v7242 = vpop.f32.mrb[0].mxu0
    %v7243 = vadd.f32 0.0, %v7242
    %v7244 = vpop.f32.mrb[0].mxu0
    %7245 = vmatprep.mubr.bf16.mxu0 0
    %7246 = vmatmul.mubr.bf16.gmra.mrb[0].mxu0 %v7069
    %v7247 = vpop.f32.mrb[0].mxu0
    %v7248 = vadd.f32 0.0, %v7247
    %v7249 = vpop.f32.mrb[0].mxu0
    %v7250 = vpop.f32.mrb[0].mxu0
    %v7251 = vadd.f32 0.0, %v7250
    %v7252 = vpop.f32.mrb[0].mxu0
    %7253 = vmatprep.mubr.bf16.mxu0 0
    %7254 = vmatmul.mubr.bf16.gmra.mrb[0].mxu0 %v7072
    %v7255 = vpop.f32.mrb[0].mxu0
    %v7256 = vadd.f32 0.0, %v7255
    %v7257 = vpop.f32.mrb[0].mxu0
    %v7258 = vpop.f32.mrb[0].mxu0
    %v7259 = vadd.f32 0.0, %v7258
    %v7260 = vpop.f32.mrb[0].mxu0
    %7261 = vmatprep.mubr.bf16.mxu0 0
    %7262 = vmatmul.mubr.bf16.gmra.mrb[0].mxu0 %v7075
    %v7263 = vpop.f32.mrb[0].mxu0
    %v7264 = vadd.f32 0.0, %v7263
    %v7265 = vpop.f32.mrb[0].mxu0
    %v7266 = vpop.f32.mrb[0].mxu0
    %v7267 = vadd.f32 0.0, %v7266
    %v7268 = vpop.f32.mrb[0].mxu0
    %7269 = vmatprep.mubr.bf16.mxu0 0
    %7270 = vmatmul.mubr.bf16.gmra.mrb[0].mxu0 %v7078
    %v7271 = vpop.f32.mrb[0].mxu0
    %v7272 = vadd.f32 0.0, %v7271
    %v7273 = vpop.f32.mrb[0].mxu0
    %v7274 = vpop.f32.mrb[0].mxu0
    %v7275 = vadd.f32 0.0, %v7274
    %v7276 = vpop.f32.mrb[0].mxu0
    %7277 = vmatprep.mubr.bf16.mxu0 0
    %7278 = vmatmul.mubr.bf16.gmra.mrb[0].mxu0 %v7081
    %v7279 = vpop.f32.mrb[0].mxu0
    %v7280 = vadd.f32 0.0, %v7279
    %v7281 = vpop.f32.mrb[0].mxu0
    %v7282 = vpop.f32.mrb[0].mxu0
    %v7283 = vadd.f32 0.0, %v7282
    %v7284 = vpop.f32.mrb[0].mxu0
    %7285 = vmatprep.mubr.bf16.mxu0 0
    %7286 = vmatmul.mubr.bf16.gmra.mrb[0].mxu0 %v7084
    %v7287 = vpop.f32.mrb[0].mxu0
    %v7288 = vadd.f32 0.0, %v7287
    %v7289 = vpop.f32.mrb[0].mxu0
    %v7290 = vpop.f32.mrb[0].mxu0
    %v7291 = vadd.f32 0.0, %v7290
    %v7292 = vpop.f32.mrb[0].mxu0
    %7293 = vmatprep.mubr.bf16.mxu0 0
    %7294 = vmatmul.mubr.bf16.gmra.mrb[0].mxu0 %v7087
    %v7295 = vpop.f32.mrb[0].mxu0
    %v7296 = vadd.f32 0.0, %v7295
    %v7297 = vpop.f32.mrb[0].mxu0
    %v7298 = vpop.f32.mrb[0].mxu0
    %v7299 = vadd.f32 0.0, %v7298
    %v7300 = vpop.f32.mrb[0].mxu0
    %7301 = vmatprep.mubr.bf16.mxu0 0
    %7302 = vmatmul.mubr.bf16.gmra.mrb[0].mxu0 %v7090
    %v7303 = vpop.f32.mrb[0].mxu0
    %v7304 = vadd.f32 0.0, %v7303
    %v7305 = vpop.f32.mrb[0].mxu0
    %v7306 = vpop.f32.mrb[0].mxu0
    %v7307 = vadd.f32 0.0, %v7306
    %v7308 = vpop.f32.mrb[0].mxu0
    %7309 = vmatprep.mubr.bf16.mxu0 0
    %7310 = vmatmul.mubr.bf16.gmra.mrb[0].mxu0 %v7093
    %v7311 = vpop.f32.mrb[0].mxu0
    %v7312 = vadd.f32 0.0, %v7311
    %v7313 = vpop.f32.mrb[0].mxu0
    %v7314 = vpop.f32.mrb[0].mxu0
    %v7315 = vadd.f32 0.0, %v7314
    %v7316 = vpop.f32.mrb[0].mxu0
    %7317 = vmatprep.mubr.bf16.mxu0 0
    %7318 = vmatmul.mubr.bf16.gmra.mrb[0].mxu0 %v7096
    %v7319 = vpop.f32.mrb[0].mxu0
    %v7320 = vadd.f32 0.0, %v7319
    %v7321 = vpop.f32.mrb[0].mxu0
    %v7322 = vpop.f32.mrb[0].mxu0
    %v7323 = vadd.f32 0.0, %v7322
    %v7324 = vpop.f32.mrb[0].mxu0
    %7325 = vdwg.mxu0
    %v7326 = vadd.f32 %v6976, %v7136
    %v7327 = vadd.f32 %v6977, %v7139
    %v7328 = vadd.f32 %v6978, %v7144
    %v7329 = vadd.f32 %v6979, %v7147
    %v7330 = vadd.f32 %v6980, %v7152
    %v7331 = vadd.f32 %v6981, %v7155
    %v7332 = vadd.f32 %v6982, %v7160
    %v7333 = vadd.f32 %v6983, %v7163
    %v7334 = vadd.f32 %v6984, %v7168
    %v7335 = vadd.f32 %v6985, %v7171
    %v7336 = vadd.f32 %v6986, %v7176
    %v7337 = vadd.f32 %v6987, %v7179
    %v7338 = vadd.f32 %v6988, %v7184
    %v7339 = vadd.f32 %v6989, %v7187
    %v7340 = vadd.f32 %v6990, %v7192
    %v7341 = vadd.f32 %v6991, %v7195
    %v7342 = vadd.f32 %v6992, %v7200
    %v7343 = vadd.f32 %v6993, %v7203
    %v7344 = vadd.f32 %v6994, %v7208
    %v7345 = vadd.f32 %v6995, %v7211
    %v7346 = vadd.f32 %v6996, %v7216
    %v7347 = vadd.f32 %v6997, %v7219
    %v7348 = vadd.f32 %v6998, %v7224
    %v7349 = vadd.f32 %v6999, %v7227
    %v7350 = vadd.f32 %v7000, %v7232
    %v7351 = vadd.f32 %v7001, %v7235
    %v7352 = vadd.f32 %v7002, %v7240
    %v7353 = vadd.f32 %v7003, %v7243
    %v7354 = vadd.f32 %v7004, %v7248
    %v7355 = vadd.f32 %v7005, %v7251
    %v7356 = vadd.f32 %v7006, %v7256
    %v7357 = vadd.f32 %v7007, %v7259
    %v7358 = vadd.f32 %v7008, %v7264
    %v7359 = vadd.f32 %v7009, %v7267
    %v7360 = vadd.f32 %v7010, %v7272
    %v7361 = vadd.f32 %v7011, %v7275
    %v7362 = vadd.f32 %v7012, %v7280
    %v7363 = vadd.f32 %v7013, %v7283
    %v7364 = vadd.f32 %v7014, %v7288
    %v7365 = vadd.f32 %v7015, %v7291
    %v7366 = vadd.f32 %v7016, %v7296
    %v7367 = vadd.f32 %v7017, %v7299
    %v7368 = vadd.f32 %v7018, %v7304
    %v7369 = vadd.f32 %v7019, %v7307
    %v7370 = vadd.f32 %v7020, %v7312
    %v7371 = vadd.f32 %v7021, %v7315
    %v7372 = vadd.f32 %v7022, %v7320
    %v7373 = vadd.f32 %v7023, %v7323
    %s7374 = scalar_lea.vmem %s2, 20
    %v7375 = vld [vmem:[%s7374] sm:$0xf]
    %v7377 = vsel %vm5722, %v5647, 0
    %v7380 = vsel %vm5722, %v5648, 0
    %v7383 = vsel %vm5722, %v5649, 0
    %v7386 = vsel %vm5722, %v5650, 0
    %v7389 = vsel %vm5722, %v5651, 0
    %v7392 = vsel %vm5722, %v5652, 0
    %v7395 = vsel %vm5722, %v5653, 0
    %v7398 = vsel %vm5722, %v5654, 0
    %v7401 = vsel %vm5722, %v5655, 0
    %v7404 = vsel %vm5722, %v5656, 0
    %v7407 = vsel %vm5722, %v5657, 0
    %v7410 = vsel %vm5722, %v5658, 0
    %v7413 = vsel %vm5722, %v5659, 0
    %v7416 = vsel %vm5722, %v5660, 0
    %v7419 = vsel %vm5722, %v5661, 0
    %v7422 = vsel %vm5722, %v5662, 0
    %v7425 = vsel %vm5722, %v5663, 0
    %v7428 = vsel %vm5722, %v5664, 0
    %v7431 = vsel %vm5722, %v5665, 0
    %v7434 = vsel %vm5722, %v5666, 0
    %v7437 = vsel %vm5722, %v5667, 0
    %v7440 = vsel %vm5722, %v5668, 0
    %v7443 = vsel %vm5722, %v5669, 0
    %v7446 = vsel %vm5722, %v5670, 0
    %v7449 = vsel %vm5795, %v7375, 0
    %7451 = vmatprep.subr.bf16.mxu0 0
    %7452 = vmatpush1.bf16.msra.mxu0 %v7449
    %7453 = vmatprep.subr.bf16.mxu0 0
    %7454 = vmatpush1.bf16.msra.mxu0 0
    %7455 = vmatprep.subr.bf16.mxu0 0
    %7456 = vmatpush1.bf16.msra.mxu0 0
    %7457 = vmatprep.subr.bf16.mxu0 0
    %7458 = vmatpush1.bf16.msra.mxu0 0
    %7459 = vmatprep.subr.bf16.mxu0 0
    %7460 = vmatpush1.bf16.msra.mxu0 0
    %7461 = vmatprep.subr.bf16.mxu0 0
    %7462 = vmatpush1.bf16.msra.mxu0 0
    %7463 = vmatprep.subr.bf16.mxu0 0
    %7464 = vmatpush1.bf16.msra.mxu0 0
    %7465 = vmatprep.subr.bf16.mxu0 0
    %7466 = vmatpush1.bf16.msra.mxu0 0
    %7467 = vmatprep.subr.bf16.mxu0 0
    %7468 = vmatpush1.bf16.msra.mxu0 0
    %7469 = vmatprep.subr.bf16.mxu0 0
    %7470 = vmatpush1.bf16.msra.mxu0 0
    %7471 = vmatprep.subr.bf16.mxu0 0
    %7472 = vmatpush1.bf16.msra.mxu0 0
    %7473 = vmatprep.subr.bf16.mxu0 0
    %7474 = vmatpush1.bf16.msra.mxu0 0
    %7475 = vmatprep.subr.bf16.mxu0 0
    %7476 = vmatpush1.bf16.msra.mxu0 0
    %7477 = vmatprep.subr.bf16.mxu0 0
    %7478 = vmatpush1.bf16.msra.mxu0 0
    %7479 = vmatprep.subr.bf16.mxu0 0
    %7480 = vmatpush1.bf16.msra.mxu0 0
    %7481 = vmatprep.subr.bf16.mxu0 0
    %7482 = vmatpush1.bf16.msra.mxu0 0
    %7483 = vmatprep.mubr.bf16.mxu0 0
    %7484 = vmatmul.mubr.bf16.gmra.mrb[0].mxu0 %v7377
    %v7485 = vpop.f32.mrb[0].mxu0
    %v7486 = vadd.f32 0.0, %v7485
    %v7487 = vpop.f32.mrb[0].mxu0
    %v7488 = vpop.f32.mrb[0].mxu0
    %v7489 = vadd.f32 0.0, %v7488
    %v7490 = vpop.f32.mrb[0].mxu0
    %7491 = vmatprep.mubr.bf16.mxu0 0
    %7492 = vmatmul.mubr.bf16.gmra.mrb[0].mxu0 %v7380
    %v7493 = vpop.f32.mrb[0].mxu0
    %v7494 = vadd.f32 0.0, %v7493
    %v7495 = vpop.f32.mrb[0].mxu0
    %v7496 = vpop.f32.mrb[0].mxu0
    %v7497 = vadd.f32 0.0, %v7496
    %v7498 = vpop.f32.mrb[0].mxu0
    %7499 = vmatprep.mubr.bf16.mxu0 0
    %7500 = vmatmul.mubr.bf16.gmra.mrb[0].mxu0 %v7383
    %v7501 = vpop.f32.mrb[0].mxu0
    %v7502 = vadd.f32 0.0, %v7501
    %v7503 = vpop.f32.mrb[0].mxu0
    %v7504 = vpop.f32.mrb[0].mxu0
    %v7505 = vadd.f32 0.0, %v7504
    %v7506 = vpop.f32.mrb[0].mxu0
    %7507 = vmatprep.mubr.bf16.mxu0 0
    %7508 = vmatmul.mubr.bf16.gmra.mrb[0].mxu0 %v7386
    %v7509 = vpop.f32.mrb[0].mxu0
    %v7510 = vadd.f32 0.0, %v7509
    %v7511 = vpop.f32.mrb[0].mxu0
    %v7512 = vpop.f32.mrb[0].mxu0
    %v7513 = vadd.f32 0.0, %v7512
    %v7514 = vpop.f32.mrb[0].mxu0
    %7515 = vmatprep.mubr.bf16.mxu0 0
    %7516 = vmatmul.mubr.bf16.gmra.mrb[0].mxu0 %v7389
    %v7517 = vpop.f32.mrb[0].mxu0
    %v7518 = vadd.f32 0.0, %v7517
    %v7519 = vpop.f32.mrb[0].mxu0
    %v7520 = vpop.f32.mrb[0].mxu0
    %v7521 = vadd.f32 0.0, %v7520
    %v7522 = vpop.f32.mrb[0].mxu0
    %7523 = vmatprep.mubr.bf16.mxu0 0
    %7524 = vmatmul.mubr.bf16.gmra.mrb[0].mxu0 %v7392
    %v7525 = vpop.f32.mrb[0].mxu0
    %v7526 = vadd.f32 0.0, %v7525
    %v7527 = vpop.f32.mrb[0].mxu0
    %v7528 = vpop.f32.mrb[0].mxu0
    %v7529 = vadd.f32 0.0, %v7528
    %v7530 = vpop.f32.mrb[0].mxu0
    %7531 = vmatprep.mubr.bf16.mxu0 0
    %7532 = vmatmul.mubr.bf16.gmra.mrb[0].mxu0 %v7395
    %v7533 = vpop.f32.mrb[0].mxu0
    %v7534 = vadd.f32 0.0, %v7533
    %v7535 = vpop.f32.mrb[0].mxu0
    %v7536 = vpop.f32.mrb[0].mxu0
    %v7537 = vadd.f32 0.0, %v7536
    %v7538 = vpop.f32.mrb[0].mxu0
    %7539 = vmatprep.mubr.bf16.mxu0 0
    %7540 = vmatmul.mubr.bf16.gmra.mrb[0].mxu0 %v7398
    %v7541 = vpop.f32.mrb[0].mxu0
    %v7542 = vadd.f32 0.0, %v7541
    %v7543 = vpop.f32.mrb[0].mxu0
    %v7544 = vpop.f32.mrb[0].mxu0
    %v7545 = vadd.f32 0.0, %v7544
    %v7546 = vpop.f32.mrb[0].mxu0
    %7547 = vmatprep.mubr.bf16.mxu0 0
    %7548 = vmatmul.mubr.bf16.gmra.mrb[0].mxu0 %v7401
    %v7549 = vpop.f32.mrb[0].mxu0
    %v7550 = vadd.f32 0.0, %v7549
    %v7551 = vpop.f32.mrb[0].mxu0
    %v7552 = vpop.f32.mrb[0].mxu0
    %v7553 = vadd.f32 0.0, %v7552
    %v7554 = vpop.f32.mrb[0].mxu0
    %7555 = vmatprep.mubr.bf16.mxu0 0
    %7556 = vmatmul.mubr.bf16.gmra.mrb[0].mxu0 %v7404
    %v7557 = vpop.f32.mrb[0].mxu0
    %v7558 = vadd.f32 0.0, %v7557
    %v7559 = vpop.f32.mrb[0].mxu0
    %v7560 = vpop.f32.mrb[0].mxu0
    %v7561 = vadd.f32 0.0, %v7560
    %v7562 = vpop.f32.mrb[0].mxu0
    %7563 = vmatprep.mubr.bf16.mxu0 0
    %7564 = vmatmul.mubr.bf16.gmra.mrb[0].mxu0 %v7407
    %v7565 = vpop.f32.mrb[0].mxu0
    %v7566 = vadd.f32 0.0, %v7565
    %v7567 = vpop.f32.mrb[0].mxu0
    %v7568 = vpop.f32.mrb[0].mxu0
    %v7569 = vadd.f32 0.0, %v7568
    %v7570 = vpop.f32.mrb[0].mxu0
    %7571 = vmatprep.mubr.bf16.mxu0 0
    %7572 = vmatmul.mubr.bf16.gmra.mrb[0].mxu0 %v7410
    %v7573 = vpop.f32.mrb[0].mxu0
    %v7574 = vadd.f32 0.0, %v7573
    %v7575 = vpop.f32.mrb[0].mxu0
    %v7576 = vpop.f32.mrb[0].mxu0
    %v7577 = vadd.f32 0.0, %v7576
    %v7578 = vpop.f32.mrb[0].mxu0
    %7579 = vmatprep.mubr.bf16.mxu0 0
    %7580 = vmatmul.mubr.bf16.gmra.mrb[0].mxu0 %v7413
    %v7581 = vpop.f32.mrb[0].mxu0
    %v7582 = vadd.f32 0.0, %v7581
    %v7583 = vpop.f32.mrb[0].mxu0
    %v7584 = vpop.f32.mrb[0].mxu0
    %v7585 = vadd.f32 0.0, %v7584
    %v7586 = vpop.f32.mrb[0].mxu0
    %7587 = vmatprep.mubr.bf16.mxu0 0
    %7588 = vmatmul.mubr.bf16.gmra.mrb[0].mxu0 %v7416
    %v7589 = vpop.f32.mrb[0].mxu0
    %v7590 = vadd.f32 0.0, %v7589
    %v7591 = vpop.f32.mrb[0].mxu0
    %v7592 = vpop.f32.mrb[0].mxu0
    %v7593 = vadd.f32 0.0, %v7592
    %v7594 = vpop.f32.mrb[0].mxu0
    %7595 = vmatprep.mubr.bf16.mxu0 0
    %7596 = vmatmul.mubr.bf16.gmra.mrb[0].mxu0 %v7419
    %v7597 = vpop.f32.mrb[0].mxu0
    %v7598 = vadd.f32 0.0, %v7597
    %v7599 = vpop.f32.mrb[0].mxu0
    %v7600 = vpop.f32.mrb[0].mxu0
    %v7601 = vadd.f32 0.0, %v7600
    %v7602 = vpop.f32.mrb[0].mxu0
    %7603 = vmatprep.mubr.bf16.mxu0 0
    %7604 = vmatmul.mubr.bf16.gmra.mrb[0].mxu0 %v7422
    %v7605 = vpop.f32.mrb[0].mxu0
    %v7606 = vadd.f32 0.0, %v7605
    %v7607 = vpop.f32.mrb[0].mxu0
    %v7608 = vpop.f32.mrb[0].mxu0
    %v7609 = vadd.f32 0.0, %v7608
    %v7610 = vpop.f32.mrb[0].mxu0
    %7611 = vmatprep.mubr.bf16.mxu0 0
    %7612 = vmatmul.mubr.bf16.gmra.mrb[0].mxu0 %v7425
    %v7613 = vpop.f32.mrb[0].mxu0
    %v7614 = vadd.f32 0.0, %v7613
    %v7615 = vpop.f32.mrb[0].mxu0
    %v7616 = vpop.f32.mrb[0].mxu0
    %v7617 = vadd.f32 0.0, %v7616
    %v7618 = vpop.f32.mrb[0].mxu0
    %7619 = vmatprep.mubr.bf16.mxu0 0
    %7620 = vmatmul.mubr.bf16.gmra.mrb[0].mxu0 %v7428
    %v7621 = vpop.f32.mrb[0].mxu0
    %v7622 = vadd.f32 0.0, %v7621
    %v7623 = vpop.f32.mrb[0].mxu0
    %v7624 = vpop.f32.mrb[0].mxu0
    %v7625 = vadd.f32 0.0, %v7624
    %v7626 = vpop.f32.mrb[0].mxu0
    %7627 = vmatprep.mubr.bf16.mxu0 0
    %7628 = vmatmul.mubr.bf16.gmra.mrb[0].mxu0 %v7431
    %v7629 = vpop.f32.mrb[0].mxu0
    %v7630 = vadd.f32 0.0, %v7629
    %v7631 = vpop.f32.mrb[0].mxu0
    %v7632 = vpop.f32.mrb[0].mxu0
    %v7633 = vadd.f32 0.0, %v7632
    %v7634 = vpop.f32.mrb[0].mxu0
    %7635 = vmatprep.mubr.bf16.mxu0 0
    %7636 = vmatmul.mubr.bf16.gmra.mrb[0].mxu0 %v7434
    %v7637 = vpop.f32.mrb[0].mxu0
    %v7638 = vadd.f32 0.0, %v7637
    %v7639 = vpop.f32.mrb[0].mxu0
    %v7640 = vpop.f32.mrb[0].mxu0
    %v7641 = vadd.f32 0.0, %v7640
    %v7642 = vpop.f32.mrb[0].mxu0
    %7643 = vmatprep.mubr.bf16.mxu0 0
    %7644 = vmatmul.mubr.bf16.gmra.mrb[0].mxu0 %v7437
    %v7645 = vpop.f32.mrb[0].mxu0
    %v7646 = vadd.f32 0.0, %v7645
    %v7647 = vpop.f32.mrb[0].mxu0
    %v7648 = vpop.f32.mrb[0].mxu0
    %v7649 = vadd.f32 0.0, %v7648
    %v7650 = vpop.f32.mrb[0].mxu0
    %7651 = vmatprep.mubr.bf16.mxu0 0
    %7652 = vmatmul.mubr.bf16.gmra.mrb[0].mxu0 %v7440
    %v7653 = vpop.f32.mrb[0].mxu0
    %v7654 = vadd.f32 0.0, %v7653
    %v7655 = vpop.f32.mrb[0].mxu0
    %v7656 = vpop.f32.mrb[0].mxu0
    %v7657 = vadd.f32 0.0, %v7656
    %v7658 = vpop.f32.mrb[0].mxu0
    %7659 = vmatprep.mubr.bf16.mxu0 0
    %7660 = vmatmul.mubr.bf16.gmra.mrb[0].mxu0 %v7443
    %v7661 = vpop.f32.mrb[0].mxu0
    %v7662 = vadd.f32 0.0, %v7661
    %v7663 = vpop.f32.mrb[0].mxu0
    %v7664 = vpop.f32.mrb[0].mxu0
    %v7665 = vadd.f32 0.0, %v7664
    %v7666 = vpop.f32.mrb[0].mxu0
    %7667 = vmatprep.mubr.bf16.mxu0 0
    %7668 = vmatmul.mubr.bf16.gmra.mrb[0].mxu0 %v7446
    %v7669 = vpop.f32.mrb[0].mxu0
    %v7670 = vadd.f32 0.0, %v7669
    %v7671 = vpop.f32.mrb[0].mxu0
    %v7672 = vpop.f32.mrb[0].mxu0
    %v7673 = vadd.f32 0.0, %v7672
    %v7674 = vpop.f32.mrb[0].mxu0
    %7675 = vdwg.mxu0
    %v7676 = vadd.f32 %v7326, %v7486
    %v7677 = vadd.f32 %v7327, %v7489
    %v7678 = vadd.f32 %v7328, %v7494
    %v7679 = vadd.f32 %v7329, %v7497
    %v7680 = vadd.f32 %v7330, %v7502
    %v7681 = vadd.f32 %v7331, %v7505
    %v7682 = vadd.f32 %v7332, %v7510
    %v7683 = vadd.f32 %v7333, %v7513
    %v7684 = vadd.f32 %v7334, %v7518
    %v7685 = vadd.f32 %v7335, %v7521
    %v7686 = vadd.f32 %v7336, %v7526
    %v7687 = vadd.f32 %v7337, %v7529
    %v7688 = vadd.f32 %v7338, %v7534
    %v7689 = vadd.f32 %v7339, %v7537
    %v7690 = vadd.f32 %v7340, %v7542
    %v7691 = vadd.f32 %v7341, %v7545
    %v7692 = vadd.f32 %v7342, %v7550
    %v7693 = vadd.f32 %v7343, %v7553
    %v7694 = vadd.f32 %v7344, %v7558
    %v7695 = vadd.f32 %v7345, %v7561
    %v7696 = vadd.f32 %v7346, %v7566
    %v7697 = vadd.f32 %v7347, %v7569
    %v7698 = vadd.f32 %v7348, %v7574
    %v7699 = vadd.f32 %v7349, %v7577
    %v7700 = vadd.f32 %v7350, %v7582
    %v7701 = vadd.f32 %v7351, %v7585
    %v7702 = vadd.f32 %v7352, %v7590
    %v7703 = vadd.f32 %v7353, %v7593
    %v7704 = vadd.f32 %v7354, %v7598
    %v7705 = vadd.f32 %v7355, %v7601
    %v7706 = vadd.f32 %v7356, %v7606
    %v7707 = vadd.f32 %v7357, %v7609
    %v7708 = vadd.f32 %v7358, %v7614
    %v7709 = vadd.f32 %v7359, %v7617
    %v7710 = vadd.f32 %v7360, %v7622
    %v7711 = vadd.f32 %v7361, %v7625
    %v7712 = vadd.f32 %v7362, %v7630
    %v7713 = vadd.f32 %v7363, %v7633
    %v7714 = vadd.f32 %v7364, %v7638
    %v7715 = vadd.f32 %v7365, %v7641
    %v7716 = vadd.f32 %v7366, %v7646
    %v7717 = vadd.f32 %v7367, %v7649
    %v7718 = vadd.f32 %v7368, %v7654
    %v7719 = vadd.f32 %v7369, %v7657
    %v7720 = vadd.f32 %v7370, %v7662
    %v7721 = vadd.f32 %v7371, %v7665
    %v7722 = vadd.f32 %v7372, %v7670
    %v7723 = vadd.f32 %v7373, %v7673
    %s7724 = scalar_lea.vmem %s2, 24
    %v7725 = vld [vmem:[%s7724] sm:$0xf]
    %v7727 = vsel %vm5722, %v5671, 0
    %v7730 = vsel %vm5722, %v5672, 0
    %v7733 = vsel %vm5722, %v5673, 0
    %v7736 = vsel %vm5722, %v5674, 0
    %v7739 = vsel %vm5722, %v5675, 0
    %v7742 = vsel %vm5722, %v5676, 0
    %v7745 = vsel %vm5722, %v5677, 0
    %v7748 = vsel %vm5722, %v5678, 0
    %v7751 = vsel %vm5722, %v5679, 0
    %v7754 = vsel %vm5722, %v5680, 0
    %v7757 = vsel %vm5722, %v5681, 0
    %v7760 = vsel %vm5722, %v5682, 0
    %v7763 = vsel %vm5722, %v5683, 0
    %v7766 = vsel %vm5722, %v5684, 0
    %v7769 = vsel %vm5722, %v5685, 0
    %v7772 = vsel %vm5722, %v5686, 0
    %v7775 = vsel %vm5722, %v5687, 0
    %v7778 = vsel %vm5722, %v5688, 0
    %v7781 = vsel %vm5722, %v5689, 0
    %v7784 = vsel %vm5722, %v5690, 0
    %v7787 = vsel %vm5722, %v5691, 0
    %v7790 = vsel %vm5722, %v5692, 0
    %v7793 = vsel %vm5722, %v5693, 0
    %v7796 = vsel %vm5722, %v5694, 0
    %v7799 = vsel %vm5795, %v7725, 0
    %7801 = vmatprep.subr.bf16.mxu0 0
    %7802 = vmatpush1.bf16.msra.mxu0 %v7799
    %7803 = vmatprep.subr.bf16.mxu0 0
    %7804 = vmatpush1.bf16.msra.mxu0 0
    %7805 = vmatprep.subr.bf16.mxu0 0
    %7806 = vmatpush1.bf16.msra.mxu0 0
    %7807 = vmatprep.subr.bf16.mxu0 0
    %7808 = vmatpush1.bf16.msra.mxu0 0
    %7809 = vmatprep.subr.bf16.mxu0 0
    %7810 = vmatpush1.bf16.msra.mxu0 0
    %7811 = vmatprep.subr.bf16.mxu0 0
    %7812 = vmatpush1.bf16.msra.mxu0 0
    %7813 = vmatprep.subr.bf16.mxu0 0
    %7814 = vmatpush1.bf16.msra.mxu0 0
    %7815 = vmatprep.subr.bf16.mxu0 0
    %7816 = vmatpush1.bf16.msra.mxu0 0
    %7817 = vmatprep.subr.bf16.mxu0 0
    %7818 = vmatpush1.bf16.msra.mxu0 0
    %7819 = vmatprep.subr.bf16.mxu0 0
    %7820 = vmatpush1.bf16.msra.mxu0 0
    %7821 = vmatprep.subr.bf16.mxu0 0
    %7822 = vmatpush1.bf16.msra.mxu0 0
    %7823 = vmatprep.subr.bf16.mxu0 0
    %7824 = vmatpush1.bf16.msra.mxu0 0
    %7825 = vmatprep.subr.bf16.mxu0 0
    %7826 = vmatpush1.bf16.msra.mxu0 0
    %7827 = vmatprep.subr.bf16.mxu0 0
    %7828 = vmatpush1.bf16.msra.mxu0 0
    %7829 = vmatprep.subr.bf16.mxu0 0
    %7830 = vmatpush1.bf16.msra.mxu0 0
    %7831 = vmatprep.subr.bf16.mxu0 0
    %7832 = vmatpush1.bf16.msra.mxu0 0
    %7833 = vmatprep.mubr.bf16.mxu0 0
    %7834 = vmatmul.mubr.bf16.gmra.mrb[0].mxu0 %v7727
    %v7835 = vpop.f32.mrb[0].mxu0
    %v7836 = vadd.f32 0.0, %v7835
    %v7837 = vpop.f32.mrb[0].mxu0
    %v7838 = vpop.f32.mrb[0].mxu0
    %v7839 = vadd.f32 0.0, %v7838
    %v7840 = vpop.f32.mrb[0].mxu0
    %7841 = vmatprep.mubr.bf16.mxu0 0
    %7842 = vmatmul.mubr.bf16.gmra.mrb[0].mxu0 %v7730
    %v7843 = vpop.f32.mrb[0].mxu0
    %v7844 = vadd.f32 0.0, %v7843
    %v7845 = vpop.f32.mrb[0].mxu0
    %v7846 = vpop.f32.mrb[0].mxu0
    %v7847 = vadd.f32 0.0, %v7846
    %v7848 = vpop.f32.mrb[0].mxu0
    %7849 = vmatprep.mubr.bf16.mxu0 0
    %7850 = vmatmul.mubr.bf16.gmra.mrb[0].mxu0 %v7733
    %v7851 = vpop.f32.mrb[0].mxu0
    %v7852 = vadd.f32 0.0, %v7851
    %v7853 = vpop.f32.mrb[0].mxu0
    %v7854 = vpop.f32.mrb[0].mxu0
    %v7855 = vadd.f32 0.0, %v7854
    %v7856 = vpop.f32.mrb[0].mxu0
    %7857 = vmatprep.mubr.bf16.mxu0 0
    %7858 = vmatmul.mubr.bf16.gmra.mrb[0].mxu0 %v7736
    %v7859 = vpop.f32.mrb[0].mxu0
    %v7860 = vadd.f32 0.0, %v7859
    %v7861 = vpop.f32.mrb[0].mxu0
    %v7862 = vpop.f32.mrb[0].mxu0
    %v7863 = vadd.f32 0.0, %v7862
    %v7864 = vpop.f32.mrb[0].mxu0
    %7865 = vmatprep.mubr.bf16.mxu0 0
    %7866 = vmatmul.mubr.bf16.gmra.mrb[0].mxu0 %v7739
    %v7867 = vpop.f32.mrb[0].mxu0
    %v7868 = vadd.f32 0.0, %v7867
    %v7869 = vpop.f32.mrb[0].mxu0
    %v7870 = vpop.f32.mrb[0].mxu0
    %v7871 = vadd.f32 0.0, %v7870
    %v7872 = vpop.f32.mrb[0].mxu0
    %7873 = vmatprep.mubr.bf16.mxu0 0
    %7874 = vmatmul.mubr.bf16.gmra.mrb[0].mxu0 %v7742
    %v7875 = vpop.f32.mrb[0].mxu0
    %v7876 = vadd.f32 0.0, %v7875
    %v7877 = vpop.f32.mrb[0].mxu0
    %v7878 = vpop.f32.mrb[0].mxu0
    %v7879 = vadd.f32 0.0, %v7878
    %v7880 = vpop.f32.mrb[0].mxu0
    %7881 = vmatprep.mubr.bf16.mxu0 0
    %7882 = vmatmul.mubr.bf16.gmra.mrb[0].mxu0 %v7745
    %v7883 = vpop.f32.mrb[0].mxu0
    %v7884 = vadd.f32 0.0, %v7883
    %v7885 = vpop.f32.mrb[0].mxu0
    %v7886 = vpop.f32.mrb[0].mxu0
    %v7887 = vadd.f32 0.0, %v7886
    %v7888 = vpop.f32.mrb[0].mxu0
    %7889 = vmatprep.mubr.bf16.mxu0 0
    %7890 = vmatmul.mubr.bf16.gmra.mrb[0].mxu0 %v7748
    %v7891 = vpop.f32.mrb[0].mxu0
    %v7892 = vadd.f32 0.0, %v7891
    %v7893 = vpop.f32.mrb[0].mxu0
    %v7894 = vpop.f32.mrb[0].mxu0
    %v7895 = vadd.f32 0.0, %v7894
    %v7896 = vpop.f32.mrb[0].mxu0
    %7897 = vmatprep.mubr.bf16.mxu0 0
    %7898 = vmatmul.mubr.bf16.gmra.mrb[0].mxu0 %v7751
    %v7899 = vpop.f32.mrb[0].mxu0
    %v7900 = vadd.f32 0.0, %v7899
    %v7901 = vpop.f32.mrb[0].mxu0
    %v7902 = vpop.f32.mrb[0].mxu0
    %v7903 = vadd.f32 0.0, %v7902
    %v7904 = vpop.f32.mrb[0].mxu0
    %7905 = vmatprep.mubr.bf16.mxu0 0
    %7906 = vmatmul.mubr.bf16.gmra.mrb[0].mxu0 %v7754
    %v7907 = vpop.f32.mrb[0].mxu0
    %v7908 = vadd.f32 0.0, %v7907
    %v7909 = vpop.f32.mrb[0].mxu0
    %v7910 = vpop.f32.mrb[0].mxu0
    %v7911 = vadd.f32 0.0, %v7910
    %v7912 = vpop.f32.mrb[0].mxu0
    %7913 = vmatprep.mubr.bf16.mxu0 0
    %7914 = vmatmul.mubr.bf16.gmra.mrb[0].mxu0 %v7757
    %v7915 = vpop.f32.mrb[0].mxu0
    %v7916 = vadd.f32 0.0, %v7915
    %v7917 = vpop.f32.mrb[0].mxu0
    %v7918 = vpop.f32.mrb[0].mxu0
    %v7919 = vadd.f32 0.0, %v7918
    %v7920 = vpop.f32.mrb[0].mxu0
    %7921 = vmatprep.mubr.bf16.mxu0 0
    %7922 = vmatmul.mubr.bf16.gmra.mrb[0].mxu0 %v7760
    %v7923 = vpop.f32.mrb[0].mxu0
    %v7924 = vadd.f32 0.0, %v7923
    %v7925 = vpop.f32.mrb[0].mxu0
    %v7926 = vpop.f32.mrb[0].mxu0
    %v7927 = vadd.f32 0.0, %v7926
    %v7928 = vpop.f32.mrb[0].mxu0
    %7929 = vmatprep.mubr.bf16.mxu0 0
    %7930 = vmatmul.mubr.bf16.gmra.mrb[0].mxu0 %v7763
    %v7931 = vpop.f32.mrb[0].mxu0
    %v7932 = vadd.f32 0.0, %v7931
    %v7933 = vpop.f32.mrb[0].mxu0
    %v7934 = vpop.f32.mrb[0].mxu0
    %v7935 = vadd.f32 0.0, %v7934
    %v7936 = vpop.f32.mrb[0].mxu0
    %7937 = vmatprep.mubr.bf16.mxu0 0
    %7938 = vmatmul.mubr.bf16.gmra.mrb[0].mxu0 %v7766
    %v7939 = vpop.f32.mrb[0].mxu0
    %v7940 = vadd.f32 0.0, %v7939
    %v7941 = vpop.f32.mrb[0].mxu0
    %v7942 = vpop.f32.mrb[0].mxu0
    %v7943 = vadd.f32 0.0, %v7942
    %v7944 = vpop.f32.mrb[0].mxu0
    %7945 = vmatprep.mubr.bf16.mxu0 0
    %7946 = vmatmul.mubr.bf16.gmra.mrb[0].mxu0 %v7769
    %v7947 = vpop.f32.mrb[0].mxu0
    %v7948 = vadd.f32 0.0, %v7947
    %v7949 = vpop.f32.mrb[0].mxu0
    %v7950 = vpop.f32.mrb[0].mxu0
    %v7951 = vadd.f32 0.0, %v7950
    %v7952 = vpop.f32.mrb[0].mxu0
    %7953 = vmatprep.mubr.bf16.mxu0 0
    %7954 = vmatmul.mubr.bf16.gmra.mrb[0].mxu0 %v7772
    %v7955 = vpop.f32.mrb[0].mxu0
    %v7956 = vadd.f32 0.0, %v7955
    %v7957 = vpop.f32.mrb[0].mxu0
    %v7958 = vpop.f32.mrb[0].mxu0
    %v7959 = vadd.f32 0.0, %v7958
    %v7960 = vpop.f32.mrb[0].mxu0
    %7961 = vmatprep.mubr.bf16.mxu0 0
    %7962 = vmatmul.mubr.bf16.gmra.mrb[0].mxu0 %v7775
    %v7963 = vpop.f32.mrb[0].mxu0
    %v7964 = vadd.f32 0.0, %v7963
    %v7965 = vpop.f32.mrb[0].mxu0
    %v7966 = vpop.f32.mrb[0].mxu0
    %v7967 = vadd.f32 0.0, %v7966
    %v7968 = vpop.f32.mrb[0].mxu0
    %7969 = vmatprep.mubr.bf16.mxu0 0
    %7970 = vmatmul.mubr.bf16.gmra.mrb[0].mxu0 %v7778
    %v7971 = vpop.f32.mrb[0].mxu0
    %v7972 = vadd.f32 0.0, %v7971
    %v7973 = vpop.f32.mrb[0].mxu0
    %v7974 = vpop.f32.mrb[0].mxu0
    %v7975 = vadd.f32 0.0, %v7974
    %v7976 = vpop.f32.mrb[0].mxu0
    %7977 = vmatprep.mubr.bf16.mxu0 0
    %7978 = vmatmul.mubr.bf16.gmra.mrb[0].mxu0 %v7781
    %v7979 = vpop.f32.mrb[0].mxu0
    %v7980 = vadd.f32 0.0, %v7979
    %v7981 = vpop.f32.mrb[0].mxu0
    %v7982 = vpop.f32.mrb[0].mxu0
    %v7983 = vadd.f32 0.0, %v7982
    %v7984 = vpop.f32.mrb[0].mxu0
    %7985 = vmatprep.mubr.bf16.mxu0 0
    %7986 = vmatmul.mubr.bf16.gmra.mrb[0].mxu0 %v7784
    %v7987 = vpop.f32.mrb[0].mxu0
    %v7988 = vadd.f32 0.0, %v7987
    %v7989 = vpop.f32.mrb[0].mxu0
    %v7990 = vpop.f32.mrb[0].mxu0
    %v7991 = vadd.f32 0.0, %v7990
    %v7992 = vpop.f32.mrb[0].mxu0
    %7993 = vmatprep.mubr.bf16.mxu0 0
    %7994 = vmatmul.mubr.bf16.gmra.mrb[0].mxu0 %v7787
    %v7995 = vpop.f32.mrb[0].mxu0
    %v7996 = vadd.f32 0.0, %v7995
    %v7997 = vpop.f32.mrb[0].mxu0
    %v7998 = vpop.f32.mrb[0].mxu0
    %v7999 = vadd.f32 0.0, %v7998
    %v8000 = vpop.f32.mrb[0].mxu0
    %8001 = vmatprep.mubr.bf16.mxu0 0
    %8002 = vmatmul.mubr.bf16.gmra.mrb[0].mxu0 %v7790
    %v8003 = vpop.f32.mrb[0].mxu0
    %v8004 = vadd.f32 0.0, %v8003
    %v8005 = vpop.f32.mrb[0].mxu0
    %v8006 = vpop.f32.mrb[0].mxu0
    %v8007 = vadd.f32 0.0, %v8006
    %v8008 = vpop.f32.mrb[0].mxu0
    %8009 = vmatprep.mubr.bf16.mxu0 0
    %8010 = vmatmul.mubr.bf16.gmra.mrb[0].mxu0 %v7793
    %v8011 = vpop.f32.mrb[0].mxu0
    %v8012 = vadd.f32 0.0, %v8011
    %v8013 = vpop.f32.mrb[0].mxu0
    %v8014 = vpop.f32.mrb[0].mxu0
    %v8015 = vadd.f32 0.0, %v8014
    %v8016 = vpop.f32.mrb[0].mxu0
    %8017 = vmatprep.mubr.bf16.mxu0 0
    %8018 = vmatmul.mubr.bf16.gmra.mrb[0].mxu0 %v7796
    %v8019 = vpop.f32.mrb[0].mxu0
    %v8020 = vadd.f32 0.0, %v8019
    %v8021 = vpop.f32.mrb[0].mxu0
    %v8022 = vpop.f32.mrb[0].mxu0
    %v8023 = vadd.f32 0.0, %v8022
    %v8024 = vpop.f32.mrb[0].mxu0
    %8025 = vdwg.mxu0
    %v8026 = vadd.f32 %v7676, %v7836
    %v8027 = vadd.f32 %v7677, %v7839
    %v8028 = vadd.f32 %v7678, %v7844
    %v8029 = vadd.f32 %v7679, %v7847
    %v8030 = vadd.f32 %v7680, %v7852
    %v8031 = vadd.f32 %v7681, %v7855
    %v8032 = vadd.f32 %v7682, %v7860
    %v8033 = vadd.f32 %v7683, %v7863
    %v8034 = vadd.f32 %v7684, %v7868
    %v8035 = vadd.f32 %v7685, %v7871
    %v8036 = vadd.f32 %v7686, %v7876
    %v8037 = vadd.f32 %v7687, %v7879
    %v8038 = vadd.f32 %v7688, %v7884
    %v8039 = vadd.f32 %v7689, %v7887
    %v8040 = vadd.f32 %v7690, %v7892
    %v8041 = vadd.f32 %v7691, %v7895
    %v8042 = vadd.f32 %v7692, %v7900
    %v8043 = vadd.f32 %v7693, %v7903
    %v8044 = vadd.f32 %v7694, %v7908
    %v8045 = vadd.f32 %v7695, %v7911
    %v8046 = vadd.f32 %v7696, %v7916
    %v8047 = vadd.f32 %v7697, %v7919
    %v8048 = vadd.f32 %v7698, %v7924
    %v8049 = vadd.f32 %v7699, %v7927
    %v8050 = vadd.f32 %v7700, %v7932
    %v8051 = vadd.f32 %v7701, %v7935
    %v8052 = vadd.f32 %v7702, %v7940
    %v8053 = vadd.f32 %v7703, %v7943
    %v8054 = vadd.f32 %v7704, %v7948
    %v8055 = vadd.f32 %v7705, %v7951
    %v8056 = vadd.f32 %v7706, %v7956
    %v8057 = vadd.f32 %v7707, %v7959
    %v8058 = vadd.f32 %v7708, %v7964
    %v8059 = vadd.f32 %v7709, %v7967
    %v8060 = vadd.f32 %v7710, %v7972
    %v8061 = vadd.f32 %v7711, %v7975
    %v8062 = vadd.f32 %v7712, %v7980
    %v8063 = vadd.f32 %v7713, %v7983
    %v8064 = vadd.f32 %v7714, %v7988
    %v8065 = vadd.f32 %v7715, %v7991
    %v8066 = vadd.f32 %v7716, %v7996
    %v8067 = vadd.f32 %v7717, %v7999
    %v8068 = vadd.f32 %v7718, %v8004
    %v8069 = vadd.f32 %v7719, %v8007
    %v8070 = vadd.f32 %v7720, %v8012
    %v8071 = vadd.f32 %v7721, %v8015
    %v8072 = vadd.f32 %v7722, %v8020
    %v8073 = vadd.f32 %v7723, %v8023
    %s8074 = scalar_lea.vmem %s2, 28
    %v8075 = vld [vmem:[%s8074] sm:$0xf]
    %v8077 = vsel %vm5722, %v5695, 0
    %v8080 = vsel %vm5722, %v5696, 0
    %v8083 = vsel %vm5722, %v5697, 0
    %v8086 = vsel %vm5722, %v5698, 0
    %v8089 = vsel %vm5722, %v5699, 0
    %v8092 = vsel %vm5722, %v5700, 0
    %v8095 = vsel %vm5722, %v5701, 0
    %v8098 = vsel %vm5722, %v5702, 0
    %v8101 = vsel %vm5722, %v5703, 0
    %v8104 = vsel %vm5722, %v5704, 0
    %v8107 = vsel %vm5722, %v5705, 0
    %v8110 = vsel %vm5722, %v5706, 0
    %v8113 = vsel %vm5722, %v5707, 0
    %v8116 = vsel %vm5722, %v5708, 0
    %v8119 = vsel %vm5722, %v5709, 0
    %v8122 = vsel %vm5722, %v5710, 0
    %v8125 = vsel %vm5722, %v5711, 0
    %v8128 = vsel %vm5722, %v5712, 0
    %v8131 = vsel %vm5722, %v5713, 0
    %v8134 = vsel %vm5722, %v5714, 0
    %v8137 = vsel %vm5722, %v5715, 0
    %v8140 = vsel %vm5722, %v5716, 0
    %v8143 = vsel %vm5722, %v5717, 0
    %v8146 = vsel %vm5722, %v5718, 0
    %v8149 = vsel %vm5795, %v8075, 0
    %8151 = vmatprep.subr.bf16.mxu0 0
    %8152 = vmatpush1.bf16.msra.mxu0 %v8149
    %8153 = vmatprep.subr.bf16.mxu0 0
    %8154 = vmatpush1.bf16.msra.mxu0 0
    %8155 = vmatprep.subr.bf16.mxu0 0
    %8156 = vmatpush1.bf16.msra.mxu0 0
    %8157 = vmatprep.subr.bf16.mxu0 0
    %8158 = vmatpush1.bf16.msra.mxu0 0
    %8159 = vmatprep.subr.bf16.mxu0 0
    %8160 = vmatpush1.bf16.msra.mxu0 0
    %8161 = vmatprep.subr.bf16.mxu0 0
    %8162 = vmatpush1.bf16.msra.mxu0 0
    %8163 = vmatprep.subr.bf16.mxu0 0
    %8164 = vmatpush1.bf16.msra.mxu0 0
    %8165 = vmatprep.subr.bf16.mxu0 0
    %8166 = vmatpush1.bf16.msra.mxu0 0
    %8167 = vmatprep.subr.bf16.mxu0 0
    %8168 = vmatpush1.bf16.msra.mxu0 0
    %8169 = vmatprep.subr.bf16.mxu0 0
    %8170 = vmatpush1.bf16.msra.mxu0 0
    %8171 = vmatprep.subr.bf16.mxu0 0
    %8172 = vmatpush1.bf16.msra.mxu0 0
    %8173 = vmatprep.subr.bf16.mxu0 0
    %8174 = vmatpush1.bf16.msra.mxu0 0
    %8175 = vmatprep.subr.bf16.mxu0 0
    %8176 = vmatpush1.bf16.msra.mxu0 0
    %8177 = vmatprep.subr.bf16.mxu0 0
    %8178 = vmatpush1.bf16.msra.mxu0 0
    %8179 = vmatprep.subr.bf16.mxu0 0
    %8180 = vmatpush1.bf16.msra.mxu0 0
    %8181 = vmatprep.subr.bf16.mxu0 0
    %8182 = vmatpush1.bf16.msra.mxu0 0
    %8183 = vmatprep.mubr.bf16.mxu0 0
    %8184 = vmatmul.mubr.bf16.gmra.mrb[0].mxu0 %v8077
    %v8185 = vpop.f32.mrb[0].mxu0
    %v8186 = vadd.f32 0.0, %v8185
    %v8187 = vpop.f32.mrb[0].mxu0
    %v8188 = vpop.f32.mrb[0].mxu0
    %v8189 = vadd.f32 0.0, %v8188
    %v8190 = vpop.f32.mrb[0].mxu0
    %8191 = vmatprep.mubr.bf16.mxu0 0
    %8192 = vmatmul.mubr.bf16.gmra.mrb[0].mxu0 %v8080
    %v8193 = vpop.f32.mrb[0].mxu0
    %v8194 = vadd.f32 0.0, %v8193
    %v8195 = vpop.f32.mrb[0].mxu0
    %v8196 = vpop.f32.mrb[0].mxu0
    %v8197 = vadd.f32 0.0, %v8196
    %v8198 = vpop.f32.mrb[0].mxu0
    %8199 = vmatprep.mubr.bf16.mxu0 0
    %8200 = vmatmul.mubr.bf16.gmra.mrb[0].mxu0 %v8083
    %v8201 = vpop.f32.mrb[0].mxu0
    %v8202 = vadd.f32 0.0, %v8201
    %v8203 = vpop.f32.mrb[0].mxu0
    %v8204 = vpop.f32.mrb[0].mxu0
    %v8205 = vadd.f32 0.0, %v8204
    %v8206 = vpop.f32.mrb[0].mxu0
    %8207 = vmatprep.mubr.bf16.mxu0 0
    %8208 = vmatmul.mubr.bf16.gmra.mrb[0].mxu0 %v8086
    %v8209 = vpop.f32.mrb[0].mxu0
    %v8210 = vadd.f32 0.0, %v8209
    %v8211 = vpop.f32.mrb[0].mxu0
    %v8212 = vpop.f32.mrb[0].mxu0
    %v8213 = vadd.f32 0.0, %v8212
    %v8214 = vpop.f32.mrb[0].mxu0
    %8215 = vmatprep.mubr.bf16.mxu0 0
    %8216 = vmatmul.mubr.bf16.gmra.mrb[0].mxu0 %v8089
    %v8217 = vpop.f32.mrb[0].mxu0
    %v8218 = vadd.f32 0.0, %v8217
    %v8219 = vpop.f32.mrb[0].mxu0
    %v8220 = vpop.f32.mrb[0].mxu0
    %v8221 = vadd.f32 0.0, %v8220
    %v8222 = vpop.f32.mrb[0].mxu0
    %8223 = vmatprep.mubr.bf16.mxu0 0
    %8224 = vmatmul.mubr.bf16.gmra.mrb[0].mxu0 %v8092
    %v8225 = vpop.f32.mrb[0].mxu0
    %v8226 = vadd.f32 0.0, %v8225
    %v8227 = vpop.f32.mrb[0].mxu0
    %v8228 = vpop.f32.mrb[0].mxu0
    %v8229 = vadd.f32 0.0, %v8228
    %v8230 = vpop.f32.mrb[0].mxu0
    %8231 = vmatprep.mubr.bf16.mxu0 0
    %8232 = vmatmul.mubr.bf16.gmra.mrb[0].mxu0 %v8095
    %v8233 = vpop.f32.mrb[0].mxu0
    %v8234 = vadd.f32 0.0, %v8233
    %v8235 = vpop.f32.mrb[0].mxu0
    %v8236 = vpop.f32.mrb[0].mxu0
    %v8237 = vadd.f32 0.0, %v8236
    %v8238 = vpop.f32.mrb[0].mxu0
    %8239 = vmatprep.mubr.bf16.mxu0 0
    %8240 = vmatmul.mubr.bf16.gmra.mrb[0].mxu0 %v8098
    %v8241 = vpop.f32.mrb[0].mxu0
    %v8242 = vadd.f32 0.0, %v8241
    %v8243 = vpop.f32.mrb[0].mxu0
    %v8244 = vpop.f32.mrb[0].mxu0
    %v8245 = vadd.f32 0.0, %v8244
    %v8246 = vpop.f32.mrb[0].mxu0
    %8247 = vmatprep.mubr.bf16.mxu0 0
    %8248 = vmatmul.mubr.bf16.gmra.mrb[0].mxu0 %v8101
    %v8249 = vpop.f32.mrb[0].mxu0
    %v8250 = vadd.f32 0.0, %v8249
    %v8251 = vpop.f32.mrb[0].mxu0
    %v8252 = vpop.f32.mrb[0].mxu0
    %v8253 = vadd.f32 0.0, %v8252
    %v8254 = vpop.f32.mrb[0].mxu0
    %8255 = vmatprep.mubr.bf16.mxu0 0
    %8256 = vmatmul.mubr.bf16.gmra.mrb[0].mxu0 %v8104
    %v8257 = vpop.f32.mrb[0].mxu0
    %v8258 = vadd.f32 0.0, %v8257
    %v8259 = vpop.f32.mrb[0].mxu0
    %v8260 = vpop.f32.mrb[0].mxu0
    %v8261 = vadd.f32 0.0, %v8260
    %v8262 = vpop.f32.mrb[0].mxu0
    %8263 = vmatprep.mubr.bf16.mxu0 0
    %8264 = vmatmul.mubr.bf16.gmra.mrb[0].mxu0 %v8107
    %v8265 = vpop.f32.mrb[0].mxu0
    %v8266 = vadd.f32 0.0, %v8265
    %v8267 = vpop.f32.mrb[0].mxu0
    %v8268 = vpop.f32.mrb[0].mxu0
    %v8269 = vadd.f32 0.0, %v8268
    %v8270 = vpop.f32.mrb[0].mxu0
    %8271 = vmatprep.mubr.bf16.mxu0 0
    %8272 = vmatmul.mubr.bf16.gmra.mrb[0].mxu0 %v8110
    %v8273 = vpop.f32.mrb[0].mxu0
    %v8274 = vadd.f32 0.0, %v8273
    %v8275 = vpop.f32.mrb[0].mxu0
    %v8276 = vpop.f32.mrb[0].mxu0
    %v8277 = vadd.f32 0.0, %v8276
    %v8278 = vpop.f32.mrb[0].mxu0
    %8279 = vmatprep.mubr.bf16.mxu0 0
    %8280 = vmatmul.mubr.bf16.gmra.mrb[0].mxu0 %v8113
    %v8281 = vpop.f32.mrb[0].mxu0
    %v8282 = vadd.f32 0.0, %v8281
    %v8283 = vpop.f32.mrb[0].mxu0
    %v8284 = vpop.f32.mrb[0].mxu0
    %v8285 = vadd.f32 0.0, %v8284
    %v8286 = vpop.f32.mrb[0].mxu0
    %8287 = vmatprep.mubr.bf16.mxu0 0
    %8288 = vmatmul.mubr.bf16.gmra.mrb[0].mxu0 %v8116
    %v8289 = vpop.f32.mrb[0].mxu0
    %v8290 = vadd.f32 0.0, %v8289
    %v8291 = vpop.f32.mrb[0].mxu0
    %v8292 = vpop.f32.mrb[0].mxu0
    %v8293 = vadd.f32 0.0, %v8292
    %v8294 = vpop.f32.mrb[0].mxu0
    %8295 = vmatprep.mubr.bf16.mxu0 0
    %8296 = vmatmul.mubr.bf16.gmra.mrb[0].mxu0 %v8119
    %v8297 = vpop.f32.mrb[0].mxu0
    %v8298 = vadd.f32 0.0, %v8297
    %v8299 = vpop.f32.mrb[0].mxu0
    %v8300 = vpop.f32.mrb[0].mxu0
    %v8301 = vadd.f32 0.0, %v8300
    %v8302 = vpop.f32.mrb[0].mxu0
    %8303 = vmatprep.mubr.bf16.mxu0 0
    %8304 = vmatmul.mubr.bf16.gmra.mrb[0].mxu0 %v8122
    %v8305 = vpop.f32.mrb[0].mxu0
    %v8306 = vadd.f32 0.0, %v8305
    %v8307 = vpop.f32.mrb[0].mxu0
    %v8308 = vpop.f32.mrb[0].mxu0
    %v8309 = vadd.f32 0.0, %v8308
    %v8310 = vpop.f32.mrb[0].mxu0
    %8311 = vmatprep.mubr.bf16.mxu0 0
    %8312 = vmatmul.mubr.bf16.gmra.mrb[0].mxu0 %v8125
    %v8313 = vpop.f32.mrb[0].mxu0
    %v8314 = vadd.f32 0.0, %v8313
    %v8315 = vpop.f32.mrb[0].mxu0
    %v8316 = vpop.f32.mrb[0].mxu0
    %v8317 = vadd.f32 0.0, %v8316
    %v8318 = vpop.f32.mrb[0].mxu0
    %8319 = vmatprep.mubr.bf16.mxu0 0
    %8320 = vmatmul.mubr.bf16.gmra.mrb[0].mxu0 %v8128
    %v8321 = vpop.f32.mrb[0].mxu0
    %v8322 = vadd.f32 0.0, %v8321
    %v8323 = vpop.f32.mrb[0].mxu0
    %v8324 = vpop.f32.mrb[0].mxu0
    %v8325 = vadd.f32 0.0, %v8324
    %v8326 = vpop.f32.mrb[0].mxu0
    %8327 = vmatprep.mubr.bf16.mxu0 0
    %8328 = vmatmul.mubr.bf16.gmra.mrb[0].mxu0 %v8131
    %v8329 = vpop.f32.mrb[0].mxu0
    %v8330 = vadd.f32 0.0, %v8329
    %v8331 = vpop.f32.mrb[0].mxu0
    %v8332 = vpop.f32.mrb[0].mxu0
    %v8333 = vadd.f32 0.0, %v8332
    %v8334 = vpop.f32.mrb[0].mxu0
    %8335 = vmatprep.mubr.bf16.mxu0 0
    %8336 = vmatmul.mubr.bf16.gmra.mrb[0].mxu0 %v8134
    %v8337 = vpop.f32.mrb[0].mxu0
    %v8338 = vadd.f32 0.0, %v8337
    %v8339 = vpop.f32.mrb[0].mxu0
    %v8340 = vpop.f32.mrb[0].mxu0
    %v8341 = vadd.f32 0.0, %v8340
    %v8342 = vpop.f32.mrb[0].mxu0
    %8343 = vmatprep.mubr.bf16.mxu0 0
    %8344 = vmatmul.mubr.bf16.gmra.mrb[0].mxu0 %v8137
    %v8345 = vpop.f32.mrb[0].mxu0
    %v8346 = vadd.f32 0.0, %v8345
    %v8347 = vpop.f32.mrb[0].mxu0
    %v8348 = vpop.f32.mrb[0].mxu0
    %v8349 = vadd.f32 0.0, %v8348
    %v8350 = vpop.f32.mrb[0].mxu0
    %8351 = vmatprep.mubr.bf16.mxu0 0
    %8352 = vmatmul.mubr.bf16.gmra.mrb[0].mxu0 %v8140
    %v8353 = vpop.f32.mrb[0].mxu0
    %v8354 = vadd.f32 0.0, %v8353
    %v8355 = vpop.f32.mrb[0].mxu0
    %v8356 = vpop.f32.mrb[0].mxu0
    %v8357 = vadd.f32 0.0, %v8356
    %v8358 = vpop.f32.mrb[0].mxu0
    %8359 = vmatprep.mubr.bf16.mxu0 0
    %8360 = vmatmul.mubr.bf16.gmra.mrb[0].mxu0 %v8143
    %v8361 = vpop.f32.mrb[0].mxu0
    %v8362 = vadd.f32 0.0, %v8361
    %v8363 = vpop.f32.mrb[0].mxu0
    %v8364 = vpop.f32.mrb[0].mxu0
    %v8365 = vadd.f32 0.0, %v8364
    %v8366 = vpop.f32.mrb[0].mxu0
    %8367 = vmatprep.mubr.bf16.mxu0 0
    %8368 = vmatmul.mubr.bf16.gmra.mrb[0].mxu0 %v8146
    %v8369 = vpop.f32.mrb[0].mxu0
    %v8370 = vadd.f32 0.0, %v8369
    %v8371 = vpop.f32.mrb[0].mxu0
    %v8372 = vpop.f32.mrb[0].mxu0
    %v8373 = vadd.f32 0.0, %v8372
    %v8374 = vpop.f32.mrb[0].mxu0
    %8375 = vdwg.mxu0
    %v8376 = vadd.f32 %v8026, %v8186
    %v8377 = vadd.f32 %v8027, %v8189
    %v8378 = vadd.f32 %v8028, %v8194
    %v8379 = vadd.f32 %v8029, %v8197
    %v8380 = vadd.f32 %v8030, %v8202
    %v8381 = vadd.f32 %v8031, %v8205
    %v8382 = vadd.f32 %v8032, %v8210
    %v8383 = vadd.f32 %v8033, %v8213
    %v8384 = vadd.f32 %v8034, %v8218
    %v8385 = vadd.f32 %v8035, %v8221
    %v8386 = vadd.f32 %v8036, %v8226
    %v8387 = vadd.f32 %v8037, %v8229
    %v8388 = vadd.f32 %v8038, %v8234
    %v8389 = vadd.f32 %v8039, %v8237
    %v8390 = vadd.f32 %v8040, %v8242
    %v8391 = vadd.f32 %v8041, %v8245
    %v8392 = vadd.f32 %v8042, %v8250
    %v8393 = vadd.f32 %v8043, %v8253
    %v8394 = vadd.f32 %v8044, %v8258
    %v8395 = vadd.f32 %v8045, %v8261
    %v8396 = vadd.f32 %v8046, %v8266
    %v8397 = vadd.f32 %v8047, %v8269
    %v8398 = vadd.f32 %v8048, %v8274
    %v8399 = vadd.f32 %v8049, %v8277
    %v8400 = vadd.f32 %v8050, %v8282
    %v8401 = vadd.f32 %v8051, %v8285
    %v8402 = vadd.f32 %v8052, %v8290
    %v8403 = vadd.f32 %v8053, %v8293
    %v8404 = vadd.f32 %v8054, %v8298
    %v8405 = vadd.f32 %v8055, %v8301
    %v8406 = vadd.f32 %v8056, %v8306
    %v8407 = vadd.f32 %v8057, %v8309
    %v8408 = vadd.f32 %v8058, %v8314
    %v8409 = vadd.f32 %v8059, %v8317
    %v8410 = vadd.f32 %v8060, %v8322
    %v8411 = vadd.f32 %v8061, %v8325
    %v8412 = vadd.f32 %v8062, %v8330
    %v8413 = vadd.f32 %v8063, %v8333
    %v8414 = vadd.f32 %v8064, %v8338
    %v8415 = vadd.f32 %v8065, %v8341
    %v8416 = vadd.f32 %v8066, %v8346
    %v8417 = vadd.f32 %v8067, %v8349
    %v8418 = vadd.f32 %v8068, %v8354
    %v8419 = vadd.f32 %v8069, %v8357
    %v8420 = vadd.f32 %v8070, %v8362
    %v8421 = vadd.f32 %v8071, %v8365
    %v8422 = vadd.f32 %v8072, %v8370
    %v8423 = vadd.f32 %v8073, %v8373
    %v8424 = vld [vmem:[%s4] sm:$0xff]
    %v8425 = vld [vmem:[%s4 + $0x8] sm:$0xff]
    %v8426 = vld [vmem:[%s4 + $0x10] sm:$0xff]
    %v8427 = vld [vmem:[%s4 + $0x18] sm:$0xff]
    %v8428 = vld [vmem:[%s4 + $0x20] sm:$0xff]
    %v8429 = vld [vmem:[%s4 + $0x28] sm:$0xff]
    %v8430 = vld [vmem:[%s4 + $0x30] sm:$0xff]
    %v8431 = vld [vmem:[%s4 + $0x38] sm:$0xff]
    %v8432 = vld [vmem:[%s4 + $0x40] sm:$0xff]
    %v8433 = vld [vmem:[%s4 + $0x48] sm:$0xff]
    %v8434 = vld [vmem:[%s4 + $0x50] sm:$0xff]
    %v8435 = vld [vmem:[%s4 + $0x58] sm:$0xff]
    %v8436 = vld [vmem:[%s4 + $0x60] sm:$0xff]
    %v8437 = vld [vmem:[%s4 + $0x68] sm:$0xff]
    %v8438 = vld [vmem:[%s4 + $0x70] sm:$0xff]
    %v8439 = vld [vmem:[%s4 + $0x78] sm:$0x1]
    %v8440 = vld [vmem:[%s4 + $0x80] sm:$0x1]
    %v8441 = vld [vmem:[%s4 + $0x88] sm:$0x1]
    %v8442 = vld [vmem:[%s3] sm:$0x1]
    %v8444 = vlaneseq
    %v8445 = vshrl.u32 %v8444, 7
    %v8446 = vsub.s32 0, %v8445
    %v8447 = vrot.slane %v8442, %v8446
    %8449 = vmatprep.subr.mxu0 0.0
    %8450 = vmatpush1.msra.mxu0 %v8376
    %8451 = vmatprep.subr.mxu0 0.0
    %8452 = vmatpush1.msra.mxu0 %v8377
    %8453 = vmatprep.subr.mxu0 0.0
    %8454 = vmatpush1.msra.mxu0 %v8378
    %8455 = vmatprep.subr.mxu0 0.0
    %8456 = vmatpush1.msra.mxu0 %v8379
    %8457 = vmatprep.subr.mxu0 0.0
    %8458 = vmatpush1.msra.mxu0 %v8380
    %8459 = vmatprep.subr.mxu0 0.0
    %8460 = vmatpush1.msra.mxu0 %v8381
    %8461 = vmatprep.subr.mxu0 0.0
    %8462 = vmatpush1.msra.mxu0 %v8382
    %8463 = vmatprep.subr.mxu0 0.0
    %8464 = vmatpush1.msra.mxu0 %v8383
    %8465 = vmatprep.subr.mxu0 0.0
    %8466 = vmatpush1.msra.mxu0 %v8384
    %8467 = vmatprep.subr.mxu0 0.0
    %8468 = vmatpush1.msra.mxu0 %v8385
    %8469 = vmatprep.subr.mxu0 0.0
    %8470 = vmatpush1.msra.mxu0 %v8386
    %8471 = vmatprep.subr.mxu0 0.0
    %8472 = vmatpush1.msra.mxu0 %v8387
    %8473 = vmatprep.subr.mxu0 0.0
    %8474 = vmatpush1.msra.mxu0 %v8388
    %8475 = vmatprep.subr.mxu0 0.0
    %8476 = vmatpush1.msra.mxu0 %v8389
    %8477 = vmatprep.subr.mxu0 0.0
    %8478 = vmatpush1.msra.mxu0 %v8390
    %8479 = vmatprep.subr.mxu0 0.0
    %8480 = vmatpush1.msra.mxu0 %v8391
    %8481 = vmatprep.subr.mxu0 0.0
    %8482 = vmatpush1.msra.mxu0 %v8392
    %8483 = vmatprep.subr.mxu0 0.0
    %8484 = vmatpush1.msra.mxu0 %v8393
    %8485 = vmatprep.subr.mxu0 0.0
    %8486 = vmatpush1.msra.mxu0 %v8394
    %8487 = vmatprep.subr.mxu0 0.0
    %8488 = vmatpush1.msra.mxu0 %v8395
    %8489 = vmatprep.subr.mxu0 0.0
    %8490 = vmatpush1.msra.mxu0 %v8396
    %8491 = vmatprep.subr.mxu0 0.0
    %8492 = vmatpush1.msra.mxu0 %v8397
    %8493 = vmatprep.subr.mxu0 0.0
    %8494 = vmatpush1.msra.mxu0 %v8398
    %8495 = vmatprep.subr.mxu0 0.0
    %8496 = vmatpush1.msra.mxu0 %v8399
    %8497 = vmatprep.subr.mxu0 0.0
    %8498 = vmatpush1.msra.mxu0 %v8400
    %8499 = vmatprep.subr.mxu0 0.0
    %8500 = vmatpush1.msra.mxu0 %v8401
    %8501 = vmatprep.subr.mxu0 0.0
    %8502 = vmatpush1.msra.mxu0 %v8402
    %8503 = vmatprep.subr.mxu0 0.0
    %8504 = vmatpush1.msra.mxu0 %v8403
    %8505 = vmatprep.subr.mxu0 0.0
    %8506 = vmatpush1.msra.mxu0 %v8404
    %8507 = vmatprep.subr.mxu0 0.0
    %8508 = vmatpush1.msra.mxu0 %v8405
    %8509 = vmatprep.subr.mxu0 0.0
    %8510 = vmatpush1.msra.mxu0 %v8406
    %8511 = vmatprep.subr.mxu0 0.0
    %8512 = vmatpush1.msra.mxu0 %v8407
    %8513 = vmatprep.mubr.f32.mxu0 %v8425
    %8514 = vmatmul.mubr.f32.gmra.mrb[0].mxu0 %v8424
    %v8515 = vpop.f32.mrb[0].mxu0
    %v8516 = vadd.f32 %v8447, %v8515
    %v8517 = vpop.f32.mrb[0].mxu0
    %8518 = vmatprep.mubr.f32.mxu0 %v8428
    %8519 = vmatmul.mubr.f32.gmra.mrb[0].mxu0 %v8427
    %v8520 = vpop.f32.mrb[0].mxu0
    %v8521 = vadd.f32 %v8447, %v8520
    %v8522 = vpop.f32.mrb[0].mxu0
    %8523 = vmatprep.mubr.f32.mxu0 %v8431
    %8524 = vmatmul.mubr.f32.gmra.mrb[0].mxu0 %v8430
    %v8525 = vpop.f32.mrb[0].mxu0
    %v8526 = vadd.f32 %v8447, %v8525
    %v8527 = vpop.f32.mrb[0].mxu0
    %8528 = vmatprep.mubr.f32.mxu0 %v8434
    %8529 = vmatmul.mubr.f32.gmra.mrb[0].mxu0 %v8433
    %v8530 = vpop.f32.mrb[0].mxu0
    %v8531 = vadd.f32 %v8447, %v8530
    %v8532 = vpop.f32.mrb[0].mxu0
    %8533 = vmatprep.mubr.f32.mxu0 %v8437
    %8534 = vmatmul.mubr.f32.gmra.mrb[0].mxu0 %v8436
    %v8535 = vpop.f32.mrb[0].mxu0
    %v8536 = vadd.f32 %v8447, %v8535
    %v8537 = vpop.f32.mrb[0].mxu0
    %8538 = vmatprep.mubr.f32.mxu0 %v8440
    %8539 = vmatmul.mubr.f32.gmra.mrb[0].mxu0 %v8439
    %v8540 = vpop.f32.mrb[0].mxu0
    %v8541 = vadd.f32 %v8447, %v8540
    %v8542 = vpop.f32.mrb[0].mxu0
    %8543 = vdwg.mxu0
    %8544 = vmatprep.subr.mxu0 0.0
    %8545 = vmatpush1.msra.mxu0 %v8408
    %8546 = vmatprep.subr.mxu0 0.0
    %8547 = vmatpush1.msra.mxu0 %v8409
    %8548 = vmatprep.subr.mxu0 0.0
    %8549 = vmatpush1.msra.mxu0 %v8410
    %8550 = vmatprep.subr.mxu0 0.0
    %8551 = vmatpush1.msra.mxu0 %v8411
    %8552 = vmatprep.subr.mxu0 0.0
    %8553 = vmatpush1.msra.mxu0 %v8412
    %8554 = vmatprep.subr.mxu0 0.0
    %8555 = vmatpush1.msra.mxu0 %v8413
    %8556 = vmatprep.subr.mxu0 0.0
    %8557 = vmatpush1.msra.mxu0 %v8414
    %8558 = vmatprep.subr.mxu0 0.0
    %8559 = vmatpush1.msra.mxu0 %v8415
    %8560 = vmatprep.subr.mxu0 0.0
    %8561 = vmatpush1.msra.mxu0 %v8416
    %8562 = vmatprep.subr.mxu0 0.0
    %8563 = vmatpush1.msra.mxu0 %v8417
    %8564 = vmatprep.subr.mxu0 0.0
    %8565 = vmatpush1.msra.mxu0 %v8418
    %8566 = vmatprep.subr.mxu0 0.0
    %8567 = vmatpush1.msra.mxu0 %v8419
    %8568 = vmatprep.subr.mxu0 0.0
    %8569 = vmatpush1.msra.mxu0 %v8420
    %8570 = vmatprep.subr.mxu0 0.0
    %8571 = vmatpush1.msra.mxu0 %v8421
    %8572 = vmatprep.subr.mxu0 0.0
    %8573 = vmatpush1.msra.mxu0 %v8422
    %8574 = vmatprep.subr.mxu0 0.0
    %8575 = vmatpush1.msra.mxu0 %v8423
    %8576 = vmatprep.subr.mxu0 0.0
    %8577 = vmatpush1.msra.mxu0 0.0
    %8578 = vmatprep.subr.mxu0 0.0
    %8579 = vmatpush1.msra.mxu0 0.0
    %8580 = vmatprep.subr.mxu0 0.0
    %8581 = vmatpush1.msra.mxu0 0.0
    %8582 = vmatprep.subr.mxu0 0.0
    %8583 = vmatpush1.msra.mxu0 0.0
    %8584 = vmatprep.subr.mxu0 0.0
    %8585 = vmatpush1.msra.mxu0 0.0
    %8586 = vmatprep.subr.mxu0 0.0
    %8587 = vmatpush1.msra.mxu0 0.0
    %8588 = vmatprep.subr.mxu0 0.0
    %8589 = vmatpush1.msra.mxu0 0.0
    %8590 = vmatprep.subr.mxu0 0.0
    %8591 = vmatpush1.msra.mxu0 0.0
    %8592 = vmatprep.subr.mxu0 0.0
    %8593 = vmatpush1.msra.mxu0 0.0
    %8594 = vmatprep.subr.mxu0 0.0
    %8595 = vmatpush1.msra.mxu0 0.0
    %8596 = vmatprep.subr.mxu0 0.0
    %8597 = vmatpush1.msra.mxu0 0.0
    %8598 = vmatprep.subr.mxu0 0.0
    %8599 = vmatpush1.msra.mxu0 0.0
    %8600 = vmatprep.subr.mxu0 0.0
    %8601 = vmatpush1.msra.mxu0 0.0
    %8602 = vmatprep.subr.mxu0 0.0
    %8603 = vmatpush1.msra.mxu0 0.0
    %8604 = vmatprep.subr.mxu0 0.0
    %8605 = vmatpush1.msra.mxu0 0.0
    %8606 = vmatprep.subr.mxu0 0.0
    %8607 = vmatpush1.msra.mxu0 0.0
    %8608 = vmatprep.mubr.f32.mxu0 0.0
    %8609 = vmatmul.mubr.f32.gmra.mrb[0].mxu0 %v8426
    %v8610 = vpop.f32.mrb[0].mxu0
    %v8611 = vadd.f32 %v8516, %v8610
    %v8612 = vpop.f32.mrb[0].mxu0
    %8613 = vmatprep.mubr.f32.mxu0 0.0
    %8614 = vmatmul.mubr.f32.gmra.mrb[0].mxu0 %v8429
    %v8615 = vpop.f32.mrb[0].mxu0
    %v8616 = vadd.f32 %v8521, %v8615
    %v8617 = vpop.f32.mrb[0].mxu0
    %8618 = vmatprep.mubr.f32.mxu0 0.0
    %8619 = vmatmul.mubr.f32.gmra.mrb[0].mxu0 %v8432
    %v8620 = vpop.f32.mrb[0].mxu0
    %v8621 = vadd.f32 %v8526, %v8620
    %v8622 = vpop.f32.mrb[0].mxu0
    %8623 = vmatprep.mubr.f32.mxu0 0.0
    %8624 = vmatmul.mubr.f32.gmra.mrb[0].mxu0 %v8435
    %v8625 = vpop.f32.mrb[0].mxu0
    %v8626 = vadd.f32 %v8531, %v8625
    %v8627 = vpop.f32.mrb[0].mxu0
    %8628 = vmatprep.mubr.f32.mxu0 0.0
    %8629 = vmatmul.mubr.f32.gmra.mrb[0].mxu0 %v8438
    %v8630 = vpop.f32.mrb[0].mxu0
    %v8631 = vadd.f32 %v8536, %v8630
    %v8632 = vpop.f32.mrb[0].mxu0
    %8633 = vmatprep.mubr.f32.mxu0 0.0
    %8634 = vmatmul.mubr.f32.gmra.mrb[0].mxu0 %v8441
    %v8635 = vpop.f32.mrb[0].mxu0
    %v8636 = vadd.f32 %v8541, %v8635
    %v8637 = vpop.f32.mrb[0].mxu0
    %8638 = vdwg.mxu0
    %vm8639 = vcmp.gt.f32.partialorder %v8611, 0.0
    %vm8640 = vcmp.gt.f32.partialorder %v8616, 0.0
    %vm8641 = vcmp.gt.f32.partialorder %v8621, 0.0
    %vm8642 = vcmp.gt.f32.partialorder %v8626, 0.0
    %vm8643 = vcmp.gt.f32.partialorder %v8631, 0.0
    %vm8644 = vcmp.gt.f32.partialorder %v8636, 0.0
    %v8645 = vmul.f32 %v8611, 0.01
    %v8646 = vmul.f32 %v8616, 0.01
    %v8647 = vmul.f32 %v8621, 0.01
    %v8648 = vmul.f32 %v8626, 0.01
    %v8649 = vmul.f32 %v8631, 0.01
    %v8650 = vmul.f32 %v8636, 0.01
    %v8651 = vsel %vm8639, %v8611, %v8645
    %v8652 = vsel %vm8640, %v8616, %v8646
    %v8653 = vsel %vm8641, %v8621, %v8647
    %v8654 = vsel %vm8642, %v8626, %v8648
    %v8655 = vsel %vm8643, %v8631, %v8649
    %v8656 = vsel %vm8644, %v8636, %v8650
    %v8657 = vld [vmem:[%s5] sm:$0xff]
    %v8658 = vld [vmem:[%s5 + $0x8] sm:$0xff]
    %v8659 = vld [vmem:[%s5 + $0x10] sm:$0xf]
    %vm8660 = vcmask 334848
    %v8662 = vsel %vm8660, %v8657, 0
    %v8665 = vsel %vm8660, %v8658, 0
    %v8668 = vsel %vm8660, %v8659, 0
    %v8671 = vsel %vm2800, %v8656, 0
    %8673 = vmatprep.subr.mxu0 0.0
    %8674 = vmatpush1.msra.mxu0 %v8651
    %8675 = vmatprep.subr.mxu0 0.0
    %8676 = vmatpush1.msra.mxu0 %v8652
    %8677 = vmatprep.subr.mxu0 0.0
    %8678 = vmatpush1.msra.mxu0 %v8653
    %8679 = vmatprep.subr.mxu0 0.0
    %8680 = vmatpush1.msra.mxu0 %v8654
    %8681 = vmatprep.subr.mxu0 0.0
    %8682 = vmatpush1.msra.mxu0 %v8655
    %8683 = vmatprep.subr.mxu0 0.0
    %8684 = vmatpush1.msra.mxu0 %v8671
    %8685 = vmatprep.subr.mxu0 0.0
    %8686 = vmatpush1.msra.mxu0 0.0
    %8687 = vmatprep.subr.mxu0 0.0
    %8688 = vmatpush1.msra.mxu0 0.0
    %8689 = vmatprep.subr.mxu0 0.0
    %8690 = vmatpush1.msra.mxu0 0.0
    %8691 = vmatprep.subr.mxu0 0.0
    %8692 = vmatpush1.msra.mxu0 0.0
    %8693 = vmatprep.subr.mxu0 0.0
    %8694 = vmatpush1.msra.mxu0 0.0
    %8695 = vmatprep.subr.mxu0 0.0
    %8696 = vmatpush1.msra.mxu0 0.0
    %8697 = vmatprep.subr.mxu0 0.0
    %8698 = vmatpush1.msra.mxu0 0.0
    %8699 = vmatprep.subr.mxu0 0.0
    %8700 = vmatpush1.msra.mxu0 0.0
    %8701 = vmatprep.subr.mxu0 0.0
    %8702 = vmatpush1.msra.mxu0 0.0
    %8703 = vmatprep.subr.mxu0 0.0
    %8704 = vmatpush1.msra.mxu0 0.0
    %8705 = vmatprep.subr.mxu0 0.0
    %8706 = vmatpush1.msra.mxu0 0.0
    %8707 = vmatprep.subr.mxu0 0.0
    %8708 = vmatpush1.msra.mxu0 0.0
    %8709 = vmatprep.subr.mxu0 0.0
    %8710 = vmatpush1.msra.mxu0 0.0
    %8711 = vmatprep.subr.mxu0 0.0
    %8712 = vmatpush1.msra.mxu0 0.0
    %8713 = vmatprep.subr.mxu0 0.0
    %8714 = vmatpush1.msra.mxu0 0.0
    %8715 = vmatprep.subr.mxu0 0.0
    %8716 = vmatpush1.msra.mxu0 0.0
    %8717 = vmatprep.subr.mxu0 0.0
    %8718 = vmatpush1.msra.mxu0 0.0
    %8719 = vmatprep.subr.mxu0 0.0
    %8720 = vmatpush1.msra.mxu0 0.0
    %8721 = vmatprep.subr.mxu0 0.0
    %8722 = vmatpush1.msra.mxu0 0.0
    %8723 = vmatprep.subr.mxu0 0.0
    %8724 = vmatpush1.msra.mxu0 0.0
    %8725 = vmatprep.subr.mxu0 0.0
    %8726 = vmatpush1.msra.mxu0 0.0
    %8727 = vmatprep.subr.mxu0 0.0
    %8728 = vmatpush1.msra.mxu0 0.0
    %8729 = vmatprep.subr.mxu0 0.0
    %8730 = vmatpush1.msra.mxu0 0.0
    %8731 = vmatprep.subr.mxu0 0.0
    %8732 = vmatpush1.msra.mxu0 0.0
    %8733 = vmatprep.subr.mxu0 0.0
    %8734 = vmatpush1.msra.mxu0 0.0
    %8735 = vmatprep.subr.mxu0 0.0
    %8736 = vmatpush1.msra.mxu0 0.0
    %8737 = vmatprep.mubr.f32.mxu0 0.0
    %8738 = vmatmul.mubr.f32.gmra.mrb[0].mxu0 %v8662
    %v8739 = vpop.f32.mrb[0].mxu0
    %v8740 = vadd.f32 0.0, %v8739
    %v8741 = vpop.f32.mrb[0].mxu0
    %8742 = vmatprep.mubr.f32.mxu0 0.0
    %8743 = vmatmul.mubr.f32.gmra.mrb[0].mxu0 %v8665
    %v8744 = vpop.f32.mrb[0].mxu0
    %v8745 = vadd.f32 0.0, %v8744
    %v8746 = vpop.f32.mrb[0].mxu0
    %8747 = vmatprep.mubr.f32.mxu0 0.0
    %8748 = vmatmul.mubr.f32.gmra.mrb[0].mxu0 %v8668
    %v8749 = vpop.f32.mrb[0].mxu0
    %v8750 = vadd.f32 0.0, %v8749
    %v8751 = vpop.f32.mrb[0].mxu0
    %8752 = vdwg.mxu0
    %v8753 = vld [vmem:[%s6] sm:$0xff]
    %v8754 = vld [vmem:[%s6 + $0x8] sm:$0xff]
    %v8755 = vld [vmem:[%s6 + $0x10] sm:$0xff]
    %v8756 = vld [vmem:[%s6 + $0x18] sm:$0xff]
    %v8757 = vld [vmem:[%s7] sm:$0x1]
    %v8759 = vlaneseq
    %v8760 = vshrl.u32 %v8759, 7
    %v8761 = vsub.s32 0, %v8760
    %v8762 = vrot.slane %v8757, %v8761
    %vm8764 = vcmask 261120
    %v8766 = vsel %vm8764, %v8740, 0
    %v8769 = vsel %vm8764, %v8745, 0
    %v8772 = vsel %vm8764, %v8750, 0
    %8774 = vmatprep.subr.mxu0 0.0
    %8775 = vmatpush1.msra.mxu0 %v8753
    %8776 = vmatprep.subr.mxu0 0.0
    %8777 = vmatpush1.msra.mxu0 %v8754
    %8778 = vmatprep.subr.mxu0 0.0
    %8779 = vmatpush1.msra.mxu0 %v8755
    %8780 = vmatprep.subr.mxu0 0.0
    %8781 = vmatpush1.msra.mxu0 %v8756
    %8782 = vmatprep.subr.mxu0 0.0
    %8783 = vmatpush1.msra.mxu0 0.0
    %8784 = vmatprep.subr.mxu0 0.0
    %8785 = vmatpush1.msra.mxu0 0.0
    %8786 = vmatprep.subr.mxu0 0.0
    %8787 = vmatpush1.msra.mxu0 0.0
    %8788 = vmatprep.subr.mxu0 0.0
    %8789 = vmatpush1.msra.mxu0 0.0
    %8790 = vmatprep.subr.mxu0 0.0
    %8791 = vmatpush1.msra.mxu0 0.0
    %8792 = vmatprep.subr.mxu0 0.0
    %8793 = vmatpush1.msra.mxu0 0.0
    %8794 = vmatprep.subr.mxu0 0.0
    %8795 = vmatpush1.msra.mxu0 0.0
    %8796 = vmatprep.subr.mxu0 0.0
    %8797 = vmatpush1.msra.mxu0 0.0
    %8798 = vmatprep.subr.mxu0 0.0
    %8799 = vmatpush1.msra.mxu0 0.0
    %8800 = vmatprep.subr.mxu0 0.0
    %8801 = vmatpush1.msra.mxu0 0.0
    %8802 = vmatprep.subr.mxu0 0.0
    %8803 = vmatpush1.msra.mxu0 0.0
    %8804 = vmatprep.subr.mxu0 0.0
    %8805 = vmatpush1.msra.mxu0 0.0
    %8806 = vmatprep.subr.mxu0 0.0
    %8807 = vmatpush1.msra.mxu0 0.0
    %8808 = vmatprep.subr.mxu0 0.0
    %8809 = vmatpush1.msra.mxu0 0.0
    %8810 = vmatprep.subr.mxu0 0.0
    %8811 = vmatpush1.msra.mxu0 0.0
    %8812 = vmatprep.subr.mxu0 0.0
    %8813 = vmatpush1.msra.mxu0 0.0
    %8814 = vmatprep.subr.mxu0 0.0
    %8815 = vmatpush1.msra.mxu0 0.0
    %8816 = vmatprep.subr.mxu0 0.0
    %8817 = vmatpush1.msra.mxu0 0.0
    %8818 = vmatprep.subr.mxu0 0.0
    %8819 = vmatpush1.msra.mxu0 0.0
    %8820 = vmatprep.subr.mxu0 0.0
    %8821 = vmatpush1.msra.mxu0 0.0
    %8822 = vmatprep.subr.mxu0 0.0
    %8823 = vmatpush1.msra.mxu0 0.0
    %8824 = vmatprep.subr.mxu0 0.0
    %8825 = vmatpush1.msra.mxu0 0.0
    %8826 = vmatprep.subr.mxu0 0.0
    %8827 = vmatpush1.msra.mxu0 0.0
    %8828 = vmatprep.subr.mxu0 0.0
    %8829 = vmatpush1.msra.mxu0 0.0
    %8830 = vmatprep.subr.mxu0 0.0
    %8831 = vmatpush1.msra.mxu0 0.0
    %8832 = vmatprep.subr.mxu0 0.0
    %8833 = vmatpush1.msra.mxu0 0.0
    %8834 = vmatprep.subr.mxu0 0.0
    %8835 = vmatpush1.msra.mxu0 0.0
    %8836 = vmatprep.subr.mxu0 0.0
    %8837 = vmatpush1.msra.mxu0 0.0
    %8838 = vmatprep.mubr.f32.mxu0 0.0
    %8839 = vmatmul.mubr.f32.gmra.mrb[0].mxu0 %v8766
    %v8840 = vpop.f32.mrb[0].mxu0
    %v8841 = vadd.f32 %v8762, %v8840
    %v8842 = vpop.f32.mrb[0].mxu0
    %8843 = vmatprep.mubr.f32.mxu0 0.0
    %8844 = vmatmul.mubr.f32.gmra.mrb[0].mxu0 %v8769
    %v8845 = vpop.f32.mrb[0].mxu0
    %v8846 = vadd.f32 %v8762, %v8845
    %v8847 = vpop.f32.mrb[0].mxu0
    %8848 = vmatprep.mubr.f32.mxu0 0.0
    %8849 = vmatmul.mubr.f32.gmra.mrb[0].mxu0 %v8772
    %v8850 = vpop.f32.mrb[0].mxu0
    %v8851 = vadd.f32 %v8762, %v8850
    %v8852 = vpop.f32.mrb[0].mxu0
    %8853 = vdwg.mxu0
    %vm8854 = vcmp.gt.f32.partialorder %v8841, 0.0
    %vm8855 = vcmp.gt.f32.partialorder %v8846, 0.0
    %vm8856 = vcmp.gt.f32.partialorder %v8851, 0.0
    %v8857 = vmul.f32 %v8841, 0.01
    %v8858 = vmul.f32 %v8846, 0.01
    %v8859 = vmul.f32 %v8851, 0.01
    %v8860 = vsel %vm8854, %v8841, %v8857
    %v8861 = vsel %vm8855, %v8846, %v8858
    %v8862 = vsel %vm8856, %v8851, %v8859
    %vm8863 = vcmask 130048
    %v8864 = vsel %vm8863, %v8860, 0.0
    %v8865 = vsel %vm8863, %v8861, 0.0
    %v8866 = vadd.f32 %v8864, %v8865
    %vm8867 = vcmask 125952
    %v8868 = vsel %vm8867, %v8862, 0.0
    %v8869 = vadd.f32 %v8866, %v8868
    %v8870 = vrot.slane %v8869, 4
    %v8871 = vadd.f32 %v8869, %v8870
    %v8872 = vrot.slane %v8871, 2
    %v8873 = vadd.f32 %v8871, %v8872
    %v8874 = vrot.slane %v8873, 1
    %v8875 = vadd.f32 %v8873, %v8874
    %v8876 = vrcp.pop 20.0
    %v8877 = vmul.f32 %v8875, %v8876
    %v8878 = vld [vmem:[%s8] sm:$0xff]
    %v8879 = vld [vmem:[%s8 + $0x8] sm:$0xff]
    %v8880 = vld [vmem:[%s9] sm:$0x1]
    %v8882 = vsel %vm8863, %v8877, 0
    %8884 = vmatprep.subr.mxu0 0.0
    %8885 = vmatpush1.msra.mxu0 %v8878
    %8886 = vmatprep.subr.mxu0 0.0
    %8887 = vmatpush1.msra.mxu0 %v8879
    %8888 = vmatprep.subr.mxu0 0.0
    %8889 = vmatpush1.msra.mxu0 0.0
    %8890 = vmatprep.subr.mxu0 0.0
    %8891 = vmatpush1.msra.mxu0 0.0
    %8892 = vmatprep.subr.mxu0 0.0
    %8893 = vmatpush1.msra.mxu0 0.0
    %8894 = vmatprep.subr.mxu0 0.0
    %8895 = vmatpush1.msra.mxu0 0.0
    %8896 = vmatprep.subr.mxu0 0.0
    %8897 = vmatpush1.msra.mxu0 0.0
    %8898 = vmatprep.subr.mxu0 0.0
    %8899 = vmatpush1.msra.mxu0 0.0
    %8900 = vmatprep.subr.mxu0 0.0
    %8901 = vmatpush1.msra.mxu0 0.0
    %8902 = vmatprep.subr.mxu0 0.0
    %8903 = vmatpush1.msra.mxu0 0.0
    %8904 = vmatprep.subr.mxu0 0.0
    %8905 = vmatpush1.msra.mxu0 0.0
    %8906 = vmatprep.subr.mxu0 0.0
    %8907 = vmatpush1.msra.mxu0 0.0
    %8908 = vmatprep.subr.mxu0 0.0
    %8909 = vmatpush1.msra.mxu0 0.0
    %8910 = vmatprep.subr.mxu0 0.0
    %8911 = vmatpush1.msra.mxu0 0.0
    %8912 = vmatprep.subr.mxu0 0.0
    %8913 = vmatpush1.msra.mxu0 0.0
    %8914 = vmatprep.subr.mxu0 0.0
    %8915 = vmatpush1.msra.mxu0 0.0
    %8916 = vmatprep.subr.mxu0 0.0
    %8917 = vmatpush1.msra.mxu0 0.0
    %8918 = vmatprep.subr.mxu0 0.0
    %8919 = vmatpush1.msra.mxu0 0.0
    %8920 = vmatprep.subr.mxu0 0.0
    %8921 = vmatpush1.msra.mxu0 0.0
    %8922 = vmatprep.subr.mxu0 0.0
    %8923 = vmatpush1.msra.mxu0 0.0
    %8924 = vmatprep.subr.mxu0 0.0
    %8925 = vmatpush1.msra.mxu0 0.0
    %8926 = vmatprep.subr.mxu0 0.0
    %8927 = vmatpush1.msra.mxu0 0.0
    %8928 = vmatprep.subr.mxu0 0.0
    %8929 = vmatpush1.msra.mxu0 0.0
    %8930 = vmatprep.subr.mxu0 0.0
    %8931 = vmatpush1.msra.mxu0 0.0
    %8932 = vmatprep.subr.mxu0 0.0
    %8933 = vmatpush1.msra.mxu0 0.0
    %8934 = vmatprep.subr.mxu0 0.0
    %8935 = vmatpush1.msra.mxu0 0.0
    %8936 = vmatprep.subr.mxu0 0.0
    %8937 = vmatpush1.msra.mxu0 0.0
    %8938 = vmatprep.subr.mxu0 0.0
    %8939 = vmatpush1.msra.mxu0 0.0
    %8940 = vmatprep.subr.mxu0 0.0
    %8941 = vmatpush1.msra.mxu0 0.0
    %8942 = vmatprep.subr.mxu0 0.0
    %8943 = vmatpush1.msra.mxu0 0.0
    %8944 = vmatprep.subr.mxu0 0.0
    %8945 = vmatpush1.msra.mxu0 0.0
    %8946 = vmatprep.subr.mxu0 0.0
    %8947 = vmatpush1.msra.mxu0 0.0
    %8948 = vmatprep.mubr.f32.mxu0 0.0
    %8949 = vmatmul.mubr.f32.gmra.mrb[0].mxu0 %v8882
    %v8950 = vpop.f32.mrb[0].mxu0
    %v8951 = vadd.f32 %v8880, %v8950
    %v8952 = vpop.f32.mrb[0].mxu0
    %8953 = vdwg.mxu0
    %v8954 = vmax.f32 %v8951, 0.0
    %v8955 = vld [vmem:[%s10] sm:$0xff]
    %v8956 = vld [vmem:[%s10 + $0x8] sm:$0xff]
    %v8957 = vld [vmem:[%s10 + $0x10] sm:$0xff]
    %v8958 = vld [vmem:[%s10 + $0x18] sm:$0xff]
    %v8959 = vld [vmem:[%s10 + $0x20] sm:$0xff]
    %v8960 = vld [vmem:[%s10 + $0x28] sm:$0xff]
    %v8961 = vld [vmem:[%s10 + $0x30] sm:$0xff]
    %v8962 = vld [vmem:[%s10 + $0x38] sm:$0xff]
    %v8963 = vld [vmem:[%s11] sm:$0x1]
    %vm8964 = vcmask 523264
    %v8966 = vsel %vm8964, %v8954, 0
    %8968 = vmatprep.subr.mxu0 0.0
    %8969 = vmatpush1.msra.mxu0 %v8955
    %8970 = vmatprep.subr.mxu0 0.0
    %8971 = vmatpush1.msra.mxu0 %v8956
    %8972 = vmatprep.subr.mxu0 0.0
    %8973 = vmatpush1.msra.mxu0 %v8957
    %8974 = vmatprep.subr.mxu0 0.0
    %8975 = vmatpush1.msra.mxu0 %v8958
    %8976 = vmatprep.subr.mxu0 0.0
    %8977 = vmatpush1.msra.mxu0 %v8959
    %8978 = vmatprep.subr.mxu0 0.0
    %8979 = vmatpush1.msra.mxu0 %v8960
    %8980 = vmatprep.subr.mxu0 0.0
    %8981 = vmatpush1.msra.mxu0 %v8961
    %8982 = vmatprep.subr.mxu0 0.0
    %8983 = vmatpush1.msra.mxu0 %v8962
    %8984 = vmatprep.subr.mxu0 0.0
    %8985 = vmatpush1.msra.mxu0 0.0
    %8986 = vmatprep.subr.mxu0 0.0
    %8987 = vmatpush1.msra.mxu0 0.0
    %8988 = vmatprep.subr.mxu0 0.0
    %8989 = vmatpush1.msra.mxu0 0.0
    %8990 = vmatprep.subr.mxu0 0.0
    %8991 = vmatpush1.msra.mxu0 0.0
    %8992 = vmatprep.subr.mxu0 0.0
    %8993 = vmatpush1.msra.mxu0 0.0
    %8994 = vmatprep.subr.mxu0 0.0
    %8995 = vmatpush1.msra.mxu0 0.0
    %8996 = vmatprep.subr.mxu0 0.0
    %8997 = vmatpush1.msra.mxu0 0.0
    %8998 = vmatprep.subr.mxu0 0.0
    %8999 = vmatpush1.msra.mxu0 0.0
    %9000 = vmatprep.subr.mxu0 0.0
    %9001 = vmatpush1.msra.mxu0 0.0
    %9002 = vmatprep.subr.mxu0 0.0
    %9003 = vmatpush1.msra.mxu0 0.0
    %9004 = vmatprep.subr.mxu0 0.0
    %9005 = vmatpush1.msra.mxu0 0.0
    %9006 = vmatprep.subr.mxu0 0.0
    %9007 = vmatpush1.msra.mxu0 0.0
    %9008 = vmatprep.subr.mxu0 0.0
    %9009 = vmatpush1.msra.mxu0 0.0
    %9010 = vmatprep.subr.mxu0 0.0
    %9011 = vmatpush1.msra.mxu0 0.0
    %9012 = vmatprep.subr.mxu0 0.0
    %9013 = vmatpush1.msra.mxu0 0.0
    %9014 = vmatprep.subr.mxu0 0.0
    %9015 = vmatpush1.msra.mxu0 0.0
    %9016 = vmatprep.subr.mxu0 0.0
    %9017 = vmatpush1.msra.mxu0 0.0
    %9018 = vmatprep.subr.mxu0 0.0
    %9019 = vmatpush1.msra.mxu0 0.0
    %9020 = vmatprep.subr.mxu0 0.0
    %9021 = vmatpush1.msra.mxu0 0.0
    %9022 = vmatprep.subr.mxu0 0.0
    %9023 = vmatpush1.msra.mxu0 0.0
    %9024 = vmatprep.subr.mxu0 0.0
    %9025 = vmatpush1.msra.mxu0 0.0
    %9026 = vmatprep.subr.mxu0 0.0
    %9027 = vmatpush1.msra.mxu0 0.0
    %9028 = vmatprep.subr.mxu0 0.0
    %9029 = vmatpush1.msra.mxu0 0.0
    %9030 = vmatprep.subr.mxu0 0.0
    %9031 = vmatpush1.msra.mxu0 0.0
    %9032 = vmatprep.mubr.f32.mxu0 0.0
    %9033 = vmatmul.mubr.f32.gmra.mrb[0].mxu0 %v8966
    %v9034 = vpop.f32.mrb[0].mxu0
    %v9035 = vadd.f32 %v8963, %v9034
    %v9036 = vpop.f32.mrb[0].mxu0
    %9037 = vdwg.mxu0
    %9038 = vst [vmem:[#allocation2] sm:$0x1] %v9035
    // Predicated region
    $region50: #{tpu_custom_call.1} parent=1 // pred_check
      _
    $region51: #{tpu_custom_call.1} parent=1 // pred_check_branch
      %9040 = sbr.rel (0) target = $region53
    $region52: #{tpu_custom_call.1} parent=1 // pred_region
      %s9042 = ssub.s32 16, 16
      %9043 = vsyncadd [#allocation3], %s9042
      %s9045 = sshll.u32 [#allocation2], 4
      %s9046 = int_to_ptr.vmem [resolvable:$true] %s9045
      %9048 = dma.vmem_to_hbm [thread:$0]  %s9046, 16, %s12, [#allocation3]
    $region53: #{tpu_custom_call.1} parent=1 // pred_fallthru
      _
    // Predicated region
    $region54: #{tpu_custom_call.1} parent=1 // pred_check
      _
    $region55: #{tpu_custom_call.1} parent=1 // pred_check_branch
      %9050 = sbr.rel (0) target = $region57
    $region56: #{tpu_custom_call.1} parent=1 // pred_region
      %9051 = dma.done [#allocation3], 16
    $region57: #{tpu_custom_call.1} parent=1 // pred_fallthru
      _
    %9052 = vsyncpa [#allocation3], 1

</llo_original>
